<compile_context>
chip_gen: v7x
topology: tpu7x:2x2x1
jax: 0.10.0
libtpu: 0.0.40
codegen_flags: <defaults>
</compile_context>

<pallas_src>
import jax
import jax.numpy as jnp
from jax.experimental import pallas as pl
from jax.experimental.pallas import tpu as pltpu

D_IN, D1, D2, D_OUT = 32 * 32 * 3, 512, 256, 10
D_OUT_PAD = 128   # lane-dense padded fc3 width
TB_MAX = 512      # max batch tile: fills the 256-row MXU on v6e/v7x


def mlp_kernel(x_ref, w1_ref, b1_ref, w2_ref, b2_ref, w3_ref, b3_ref, o_ref):
    # f32 -> bf16 cast fused into the kernel (no separate XLA pre-pass).
    x = x_ref[...].astype(jnp.bfloat16)
    # fc1 + ReLU  (bf16 operands, f32 accumulation on the MXU)
    h1 = jnp.dot(x, w1_ref[...], preferred_element_type=jnp.float32)
    h1 = jnp.maximum(h1 + b1_ref[...], 0.0).astype(jnp.bfloat16)
    # fc2 + ReLU
    h2 = jnp.dot(h1, w2_ref[...], preferred_element_type=jnp.float32)
    h2 = jnp.maximum(h2 + b2_ref[...], 0.0).astype(jnp.bfloat16)
    # fc3 (no activation), output lane-padded to 128, stored as bf16
    out = jnp.dot(h2, w3_ref[...], preferred_element_type=jnp.float32)
    o_ref[...] = (out + b3_ref[...]).astype(o_ref.dtype)


def _round_up(n, m):
    return ((n + m - 1) // m) * m


def _pick_batch_tiling(B):
    # Tile up to TB_MAX; shrink for small batches so the grid always has an
    # even number of tiles >= 2 (both v7x TensorCores get balanced work).
    tb = min(TB_MAX, _round_up(max(1, pl.cdiv(B, 2)), 8))
    n_tiles = max(2, pl.cdiv(B, tb))
    if n_tiles % 2:
        n_tiles += 1
    return tb, n_tiles, tb * n_tiles


def _build_in_specs(tb, single_buffer_weights):
    const = lambda i: (0, 0)   # weights/biases resident across the batch grid
    kw = {}
    if single_buffer_weights:
        # Constant block index -> never re-fetched; one buffer is enough.
        kw = dict(pipeline_mode=pl.Buffered(1))
    return [
        pl.BlockSpec((tb, D_IN), lambda i: (i, 0)),   # x: batch-tiled, pipelined
        pl.BlockSpec((D_IN, D1), const, **kw),        # w1 (resident)
        pl.BlockSpec((1, D1), const, **kw),           # b1
        pl.BlockSpec((D1, D2), const, **kw),          # w2 (resident)
        pl.BlockSpec((1, D2), const, **kw),           # b2
        pl.BlockSpec((D2, D_OUT_PAD), const, **kw),   # w3 (padded)
        pl.BlockSpec((1, D_OUT_PAD), const, **kw),    # b3 (padded)
    ]


def simple_nn_forward(x_nchw, params):
    w1, b1, w2, b2, w3, b3 = params
    B = x_nchw.shape[0]

    # glue: x.view(-1, 32*32*3); stays f32 (bf16 cast happens in-kernel).
    x = x_nchw.reshape(B, D_IN)

    tb, n_tiles, B_pad = _pick_batch_tiling(B)
    if B_pad != B:
        x = jnp.pad(x, ((0, B_pad - B), (0, 0)))

    # bf16 weights; fc3 zero-padded 10 -> 128 lanes for dense output stores.
    w1b = w1.astype(jnp.bfloat16)
    w2b = w2.astype(jnp.bfloat16)
    w3b = jnp.pad(w3, ((0, 0), (0, D_OUT_PAD - D_OUT))).astype(jnp.bfloat16)
    b1f = b1.astype(jnp.float32)
    b2f = b2.astype(jnp.float32)
    b3f = jnp.pad(b3, ((0, 0), (0, D_OUT_PAD - D_OUT))).astype(jnp.float32)

    flops = 2 * B_pad * (D_IN * D1 + D1 * D2 + D2 * D_OUT_PAD)
    bytes_accessed = (
        x.size * 4                                   # f32 activations in
        + (w1b.size + w2b.size + w3b.size) * 2       # bf16 weights
        + (b1f.size + b2f.size + b3f.size) * 4       # f32 biases
        + B_pad * D_OUT_PAD * 2                      # bf16 output
    )

    def run(single_buffer_weights):
        return pl.pallas_call(
            mlp_kernel,
            out_shape=jax.ShapeDtypeStruct((B_pad, D_OUT_PAD), jnp.bfloat16),
            grid_spec=pltpu.PrefetchScalarGridSpec(
                num_scalar_prefetch=0,
                grid=(n_tiles,),
                in_specs=_build_in_specs(tb, single_buffer_weights),
                out_specs=pl.BlockSpec((tb, D_OUT_PAD), lambda i: (i, 0)),
            ),
            compiler_params=pltpu.CompilerParams(
                dimension_semantics=("parallel",),   # shard batch tiles over TCs
                vmem_limit_bytes=48 << 20,           # ~22 MiB footprint @ TB=512
            ),
            cost_estimate=pl.CostEstimate(
                flops=flops, transcendentals=0, bytes_accessed=bytes_accessed),
        )(x, w1b, b1f, w2b, b2f, w3b, b3f)

    try:
        # Preferred: single-buffered resident weights (saves ~3.4 MiB VMEM).
        out = jax.block_until_ready(run(True))
    except Exception:
        # Fallback if this JAX build rejects pipeline_mode=pl.Buffered(1).
        out = jax.block_until_ready(run(False))

    # Strip batch padding and fc3 lane padding; return f32 logits.
    return out[:B, :D_OUT].astype(jnp.float32)


def init_params(key):
    # Deterministic synthetic init (PyTorch Linear shapes, stored transposed).
    k1, k2, k3, k4, k5, k6 = jax.random.split(key, 6)
    w1 = jax.random.normal(k1, (D_IN, D1), jnp.float32) * (1.0 / jnp.sqrt(D_IN))
    b1 = jax.random.normal(k2, (1, D1), jnp.float32) * 0.01
    w2 = jax.random.normal(k3, (D1, D2), jnp.float32) * (1.0 / jnp.sqrt(D1))
    b2 = jax.random.normal(k4, (1, D2), jnp.float32) * 0.01
    w3 = jax.random.normal(k5, (D2, D_OUT), jnp.float32) * (1.0 / jnp.sqrt(D2))
    b3 = jax.random.normal(k6, (1, D_OUT), jnp.float32) * 0.01
    return (w1, b1, w2, b2, w3, b3)


def reference_forward(x_nchw, params):
    # Same math as the kernel (bf16 operands, f32 accumulation) in plain JAX.
    w1, b1, w2, b2, w3, b3 = params
    x = x_nchw.reshape(x_nchw.shape[0], -1).astype(jnp.bfloat16)
    h1 = jnp.dot(x, w1.astype(jnp.bfloat16),
                 preferred_element_type=jnp.float32) + b1
    h1 = jnp.maximum(h1, 0.0).astype(jnp.bfloat16)
    h2 = jnp.dot(h1, w2.astype(jnp.bfloat16),
                 preferred_element_type=jnp.float32) + b2
    h2 = jnp.maximum(h2, 0.0).astype(jnp.bfloat16)
    return jnp.dot(h2, w3.astype(jnp.bfloat16),
                   preferred_element_type=jnp.float32) + b3


if __name__ == "__main__":
    key = jax.random.PRNGKey(0)
    k_x, k_p = jax.random.split(key)
    # CIFAR-like input: batch=2, NCHW (2, 3, 32, 32)
    x = jax.random.normal(k_x, (2, 3, 32, 32), jnp.float32)
    params = init_params(k_p)

    out = simple_nn_forward(x, params)
    out = jax.block_until_ready(out)

    ref = reference_forward(x, params)
    assert out.shape == (2, 10)
    assert jnp.allclose(out, ref, atol=2e-2, rtol=2e-2)
    print("KERNEL_OK")
</pallas_src>

<mosaic_0001>
module attributes {stable_mosaic.version = 11 : i64} {
  func.func @mlp_kernel(%arg0: i32, %arg1: memref<8x3072xf32, #tpu.memory_space<vmem>>, %arg2: memref<3072x512xbf16, #tpu.memory_space<vmem>>, %arg3: memref<1x512xf32, #tpu.memory_space<vmem>>, %arg4: memref<512x256xbf16, #tpu.memory_space<vmem>>, %arg5: memref<1x256xf32, #tpu.memory_space<vmem>>, %arg6: memref<256x128xbf16, #tpu.memory_space<vmem>>, %arg7: memref<1x128xf32, #tpu.memory_space<vmem>>, %arg8: memref<8x128xbf16, #tpu.memory_space<vmem>>) attributes {dimension_semantics = [#tpu.dimension_semantics<parallel>], iteration_bounds = array<i64: 2>, scalar_prefetch = 0 : i64, scratch_operands = 0 : i64, tpu.core_type = #tpu.core_type<tc>, window_params = [{transform_indices = @transform_0, window_bounds = array<i64: 8, 3072>}, {pipeline_mode = #tpu.pipeline_mode<synchronous>, transform_indices = @transform_1, window_bounds = array<i64: 3072, 512>}, {pipeline_mode = #tpu.pipeline_mode<synchronous>, transform_indices = @transform_2, window_bounds = array<i64: 1, 512>}, {pipeline_mode = #tpu.pipeline_mode<synchronous>, transform_indices = @transform_3, window_bounds = array<i64: 512, 256>}, {pipeline_mode = #tpu.pipeline_mode<synchronous>, transform_indices = @transform_4, window_bounds = array<i64: 1, 256>}, {pipeline_mode = #tpu.pipeline_mode<synchronous>, transform_indices = @transform_5, window_bounds = array<i64: 256, 128>}, {pipeline_mode = #tpu.pipeline_mode<synchronous>, transform_indices = @transform_6, window_bounds = array<i64: 1, 128>}, {transform_indices = @transform_7, window_bounds = array<i64: 8, 128>}]} {
    %c0 = arith.constant 0 : index
    %c0_0 = arith.constant 0 : index
    %0 = vector.load %arg1[%c0, %c0_0] : memref<8x3072xf32, #tpu.memory_space<vmem>>, vector<8x3072xf32>
    %1 = arith.truncf %0 : vector<8x3072xf32> to vector<8x3072xbf16>
    %c0_1 = arith.constant 0 : index
    %c0_2 = arith.constant 0 : index
    %2 = vector.load %arg2[%c0_1, %c0_2] : memref<3072x512xbf16, #tpu.memory_space<vmem>>, vector<3072x512xbf16>
    %cst = arith.constant dense<0.000000e+00> : vector<8x512xf32>
    %3 = tpu.matmul %1, %2, %cst {dimension_numbers = #tpu.dot_dimension_numbers<[1], [0], [0], [1], [0, 0, 1, 1], [], []>} : vector<8x3072xbf16>, vector<3072x512xbf16>, vector<8x512xf32> -> vector<8x512xf32>
    %c0_3 = arith.constant 0 : index
    %c0_4 = arith.constant 0 : index
    %4 = vector.load %arg3[%c0_3, %c0_4] : memref<1x512xf32, #tpu.memory_space<vmem>>, vector<1x512xf32>
    %5 = vector.broadcast %4 : vector<1x512xf32> to vector<8x512xf32>
    %6 = arith.addf %3, %5 : vector<8x512xf32>
    %cst_5 = arith.constant 0.000000e+00 : f32
    %7 = vector.broadcast %cst_5 : f32 to vector<8x512xf32>
    %8 = arith.maximumf %6, %7 : vector<8x512xf32>
    %9 = arith.truncf %8 : vector<8x512xf32> to vector<8x512xbf16>
    %c0_6 = arith.constant 0 : index
    %c0_7 = arith.constant 0 : index
    %10 = vector.load %arg4[%c0_6, %c0_7] : memref<512x256xbf16, #tpu.memory_space<vmem>>, vector<512x256xbf16>
    %cst_8 = arith.constant dense<0.000000e+00> : vector<8x256xf32>
    %11 = tpu.matmul %9, %10, %cst_8 {dimension_numbers = #tpu.dot_dimension_numbers<[1], [0], [0], [1], [0, 0, 1, 1], [], []>} : vector<8x512xbf16>, vector<512x256xbf16>, vector<8x256xf32> -> vector<8x256xf32>
    %c0_9 = arith.constant 0 : index
    %c0_10 = arith.constant 0 : index
    %12 = vector.load %arg5[%c0_9, %c0_10] : memref<1x256xf32, #tpu.memory_space<vmem>>, vector<1x256xf32>
    %13 = vector.broadcast %12 : vector<1x256xf32> to vector<8x256xf32>
    %14 = arith.addf %11, %13 : vector<8x256xf32>
    %cst_11 = arith.constant 0.000000e+00 : f32
    %15 = vector.broadcast %cst_11 : f32 to vector<8x256xf32>
    %16 = arith.maximumf %14, %15 : vector<8x256xf32>
    %17 = arith.truncf %16 : vector<8x256xf32> to vector<8x256xbf16>
    %c0_12 = arith.constant 0 : index
    %c0_13 = arith.constant 0 : index
    %18 = vector.load %arg6[%c0_12, %c0_13] : memref<256x128xbf16, #tpu.memory_space<vmem>>, vector<256x128xbf16>
    %cst_14 = arith.constant dense<0.000000e+00> : vector<8x128xf32>
    %19 = tpu.matmul %17, %18, %cst_14 {dimension_numbers = #tpu.dot_dimension_numbers<[1], [0], [0], [1], [0, 0, 1, 1], [], []>} : vector<8x256xbf16>, vector<256x128xbf16>, vector<8x128xf32> -> vector<8x128xf32>
    %c0_15 = arith.constant 0 : index
    %c0_16 = arith.constant 0 : index
    %20 = vector.load %arg7[%c0_15, %c0_16] : memref<1x128xf32, #tpu.memory_space<vmem>>, vector<1x128xf32>
    %21 = vector.broadcast %20 : vector<1x128xf32> to vector<8x128xf32>
    %22 = arith.addf %19, %21 : vector<8x128xf32>
    %23 = arith.truncf %22 : vector<8x128xf32> to vector<8x128xbf16>
    %c0_17 = arith.constant 0 : index
    %c0_18 = arith.constant 0 : index
    %24 = vector.load %arg8[%c0_17, %c0_18] : memref<8x128xbf16, #tpu.memory_space<vmem>>, vector<8x128xbf16>
    tpu.vector_store %arg8[%c0_17, %c0_18], %23 {strides = array<i32>} : memref<8x128xbf16, #tpu.memory_space<vmem>>, vector<8x128xbf16>,
    return
  }
  func.func @transform_0(%arg0: i32) -> (i32, i32) {
    %c0_i32 = arith.constant 0 : i32
    %c0_i32_0 = arith.constant 0 : i32
    return %arg0, %c0_i32 : i32, i32
  }
  func.func @transform_1(%arg0: i32) -> (i32, i32) {
    %c0_i32 = arith.constant 0 : i32
    %c0_i32_0 = arith.constant 0 : i32
    %c0_i32_1 = arith.constant 0 : i32
    return %c0_i32, %c0_i32_0 : i32, i32
  }
  func.func @transform_2(%arg0: i32) -> (i32, i32) {
    %c0_i32 = arith.constant 0 : i32
    %c0_i32_0 = arith.constant 0 : i32
    %c0_i32_1 = arith.constant 0 : i32
    return %c0_i32, %c0_i32_0 : i32, i32
  }
  func.func @transform_3(%arg0: i32) -> (i32, i32) {
    %c0_i32 = arith.constant 0 : i32
    %c0_i32_0 = arith.constant 0 : i32
    %c0_i32_1 = arith.constant 0 : i32
    return %c0_i32, %c0_i32_0 : i32, i32
  }
  func.func @transform_4(%arg0: i32) -> (i32, i32) {
    %c0_i32 = arith.constant 0 : i32
    %c0_i32_0 = arith.constant 0 : i32
    %c0_i32_1 = arith.constant 0 : i32
    return %c0_i32, %c0_i32_0 : i32, i32
  }
  func.func @transform_5(%arg0: i32) -> (i32, i32) {
    %c0_i32 = arith.constant 0 : i32
    %c0_i32_0 = arith.constant 0 : i32
    %c0_i32_1 = arith.constant 0 : i32
    return %c0_i32, %c0_i32_0 : i32, i32
  }
  func.func @transform_6(%arg0: i32) -> (i32, i32) {
    %c0_i32 = arith.constant 0 : i32
    %c0_i32_0 = arith.constant 0 : i32
    %c0_i32_1 = arith.constant 0 : i32
    return %c0_i32, %c0_i32_0 : i32, i32
  }
  func.func @transform_7(%arg0: i32) -> (i32, i32) {
    %c0_i32 = arith.constant 0 : i32
    %c0_i32_0 = arith.constant 0 : i32
    return %arg0, %c0_i32 : i32, i32
  }
}

module attributes {stable_mosaic.version = 11 : i64} {
  func.func @mlp_kernel(%arg0: i32, %arg1: memref<8x3072xf32, #tpu.memory_space<vmem>>, %arg2: memref<3072x512xbf16, #tpu.memory_space<vmem>>, %arg3: memref<1x512xf32, #tpu.memory_space<vmem>>, %arg4: memref<512x256xbf16, #tpu.memory_space<vmem>>, %arg5: memref<1x256xf32, #tpu.memory_space<vmem>>, %arg6: memref<256x128xbf16, #tpu.memory_space<vmem>>, %arg7: memref<1x128xf32, #tpu.memory_space<vmem>>, %arg8: memref<8x128xbf16, #tpu.memory_space<vmem>>) attributes {dimension_semantics = [#tpu.dimension_semantics<parallel>], iteration_bounds = array<i64: 2>, scalar_prefetch = 0 : i64, scratch_operands = 0 : i64, tpu.core_type = #tpu.core_type<tc>, window_params = [{transform_indices = @transform_0, window_bounds = array<i64: 8, 3072>}, {pipeline_mode = #tpu.pipeline_mode<synchronous>, transform_indices = @transform_1, window_bounds = array<i64: 3072, 512>}, {pipeline_mode = #tpu.pipeline_mode<synchronous>, transform_indices = @transform_2, window_bounds = array<i64: 1, 512>}, {pipeline_mode = #tpu.pipeline_mode<synchronous>, transform_indices = @transform_3, window_bounds = array<i64: 512, 256>}, {pipeline_mode = #tpu.pipeline_mode<synchronous>, transform_indices = @transform_4, window_bounds = array<i64: 1, 256>}, {pipeline_mode = #tpu.pipeline_mode<synchronous>, transform_indices = @transform_5, window_bounds = array<i64: 256, 128>}, {pipeline_mode = #tpu.pipeline_mode<synchronous>, transform_indices = @transform_6, window_bounds = array<i64: 1, 128>}, {transform_indices = @transform_7, window_bounds = array<i64: 8, 128>}]} {
    %c0 = arith.constant 0 : index
    %c0_0 = arith.constant 0 : index
    %0 = vector.load %arg1[%c0, %c0_0] : memref<8x3072xf32, #tpu.memory_space<vmem>>, vector<8x3072xf32>
    %1 = arith.truncf %0 : vector<8x3072xf32> to vector<8x3072xbf16>
    %c0_1 = arith.constant 0 : index
    %c0_2 = arith.constant 0 : index
    %2 = vector.load %arg2[%c0_1, %c0_2] : memref<3072x512xbf16, #tpu.memory_space<vmem>>, vector<3072x512xbf16>
    %cst = arith.constant dense<0.000000e+00> : vector<8x512xf32>
    %3 = tpu.matmul %1, %2, %cst {dimension_numbers = #tpu.dot_dimension_numbers<[1], [0], [0], [1], [0, 0, 1, 1], [], []>} : vector<8x3072xbf16>, vector<3072x512xbf16>, vector<8x512xf32> -> vector<8x512xf32>
    %c0_3 = arith.constant 0 : index
    %c0_4 = arith.constant 0 : index
    %4 = vector.load %arg3[%c0_3, %c0_4] : memref<1x512xf32, #tpu.memory_space<vmem>>, vector<1x512xf32>
    %5 = vector.broadcast %4 : vector<1x512xf32> to vector<8x512xf32>
    %6 = arith.addf %3, %5 : vector<8x512xf32>
    %cst_5 = arith.constant 0.000000e+00 : f32
    %7 = vector.broadcast %cst_5 : f32 to vector<8x512xf32>
    %8 = arith.maximumf %6, %7 : vector<8x512xf32>
    %9 = arith.truncf %8 : vector<8x512xf32> to vector<8x512xbf16>
    %c0_6 = arith.constant 0 : index
    %c0_7 = arith.constant 0 : index
    %10 = vector.load %arg4[%c0_6, %c0_7] : memref<512x256xbf16, #tpu.memory_space<vmem>>, vector<512x256xbf16>
    %cst_8 = arith.constant dense<0.000000e+00> : vector<8x256xf32>
    %11 = tpu.matmul %9, %10, %cst_8 {dimension_numbers = #tpu.dot_dimension_numbers<[1], [0], [0], [1], [0, 0, 1, 1], [], []>} : vector<8x512xbf16>, vector<512x256xbf16>, vector<8x256xf32> -> vector<8x256xf32>
    %c0_9 = arith.constant 0 : index
    %c0_10 = arith.constant 0 : index
    %12 = vector.load %arg5[%c0_9, %c0_10] : memref<1x256xf32, #tpu.memory_space<vmem>>, vector<1x256xf32>
    %13 = vector.broadcast %12 : vector<1x256xf32> to vector<8x256xf32>
    %14 = arith.addf %11, %13 : vector<8x256xf32>
    %cst_11 = arith.constant 0.000000e+00 : f32
    %15 = vector.broadcast %cst_11 : f32 to vector<8x256xf32>
    %16 = arith.maximumf %14, %15 : vector<8x256xf32>
    %17 = arith.truncf %16 : vector<8x256xf32> to vector<8x256xbf16>
    %c0_12 = arith.constant 0 : index
    %c0_13 = arith.constant 0 : index
    %18 = vector.load %arg6[%c0_12, %c0_13] : memref<256x128xbf16, #tpu.memory_space<vmem>>, vector<256x128xbf16>
    %cst_14 = arith.constant dense<0.000000e+00> : vector<8x128xf32>
    %19 = tpu.matmul %17, %18, %cst_14 {dimension_numbers = #tpu.dot_dimension_numbers<[1], [0], [0], [1], [0, 0, 1, 1], [], []>} : vector<8x256xbf16>, vector<256x128xbf16>, vector<8x128xf32> -> vector<8x128xf32>
    %c0_15 = arith.constant 0 : index
    %c0_16 = arith.constant 0 : index
    %20 = vector.load %arg7[%c0_15, %c0_16] : memref<1x128xf32, #tpu.memory_space<vmem>>, vector<1x128xf32>
    %21 = vector.broadcast %20 : vector<1x128xf32> to vector<8x128xf32>
    %22 = arith.addf %19, %21 : vector<8x128xf32>
    %23 = arith.truncf %22 : vector<8x128xf32> to vector<8x128xbf16>
    %c0_17 = arith.constant 0 : index
    %c0_18 = arith.constant 0 : index
    %24 = vector.load %arg8[%c0_17, %c0_18] : memref<8x128xbf16, #tpu.memory_space<vmem>>, vector<8x128xbf16>
    tpu.vector_store %arg8[%c0_17, %c0_18], %23 {strides = array<i32>} : memref<8x128xbf16, #tpu.memory_space<vmem>>, vector<8x128xbf16>,
    return
  }
  func.func @transform_0(%arg0: i32) -> (i32, i32) {
    %c0_i32 = arith.constant 0 : i32
    %c0_i32_0 = arith.constant 0 : i32
    return %arg0, %c0_i32 : i32, i32
  }
  func.func @transform_1(%arg0: i32) -> (i32, i32) {
    %c0_i32 = arith.constant 0 : i32
    %c0_i32_0 = arith.constant 0 : i32
    %c0_i32_1 = arith.constant 0 : i32
    return %c0_i32, %c0_i32_0 : i32, i32
  }
  func.func @transform_2(%arg0: i32) -> (i32, i32) {
    %c0_i32 = arith.constant 0 : i32
    %c0_i32_0 = arith.constant 0 : i32
    %c0_i32_1 = arith.constant 0 : i32
    return %c0_i32, %c0_i32_0 : i32, i32
  }
  func.func @transform_3(%arg0: i32) -> (i32, i32) {
    %c0_i32 = arith.constant 0 : i32
    %c0_i32_0 = arith.constant 0 : i32
    %c0_i32_1 = arith.constant 0 : i32
    return %c0_i32, %c0_i32_0 : i32, i32
  }
  func.func @transform_4(%arg0: i32) -> (i32, i32) {
    %c0_i32 = arith.constant 0 : i32
    %c0_i32_0 = arith.constant 0 : i32
    %c0_i32_1 = arith.constant 0 : i32
    return %c0_i32, %c0_i32_0 : i32, i32
  }
  func.func @transform_5(%arg0: i32) -> (i32, i32) {
    %c0_i32 = arith.constant 0 : i32
    %c0_i32_0 = arith.constant 0 : i32
    %c0_i32_1 = arith.constant 0 : i32
    return %c0_i32, %c0_i32_0 : i32, i32
  }
  func.func @transform_6(%arg0: i32) -> (i32, i32) {
    %c0_i32 = arith.constant 0 : i32
    %c0_i32_0 = arith.constant 0 : i32
    %c0_i32_1 = arith.constant 0 : i32
    return %c0_i32, %c0_i32_0 : i32, i32
  }
  func.func @transform_7(%arg0: i32) -> (i32, i32) {
    %c0_i32 = arith.constant 0 : i32
    %c0_i32_0 = arith.constant 0 : i32
    return %arg0, %c0_i32 : i32, i32
  }
}

</mosaic_0001>

<llo_original>
// kernel: tpu_custom_call.1
$region0: #{tpu_custom_call.1}
  #allocation0 [shape = 'u32[]', space=smem, size = 0x4, offset = 0x4, fixed_abs, tag = 'smem constant byte address 0x4 - core index']
  #allocation1 [shape = 'u32[144,128]{1,0:T(1,128)}', space=vmem, size = 0x12000, scoped, tag = 'internal scratch']
  %s0 = inlined_call_operand.hbm [shape: f32[16,3072], index: 0, kind: input, shape index: {}]
  %s1 = inlined_call_operand.hbm [shape: bf16[3072,512], index: 1, kind: input, shape index: {}]
  %s2 = inlined_call_operand.hbm [shape: f32[1,512], index: 2, kind: input, shape index: {}]
  %s3 = inlined_call_operand.hbm [shape: bf16[512,256], index: 3, kind: input, shape index: {}]
  %s4 = inlined_call_operand.hbm [shape: f32[1,256], index: 4, kind: input, shape index: {}]
  %s5 = inlined_call_operand.hbm [shape: bf16[256,128], index: 5, kind: input, shape index: {}]
  %s6 = inlined_call_operand.hbm [shape: f32[1,128], index: 6, kind: input, shape index: {}]
  %s7 = inlined_call_operand.hbm [shape: bf16[16,128], index: 7, kind: output, shape index: {}]
  %s8 = sld [smem:[#allocation0]]
  $region89: #{tpu_custom_call.1} parent=0
    _
  %s10 = ssub.s32 1, %s8
  %s11 = scalar_select 0, %s10, %s8
  $region1: #{tpu_custom_call.1} parent=0
    #allocation2 [shape = 'u8[196608]{0}', space=vmem, size = 0x30000, scoped, tag = 'input window, operand 0']
    #allocation3 [shape = 's32[2]{0}', space=sflag, size = 0x8, scoped, tag = 'scoped memory for tpu_custom_call.1']
    #allocation4 [shape = 's32[2]{0}', space=sflag, size = 0x8, scoped, tag = 'scoped memory for tpu_custom_call.1']
    #allocation5 [shape = 'u8[3145728]{0}', space=vmem, size = 0x300000, scoped, tag = 'input window, operand 1, single buffered']
    #allocation6 [shape = 's32[1]{0}', space=sflag, size = 0x4, scoped, tag = 'scoped memory for tpu_custom_call.1']
    #allocation7 [shape = 'u8[2048]{0}', space=vmem, size = 0x800, scoped, tag = 'input window, operand 2, single buffered']
    #allocation8 [shape = 'u8[262144]{0}', space=vmem, size = 0x40000, scoped, tag = 'input window, operand 3, single buffered']
    #allocation9 [shape = 's32[1]{0}', space=sflag, size = 0x4, scoped, tag = 'scoped memory for tpu_custom_call.1']
    #allocation10 [shape = 'u8[1024]{0}', space=vmem, size = 0x400, scoped, tag = 'input window, operand 4, single buffered']
    #allocation11 [shape = 'u8[65536]{0}', space=vmem, size = 0x10000, scoped, tag = 'input window, operand 5, single buffered']
    #allocation12 [shape = 's32[1]{0}', space=sflag, size = 0x4, scoped, tag = 'scoped memory for tpu_custom_call.1']
    #allocation13 [shape = 'u8[512]{0}', space=vmem, size = 0x400, scoped, tag = 'input window, operand 6, single buffered']
    #allocation14 [shape = 'u8[4096]{0}', space=vmem, size = 0x1000, scoped, tag = 'output window, operand 0']
    %12 = vsyncpa [#allocation3], 0
    %s13 = scalar_lea.sflag [#allocation3], 1
    %14 = vsyncpa %s13, 0
    %15 = vsyncpa [#allocation6], 0
    %16 = vsyncpa [#allocation9], 0
    %17 = vsyncpa [#allocation12], 0
    %18 = vsyncpa [#allocation4], 0
    %s19 = scalar_lea.sflag [#allocation4], 1
    %20 = vsyncpa %s19, 0
    loop: start=0, step=1, limit=4
    $region2: #{tpu_custom_call.1} parent=1 // loop_pre_header
      _
    $region3: #{tpu_custom_call.1} parent=1 // loop_header
      %s22 = sphi 0, %s26
      %p23 = scmp.ge.s32.totalorder %s22, 4
      %s32 = sphi 0, %s34
      %s35 = sphi 0, %s32
      %s36 = sphi 0, %s35
      %s52 = sphi 0, %s36
      %s56 = sphi 0, %s56
      %s58 = sphi 0, %s56
      %s59 = sphi 0, %s58
      %s73 = sphi 0, %s59
      %s77 = sphi 0, %s77
      %s79 = sphi 0, %s77
      %s80 = sphi 0, %s79
      %s94 = sphi 0, %s80
      %s98 = sphi 0, %s98
      %s100 = sphi 0, %s98
      %s101 = sphi 0, %s100
      %s115 = sphi 0, %s101
      %s119 = sphi 0, %s119
      %s121 = sphi 0, %s119
      %s122 = sphi 0, %s121
      %s136 = sphi 0, %s122
      %s140 = sphi 0, %s140
      %s142 = sphi 0, %s140
      %s143 = sphi 0, %s142
      %s157 = sphi 0, %s143
      %s161 = sphi 0, %s161
      %s163 = sphi 0, %s161
      %s164 = sphi 0, %s163
      %s178 = sphi 0, %s164
      %s184 = sphi 0, %s186
      %s187 = sphi 0, %s184
      %s188 = sphi 0, %s187
      %s204 = sphi 0, %s188
    $region4: #{tpu_custom_call.1} parent=1 // loop_header_branch
      %25 = sbr.rel (%p23) target = $region8
    $region5: #{tpu_custom_call.1} parent=1 // loop_body
      %s27 = ssub.s32 %s22, 1
      %s28 = ssub.s32 %s22, 2
      %s29 = sadd.s32 %s22, 1
      %s30 = ssub.s32 %s22, %s29
      %p31 = scmp.eq.s32.totalorder %s30, 0
      %s33 = sadd.s32 %s32, 1
      %s34 = scalar_select %p31, %s32, %s33
      %p37 = pneg %p31
      %p38 = scmp.eq.s32.totalorder %s22, 1
      %p39 = por %p37, %p38
      %p40 = scmp.ne.s32.totalorder %s32, %s35
      %p41 = scmp.eq.s32.totalorder %s22, 0
      %p42 = por %p40, %p41
      %p43 = scmp.ne.s32.totalorder %s32, %s35
      %p44 = scmp.eq.s32.totalorder %s27, 1
      %p45 = por %p43, %p44
      %p46 = scmp.ne.s32.totalorder %s35, %s36
      %p47 = scmp.eq.s32.totalorder %s27, 0
      %p48 = por %p46, %p47
      %p49 = scmp.ne.s32.totalorder %s35, %s36
      %p50 = scmp.eq.s32.totalorder %s28, 1
      %p51 = por %p49, %p50
      %p53 = scmp.ne.s32.totalorder %s36, %s52
      %p54 = scmp.eq.s32.totalorder %s28, 0
      %p55 = por %p53, %p54
      %s57 = sadd.s32 %s56, 1
      %p60 = scmp.eq.s32.totalorder %s22, 1
      %p61 = scmp.ne.s32.totalorder %s56, %s58
      %p62 = scmp.eq.s32.totalorder %s22, 0
      %p63 = por %p61, %p62
      %p64 = scmp.ne.s32.totalorder %s56, %s58
      %p65 = scmp.eq.s32.totalorder %s27, 1
      %p66 = por %p64, %p65
      %p67 = scmp.ne.s32.totalorder %s58, %s59
      %p68 = scmp.eq.s32.totalorder %s27, 0
      %p69 = por %p67, %p68
      %p70 = scmp.ne.s32.totalorder %s58, %s59
      %p71 = scmp.eq.s32.totalorder %s28, 1
      %p72 = por %p70, %p71
      %p74 = scmp.ne.s32.totalorder %s59, %s73
      %p75 = scmp.eq.s32.totalorder %s28, 0
      %p76 = por %p74, %p75
      %s78 = sadd.s32 %s77, 1
      %p81 = scmp.eq.s32.totalorder %s22, 1
      %p82 = scmp.ne.s32.totalorder %s77, %s79
      %p83 = scmp.eq.s32.totalorder %s22, 0
      %p84 = por %p82, %p83
      %p85 = scmp.ne.s32.totalorder %s77, %s79
      %p86 = scmp.eq.s32.totalorder %s27, 1
      %p87 = por %p85, %p86
      %p88 = scmp.ne.s32.totalorder %s79, %s80
      %p89 = scmp.eq.s32.totalorder %s27, 0
      %p90 = por %p88, %p89
      %p91 = scmp.ne.s32.totalorder %s79, %s80
      %p92 = scmp.eq.s32.totalorder %s28, 1
      %p93 = por %p91, %p92
      %p95 = scmp.ne.s32.totalorder %s80, %s94
      %p96 = scmp.eq.s32.totalorder %s28, 0
      %p97 = por %p95, %p96
      %s99 = sadd.s32 %s98, 1
      %p102 = scmp.eq.s32.totalorder %s22, 1
      %p103 = scmp.ne.s32.totalorder %s98, %s100
      %p104 = scmp.eq.s32.totalorder %s22, 0
      %p105 = por %p103, %p104
      %p106 = scmp.ne.s32.totalorder %s98, %s100
      %p107 = scmp.eq.s32.totalorder %s27, 1
      %p108 = por %p106, %p107
      %p109 = scmp.ne.s32.totalorder %s100, %s101
      %p110 = scmp.eq.s32.totalorder %s27, 0
      %p111 = por %p109, %p110
      %p112 = scmp.ne.s32.totalorder %s100, %s101
      %p113 = scmp.eq.s32.totalorder %s28, 1
      %p114 = por %p112, %p113
      %p116 = scmp.ne.s32.totalorder %s101, %s115
      %p117 = scmp.eq.s32.totalorder %s28, 0
      %p118 = por %p116, %p117
      %s120 = sadd.s32 %s119, 1
      %p123 = scmp.eq.s32.totalorder %s22, 1
      %p124 = scmp.ne.s32.totalorder %s119, %s121
      %p125 = scmp.eq.s32.totalorder %s22, 0
      %p126 = por %p124, %p125
      %p127 = scmp.ne.s32.totalorder %s119, %s121
      %p128 = scmp.eq.s32.totalorder %s27, 1
      %p129 = por %p127, %p128
      %p130 = scmp.ne.s32.totalorder %s121, %s122
      %p131 = scmp.eq.s32.totalorder %s27, 0
      %p132 = por %p130, %p131
      %p133 = scmp.ne.s32.totalorder %s121, %s122
      %p134 = scmp.eq.s32.totalorder %s28, 1
      %p135 = por %p133, %p134
      %p137 = scmp.ne.s32.totalorder %s122, %s136
      %p138 = scmp.eq.s32.totalorder %s28, 0
      %p139 = por %p137, %p138
      %s141 = sadd.s32 %s140, 1
      %p144 = scmp.eq.s32.totalorder %s22, 1
      %p145 = scmp.ne.s32.totalorder %s140, %s142
      %p146 = scmp.eq.s32.totalorder %s22, 0
      %p147 = por %p145, %p146
      %p148 = scmp.ne.s32.totalorder %s140, %s142
      %p149 = scmp.eq.s32.totalorder %s27, 1
      %p150 = por %p148, %p149
      %p151 = scmp.ne.s32.totalorder %s142, %s143
      %p152 = scmp.eq.s32.totalorder %s27, 0
      %p153 = por %p151, %p152
      %p154 = scmp.ne.s32.totalorder %s142, %s143
      %p155 = scmp.eq.s32.totalorder %s28, 1
      %p156 = por %p154, %p155
      %p158 = scmp.ne.s32.totalorder %s143, %s157
      %p159 = scmp.eq.s32.totalorder %s28, 0
      %p160 = por %p158, %p159
      %s162 = sadd.s32 %s161, 1
      %p165 = scmp.eq.s32.totalorder %s22, 1
      %p166 = scmp.ne.s32.totalorder %s161, %s163
      %p167 = scmp.eq.s32.totalorder %s22, 0
      %p168 = por %p166, %p167
      %p169 = scmp.ne.s32.totalorder %s161, %s163
      %p170 = scmp.eq.s32.totalorder %s27, 1
      %p171 = por %p169, %p170
      %p172 = scmp.ne.s32.totalorder %s163, %s164
      %p173 = scmp.eq.s32.totalorder %s27, 0
      %p174 = por %p172, %p173
      %p175 = scmp.ne.s32.totalorder %s163, %s164
      %p176 = scmp.eq.s32.totalorder %s28, 1
      %p177 = por %p175, %p176
      %p179 = scmp.ne.s32.totalorder %s164, %s178
      %p180 = scmp.eq.s32.totalorder %s28, 0
      %p181 = por %p179, %p180
      %s182 = ssub.s32 %s22, %s29
      %p183 = scmp.eq.s32.totalorder %s182, 0
      %s185 = sadd.s32 %s184, 1
      %s186 = scalar_select %p183, %s184, %s185
      %p189 = pneg %p183
      %p190 = scmp.eq.s32.totalorder %s22, 1
      %p191 = por %p189, %p190
      %p192 = scmp.ne.s32.totalorder %s184, %s187
      %p193 = scmp.eq.s32.totalorder %s22, 0
      %p194 = por %p192, %p193
      %p195 = scmp.ne.s32.totalorder %s184, %s187
      %p196 = scmp.eq.s32.totalorder %s27, 1
      %p197 = por %p195, %p196
      %p198 = scmp.ne.s32.totalorder %s187, %s188
      %p199 = scmp.eq.s32.totalorder %s27, 0
      %p200 = por %p198, %p199
      %p201 = scmp.ne.s32.totalorder %s187, %s188
      %p202 = scmp.eq.s32.totalorder %s28, 1
      %p203 = por %p201, %p202
      %p205 = scmp.ne.s32.totalorder %s188, %s204
      %p206 = scmp.eq.s32.totalorder %s28, 0
      %p207 = por %p205, %p206
      %p208 = scmp.le.s32.totalorder 1, %s22
      %p209 = scmp.lt.s32.totalorder %s22, 3
      %p210 = pnand %p208, %p209
      %p211 = pneg %p210
      // Predicated region
      $region9: #{tpu_custom_call.1} parent=5 // pred_check
        _
      $region10: #{tpu_custom_call.1} parent=5 // pred_check_branch
        %213 = sbr.rel (%p210) target = $region12
      $region11: #{tpu_custom_call.1} parent=5 // pred_region
        %s214 = ssub.s32 %s22, 1
        // Predicated region
        $region13: #{tpu_custom_call.1} parent=11 // pred_check
          %p215 = pneg %p69
        $region14: #{tpu_custom_call.1} parent=11 // pred_check_branch
          %217 = sbr.rel (%p215) target = $region16
        $region15: #{tpu_custom_call.1} parent=11 // pred_region
          %s219 = ssub.s32 98304, 98304
          %220 = vsyncadd [#allocation6], %s219
          %s221 = sshll.u32 [#allocation5], 4
          %s222 = int_to_ptr.vmem [resolvable:$true] %s221
          %227 = dma.hbm_to_vmem [thread:$0]  %s1, 98304, %s222, [#allocation6], 256, 256, 16
        $region16: #{tpu_custom_call.1} parent=11 // pred_fallthru
          _
        // Predicated region
        $region17: #{tpu_custom_call.1} parent=11 // pred_check
          %p228 = pneg %p90
        $region18: #{tpu_custom_call.1} parent=11 // pred_check_branch
          %230 = sbr.rel (%p228) target = $region20
        $region19: #{tpu_custom_call.1} parent=11 // pred_region
          %s232 = ssub.s32 64, 64
          %233 = vsyncadd [#allocation6], %s232
          %s235 = sshll.u32 [#allocation7], 4
          %s236 = int_to_ptr.vmem [resolvable:$true] %s235
          %238 = dma.hbm_to_vmem [thread:$0]  %s2, 64, %s236, [#allocation6]
        $region20: #{tpu_custom_call.1} parent=11 // pred_fallthru
          _
        // Predicated region
        $region21: #{tpu_custom_call.1} parent=11 // pred_check
          %p239 = pneg %p111
        $region22: #{tpu_custom_call.1} parent=11 // pred_check_branch
          %241 = sbr.rel (%p239) target = $region24
        $region23: #{tpu_custom_call.1} parent=11 // pred_region
          %s243 = ssub.s32 8192, 8192
          %244 = vsyncadd [#allocation9], %s243
          %s245 = sshll.u32 [#allocation8], 4
          %s246 = int_to_ptr.vmem [resolvable:$true] %s245
          %251 = dma.hbm_to_vmem [thread:$0]  %s3, 8192, %s246, [#allocation9], 128, 128, 8
        $region24: #{tpu_custom_call.1} parent=11 // pred_fallthru
          _
        // Predicated region
        $region25: #{tpu_custom_call.1} parent=11 // pred_check
          %p252 = pneg %p132
        $region26: #{tpu_custom_call.1} parent=11 // pred_check_branch
          %254 = sbr.rel (%p252) target = $region28
        $region27: #{tpu_custom_call.1} parent=11 // pred_region
          %s256 = ssub.s32 32, 32
          %257 = vsyncadd [#allocation9], %s256
          %s259 = sshll.u32 [#allocation10], 4
          %s260 = int_to_ptr.vmem [resolvable:$true] %s259
          %262 = dma.hbm_to_vmem [thread:$0]  %s4, 32, %s260, [#allocation9]
        $region28: #{tpu_custom_call.1} parent=11 // pred_fallthru
          _
        // Predicated region
        $region29: #{tpu_custom_call.1} parent=11 // pred_check
          %p263 = pneg %p153
        $region30: #{tpu_custom_call.1} parent=11 // pred_check_branch
          %265 = sbr.rel (%p263) target = $region32
        $region31: #{tpu_custom_call.1} parent=11 // pred_region
          %s267 = ssub.s32 2048, 2048
          %268 = vsyncadd [#allocation12], %s267
          %s269 = sshll.u32 [#allocation11], 4
          %s270 = int_to_ptr.vmem [resolvable:$true] %s269
          %275 = dma.hbm_to_vmem [thread:$0]  %s5, 2048, %s270, [#allocation12], 64, 64, 4
        $region32: #{tpu_custom_call.1} parent=11 // pred_fallthru
          _
        // Predicated region
        $region33: #{tpu_custom_call.1} parent=11 // pred_check
          %p276 = pneg %p174
        $region34: #{tpu_custom_call.1} parent=11 // pred_check_branch
          %278 = sbr.rel (%p276) target = $region36
        $region35: #{tpu_custom_call.1} parent=11 // pred_region
          %s280 = ssub.s32 16, 16
          %281 = vsyncadd [#allocation12], %s280
          %s283 = sshll.u32 [#allocation13], 4
          %s284 = int_to_ptr.vmem [resolvable:$true] %s283
          %286 = dma.hbm_to_vmem [thread:$0]  %s6, 16, %s284, [#allocation12]
        $region36: #{tpu_custom_call.1} parent=11 // pred_fallthru
          _
      $region12: #{tpu_custom_call.1} parent=5 // pred_fallthru
        _
      %p287 = scmp.lt.s32.totalorder %s22, 2
      // Predicated region
      $region37: #{tpu_custom_call.1} parent=5 // pred_check
        %p288 = pneg %p287
      $region38: #{tpu_custom_call.1} parent=5 // pred_check_branch
        %290 = sbr.rel (%p288) target = $region40
      $region39: #{tpu_custom_call.1} parent=5 // pred_region
        // Predicated region
        $region41: #{tpu_custom_call.1} parent=39 // pred_check
          %p291 = pneg %p42
        $region42: #{tpu_custom_call.1} parent=39 // pred_check_branch
          %293 = sbr.rel (%p291) target = $region44
        $region43: #{tpu_custom_call.1} parent=39 // pred_region
          %s294 = sand.u32 %s32, 1
          %s295 = scalar_lea.sflag [#allocation3], %s294
          %s296 = sand.u32 %s32, 1
          %s297 = smul.addr %s296, 192
          %s298 = scalar_lea.vmem [#allocation2], %s297
          %s300 = ssub.s32 3072, 3072
          %301 = vsyncadd %s295, %s300
          %s302 = smul.addr %s22, 24
          %s303 = smul.addr %s302, 128
          %s304 = scalar_lea.hbm %s0, %s303
          %s306 = sshll.u32 %s298, 4
          %s307 = int_to_ptr.vmem [resolvable:$true] %s306
          %309 = dma.hbm_to_vmem [thread:$0]  %s304, 3072, %s307, %s295
        $region44: #{tpu_custom_call.1} parent=39 // pred_fallthru
          _
      $region40: #{tpu_custom_call.1} parent=5 // pred_fallthru
        _
      %p310 = scmp.le.s32.totalorder 1, %s22
      %p311 = scmp.lt.s32.totalorder %s22, 3
      %p312 = pnand %p310, %p311
      %p313 = pneg %p312
      // Predicated region
      $region45: #{tpu_custom_call.1} parent=5 // pred_check
        _
      $region46: #{tpu_custom_call.1} parent=5 // pred_check_branch
        %315 = sbr.rel (%p312) target = $region48
      $region47: #{tpu_custom_call.1} parent=5 // pred_region
        %s316 = ssub.s32 %s22, 1
        %s317 = sand.u32 %s35, 1
        %s318 = scalar_lea.sflag [#allocation3], %s317
        %s319 = sand.u32 %s35, 1
        %s320 = smul.addr %s319, 192
        %s321 = scalar_lea.vmem [#allocation2], %s320
        // Predicated region
        $region49: #{tpu_custom_call.1} parent=47 // pred_check
          %p322 = pneg %p48
        $region50: #{tpu_custom_call.1} parent=47 // pred_check_branch
          %324 = sbr.rel (%p322) target = $region52
        $region51: #{tpu_custom_call.1} parent=47 // pred_region
          %325 = dma.done %s318, 3072
        $region52: #{tpu_custom_call.1} parent=47 // pred_fallthru
          _
        // Predicated region
        $region53: #{tpu_custom_call.1} parent=47 // pred_check
          %p326 = pneg %p69
        $region54: #{tpu_custom_call.1} parent=47 // pred_check_branch
          %328 = sbr.rel (%p326) target = $region56
        $region55: #{tpu_custom_call.1} parent=47 // pred_region
          %329 = dma.done [#allocation6], 98304
        $region56: #{tpu_custom_call.1} parent=47 // pred_fallthru
          _
        // Predicated region
        $region57: #{tpu_custom_call.1} parent=47 // pred_check
          %p330 = pneg %p90
        $region58: #{tpu_custom_call.1} parent=47 // pred_check_branch
          %332 = sbr.rel (%p330) target = $region60
        $region59: #{tpu_custom_call.1} parent=47 // pred_region
          %333 = dma.done [#allocation6], 64
        $region60: #{tpu_custom_call.1} parent=47 // pred_fallthru
          _
        // Predicated region
        $region61: #{tpu_custom_call.1} parent=47 // pred_check
          %p334 = pneg %p111
        $region62: #{tpu_custom_call.1} parent=47 // pred_check_branch
          %336 = sbr.rel (%p334) target = $region64
        $region63: #{tpu_custom_call.1} parent=47 // pred_region
          %337 = dma.done [#allocation9], 8192
        $region64: #{tpu_custom_call.1} parent=47 // pred_fallthru
          _
        // Predicated region
        $region65: #{tpu_custom_call.1} parent=47 // pred_check
          %p338 = pneg %p132
        $region66: #{tpu_custom_call.1} parent=47 // pred_check_branch
          %340 = sbr.rel (%p338) target = $region68
        $region67: #{tpu_custom_call.1} parent=47 // pred_region
          %341 = dma.done [#allocation9], 32
        $region68: #{tpu_custom_call.1} parent=47 // pred_fallthru
          _
        // Predicated region
        $region69: #{tpu_custom_call.1} parent=47 // pred_check
          %p342 = pneg %p153
        $region70: #{tpu_custom_call.1} parent=47 // pred_check_branch
          %344 = sbr.rel (%p342) target = $region72
        $region71: #{tpu_custom_call.1} parent=47 // pred_region
          %345 = dma.done [#allocation12], 2048
        $region72: #{tpu_custom_call.1} parent=47 // pred_fallthru
          _
        // Predicated region
        $region73: #{tpu_custom_call.1} parent=47 // pred_check
          %p346 = pneg %p174
        $region74: #{tpu_custom_call.1} parent=47 // pred_check_branch
          %348 = sbr.rel (%p346) target = $region76
        $region75: #{tpu_custom_call.1} parent=47 // pred_region
          %349 = dma.done [#allocation12], 16
        $region76: #{tpu_custom_call.1} parent=47 // pred_fallthru
          _
        %s350 = sand.u32 %s35, 1
        %s351 = scalar_lea.sflag [#allocation3], %s350
        %s352 = sand.u32 %s35, 1
        %s353 = smul.addr %s352, 192
        %s354 = scalar_lea.vmem [#allocation2], %s353
        %p355 = pneg %p48
        %p356 = pneg %p45
        %p357 = pneg %p69
        %p358 = pneg %p66
        %p359 = pneg %p90
        %p360 = pneg %p87
        %p361 = pneg %p111
        %p362 = pneg %p108
        %p363 = pneg %p132
        %p364 = pneg %p129
        %p365 = pneg %p153
        %p366 = pneg %p150
        %p367 = pneg %p174
        %p368 = pneg %p171
        %p369 = pneg %p200
        %p370 = pneg %p197
        %s371 = sand.u32 %s187, 1
        %s372 = scalar_lea.sflag [#allocation4], %s371
        %s373 = sand.u32 %s187, 1
        %s374 = smul.addr %s373, 4
        %s375 = scalar_lea.vmem [#allocation14], %s374
        %v377 = vld [vmem:[%s321] sm:$0xff]
        %v378 = vld [vmem:[%s321 + $0x8] sm:$0xff]
        %v379 = vld [vmem:[%s321 + $0x10] sm:$0xff]
        %v380 = vld [vmem:[%s321 + $0x18] sm:$0xff]
        %v381 = vld [vmem:[%s321 + $0x20] sm:$0xff]
        %v382 = vld [vmem:[%s321 + $0x28] sm:$0xff]
        %v383 = vld [vmem:[%s321 + $0x30] sm:$0xff]
        %v384 = vld [vmem:[%s321 + $0x38] sm:$0xff]
        %v385 = vld [vmem:[%s321 + $0x40] sm:$0xff]
        %v386 = vld [vmem:[%s321 + $0x48] sm:$0xff]
        %v387 = vld [vmem:[%s321 + $0x50] sm:$0xff]
        %v388 = vld [vmem:[%s321 + $0x58] sm:$0xff]
        %v389 = vld [vmem:[%s321 + $0x60] sm:$0xff]
        %v390 = vld [vmem:[%s321 + $0x68] sm:$0xff]
        %v391 = vld [vmem:[%s321 + $0x70] sm:$0xff]
        %v392 = vld [vmem:[%s321 + $0x78] sm:$0xff]
        %v393 = vld [vmem:[%s321 + $0x80] sm:$0xff]
        %v394 = vld [vmem:[%s321 + $0x88] sm:$0xff]
        %v395 = vld [vmem:[%s321 + $0x90] sm:$0xff]
        %v396 = vld [vmem:[%s321 + $0x98] sm:$0xff]
        %v397 = vld [vmem:[%s321 + $0xa0] sm:$0xff]
        %v398 = vld [vmem:[%s321 + $0xa8] sm:$0xff]
        %v399 = vld [vmem:[%s321 + $0xb0] sm:$0xff]
        %v400 = vld [vmem:[%s321 + $0xb8] sm:$0xff]
        %v401 = vpack.c.bf16 %v377, %v377
        %v402 = vpack.c.bf16 %v378, %v378
        %v403 = vpack.c.bf16 %v379, %v379
        %v404 = vpack.c.bf16 %v380, %v380
        %v405 = vpack.c.bf16 %v381, %v381
        %v406 = vpack.c.bf16 %v382, %v382
        %v407 = vpack.c.bf16 %v383, %v383
        %v408 = vpack.c.bf16 %v384, %v384
        %v409 = vpack.c.bf16 %v385, %v385
        %v410 = vpack.c.bf16 %v386, %v386
        %v411 = vpack.c.bf16 %v387, %v387
        %v412 = vpack.c.bf16 %v388, %v388
        %v413 = vpack.c.bf16 %v389, %v389
        %v414 = vpack.c.bf16 %v390, %v390
        %v415 = vpack.c.bf16 %v391, %v391
        %v416 = vpack.c.bf16 %v392, %v392
        %v417 = vpack.c.bf16 %v393, %v393
        %v418 = vpack.c.bf16 %v394, %v394
        %v419 = vpack.c.bf16 %v395, %v395
        %v420 = vpack.c.bf16 %v396, %v396
        %v421 = vpack.c.bf16 %v397, %v397
        %v422 = vpack.c.bf16 %v398, %v398
        %v423 = vpack.c.bf16 %v399, %v399
        %v424 = vpack.c.bf16 %v400, %v400
        %v425 = vld [vmem:[#allocation5] sm:$0xff]
        %v426 = vld [vmem:[#allocation5 + $0x8] sm:$0xff]
        %v427 = vld [vmem:[#allocation5 + $0x10] sm:$0xff]
        %v428 = vld [vmem:[#allocation5 + $0x18] sm:$0xff]
        %v429 = vld [vmem:[#allocation5 + $0x20] sm:$0xff]
        %v430 = vld [vmem:[#allocation5 + $0x28] sm:$0xff]
        %v431 = vld [vmem:[#allocation5 + $0x30] sm:$0xff]
        %v432 = vld [vmem:[#allocation5 + $0x38] sm:$0xff]
        %v433 = vld [vmem:[#allocation5 + $0x40] sm:$0xff]
        %v434 = vld [vmem:[#allocation5 + $0x48] sm:$0xff]
        %v435 = vld [vmem:[#allocation5 + $0x50] sm:$0xff]
        %v436 = vld [vmem:[#allocation5 + $0x58] sm:$0xff]
        %v437 = vld [vmem:[#allocation5 + $0x60] sm:$0xff]
        %v438 = vld [vmem:[#allocation5 + $0x68] sm:$0xff]
        %v439 = vld [vmem:[#allocation5 + $0x70] sm:$0xff]
        %v440 = vld [vmem:[#allocation5 + $0x78] sm:$0xff]
        %v441 = vld [vmem:[#allocation5 + $0x80] sm:$0xff]
        %v442 = vld [vmem:[#allocation5 + $0x88] sm:$0xff]
        %v443 = vld [vmem:[#allocation5 + $0x90] sm:$0xff]
        %v444 = vld [vmem:[#allocation5 + $0x98] sm:$0xff]
        %v445 = vld [vmem:[#allocation5 + $0xa0] sm:$0xff]
        %v446 = vld [vmem:[#allocation5 + $0xa8] sm:$0xff]
        %v447 = vld [vmem:[#allocation5 + $0xb0] sm:$0xff]
        %v448 = vld [vmem:[#allocation5 + $0xb8] sm:$0xff]
        %v449 = vld [vmem:[#allocation5 + $0xc0] sm:$0xff]
        %v450 = vld [vmem:[#allocation5 + $0xc8] sm:$0xff]
        %v451 = vld [vmem:[#allocation5 + $0xd0] sm:$0xff]
        %v452 = vld [vmem:[#allocation5 + $0xd8] sm:$0xff]
        %v453 = vld [vmem:[#allocation5 + $0xe0] sm:$0xff]
        %v454 = vld [vmem:[#allocation5 + $0xe8] sm:$0xff]
        %v455 = vld [vmem:[#allocation5 + $0xf0] sm:$0xff]
        %v456 = vld [vmem:[#allocation5 + $0xf8] sm:$0xff]
        %v457 = vld [vmem:[#allocation5 + $0x100] sm:$0xff]
        %v458 = vld [vmem:[#allocation5 + $0x108] sm:$0xff]
        %v459 = vld [vmem:[#allocation5 + $0x110] sm:$0xff]
        %v460 = vld [vmem:[#allocation5 + $0x118] sm:$0xff]
        %v461 = vld [vmem:[#allocation5 + $0x120] sm:$0xff]
        %v462 = vld [vmem:[#allocation5 + $0x128] sm:$0xff]
        %v463 = vld [vmem:[#allocation5 + $0x130] sm:$0xff]
        %v464 = vld [vmem:[#allocation5 + $0x138] sm:$0xff]
        %v465 = vld [vmem:[#allocation5 + $0x140] sm:$0xff]
        %v466 = vld [vmem:[#allocation5 + $0x148] sm:$0xff]
        %v467 = vld [vmem:[#allocation5 + $0x150] sm:$0xff]
        %v468 = vld [vmem:[#allocation5 + $0x158] sm:$0xff]
        %v469 = vld [vmem:[#allocation5 + $0x160] sm:$0xff]
        %v470 = vld [vmem:[#allocation5 + $0x168] sm:$0xff]
        %v471 = vld [vmem:[#allocation5 + $0x170] sm:$0xff]
        %v472 = vld [vmem:[#allocation5 + $0x178] sm:$0xff]
        %v473 = vld [vmem:[#allocation5 + $0x180] sm:$0xff]
        %v474 = vld [vmem:[#allocation5 + $0x188] sm:$0xff]
        %v475 = vld [vmem:[#allocation5 + $0x190] sm:$0xff]
        %v476 = vld [vmem:[#allocation5 + $0x198] sm:$0xff]
        %v477 = vld [vmem:[#allocation5 + $0x1a0] sm:$0xff]
        %v478 = vld [vmem:[#allocation5 + $0x1a8] sm:$0xff]
        %v479 = vld [vmem:[#allocation5 + $0x1b0] sm:$0xff]
        %v480 = vld [vmem:[#allocation5 + $0x1b8] sm:$0xff]
        %v481 = vld [vmem:[#allocation5 + $0x1c0] sm:$0xff]
        %v482 = vld [vmem:[#allocation5 + $0x1c8] sm:$0xff]
        %v483 = vld [vmem:[#allocation5 + $0x1d0] sm:$0xff]
        %v484 = vld [vmem:[#allocation5 + $0x1d8] sm:$0xff]
        %v485 = vld [vmem:[#allocation5 + $0x1e0] sm:$0xff]
        %v486 = vld [vmem:[#allocation5 + $0x1e8] sm:$0xff]
        %v487 = vld [vmem:[#allocation5 + $0x1f0] sm:$0xff]
        %v488 = vld [vmem:[#allocation5 + $0x1f8] sm:$0xff]
        %v489 = vld [vmem:[#allocation5 + $0x200] sm:$0xff]
        %v490 = vld [vmem:[#allocation5 + $0x208] sm:$0xff]
        %v491 = vld [vmem:[#allocation5 + $0x210] sm:$0xff]
        %v492 = vld [vmem:[#allocation5 + $0x218] sm:$0xff]
        %v493 = vld [vmem:[#allocation5 + $0x220] sm:$0xff]
        %v494 = vld [vmem:[#allocation5 + $0x228] sm:$0xff]
        %v495 = vld [vmem:[#allocation5 + $0x230] sm:$0xff]
        %v496 = vld [vmem:[#allocation5 + $0x238] sm:$0xff]
        %v497 = vld [vmem:[#allocation5 + $0x240] sm:$0xff]
        %v498 = vld [vmem:[#allocation5 + $0x248] sm:$0xff]
        %v499 = vld [vmem:[#allocation5 + $0x250] sm:$0xff]
        %v500 = vld [vmem:[#allocation5 + $0x258] sm:$0xff]
        %v501 = vld [vmem:[#allocation5 + $0x260] sm:$0xff]
        %v502 = vld [vmem:[#allocation5 + $0x268] sm:$0xff]
        %v503 = vld [vmem:[#allocation5 + $0x270] sm:$0xff]
        %v504 = vld [vmem:[#allocation5 + $0x278] sm:$0xff]
        %v505 = vld [vmem:[#allocation5 + $0x280] sm:$0xff]
        %v506 = vld [vmem:[#allocation5 + $0x288] sm:$0xff]
        %v507 = vld [vmem:[#allocation5 + $0x290] sm:$0xff]
        %v508 = vld [vmem:[#allocation5 + $0x298] sm:$0xff]
        %v509 = vld [vmem:[#allocation5 + $0x2a0] sm:$0xff]
        %v510 = vld [vmem:[#allocation5 + $0x2a8] sm:$0xff]
        %v511 = vld [vmem:[#allocation5 + $0x2b0] sm:$0xff]
        %v512 = vld [vmem:[#allocation5 + $0x2b8] sm:$0xff]
        %v513 = vld [vmem:[#allocation5 + $0x2c0] sm:$0xff]
        %v514 = vld [vmem:[#allocation5 + $0x2c8] sm:$0xff]
        %v515 = vld [vmem:[#allocation5 + $0x2d0] sm:$0xff]
        %v516 = vld [vmem:[#allocation5 + $0x2d8] sm:$0xff]
        %v517 = vld [vmem:[#allocation5 + $0x2e0] sm:$0xff]
        %v518 = vld [vmem:[#allocation5 + $0x2e8] sm:$0xff]
        %v519 = vld [vmem:[#allocation5 + $0x2f0] sm:$0xff]
        %v520 = vld [vmem:[#allocation5 + $0x2f8] sm:$0xff]
        %v521 = vld [vmem:[#allocation5 + $0x300] sm:$0xff]
        %v522 = vld [vmem:[#allocation5 + $0x308] sm:$0xff]
        %v523 = vld [vmem:[#allocation5 + $0x310] sm:$0xff]
        %v524 = vld [vmem:[#allocation5 + $0x318] sm:$0xff]
        %v525 = vld [vmem:[#allocation5 + $0x320] sm:$0xff]
        %v526 = vld [vmem:[#allocation5 + $0x328] sm:$0xff]
        %v527 = vld [vmem:[#allocation5 + $0x330] sm:$0xff]
        %v528 = vld [vmem:[#allocation5 + $0x338] sm:$0xff]
        %v529 = vld [vmem:[#allocation5 + $0x340] sm:$0xff]
        %v530 = vld [vmem:[#allocation5 + $0x348] sm:$0xff]
        %v531 = vld [vmem:[#allocation5 + $0x350] sm:$0xff]
        %v532 = vld [vmem:[#allocation5 + $0x358] sm:$0xff]
        %v533 = vld [vmem:[#allocation5 + $0x360] sm:$0xff]
        %v534 = vld [vmem:[#allocation5 + $0x368] sm:$0xff]
        %v535 = vld [vmem:[#allocation5 + $0x370] sm:$0xff]
        %v536 = vld [vmem:[#allocation5 + $0x378] sm:$0xff]
        %v537 = vld [vmem:[#allocation5 + $0x380] sm:$0xff]
        %v538 = vld [vmem:[#allocation5 + $0x388] sm:$0xff]
        %v539 = vld [vmem:[#allocation5 + $0x390] sm:$0xff]
        %v540 = vld [vmem:[#allocation5 + $0x398] sm:$0xff]
        %v541 = vld [vmem:[#allocation5 + $0x3a0] sm:$0xff]
        %v542 = vld [vmem:[#allocation5 + $0x3a8] sm:$0xff]
        %v543 = vld [vmem:[#allocation5 + $0x3b0] sm:$0xff]
        %v544 = vld [vmem:[#allocation5 + $0x3b8] sm:$0xff]
        %v545 = vld [vmem:[#allocation5 + $0x3c0] sm:$0xff]
        %v546 = vld [vmem:[#allocation5 + $0x3c8] sm:$0xff]
        %v547 = vld [vmem:[#allocation5 + $0x3d0] sm:$0xff]
        %v548 = vld [vmem:[#allocation5 + $0x3d8] sm:$0xff]
        %v549 = vld [vmem:[#allocation5 + $0x3e0] sm:$0xff]
        %v550 = vld [vmem:[#allocation5 + $0x3e8] sm:$0xff]
        %v551 = vld [vmem:[#allocation5 + $0x3f0] sm:$0xff]
        %v552 = vld [vmem:[#allocation5 + $0x3f8] sm:$0xff]
        %v553 = vld [vmem:[#allocation5 + $0x400] sm:$0xff]
        %v554 = vld [vmem:[#allocation5 + $0x408] sm:$0xff]
        %v555 = vld [vmem:[#allocation5 + $0x410] sm:$0xff]
        %v556 = vld [vmem:[#allocation5 + $0x418] sm:$0xff]
        %v557 = vld [vmem:[#allocation5 + $0x420] sm:$0xff]
        %v558 = vld [vmem:[#allocation5 + $0x428] sm:$0xff]
        %v559 = vld [vmem:[#allocation5 + $0x430] sm:$0xff]
        %v560 = vld [vmem:[#allocation5 + $0x438] sm:$0xff]
        %v561 = vld [vmem:[#allocation5 + $0x440] sm:$0xff]
        %v562 = vld [vmem:[#allocation5 + $0x448] sm:$0xff]
        %v563 = vld [vmem:[#allocation5 + $0x450] sm:$0xff]
        %v564 = vld [vmem:[#allocation5 + $0x458] sm:$0xff]
        %v565 = vld [vmem:[#allocation5 + $0x460] sm:$0xff]
        %v566 = vld [vmem:[#allocation5 + $0x468] sm:$0xff]
        %v567 = vld [vmem:[#allocation5 + $0x470] sm:$0xff]
        %v568 = vld [vmem:[#allocation5 + $0x478] sm:$0xff]
        %v569 = vld [vmem:[#allocation5 + $0x480] sm:$0xff]
        %v570 = vld [vmem:[#allocation5 + $0x488] sm:$0xff]
        %v571 = vld [vmem:[#allocation5 + $0x490] sm:$0xff]
        %v572 = vld [vmem:[#allocation5 + $0x498] sm:$0xff]
        %v573 = vld [vmem:[#allocation5 + $0x4a0] sm:$0xff]
        %v574 = vld [vmem:[#allocation5 + $0x4a8] sm:$0xff]
        %v575 = vld [vmem:[#allocation5 + $0x4b0] sm:$0xff]
        %v576 = vld [vmem:[#allocation5 + $0x4b8] sm:$0xff]
        %v577 = vld [vmem:[#allocation5 + $0x4c0] sm:$0xff]
        %v578 = vld [vmem:[#allocation5 + $0x4c8] sm:$0xff]
        %v579 = vld [vmem:[#allocation5 + $0x4d0] sm:$0xff]
        %v580 = vld [vmem:[#allocation5 + $0x4d8] sm:$0xff]
        %v581 = vld [vmem:[#allocation5 + $0x4e0] sm:$0xff]
        %v582 = vld [vmem:[#allocation5 + $0x4e8] sm:$0xff]
        %v583 = vld [vmem:[#allocation5 + $0x4f0] sm:$0xff]
        %v584 = vld [vmem:[#allocation5 + $0x4f8] sm:$0xff]
        %v585 = vld [vmem:[#allocation5 + $0x500] sm:$0xff]
        %v586 = vld [vmem:[#allocation5 + $0x508] sm:$0xff]
        %v587 = vld [vmem:[#allocation5 + $0x510] sm:$0xff]
        %v588 = vld [vmem:[#allocation5 + $0x518] sm:$0xff]
        %v589 = vld [vmem:[#allocation5 + $0x520] sm:$0xff]
        %v590 = vld [vmem:[#allocation5 + $0x528] sm:$0xff]
        %v591 = vld [vmem:[#allocation5 + $0x530] sm:$0xff]
        %v592 = vld [vmem:[#allocation5 + $0x538] sm:$0xff]
        %v593 = vld [vmem:[#allocation5 + $0x540] sm:$0xff]
        %v594 = vld [vmem:[#allocation5 + $0x548] sm:$0xff]
        %v595 = vld [vmem:[#allocation5 + $0x550] sm:$0xff]
        %v596 = vld [vmem:[#allocation5 + $0x558] sm:$0xff]
        %v597 = vld [vmem:[#allocation5 + $0x560] sm:$0xff]
        %v598 = vld [vmem:[#allocation5 + $0x568] sm:$0xff]
        %v599 = vld [vmem:[#allocation5 + $0x570] sm:$0xff]
        %v600 = vld [vmem:[#allocation5 + $0x578] sm:$0xff]
        %v601 = vld [vmem:[#allocation5 + $0x580] sm:$0xff]
        %v602 = vld [vmem:[#allocation5 + $0x588] sm:$0xff]
        %v603 = vld [vmem:[#allocation5 + $0x590] sm:$0xff]
        %v604 = vld [vmem:[#allocation5 + $0x598] sm:$0xff]
        %v605 = vld [vmem:[#allocation5 + $0x5a0] sm:$0xff]
        %v606 = vld [vmem:[#allocation5 + $0x5a8] sm:$0xff]
        %v607 = vld [vmem:[#allocation5 + $0x5b0] sm:$0xff]
        %v608 = vld [vmem:[#allocation5 + $0x5b8] sm:$0xff]
        %v609 = vld [vmem:[#allocation5 + $0x5c0] sm:$0xff]
        %v610 = vld [vmem:[#allocation5 + $0x5c8] sm:$0xff]
        %v611 = vld [vmem:[#allocation5 + $0x5d0] sm:$0xff]
        %v612 = vld [vmem:[#allocation5 + $0x5d8] sm:$0xff]
        %v613 = vld [vmem:[#allocation5 + $0x5e0] sm:$0xff]
        %v614 = vld [vmem:[#allocation5 + $0x5e8] sm:$0xff]
        %v615 = vld [vmem:[#allocation5 + $0x5f0] sm:$0xff]
        %v616 = vld [vmem:[#allocation5 + $0x5f8] sm:$0xff]
        %v617 = vld [vmem:[#allocation5 + $0x600] sm:$0xff]
        %v618 = vld [vmem:[#allocation5 + $0x608] sm:$0xff]
        %v619 = vld [vmem:[#allocation5 + $0x610] sm:$0xff]
        %v620 = vld [vmem:[#allocation5 + $0x618] sm:$0xff]
        %v621 = vld [vmem:[#allocation5 + $0x620] sm:$0xff]
        %v622 = vld [vmem:[#allocation5 + $0x628] sm:$0xff]
        %v623 = vld [vmem:[#allocation5 + $0x630] sm:$0xff]
        %v624 = vld [vmem:[#allocation5 + $0x638] sm:$0xff]
        %v625 = vld [vmem:[#allocation5 + $0x640] sm:$0xff]
        %v626 = vld [vmem:[#allocation5 + $0x648] sm:$0xff]
        %v627 = vld [vmem:[#allocation5 + $0x650] sm:$0xff]
        %v628 = vld [vmem:[#allocation5 + $0x658] sm:$0xff]
        %v629 = vld [vmem:[#allocation5 + $0x660] sm:$0xff]
        %v630 = vld [vmem:[#allocation5 + $0x668] sm:$0xff]
        %v631 = vld [vmem:[#allocation5 + $0x670] sm:$0xff]
        %v632 = vld [vmem:[#allocation5 + $0x678] sm:$0xff]
        %v633 = vld [vmem:[#allocation5 + $0x680] sm:$0xff]
        %v634 = vld [vmem:[#allocation5 + $0x688] sm:$0xff]
        %v635 = vld [vmem:[#allocation5 + $0x690] sm:$0xff]
        %v636 = vld [vmem:[#allocation5 + $0x698] sm:$0xff]
        %v637 = vld [vmem:[#allocation5 + $0x6a0] sm:$0xff]
        %v638 = vld [vmem:[#allocation5 + $0x6a8] sm:$0xff]
        %v639 = vld [vmem:[#allocation5 + $0x6b0] sm:$0xff]
        %v640 = vld [vmem:[#allocation5 + $0x6b8] sm:$0xff]
        %v641 = vld [vmem:[#allocation5 + $0x6c0] sm:$0xff]
        %v642 = vld [vmem:[#allocation5 + $0x6c8] sm:$0xff]
        %v643 = vld [vmem:[#allocation5 + $0x6d0] sm:$0xff]
        %v644 = vld [vmem:[#allocation5 + $0x6d8] sm:$0xff]
        %v645 = vld [vmem:[#allocation5 + $0x6e0] sm:$0xff]
        %v646 = vld [vmem:[#allocation5 + $0x6e8] sm:$0xff]
        %v647 = vld [vmem:[#allocation5 + $0x6f0] sm:$0xff]
        %v648 = vld [vmem:[#allocation5 + $0x6f8] sm:$0xff]
        %v649 = vld [vmem:[#allocation5 + $0x700] sm:$0xff]
        %v650 = vld [vmem:[#allocation5 + $0x708] sm:$0xff]
        %v651 = vld [vmem:[#allocation5 + $0x710] sm:$0xff]
        %v652 = vld [vmem:[#allocation5 + $0x718] sm:$0xff]
        %v653 = vld [vmem:[#allocation5 + $0x720] sm:$0xff]
        %v654 = vld [vmem:[#allocation5 + $0x728] sm:$0xff]
        %v655 = vld [vmem:[#allocation5 + $0x730] sm:$0xff]
        %v656 = vld [vmem:[#allocation5 + $0x738] sm:$0xff]
        %v657 = vld [vmem:[#allocation5 + $0x740] sm:$0xff]
        %v658 = vld [vmem:[#allocation5 + $0x748] sm:$0xff]
        %v659 = vld [vmem:[#allocation5 + $0x750] sm:$0xff]
        %v660 = vld [vmem:[#allocation5 + $0x758] sm:$0xff]
        %v661 = vld [vmem:[#allocation5 + $0x760] sm:$0xff]
        %v662 = vld [vmem:[#allocation5 + $0x768] sm:$0xff]
        %v663 = vld [vmem:[#allocation5 + $0x770] sm:$0xff]
        %v664 = vld [vmem:[#allocation5 + $0x778] sm:$0xff]
        %v665 = vld [vmem:[#allocation5 + $0x780] sm:$0xff]
        %v666 = vld [vmem:[#allocation5 + $0x788] sm:$0xff]
        %v667 = vld [vmem:[#allocation5 + $0x790] sm:$0xff]
        %v668 = vld [vmem:[#allocation5 + $0x798] sm:$0xff]
        %v669 = vld [vmem:[#allocation5 + $0x7a0] sm:$0xff]
        %v670 = vld [vmem:[#allocation5 + $0x7a8] sm:$0xff]
        %v671 = vld [vmem:[#allocation5 + $0x7b0] sm:$0xff]
        %v672 = vld [vmem:[#allocation5 + $0x7b8] sm:$0xff]
        %v673 = vld [vmem:[#allocation5 + $0x7c0] sm:$0xff]
        %v674 = vld [vmem:[#allocation5 + $0x7c8] sm:$0xff]
        %v675 = vld [vmem:[#allocation5 + $0x7d0] sm:$0xff]
        %v676 = vld [vmem:[#allocation5 + $0x7d8] sm:$0xff]
        %v677 = vld [vmem:[#allocation5 + $0x7e0] sm:$0xff]
        %v678 = vld [vmem:[#allocation5 + $0x7e8] sm:$0xff]
        %v679 = vld [vmem:[#allocation5 + $0x7f0] sm:$0xff]
        %v680 = vld [vmem:[#allocation5 + $0x7f8] sm:$0xff]
        %v681 = vld [vmem:[#allocation5 + $0x800] sm:$0xff]
        %v682 = vld [vmem:[#allocation5 + $0x808] sm:$0xff]
        %v683 = vld [vmem:[#allocation5 + $0x810] sm:$0xff]
        %v684 = vld [vmem:[#allocation5 + $0x818] sm:$0xff]
        %v685 = vld [vmem:[#allocation5 + $0x820] sm:$0xff]
        %v686 = vld [vmem:[#allocation5 + $0x828] sm:$0xff]
        %v687 = vld [vmem:[#allocation5 + $0x830] sm:$0xff]
        %v688 = vld [vmem:[#allocation5 + $0x838] sm:$0xff]
        %v689 = vld [vmem:[#allocation5 + $0x840] sm:$0xff]
        %v690 = vld [vmem:[#allocation5 + $0x848] sm:$0xff]
        %v691 = vld [vmem:[#allocation5 + $0x850] sm:$0xff]
        %v692 = vld [vmem:[#allocation5 + $0x858] sm:$0xff]
        %v693 = vld [vmem:[#allocation5 + $0x860] sm:$0xff]
        %v694 = vld [vmem:[#allocation5 + $0x868] sm:$0xff]
        %v695 = vld [vmem:[#allocation5 + $0x870] sm:$0xff]
        %v696 = vld [vmem:[#allocation5 + $0x878] sm:$0xff]
        %v697 = vld [vmem:[#allocation5 + $0x880] sm:$0xff]
        %v698 = vld [vmem:[#allocation5 + $0x888] sm:$0xff]
        %v699 = vld [vmem:[#allocation5 + $0x890] sm:$0xff]
        %v700 = vld [vmem:[#allocation5 + $0x898] sm:$0xff]
        %v701 = vld [vmem:[#allocation5 + $0x8a0] sm:$0xff]
        %v702 = vld [vmem:[#allocation5 + $0x8a8] sm:$0xff]
        %v703 = vld [vmem:[#allocation5 + $0x8b0] sm:$0xff]
        %v704 = vld [vmem:[#allocation5 + $0x8b8] sm:$0xff]
        %v705 = vld [vmem:[#allocation5 + $0x8c0] sm:$0xff]
        %v706 = vld [vmem:[#allocation5 + $0x8c8] sm:$0xff]
        %v707 = vld [vmem:[#allocation5 + $0x8d0] sm:$0xff]
        %v708 = vld [vmem:[#allocation5 + $0x8d8] sm:$0xff]
        %v709 = vld [vmem:[#allocation5 + $0x8e0] sm:$0xff]
        %v710 = vld [vmem:[#allocation5 + $0x8e8] sm:$0xff]
        %v711 = vld [vmem:[#allocation5 + $0x8f0] sm:$0xff]
        %v712 = vld [vmem:[#allocation5 + $0x8f8] sm:$0xff]
        %v713 = vld [vmem:[#allocation5 + $0x900] sm:$0xff]
        %v714 = vld [vmem:[#allocation5 + $0x908] sm:$0xff]
        %v715 = vld [vmem:[#allocation5 + $0x910] sm:$0xff]
        %v716 = vld [vmem:[#allocation5 + $0x918] sm:$0xff]
        %v717 = vld [vmem:[#allocation5 + $0x920] sm:$0xff]
        %v718 = vld [vmem:[#allocation5 + $0x928] sm:$0xff]
        %v719 = vld [vmem:[#allocation5 + $0x930] sm:$0xff]
        %v720 = vld [vmem:[#allocation5 + $0x938] sm:$0xff]
        %v721 = vld [vmem:[#allocation5 + $0x940] sm:$0xff]
        %v722 = vld [vmem:[#allocation5 + $0x948] sm:$0xff]
        %v723 = vld [vmem:[#allocation5 + $0x950] sm:$0xff]
        %v724 = vld [vmem:[#allocation5 + $0x958] sm:$0xff]
        %v725 = vld [vmem:[#allocation5 + $0x960] sm:$0xff]
        %v726 = vld [vmem:[#allocation5 + $0x968] sm:$0xff]
        %v727 = vld [vmem:[#allocation5 + $0x970] sm:$0xff]
        %v728 = vld [vmem:[#allocation5 + $0x978] sm:$0xff]
        %v729 = vld [vmem:[#allocation5 + $0x980] sm:$0xff]
        %v730 = vld [vmem:[#allocation5 + $0x988] sm:$0xff]
        %v731 = vld [vmem:[#allocation5 + $0x990] sm:$0xff]
        %v732 = vld [vmem:[#allocation5 + $0x998] sm:$0xff]
        %v733 = vld [vmem:[#allocation5 + $0x9a0] sm:$0xff]
        %v734 = vld [vmem:[#allocation5 + $0x9a8] sm:$0xff]
        %v735 = vld [vmem:[#allocation5 + $0x9b0] sm:$0xff]
        %v736 = vld [vmem:[#allocation5 + $0x9b8] sm:$0xff]
        %v737 = vld [vmem:[#allocation5 + $0x9c0] sm:$0xff]
        %v738 = vld [vmem:[#allocation5 + $0x9c8] sm:$0xff]
        %v739 = vld [vmem:[#allocation5 + $0x9d0] sm:$0xff]
        %v740 = vld [vmem:[#allocation5 + $0x9d8] sm:$0xff]
        %v741 = vld [vmem:[#allocation5 + $0x9e0] sm:$0xff]
        %v742 = vld [vmem:[#allocation5 + $0x9e8] sm:$0xff]
        %v743 = vld [vmem:[#allocation5 + $0x9f0] sm:$0xff]
        %v744 = vld [vmem:[#allocation5 + $0x9f8] sm:$0xff]
        %v745 = vld [vmem:[#allocation5 + $0xa00] sm:$0xff]
        %v746 = vld [vmem:[#allocation5 + $0xa08] sm:$0xff]
        %v747 = vld [vmem:[#allocation5 + $0xa10] sm:$0xff]
        %v748 = vld [vmem:[#allocation5 + $0xa18] sm:$0xff]
        %v749 = vld [vmem:[#allocation5 + $0xa20] sm:$0xff]
        %v750 = vld [vmem:[#allocation5 + $0xa28] sm:$0xff]
        %v751 = vld [vmem:[#allocation5 + $0xa30] sm:$0xff]
        %v752 = vld [vmem:[#allocation5 + $0xa38] sm:$0xff]
        %v753 = vld [vmem:[#allocation5 + $0xa40] sm:$0xff]
        %v754 = vld [vmem:[#allocation5 + $0xa48] sm:$0xff]
        %v755 = vld [vmem:[#allocation5 + $0xa50] sm:$0xff]
        %v756 = vld [vmem:[#allocation5 + $0xa58] sm:$0xff]
        %v757 = vld [vmem:[#allocation5 + $0xa60] sm:$0xff]
        %v758 = vld [vmem:[#allocation5 + $0xa68] sm:$0xff]
        %v759 = vld [vmem:[#allocation5 + $0xa70] sm:$0xff]
        %v760 = vld [vmem:[#allocation5 + $0xa78] sm:$0xff]
        %v761 = vld [vmem:[#allocation5 + $0xa80] sm:$0xff]
        %v762 = vld [vmem:[#allocation5 + $0xa88] sm:$0xff]
        %v763 = vld [vmem:[#allocation5 + $0xa90] sm:$0xff]
        %v764 = vld [vmem:[#allocation5 + $0xa98] sm:$0xff]
        %v765 = vld [vmem:[#allocation5 + $0xaa0] sm:$0xff]
        %v766 = vld [vmem:[#allocation5 + $0xaa8] sm:$0xff]
        %v767 = vld [vmem:[#allocation5 + $0xab0] sm:$0xff]
        %v768 = vld [vmem:[#allocation5 + $0xab8] sm:$0xff]
        %v769 = vld [vmem:[#allocation5 + $0xac0] sm:$0xff]
        %v770 = vld [vmem:[#allocation5 + $0xac8] sm:$0xff]
        %v771 = vld [vmem:[#allocation5 + $0xad0] sm:$0xff]
        %v772 = vld [vmem:[#allocation5 + $0xad8] sm:$0xff]
        %v773 = vld [vmem:[#allocation5 + $0xae0] sm:$0xff]
        %v774 = vld [vmem:[#allocation5 + $0xae8] sm:$0xff]
        %v775 = vld [vmem:[#allocation5 + $0xaf0] sm:$0xff]
        %v776 = vld [vmem:[#allocation5 + $0xaf8] sm:$0xff]
        %v777 = vld [vmem:[#allocation5 + $0xb00] sm:$0xff]
        %v778 = vld [vmem:[#allocation5 + $0xb08] sm:$0xff]
        %v779 = vld [vmem:[#allocation5 + $0xb10] sm:$0xff]
        %v780 = vld [vmem:[#allocation5 + $0xb18] sm:$0xff]
        %v781 = vld [vmem:[#allocation5 + $0xb20] sm:$0xff]
        %v782 = vld [vmem:[#allocation5 + $0xb28] sm:$0xff]
        %v783 = vld [vmem:[#allocation5 + $0xb30] sm:$0xff]
        %v784 = vld [vmem:[#allocation5 + $0xb38] sm:$0xff]
        %v785 = vld [vmem:[#allocation5 + $0xb40] sm:$0xff]
        %v786 = vld [vmem:[#allocation5 + $0xb48] sm:$0xff]
        %v787 = vld [vmem:[#allocation5 + $0xb50] sm:$0xff]
        %v788 = vld [vmem:[#allocation5 + $0xb58] sm:$0xff]
        %v789 = vld [vmem:[#allocation5 + $0xb60] sm:$0xff]
        %v790 = vld [vmem:[#allocation5 + $0xb68] sm:$0xff]
        %v791 = vld [vmem:[#allocation5 + $0xb70] sm:$0xff]
        %v792 = vld [vmem:[#allocation5 + $0xb78] sm:$0xff]
        %v793 = vld [vmem:[#allocation5 + $0xb80] sm:$0xff]
        %v794 = vld [vmem:[#allocation5 + $0xb88] sm:$0xff]
        %v795 = vld [vmem:[#allocation5 + $0xb90] sm:$0xff]
        %v796 = vld [vmem:[#allocation5 + $0xb98] sm:$0xff]
        %v797 = vld [vmem:[#allocation5 + $0xba0] sm:$0xff]
        %v798 = vld [vmem:[#allocation5 + $0xba8] sm:$0xff]
        %v799 = vld [vmem:[#allocation5 + $0xbb0] sm:$0xff]
        %v800 = vld [vmem:[#allocation5 + $0xbb8] sm:$0xff]
        %v801 = vld [vmem:[#allocation5 + $0xbc0] sm:$0xff]
        %v802 = vld [vmem:[#allocation5 + $0xbc8] sm:$0xff]
        %v803 = vld [vmem:[#allocation5 + $0xbd0] sm:$0xff]
        %v804 = vld [vmem:[#allocation5 + $0xbd8] sm:$0xff]
        %v805 = vld [vmem:[#allocation5 + $0xbe0] sm:$0xff]
        %v806 = vld [vmem:[#allocation5 + $0xbe8] sm:$0xff]
        %v807 = vld [vmem:[#allocation5 + $0xbf0] sm:$0xff]
        %v808 = vld [vmem:[#allocation5 + $0xbf8] sm:$0xff]
        %v809 = vld [vmem:[#allocation5 + $0xc00] sm:$0xff]
        %v810 = vld [vmem:[#allocation5 + $0xc08] sm:$0xff]
        %v811 = vld [vmem:[#allocation5 + $0xc10] sm:$0xff]
        %v812 = vld [vmem:[#allocation5 + $0xc18] sm:$0xff]
        %v813 = vld [vmem:[#allocation5 + $0xc20] sm:$0xff]
        %v814 = vld [vmem:[#allocation5 + $0xc28] sm:$0xff]
        %v815 = vld [vmem:[#allocation5 + $0xc30] sm:$0xff]
        %v816 = vld [vmem:[#allocation5 + $0xc38] sm:$0xff]
        %v817 = vld [vmem:[#allocation5 + $0xc40] sm:$0xff]
        %v818 = vld [vmem:[#allocation5 + $0xc48] sm:$0xff]
        %v819 = vld [vmem:[#allocation5 + $0xc50] sm:$0xff]
        %v820 = vld [vmem:[#allocation5 + $0xc58] sm:$0xff]
        %v821 = vld [vmem:[#allocation5 + $0xc60] sm:$0xff]
        %v822 = vld [vmem:[#allocation5 + $0xc68] sm:$0xff]
        %v823 = vld [vmem:[#allocation5 + $0xc70] sm:$0xff]
        %v824 = vld [vmem:[#allocation5 + $0xc78] sm:$0xff]
        %v825 = vld [vmem:[#allocation5 + $0xc80] sm:$0xff]
        %v826 = vld [vmem:[#allocation5 + $0xc88] sm:$0xff]
        %v827 = vld [vmem:[#allocation5 + $0xc90] sm:$0xff]
        %v828 = vld [vmem:[#allocation5 + $0xc98] sm:$0xff]
        %v829 = vld [vmem:[#allocation5 + $0xca0] sm:$0xff]
        %v830 = vld [vmem:[#allocation5 + $0xca8] sm:$0xff]
        %v831 = vld [vmem:[#allocation5 + $0xcb0] sm:$0xff]
        %v832 = vld [vmem:[#allocation5 + $0xcb8] sm:$0xff]
        %v833 = vld [vmem:[#allocation5 + $0xcc0] sm:$0xff]
        %v834 = vld [vmem:[#allocation5 + $0xcc8] sm:$0xff]
        %v835 = vld [vmem:[#allocation5 + $0xcd0] sm:$0xff]
        %v836 = vld [vmem:[#allocation5 + $0xcd8] sm:$0xff]
        %v837 = vld [vmem:[#allocation5 + $0xce0] sm:$0xff]
        %v838 = vld [vmem:[#allocation5 + $0xce8] sm:$0xff]
        %v839 = vld [vmem:[#allocation5 + $0xcf0] sm:$0xff]
        %v840 = vld [vmem:[#allocation5 + $0xcf8] sm:$0xff]
        %v841 = vld [vmem:[#allocation5 + $0xd00] sm:$0xff]
        %v842 = vld [vmem:[#allocation5 + $0xd08] sm:$0xff]
        %v843 = vld [vmem:[#allocation5 + $0xd10] sm:$0xff]
        %v844 = vld [vmem:[#allocation5 + $0xd18] sm:$0xff]
        %v845 = vld [vmem:[#allocation5 + $0xd20] sm:$0xff]
        %v846 = vld [vmem:[#allocation5 + $0xd28] sm:$0xff]
        %v847 = vld [vmem:[#allocation5 + $0xd30] sm:$0xff]
        %v848 = vld [vmem:[#allocation5 + $0xd38] sm:$0xff]
        %v849 = vld [vmem:[#allocation5 + $0xd40] sm:$0xff]
        %v850 = vld [vmem:[#allocation5 + $0xd48] sm:$0xff]
        %v851 = vld [vmem:[#allocation5 + $0xd50] sm:$0xff]
        %v852 = vld [vmem:[#allocation5 + $0xd58] sm:$0xff]
        %v853 = vld [vmem:[#allocation5 + $0xd60] sm:$0xff]
        %v854 = vld [vmem:[#allocation5 + $0xd68] sm:$0xff]
        %v855 = vld [vmem:[#allocation5 + $0xd70] sm:$0xff]
        %v856 = vld [vmem:[#allocation5 + $0xd78] sm:$0xff]
        %v857 = vld [vmem:[#allocation5 + $0xd80] sm:$0xff]
        %v858 = vld [vmem:[#allocation5 + $0xd88] sm:$0xff]
        %v859 = vld [vmem:[#allocation5 + $0xd90] sm:$0xff]
        %v860 = vld [vmem:[#allocation5 + $0xd98] sm:$0xff]
        %v861 = vld [vmem:[#allocation5 + $0xda0] sm:$0xff]
        %v862 = vld [vmem:[#allocation5 + $0xda8] sm:$0xff]
        %v863 = vld [vmem:[#allocation5 + $0xdb0] sm:$0xff]
        %v864 = vld [vmem:[#allocation5 + $0xdb8] sm:$0xff]
        %v865 = vld [vmem:[#allocation5 + $0xdc0] sm:$0xff]
        %v866 = vld [vmem:[#allocation5 + $0xdc8] sm:$0xff]
        %v867 = vld [vmem:[#allocation5 + $0xdd0] sm:$0xff]
        %v868 = vld [vmem:[#allocation5 + $0xdd8] sm:$0xff]
        %v869 = vld [vmem:[#allocation5 + $0xde0] sm:$0xff]
        %v870 = vld [vmem:[#allocation5 + $0xde8] sm:$0xff]
        %v871 = vld [vmem:[#allocation5 + $0xdf0] sm:$0xff]
        %v872 = vld [vmem:[#allocation5 + $0xdf8] sm:$0xff]
        %v873 = vld [vmem:[#allocation5 + $0xe00] sm:$0xff]
        %v874 = vld [vmem:[#allocation5 + $0xe08] sm:$0xff]
        %v875 = vld [vmem:[#allocation5 + $0xe10] sm:$0xff]
        %v876 = vld [vmem:[#allocation5 + $0xe18] sm:$0xff]
        %v877 = vld [vmem:[#allocation5 + $0xe20] sm:$0xff]
        %v878 = vld [vmem:[#allocation5 + $0xe28] sm:$0xff]
        %v879 = vld [vmem:[#allocation5 + $0xe30] sm:$0xff]
        %v880 = vld [vmem:[#allocation5 + $0xe38] sm:$0xff]
        %v881 = vld [vmem:[#allocation5 + $0xe40] sm:$0xff]
        %v882 = vld [vmem:[#allocation5 + $0xe48] sm:$0xff]
        %v883 = vld [vmem:[#allocation5 + $0xe50] sm:$0xff]
        %v884 = vld [vmem:[#allocation5 + $0xe58] sm:$0xff]
        %v885 = vld [vmem:[#allocation5 + $0xe60] sm:$0xff]
        %v886 = vld [vmem:[#allocation5 + $0xe68] sm:$0xff]
        %v887 = vld [vmem:[#allocation5 + $0xe70] sm:$0xff]
        %v888 = vld [vmem:[#allocation5 + $0xe78] sm:$0xff]
        %v889 = vld [vmem:[#allocation5 + $0xe80] sm:$0xff]
        %v890 = vld [vmem:[#allocation5 + $0xe88] sm:$0xff]
        %v891 = vld [vmem:[#allocation5 + $0xe90] sm:$0xff]
        %v892 = vld [vmem:[#allocation5 + $0xe98] sm:$0xff]
        %v893 = vld [vmem:[#allocation5 + $0xea0] sm:$0xff]
        %v894 = vld [vmem:[#allocation5 + $0xea8] sm:$0xff]
        %v895 = vld [vmem:[#allocation5 + $0xeb0] sm:$0xff]
        %v896 = vld [vmem:[#allocation5 + $0xeb8] sm:$0xff]
        %v897 = vld [vmem:[#allocation5 + $0xec0] sm:$0xff]
        %v898 = vld [vmem:[#allocation5 + $0xec8] sm:$0xff]
        %v899 = vld [vmem:[#allocation5 + $0xed0] sm:$0xff]
        %v900 = vld [vmem:[#allocation5 + $0xed8] sm:$0xff]
        %v901 = vld [vmem:[#allocation5 + $0xee0] sm:$0xff]
        %v902 = vld [vmem:[#allocation5 + $0xee8] sm:$0xff]
        %v903 = vld [vmem:[#allocation5 + $0xef0] sm:$0xff]
        %v904 = vld [vmem:[#allocation5 + $0xef8] sm:$0xff]
        %v905 = vld [vmem:[#allocation5 + $0xf00] sm:$0xff]
        %v906 = vld [vmem:[#allocation5 + $0xf08] sm:$0xff]
        %v907 = vld [vmem:[#allocation5 + $0xf10] sm:$0xff]
        %v908 = vld [vmem:[#allocation5 + $0xf18] sm:$0xff]
        %v909 = vld [vmem:[#allocation5 + $0xf20] sm:$0xff]
        %v910 = vld [vmem:[#allocation5 + $0xf28] sm:$0xff]
        %v911 = vld [vmem:[#allocation5 + $0xf30] sm:$0xff]
        %v912 = vld [vmem:[#allocation5 + $0xf38] sm:$0xff]
        %v913 = vld [vmem:[#allocation5 + $0xf40] sm:$0xff]
        %v914 = vld [vmem:[#allocation5 + $0xf48] sm:$0xff]
        %v915 = vld [vmem:[#allocation5 + $0xf50] sm:$0xff]
        %v916 = vld [vmem:[#allocation5 + $0xf58] sm:$0xff]
        %v917 = vld [vmem:[#allocation5 + $0xf60] sm:$0xff]
        %v918 = vld [vmem:[#allocation5 + $0xf68] sm:$0xff]
        %v919 = vld [vmem:[#allocation5 + $0xf70] sm:$0xff]
        %v920 = vld [vmem:[#allocation5 + $0xf78] sm:$0xff]
        %v921 = vld [vmem:[#allocation5 + $0xf80] sm:$0xff]
        %v922 = vld [vmem:[#allocation5 + $0xf88] sm:$0xff]
        %v923 = vld [vmem:[#allocation5 + $0xf90] sm:$0xff]
        %v924 = vld [vmem:[#allocation5 + $0xf98] sm:$0xff]
        %v925 = vld [vmem:[#allocation5 + $0xfa0] sm:$0xff]
        %v926 = vld [vmem:[#allocation5 + $0xfa8] sm:$0xff]
        %v927 = vld [vmem:[#allocation5 + $0xfb0] sm:$0xff]
        %v928 = vld [vmem:[#allocation5 + $0xfb8] sm:$0xff]
        %v929 = vld [vmem:[#allocation5 + $0xfc0] sm:$0xff]
        %v930 = vld [vmem:[#allocation5 + $0xfc8] sm:$0xff]
        %v931 = vld [vmem:[#allocation5 + $0xfd0] sm:$0xff]
        %v932 = vld [vmem:[#allocation5 + $0xfd8] sm:$0xff]
        %v933 = vld [vmem:[#allocation5 + $0xfe0] sm:$0xff]
        %v934 = vld [vmem:[#allocation5 + $0xfe8] sm:$0xff]
        %v935 = vld [vmem:[#allocation5 + $0xff0] sm:$0xff]
        %v936 = vld [vmem:[#allocation5 + $0xff8] sm:$0xff]
        %v937 = vld [vmem:[#allocation5 + $0x1000] sm:$0xff]
        %v938 = vld [vmem:[#allocation5 + $0x1008] sm:$0xff]
        %v939 = vld [vmem:[#allocation5 + $0x1010] sm:$0xff]
        %v940 = vld [vmem:[#allocation5 + $0x1018] sm:$0xff]
        %v941 = vld [vmem:[#allocation5 + $0x1020] sm:$0xff]
        %v942 = vld [vmem:[#allocation5 + $0x1028] sm:$0xff]
        %v943 = vld [vmem:[#allocation5 + $0x1030] sm:$0xff]
        %v944 = vld [vmem:[#allocation5 + $0x1038] sm:$0xff]
        %v945 = vld [vmem:[#allocation5 + $0x1040] sm:$0xff]
        %v946 = vld [vmem:[#allocation5 + $0x1048] sm:$0xff]
        %v947 = vld [vmem:[#allocation5 + $0x1050] sm:$0xff]
        %v948 = vld [vmem:[#allocation5 + $0x1058] sm:$0xff]
        %v949 = vld [vmem:[#allocation5 + $0x1060] sm:$0xff]
        %v950 = vld [vmem:[#allocation5 + $0x1068] sm:$0xff]
        %v951 = vld [vmem:[#allocation5 + $0x1070] sm:$0xff]
        %v952 = vld [vmem:[#allocation5 + $0x1078] sm:$0xff]
        %v953 = vld [vmem:[#allocation5 + $0x1080] sm:$0xff]
        %v954 = vld [vmem:[#allocation5 + $0x1088] sm:$0xff]
        %v955 = vld [vmem:[#allocation5 + $0x1090] sm:$0xff]
        %v956 = vld [vmem:[#allocation5 + $0x1098] sm:$0xff]
        %v957 = vld [vmem:[#allocation5 + $0x10a0] sm:$0xff]
        %v958 = vld [vmem:[#allocation5 + $0x10a8] sm:$0xff]
        %v959 = vld [vmem:[#allocation5 + $0x10b0] sm:$0xff]
        %v960 = vld [vmem:[#allocation5 + $0x10b8] sm:$0xff]
        %v961 = vld [vmem:[#allocation5 + $0x10c0] sm:$0xff]
        %v962 = vld [vmem:[#allocation5 + $0x10c8] sm:$0xff]
        %v963 = vld [vmem:[#allocation5 + $0x10d0] sm:$0xff]
        %v964 = vld [vmem:[#allocation5 + $0x10d8] sm:$0xff]
        %v965 = vld [vmem:[#allocation5 + $0x10e0] sm:$0xff]
        %v966 = vld [vmem:[#allocation5 + $0x10e8] sm:$0xff]
        %v967 = vld [vmem:[#allocation5 + $0x10f0] sm:$0xff]
        %v968 = vld [vmem:[#allocation5 + $0x10f8] sm:$0xff]
        %v969 = vld [vmem:[#allocation5 + $0x1100] sm:$0xff]
        %v970 = vld [vmem:[#allocation5 + $0x1108] sm:$0xff]
        %v971 = vld [vmem:[#allocation5 + $0x1110] sm:$0xff]
        %v972 = vld [vmem:[#allocation5 + $0x1118] sm:$0xff]
        %v973 = vld [vmem:[#allocation5 + $0x1120] sm:$0xff]
        %v974 = vld [vmem:[#allocation5 + $0x1128] sm:$0xff]
        %v975 = vld [vmem:[#allocation5 + $0x1130] sm:$0xff]
        %v976 = vld [vmem:[#allocation5 + $0x1138] sm:$0xff]
        %v977 = vld [vmem:[#allocation5 + $0x1140] sm:$0xff]
        %v978 = vld [vmem:[#allocation5 + $0x1148] sm:$0xff]
        %v979 = vld [vmem:[#allocation5 + $0x1150] sm:$0xff]
        %v980 = vld [vmem:[#allocation5 + $0x1158] sm:$0xff]
        %v981 = vld [vmem:[#allocation5 + $0x1160] sm:$0xff]
        %v982 = vld [vmem:[#allocation5 + $0x1168] sm:$0xff]
        %v983 = vld [vmem:[#allocation5 + $0x1170] sm:$0xff]
        %v984 = vld [vmem:[#allocation5 + $0x1178] sm:$0xff]
        %v985 = vld [vmem:[#allocation5 + $0x1180] sm:$0xff]
        %v986 = vld [vmem:[#allocation5 + $0x1188] sm:$0xff]
        %v987 = vld [vmem:[#allocation5 + $0x1190] sm:$0xff]
        %v988 = vld [vmem:[#allocation5 + $0x1198] sm:$0xff]
        %v989 = vld [vmem:[#allocation5 + $0x11a0] sm:$0xff]
        %v990 = vld [vmem:[#allocation5 + $0x11a8] sm:$0xff]
        %v991 = vld [vmem:[#allocation5 + $0x11b0] sm:$0xff]
        %v992 = vld [vmem:[#allocation5 + $0x11b8] sm:$0xff]
        %v993 = vld [vmem:[#allocation5 + $0x11c0] sm:$0xff]
        %v994 = vld [vmem:[#allocation5 + $0x11c8] sm:$0xff]
        %v995 = vld [vmem:[#allocation5 + $0x11d0] sm:$0xff]
        %v996 = vld [vmem:[#allocation5 + $0x11d8] sm:$0xff]
        %v997 = vld [vmem:[#allocation5 + $0x11e0] sm:$0xff]
        %v998 = vld [vmem:[#allocation5 + $0x11e8] sm:$0xff]
        %v999 = vld [vmem:[#allocation5 + $0x11f0] sm:$0xff]
        %v1000 = vld [vmem:[#allocation5 + $0x11f8] sm:$0xff]
        %v1001 = vld [vmem:[#allocation5 + $0x1200] sm:$0xff]
        %v1002 = vld [vmem:[#allocation5 + $0x1208] sm:$0xff]
        %v1003 = vld [vmem:[#allocation5 + $0x1210] sm:$0xff]
        %v1004 = vld [vmem:[#allocation5 + $0x1218] sm:$0xff]
        %v1005 = vld [vmem:[#allocation5 + $0x1220] sm:$0xff]
        %v1006 = vld [vmem:[#allocation5 + $0x1228] sm:$0xff]
        %v1007 = vld [vmem:[#allocation5 + $0x1230] sm:$0xff]
        %v1008 = vld [vmem:[#allocation5 + $0x1238] sm:$0xff]
        %v1009 = vld [vmem:[#allocation5 + $0x1240] sm:$0xff]
        %v1010 = vld [vmem:[#allocation5 + $0x1248] sm:$0xff]
        %v1011 = vld [vmem:[#allocation5 + $0x1250] sm:$0xff]
        %v1012 = vld [vmem:[#allocation5 + $0x1258] sm:$0xff]
        %v1013 = vld [vmem:[#allocation5 + $0x1260] sm:$0xff]
        %v1014 = vld [vmem:[#allocation5 + $0x1268] sm:$0xff]
        %v1015 = vld [vmem:[#allocation5 + $0x1270] sm:$0xff]
        %v1016 = vld [vmem:[#allocation5 + $0x1278] sm:$0xff]
        %v1017 = vld [vmem:[#allocation5 + $0x1280] sm:$0xff]
        %v1018 = vld [vmem:[#allocation5 + $0x1288] sm:$0xff]
        %v1019 = vld [vmem:[#allocation5 + $0x1290] sm:$0xff]
        %v1020 = vld [vmem:[#allocation5 + $0x1298] sm:$0xff]
        %v1021 = vld [vmem:[#allocation5 + $0x12a0] sm:$0xff]
        %v1022 = vld [vmem:[#allocation5 + $0x12a8] sm:$0xff]
        %v1023 = vld [vmem:[#allocation5 + $0x12b0] sm:$0xff]
        %v1024 = vld [vmem:[#allocation5 + $0x12b8] sm:$0xff]
        %v1025 = vld [vmem:[#allocation5 + $0x12c0] sm:$0xff]
        %v1026 = vld [vmem:[#allocation5 + $0x12c8] sm:$0xff]
        %v1027 = vld [vmem:[#allocation5 + $0x12d0] sm:$0xff]
        %v1028 = vld [vmem:[#allocation5 + $0x12d8] sm:$0xff]
        %v1029 = vld [vmem:[#allocation5 + $0x12e0] sm:$0xff]
        %v1030 = vld [vmem:[#allocation5 + $0x12e8] sm:$0xff]
        %v1031 = vld [vmem:[#allocation5 + $0x12f0] sm:$0xff]
        %v1032 = vld [vmem:[#allocation5 + $0x12f8] sm:$0xff]
        %v1033 = vld [vmem:[#allocation5 + $0x1300] sm:$0xff]
        %v1034 = vld [vmem:[#allocation5 + $0x1308] sm:$0xff]
        %v1035 = vld [vmem:[#allocation5 + $0x1310] sm:$0xff]
        %v1036 = vld [vmem:[#allocation5 + $0x1318] sm:$0xff]
        %v1037 = vld [vmem:[#allocation5 + $0x1320] sm:$0xff]
        %v1038 = vld [vmem:[#allocation5 + $0x1328] sm:$0xff]
        %v1039 = vld [vmem:[#allocation5 + $0x1330] sm:$0xff]
        %v1040 = vld [vmem:[#allocation5 + $0x1338] sm:$0xff]
        %v1041 = vld [vmem:[#allocation5 + $0x1340] sm:$0xff]
        %v1042 = vld [vmem:[#allocation5 + $0x1348] sm:$0xff]
        %v1043 = vld [vmem:[#allocation5 + $0x1350] sm:$0xff]
        %v1044 = vld [vmem:[#allocation5 + $0x1358] sm:$0xff]
        %v1045 = vld [vmem:[#allocation5 + $0x1360] sm:$0xff]
        %v1046 = vld [vmem:[#allocation5 + $0x1368] sm:$0xff]
        %v1047 = vld [vmem:[#allocation5 + $0x1370] sm:$0xff]
        %v1048 = vld [vmem:[#allocation5 + $0x1378] sm:$0xff]
        %v1049 = vld [vmem:[#allocation5 + $0x1380] sm:$0xff]
        %v1050 = vld [vmem:[#allocation5 + $0x1388] sm:$0xff]
        %v1051 = vld [vmem:[#allocation5 + $0x1390] sm:$0xff]
        %v1052 = vld [vmem:[#allocation5 + $0x1398] sm:$0xff]
        %v1053 = vld [vmem:[#allocation5 + $0x13a0] sm:$0xff]
        %v1054 = vld [vmem:[#allocation5 + $0x13a8] sm:$0xff]
        %v1055 = vld [vmem:[#allocation5 + $0x13b0] sm:$0xff]
        %v1056 = vld [vmem:[#allocation5 + $0x13b8] sm:$0xff]
        %v1057 = vld [vmem:[#allocation5 + $0x13c0] sm:$0xff]
        %v1058 = vld [vmem:[#allocation5 + $0x13c8] sm:$0xff]
        %v1059 = vld [vmem:[#allocation5 + $0x13d0] sm:$0xff]
        %v1060 = vld [vmem:[#allocation5 + $0x13d8] sm:$0xff]
        %v1061 = vld [vmem:[#allocation5 + $0x13e0] sm:$0xff]
        %v1062 = vld [vmem:[#allocation5 + $0x13e8] sm:$0xff]
        %v1063 = vld [vmem:[#allocation5 + $0x13f0] sm:$0xff]
        %v1064 = vld [vmem:[#allocation5 + $0x13f8] sm:$0xff]
        %v1065 = vld [vmem:[#allocation5 + $0x1400] sm:$0xff]
        %v1066 = vld [vmem:[#allocation5 + $0x1408] sm:$0xff]
        %v1067 = vld [vmem:[#allocation5 + $0x1410] sm:$0xff]
        %v1068 = vld [vmem:[#allocation5 + $0x1418] sm:$0xff]
        %v1069 = vld [vmem:[#allocation5 + $0x1420] sm:$0xff]
        %v1070 = vld [vmem:[#allocation5 + $0x1428] sm:$0xff]
        %v1071 = vld [vmem:[#allocation5 + $0x1430] sm:$0xff]
        %v1072 = vld [vmem:[#allocation5 + $0x1438] sm:$0xff]
        %v1073 = vld [vmem:[#allocation5 + $0x1440] sm:$0xff]
        %v1074 = vld [vmem:[#allocation5 + $0x1448] sm:$0xff]
        %v1075 = vld [vmem:[#allocation5 + $0x1450] sm:$0xff]
        %v1076 = vld [vmem:[#allocation5 + $0x1458] sm:$0xff]
        %v1077 = vld [vmem:[#allocation5 + $0x1460] sm:$0xff]
        %v1078 = vld [vmem:[#allocation5 + $0x1468] sm:$0xff]
        %v1079 = vld [vmem:[#allocation5 + $0x1470] sm:$0xff]
        %v1080 = vld [vmem:[#allocation5 + $0x1478] sm:$0xff]
        %v1081 = vld [vmem:[#allocation5 + $0x1480] sm:$0xff]
        %v1082 = vld [vmem:[#allocation5 + $0x1488] sm:$0xff]
        %v1083 = vld [vmem:[#allocation5 + $0x1490] sm:$0xff]
        %v1084 = vld [vmem:[#allocation5 + $0x1498] sm:$0xff]
        %v1085 = vld [vmem:[#allocation5 + $0x14a0] sm:$0xff]
        %v1086 = vld [vmem:[#allocation5 + $0x14a8] sm:$0xff]
        %v1087 = vld [vmem:[#allocation5 + $0x14b0] sm:$0xff]
        %v1088 = vld [vmem:[#allocation5 + $0x14b8] sm:$0xff]
        %v1089 = vld [vmem:[#allocation5 + $0x14c0] sm:$0xff]
        %v1090 = vld [vmem:[#allocation5 + $0x14c8] sm:$0xff]
        %v1091 = vld [vmem:[#allocation5 + $0x14d0] sm:$0xff]
        %v1092 = vld [vmem:[#allocation5 + $0x14d8] sm:$0xff]
        %v1093 = vld [vmem:[#allocation5 + $0x14e0] sm:$0xff]
        %v1094 = vld [vmem:[#allocation5 + $0x14e8] sm:$0xff]
        %v1095 = vld [vmem:[#allocation5 + $0x14f0] sm:$0xff]
        %v1096 = vld [vmem:[#allocation5 + $0x14f8] sm:$0xff]
        %v1097 = vld [vmem:[#allocation5 + $0x1500] sm:$0xff]
        %v1098 = vld [vmem:[#allocation5 + $0x1508] sm:$0xff]
        %v1099 = vld [vmem:[#allocation5 + $0x1510] sm:$0xff]
        %v1100 = vld [vmem:[#allocation5 + $0x1518] sm:$0xff]
        %v1101 = vld [vmem:[#allocation5 + $0x1520] sm:$0xff]
        %v1102 = vld [vmem:[#allocation5 + $0x1528] sm:$0xff]
        %v1103 = vld [vmem:[#allocation5 + $0x1530] sm:$0xff]
        %v1104 = vld [vmem:[#allocation5 + $0x1538] sm:$0xff]
        %v1105 = vld [vmem:[#allocation5 + $0x1540] sm:$0xff]
        %v1106 = vld [vmem:[#allocation5 + $0x1548] sm:$0xff]
        %v1107 = vld [vmem:[#allocation5 + $0x1550] sm:$0xff]
        %v1108 = vld [vmem:[#allocation5 + $0x1558] sm:$0xff]
        %v1109 = vld [vmem:[#allocation5 + $0x1560] sm:$0xff]
        %v1110 = vld [vmem:[#allocation5 + $0x1568] sm:$0xff]
        %v1111 = vld [vmem:[#allocation5 + $0x1570] sm:$0xff]
        %v1112 = vld [vmem:[#allocation5 + $0x1578] sm:$0xff]
        %v1113 = vld [vmem:[#allocation5 + $0x1580] sm:$0xff]
        %v1114 = vld [vmem:[#allocation5 + $0x1588] sm:$0xff]
        %v1115 = vld [vmem:[#allocation5 + $0x1590] sm:$0xff]
        %v1116 = vld [vmem:[#allocation5 + $0x1598] sm:$0xff]
        %v1117 = vld [vmem:[#allocation5 + $0x15a0] sm:$0xff]
        %v1118 = vld [vmem:[#allocation5 + $0x15a8] sm:$0xff]
        %v1119 = vld [vmem:[#allocation5 + $0x15b0] sm:$0xff]
        %v1120 = vld [vmem:[#allocation5 + $0x15b8] sm:$0xff]
        %v1121 = vld [vmem:[#allocation5 + $0x15c0] sm:$0xff]
        %v1122 = vld [vmem:[#allocation5 + $0x15c8] sm:$0xff]
        %v1123 = vld [vmem:[#allocation5 + $0x15d0] sm:$0xff]
        %v1124 = vld [vmem:[#allocation5 + $0x15d8] sm:$0xff]
        %v1125 = vld [vmem:[#allocation5 + $0x15e0] sm:$0xff]
        %v1126 = vld [vmem:[#allocation5 + $0x15e8] sm:$0xff]
        %v1127 = vld [vmem:[#allocation5 + $0x15f0] sm:$0xff]
        %v1128 = vld [vmem:[#allocation5 + $0x15f8] sm:$0xff]
        %v1129 = vld [vmem:[#allocation5 + $0x1600] sm:$0xff]
        %v1130 = vld [vmem:[#allocation5 + $0x1608] sm:$0xff]
        %v1131 = vld [vmem:[#allocation5 + $0x1610] sm:$0xff]
        %v1132 = vld [vmem:[#allocation5 + $0x1618] sm:$0xff]
        %v1133 = vld [vmem:[#allocation5 + $0x1620] sm:$0xff]
        %v1134 = vld [vmem:[#allocation5 + $0x1628] sm:$0xff]
        %v1135 = vld [vmem:[#allocation5 + $0x1630] sm:$0xff]
        %v1136 = vld [vmem:[#allocation5 + $0x1638] sm:$0xff]
        %v1137 = vld [vmem:[#allocation5 + $0x1640] sm:$0xff]
        %v1138 = vld [vmem:[#allocation5 + $0x1648] sm:$0xff]
        %v1139 = vld [vmem:[#allocation5 + $0x1650] sm:$0xff]
        %v1140 = vld [vmem:[#allocation5 + $0x1658] sm:$0xff]
        %v1141 = vld [vmem:[#allocation5 + $0x1660] sm:$0xff]
        %v1142 = vld [vmem:[#allocation5 + $0x1668] sm:$0xff]
        %v1143 = vld [vmem:[#allocation5 + $0x1670] sm:$0xff]
        %v1144 = vld [vmem:[#allocation5 + $0x1678] sm:$0xff]
        %v1145 = vld [vmem:[#allocation5 + $0x1680] sm:$0xff]
        %v1146 = vld [vmem:[#allocation5 + $0x1688] sm:$0xff]
        %v1147 = vld [vmem:[#allocation5 + $0x1690] sm:$0xff]
        %v1148 = vld [vmem:[#allocation5 + $0x1698] sm:$0xff]
        %v1149 = vld [vmem:[#allocation5 + $0x16a0] sm:$0xff]
        %v1150 = vld [vmem:[#allocation5 + $0x16a8] sm:$0xff]
        %v1151 = vld [vmem:[#allocation5 + $0x16b0] sm:$0xff]
        %v1152 = vld [vmem:[#allocation5 + $0x16b8] sm:$0xff]
        %v1153 = vld [vmem:[#allocation5 + $0x16c0] sm:$0xff]
        %v1154 = vld [vmem:[#allocation5 + $0x16c8] sm:$0xff]
        %v1155 = vld [vmem:[#allocation5 + $0x16d0] sm:$0xff]
        %v1156 = vld [vmem:[#allocation5 + $0x16d8] sm:$0xff]
        %v1157 = vld [vmem:[#allocation5 + $0x16e0] sm:$0xff]
        %v1158 = vld [vmem:[#allocation5 + $0x16e8] sm:$0xff]
        %v1159 = vld [vmem:[#allocation5 + $0x16f0] sm:$0xff]
        %v1160 = vld [vmem:[#allocation5 + $0x16f8] sm:$0xff]
        %v1161 = vld [vmem:[#allocation5 + $0x1700] sm:$0xff]
        %v1162 = vld [vmem:[#allocation5 + $0x1708] sm:$0xff]
        %v1163 = vld [vmem:[#allocation5 + $0x1710] sm:$0xff]
        %v1164 = vld [vmem:[#allocation5 + $0x1718] sm:$0xff]
        %v1165 = vld [vmem:[#allocation5 + $0x1720] sm:$0xff]
        %v1166 = vld [vmem:[#allocation5 + $0x1728] sm:$0xff]
        %v1167 = vld [vmem:[#allocation5 + $0x1730] sm:$0xff]
        %v1168 = vld [vmem:[#allocation5 + $0x1738] sm:$0xff]
        %v1169 = vld [vmem:[#allocation5 + $0x1740] sm:$0xff]
        %v1170 = vld [vmem:[#allocation5 + $0x1748] sm:$0xff]
        %v1171 = vld [vmem:[#allocation5 + $0x1750] sm:$0xff]
        %v1172 = vld [vmem:[#allocation5 + $0x1758] sm:$0xff]
        %v1173 = vld [vmem:[#allocation5 + $0x1760] sm:$0xff]
        %v1174 = vld [vmem:[#allocation5 + $0x1768] sm:$0xff]
        %v1175 = vld [vmem:[#allocation5 + $0x1770] sm:$0xff]
        %v1176 = vld [vmem:[#allocation5 + $0x1778] sm:$0xff]
        %v1177 = vld [vmem:[#allocation5 + $0x1780] sm:$0xff]
        %v1178 = vld [vmem:[#allocation5 + $0x1788] sm:$0xff]
        %v1179 = vld [vmem:[#allocation5 + $0x1790] sm:$0xff]
        %v1180 = vld [vmem:[#allocation5 + $0x1798] sm:$0xff]
        %v1181 = vld [vmem:[#allocation5 + $0x17a0] sm:$0xff]
        %v1182 = vld [vmem:[#allocation5 + $0x17a8] sm:$0xff]
        %v1183 = vld [vmem:[#allocation5 + $0x17b0] sm:$0xff]
        %v1184 = vld [vmem:[#allocation5 + $0x17b8] sm:$0xff]
        %v1185 = vld [vmem:[#allocation5 + $0x17c0] sm:$0xff]
        %v1186 = vld [vmem:[#allocation5 + $0x17c8] sm:$0xff]
        %v1187 = vld [vmem:[#allocation5 + $0x17d0] sm:$0xff]
        %v1188 = vld [vmem:[#allocation5 + $0x17d8] sm:$0xff]
        %v1189 = vld [vmem:[#allocation5 + $0x17e0] sm:$0xff]
        %v1190 = vld [vmem:[#allocation5 + $0x17e8] sm:$0xff]
        %v1191 = vld [vmem:[#allocation5 + $0x17f0] sm:$0xff]
        %v1192 = vld [vmem:[#allocation5 + $0x17f8] sm:$0xff]
        %v1193 = vld [vmem:[#allocation7] sm:$0xf]
        %v1195 = vlaneseq
        %v1196 = vshrl.u32 %v1195, 7
        %v1197 = vsub.s32 0, %v1196
        %v1198 = vrot.slane %v1193, %v1197
        %v1199 = vlaneseq
        %v1200 = vshrl.u32 %v1199, 7
        %v1201 = vsub.s32 1, %v1200
        %v1202 = vrot.slane %v1193, %v1201
        %v1203 = vlaneseq
        %v1204 = vshrl.u32 %v1203, 7
        %v1205 = vsub.s32 2, %v1204
        %v1206 = vrot.slane %v1193, %v1205
        %v1207 = vlaneseq
        %v1208 = vshrl.u32 %v1207, 7
        %v1209 = vsub.s32 3, %v1208
        %v1210 = vrot.slane %v1193, %v1209
        %v1983 = vunpack.c.l.b16 %v425
        %v1984 = vunpack.c.h.b16 %v425
        %v1985 = vunpack.c.l.b16 %v426
        %v1986 = vunpack.c.h.b16 %v426
        %v1987 = vunpack.c.l.b16 %v427
        %v1988 = vunpack.c.h.b16 %v427
        %v1989 = vunpack.c.l.b16 %v428
        %v1990 = vunpack.c.h.b16 %v428
        %v1991 = vunpack.c.l.b16 %v429
        %v1992 = vunpack.c.h.b16 %v429
        %v1993 = vunpack.c.l.b16 %v430
        %v1994 = vunpack.c.h.b16 %v430
        %v1995 = vunpack.c.l.b16 %v431
        %v1996 = vunpack.c.h.b16 %v431
        %v1997 = vunpack.c.l.b16 %v432
        %v1998 = vunpack.c.h.b16 %v432
        %v1999 = vunpack.c.l.b16 %v433
        %v2000 = vunpack.c.h.b16 %v433
        %v2001 = vunpack.c.l.b16 %v434
        %v2002 = vunpack.c.h.b16 %v434
        %v2003 = vunpack.c.l.b16 %v435
        %v2004 = vunpack.c.h.b16 %v435
        %v2005 = vunpack.c.l.b16 %v436
        %v2006 = vunpack.c.h.b16 %v436
        %v2007 = vunpack.c.l.b16 %v437
        %v2008 = vunpack.c.h.b16 %v437
        %v2009 = vunpack.c.l.b16 %v438
        %v2010 = vunpack.c.h.b16 %v438
        %v2011 = vunpack.c.l.b16 %v439
        %v2012 = vunpack.c.h.b16 %v439
        %v2013 = vunpack.c.l.b16 %v440
        %v2014 = vunpack.c.h.b16 %v440
        %v2015 = vunpack.c.l.b16 %v441
        %v2016 = vunpack.c.h.b16 %v441
        %v2017 = vunpack.c.l.b16 %v442
        %v2018 = vunpack.c.h.b16 %v442
        %v2019 = vunpack.c.l.b16 %v443
        %v2020 = vunpack.c.h.b16 %v443
        %v2021 = vunpack.c.l.b16 %v444
        %v2022 = vunpack.c.h.b16 %v444
        %v2023 = vunpack.c.l.b16 %v445
        %v2024 = vunpack.c.h.b16 %v445
        %v2025 = vunpack.c.l.b16 %v446
        %v2026 = vunpack.c.h.b16 %v446
        %v2027 = vunpack.c.l.b16 %v447
        %v2028 = vunpack.c.h.b16 %v447
        %v2029 = vunpack.c.l.b16 %v448
        %v2030 = vunpack.c.h.b16 %v448
        %v2031 = vunpack.c.l.b16 %v449
        %v2032 = vunpack.c.h.b16 %v449
        %v2033 = vunpack.c.l.b16 %v450
        %v2034 = vunpack.c.h.b16 %v450
        %v2035 = vunpack.c.l.b16 %v451
        %v2036 = vunpack.c.h.b16 %v451
        %v2037 = vunpack.c.l.b16 %v452
        %v2038 = vunpack.c.h.b16 %v452
        %v2039 = vunpack.c.l.b16 %v453
        %v2040 = vunpack.c.h.b16 %v453
        %v2041 = vunpack.c.l.b16 %v454
        %v2042 = vunpack.c.h.b16 %v454
        %v2043 = vunpack.c.l.b16 %v455
        %v2044 = vunpack.c.h.b16 %v455
        %v2045 = vunpack.c.l.b16 %v456
        %v2046 = vunpack.c.h.b16 %v456
        %v2047 = vunpack.c.l.b16 %v457
        %v2048 = vunpack.c.h.b16 %v457
        %v2049 = vunpack.c.l.b16 %v458
        %v2050 = vunpack.c.h.b16 %v458
        %v2051 = vunpack.c.l.b16 %v459
        %v2052 = vunpack.c.h.b16 %v459
        %v2053 = vunpack.c.l.b16 %v460
        %v2054 = vunpack.c.h.b16 %v460
        %v2055 = vunpack.c.l.b16 %v461
        %v2056 = vunpack.c.h.b16 %v461
        %v2057 = vunpack.c.l.b16 %v462
        %v2058 = vunpack.c.h.b16 %v462
        %v2059 = vunpack.c.l.b16 %v463
        %v2060 = vunpack.c.h.b16 %v463
        %v2061 = vunpack.c.l.b16 %v464
        %v2062 = vunpack.c.h.b16 %v464
        %v2063 = vunpack.c.l.b16 %v465
        %v2064 = vunpack.c.h.b16 %v465
        %v2065 = vunpack.c.l.b16 %v466
        %v2066 = vunpack.c.h.b16 %v466
        %v2067 = vunpack.c.l.b16 %v467
        %v2068 = vunpack.c.h.b16 %v467
        %v2069 = vunpack.c.l.b16 %v468
        %v2070 = vunpack.c.h.b16 %v468
        %v2071 = vunpack.c.l.b16 %v469
        %v2072 = vunpack.c.h.b16 %v469
        %v2073 = vunpack.c.l.b16 %v470
        %v2074 = vunpack.c.h.b16 %v470
        %v2075 = vunpack.c.l.b16 %v471
        %v2076 = vunpack.c.h.b16 %v471
        %v2077 = vunpack.c.l.b16 %v472
        %v2078 = vunpack.c.h.b16 %v472
        %v2079 = vunpack.c.l.b16 %v473
        %v2080 = vunpack.c.h.b16 %v473
        %v2081 = vunpack.c.l.b16 %v474
        %v2082 = vunpack.c.h.b16 %v474
        %v2083 = vunpack.c.l.b16 %v475
        %v2084 = vunpack.c.h.b16 %v475
        %v2085 = vunpack.c.l.b16 %v476
        %v2086 = vunpack.c.h.b16 %v476
        %v2087 = vunpack.c.l.b16 %v477
        %v2088 = vunpack.c.h.b16 %v477
        %v2089 = vunpack.c.l.b16 %v478
        %v2090 = vunpack.c.h.b16 %v478
        %v2091 = vunpack.c.l.b16 %v479
        %v2092 = vunpack.c.h.b16 %v479
        %v2093 = vunpack.c.l.b16 %v480
        %v2094 = vunpack.c.h.b16 %v480
        %v2095 = vunpack.c.l.b16 %v481
        %v2096 = vunpack.c.h.b16 %v481
        %v2097 = vunpack.c.l.b16 %v482
        %v2098 = vunpack.c.h.b16 %v482
        %v2099 = vunpack.c.l.b16 %v483
        %v2100 = vunpack.c.h.b16 %v483
        %v2101 = vunpack.c.l.b16 %v484
        %v2102 = vunpack.c.h.b16 %v484
        %v2103 = vunpack.c.l.b16 %v485
        %v2104 = vunpack.c.h.b16 %v485
        %v2105 = vunpack.c.l.b16 %v486
        %v2106 = vunpack.c.h.b16 %v486
        %v2107 = vunpack.c.l.b16 %v487
        %v2108 = vunpack.c.h.b16 %v487
        %v2109 = vunpack.c.l.b16 %v488
        %v2110 = vunpack.c.h.b16 %v488
        %v2111 = vunpack.c.l.b16 %v489
        %v2112 = vunpack.c.h.b16 %v489
        %v2113 = vunpack.c.l.b16 %v490
        %v2114 = vunpack.c.h.b16 %v490
        %v2115 = vunpack.c.l.b16 %v491
        %v2116 = vunpack.c.h.b16 %v491
        %v2117 = vunpack.c.l.b16 %v492
        %v2118 = vunpack.c.h.b16 %v492
        %v2119 = vunpack.c.l.b16 %v493
        %v2120 = vunpack.c.h.b16 %v493
        %v2121 = vunpack.c.l.b16 %v494
        %v2122 = vunpack.c.h.b16 %v494
        %v2123 = vunpack.c.l.b16 %v495
        %v2124 = vunpack.c.h.b16 %v495
        %v2125 = vunpack.c.l.b16 %v496
        %v2126 = vunpack.c.h.b16 %v496
        %v2127 = vunpack.c.l.b16 %v497
        %v2128 = vunpack.c.h.b16 %v497
        %v2129 = vunpack.c.l.b16 %v498
        %v2130 = vunpack.c.h.b16 %v498
        %v2131 = vunpack.c.l.b16 %v499
        %v2132 = vunpack.c.h.b16 %v499
        %v2133 = vunpack.c.l.b16 %v500
        %v2134 = vunpack.c.h.b16 %v500
        %v2135 = vunpack.c.l.b16 %v501
        %v2136 = vunpack.c.h.b16 %v501
        %v2137 = vunpack.c.l.b16 %v502
        %v2138 = vunpack.c.h.b16 %v502
        %v2139 = vunpack.c.l.b16 %v503
        %v2140 = vunpack.c.h.b16 %v503
        %v2141 = vunpack.c.l.b16 %v504
        %v2142 = vunpack.c.h.b16 %v504
        %v2143 = vunpack.c.l.b16 %v505
        %v2144 = vunpack.c.h.b16 %v505
        %v2145 = vunpack.c.l.b16 %v506
        %v2146 = vunpack.c.h.b16 %v506
        %v2147 = vunpack.c.l.b16 %v507
        %v2148 = vunpack.c.h.b16 %v507
        %v2149 = vunpack.c.l.b16 %v508
        %v2150 = vunpack.c.h.b16 %v508
        %v2151 = vunpack.c.l.b16 %v509
        %v2152 = vunpack.c.h.b16 %v509
        %v2153 = vunpack.c.l.b16 %v510
        %v2154 = vunpack.c.h.b16 %v510
        %v2155 = vunpack.c.l.b16 %v511
        %v2156 = vunpack.c.h.b16 %v511
        %v2157 = vunpack.c.l.b16 %v512
        %v2158 = vunpack.c.h.b16 %v512
        %v2159 = vunpack.c.l.b16 %v513
        %v2160 = vunpack.c.h.b16 %v513
        %v2161 = vunpack.c.l.b16 %v514
        %v2162 = vunpack.c.h.b16 %v514
        %v2163 = vunpack.c.l.b16 %v515
        %v2164 = vunpack.c.h.b16 %v515
        %v2165 = vunpack.c.l.b16 %v516
        %v2166 = vunpack.c.h.b16 %v516
        %v2167 = vunpack.c.l.b16 %v517
        %v2168 = vunpack.c.h.b16 %v517
        %v2169 = vunpack.c.l.b16 %v518
        %v2170 = vunpack.c.h.b16 %v518
        %v2171 = vunpack.c.l.b16 %v519
        %v2172 = vunpack.c.h.b16 %v519
        %v2173 = vunpack.c.l.b16 %v520
        %v2174 = vunpack.c.h.b16 %v520
        %v2175 = vunpack.c.l.b16 %v521
        %v2176 = vunpack.c.h.b16 %v521
        %v2177 = vunpack.c.l.b16 %v522
        %v2178 = vunpack.c.h.b16 %v522
        %v2179 = vunpack.c.l.b16 %v523
        %v2180 = vunpack.c.h.b16 %v523
        %v2181 = vunpack.c.l.b16 %v524
        %v2182 = vunpack.c.h.b16 %v524
        %v2183 = vunpack.c.l.b16 %v525
        %v2184 = vunpack.c.h.b16 %v525
        %v2185 = vunpack.c.l.b16 %v526
        %v2186 = vunpack.c.h.b16 %v526
        %v2187 = vunpack.c.l.b16 %v527
        %v2188 = vunpack.c.h.b16 %v527
        %v2189 = vunpack.c.l.b16 %v528
        %v2190 = vunpack.c.h.b16 %v528
        %v2191 = vunpack.c.l.b16 %v529
        %v2192 = vunpack.c.h.b16 %v529
        %v2193 = vunpack.c.l.b16 %v530
        %v2194 = vunpack.c.h.b16 %v530
        %v2195 = vunpack.c.l.b16 %v531
        %v2196 = vunpack.c.h.b16 %v531
        %v2197 = vunpack.c.l.b16 %v532
        %v2198 = vunpack.c.h.b16 %v532
        %v2199 = vunpack.c.l.b16 %v533
        %v2200 = vunpack.c.h.b16 %v533
        %v2201 = vunpack.c.l.b16 %v534
        %v2202 = vunpack.c.h.b16 %v534
        %v2203 = vunpack.c.l.b16 %v535
        %v2204 = vunpack.c.h.b16 %v535
        %v2205 = vunpack.c.l.b16 %v536
        %v2206 = vunpack.c.h.b16 %v536
        %v2207 = vunpack.c.l.b16 %v537
        %v2208 = vunpack.c.h.b16 %v537
        %v2209 = vunpack.c.l.b16 %v538
        %v2210 = vunpack.c.h.b16 %v538
        %v2211 = vunpack.c.l.b16 %v539
        %v2212 = vunpack.c.h.b16 %v539
        %v2213 = vunpack.c.l.b16 %v540
        %v2214 = vunpack.c.h.b16 %v540
        %v2215 = vunpack.c.l.b16 %v541
        %v2216 = vunpack.c.h.b16 %v541
        %v2217 = vunpack.c.l.b16 %v542
        %v2218 = vunpack.c.h.b16 %v542
        %v2219 = vunpack.c.l.b16 %v543
        %v2220 = vunpack.c.h.b16 %v543
        %v2221 = vunpack.c.l.b16 %v544
        %v2222 = vunpack.c.h.b16 %v544
        %v2223 = vunpack.c.l.b16 %v545
        %v2224 = vunpack.c.h.b16 %v545
        %v2225 = vunpack.c.l.b16 %v546
        %v2226 = vunpack.c.h.b16 %v546
        %v2227 = vunpack.c.l.b16 %v547
        %v2228 = vunpack.c.h.b16 %v547
        %v2229 = vunpack.c.l.b16 %v548
        %v2230 = vunpack.c.h.b16 %v548
        %v2231 = vunpack.c.l.b16 %v549
        %v2232 = vunpack.c.h.b16 %v549
        %v2233 = vunpack.c.l.b16 %v550
        %v2234 = vunpack.c.h.b16 %v550
        %v2235 = vunpack.c.l.b16 %v551
        %v2236 = vunpack.c.h.b16 %v551
        %v2237 = vunpack.c.l.b16 %v552
        %v2238 = vunpack.c.h.b16 %v552
        %v2239 = vunpack.c.l.b16 %v553
        %v2240 = vunpack.c.h.b16 %v553
        %v2241 = vunpack.c.l.b16 %v554
        %v2242 = vunpack.c.h.b16 %v554
        %v2243 = vunpack.c.l.b16 %v555
        %v2244 = vunpack.c.h.b16 %v555
        %v2245 = vunpack.c.l.b16 %v556
        %v2246 = vunpack.c.h.b16 %v556
        %v2247 = vunpack.c.l.b16 %v557
        %v2248 = vunpack.c.h.b16 %v557
        %v2249 = vunpack.c.l.b16 %v558
        %v2250 = vunpack.c.h.b16 %v558
        %v2251 = vunpack.c.l.b16 %v559
        %v2252 = vunpack.c.h.b16 %v559
        %v2253 = vunpack.c.l.b16 %v560
        %v2254 = vunpack.c.h.b16 %v560
        %v2255 = vunpack.c.l.b16 %v561
        %v2256 = vunpack.c.h.b16 %v561
        %v2257 = vunpack.c.l.b16 %v562
        %v2258 = vunpack.c.h.b16 %v562
        %v2259 = vunpack.c.l.b16 %v563
        %v2260 = vunpack.c.h.b16 %v563
        %v2261 = vunpack.c.l.b16 %v564
        %v2262 = vunpack.c.h.b16 %v564
        %v2263 = vunpack.c.l.b16 %v565
        %v2264 = vunpack.c.h.b16 %v565
        %v2265 = vunpack.c.l.b16 %v566
        %v2266 = vunpack.c.h.b16 %v566
        %v2267 = vunpack.c.l.b16 %v567
        %v2268 = vunpack.c.h.b16 %v567
        %v2269 = vunpack.c.l.b16 %v568
        %v2270 = vunpack.c.h.b16 %v568
        %v2271 = vunpack.c.l.b16 %v569
        %v2272 = vunpack.c.h.b16 %v569
        %v2273 = vunpack.c.l.b16 %v570
        %v2274 = vunpack.c.h.b16 %v570
        %v2275 = vunpack.c.l.b16 %v571
        %v2276 = vunpack.c.h.b16 %v571
        %v2277 = vunpack.c.l.b16 %v572
        %v2278 = vunpack.c.h.b16 %v572
        %v2279 = vunpack.c.l.b16 %v573
        %v2280 = vunpack.c.h.b16 %v573
        %v2281 = vunpack.c.l.b16 %v574
        %v2282 = vunpack.c.h.b16 %v574
        %v2283 = vunpack.c.l.b16 %v575
        %v2284 = vunpack.c.h.b16 %v575
        %v2285 = vunpack.c.l.b16 %v576
        %v2286 = vunpack.c.h.b16 %v576
        %v2287 = vunpack.c.l.b16 %v577
        %v2288 = vunpack.c.h.b16 %v577
        %v2289 = vunpack.c.l.b16 %v578
        %v2290 = vunpack.c.h.b16 %v578
        %v2291 = vunpack.c.l.b16 %v579
        %v2292 = vunpack.c.h.b16 %v579
        %v2293 = vunpack.c.l.b16 %v580
        %v2294 = vunpack.c.h.b16 %v580
        %v2295 = vunpack.c.l.b16 %v581
        %v2296 = vunpack.c.h.b16 %v581
        %v2297 = vunpack.c.l.b16 %v582
        %v2298 = vunpack.c.h.b16 %v582
        %v2299 = vunpack.c.l.b16 %v583
        %v2300 = vunpack.c.h.b16 %v583
        %v2301 = vunpack.c.l.b16 %v584
        %v2302 = vunpack.c.h.b16 %v584
        %v2303 = vunpack.c.l.b16 %v585
        %v2304 = vunpack.c.h.b16 %v585
        %v2305 = vunpack.c.l.b16 %v586
        %v2306 = vunpack.c.h.b16 %v586
        %v2307 = vunpack.c.l.b16 %v587
        %v2308 = vunpack.c.h.b16 %v587
        %v2309 = vunpack.c.l.b16 %v588
        %v2310 = vunpack.c.h.b16 %v588
        %v2311 = vunpack.c.l.b16 %v589
        %v2312 = vunpack.c.h.b16 %v589
        %v2313 = vunpack.c.l.b16 %v590
        %v2314 = vunpack.c.h.b16 %v590
        %v2315 = vunpack.c.l.b16 %v591
        %v2316 = vunpack.c.h.b16 %v591
        %v2317 = vunpack.c.l.b16 %v592
        %v2318 = vunpack.c.h.b16 %v592
        %v2319 = vunpack.c.l.b16 %v593
        %v2320 = vunpack.c.h.b16 %v593
        %v2321 = vunpack.c.l.b16 %v594
        %v2322 = vunpack.c.h.b16 %v594
        %v2323 = vunpack.c.l.b16 %v595
        %v2324 = vunpack.c.h.b16 %v595
        %v2325 = vunpack.c.l.b16 %v596
        %v2326 = vunpack.c.h.b16 %v596
        %v2327 = vunpack.c.l.b16 %v597
        %v2328 = vunpack.c.h.b16 %v597
        %v2329 = vunpack.c.l.b16 %v598
        %v2330 = vunpack.c.h.b16 %v598
        %v2331 = vunpack.c.l.b16 %v599
        %v2332 = vunpack.c.h.b16 %v599
        %v2333 = vunpack.c.l.b16 %v600
        %v2334 = vunpack.c.h.b16 %v600
        %v2335 = vunpack.c.l.b16 %v601
        %v2336 = vunpack.c.h.b16 %v601
        %v2337 = vunpack.c.l.b16 %v602
        %v2338 = vunpack.c.h.b16 %v602
        %v2339 = vunpack.c.l.b16 %v603
        %v2340 = vunpack.c.h.b16 %v603
        %v2341 = vunpack.c.l.b16 %v604
        %v2342 = vunpack.c.h.b16 %v604
        %v2343 = vunpack.c.l.b16 %v605
        %v2344 = vunpack.c.h.b16 %v605
        %v2345 = vunpack.c.l.b16 %v606
        %v2346 = vunpack.c.h.b16 %v606
        %v2347 = vunpack.c.l.b16 %v607
        %v2348 = vunpack.c.h.b16 %v607
        %v2349 = vunpack.c.l.b16 %v608
        %v2350 = vunpack.c.h.b16 %v608
        %v2351 = vunpack.c.l.b16 %v609
        %v2352 = vunpack.c.h.b16 %v609
        %v2353 = vunpack.c.l.b16 %v610
        %v2354 = vunpack.c.h.b16 %v610
        %v2355 = vunpack.c.l.b16 %v611
        %v2356 = vunpack.c.h.b16 %v611
        %v2357 = vunpack.c.l.b16 %v612
        %v2358 = vunpack.c.h.b16 %v612
        %v2359 = vunpack.c.l.b16 %v613
        %v2360 = vunpack.c.h.b16 %v613
        %v2361 = vunpack.c.l.b16 %v614
        %v2362 = vunpack.c.h.b16 %v614
        %v2363 = vunpack.c.l.b16 %v615
        %v2364 = vunpack.c.h.b16 %v615
        %v2365 = vunpack.c.l.b16 %v616
        %v2366 = vunpack.c.h.b16 %v616
        %v2367 = vunpack.c.l.b16 %v617
        %v2368 = vunpack.c.h.b16 %v617
        %v2369 = vunpack.c.l.b16 %v618
        %v2370 = vunpack.c.h.b16 %v618
        %v2371 = vunpack.c.l.b16 %v619
        %v2372 = vunpack.c.h.b16 %v619
        %v2373 = vunpack.c.l.b16 %v620
        %v2374 = vunpack.c.h.b16 %v620
        %v2375 = vunpack.c.l.b16 %v621
        %v2376 = vunpack.c.h.b16 %v621
        %v2377 = vunpack.c.l.b16 %v622
        %v2378 = vunpack.c.h.b16 %v622
        %v2379 = vunpack.c.l.b16 %v623
        %v2380 = vunpack.c.h.b16 %v623
        %v2381 = vunpack.c.l.b16 %v624
        %v2382 = vunpack.c.h.b16 %v624
        %v2383 = vunpack.c.l.b16 %v625
        %v2384 = vunpack.c.h.b16 %v625
        %v2385 = vunpack.c.l.b16 %v626
        %v2386 = vunpack.c.h.b16 %v626
        %v2387 = vunpack.c.l.b16 %v627
        %v2388 = vunpack.c.h.b16 %v627
        %v2389 = vunpack.c.l.b16 %v628
        %v2390 = vunpack.c.h.b16 %v628
        %v2391 = vunpack.c.l.b16 %v629
        %v2392 = vunpack.c.h.b16 %v629
        %v2393 = vunpack.c.l.b16 %v630
        %v2394 = vunpack.c.h.b16 %v630
        %v2395 = vunpack.c.l.b16 %v631
        %v2396 = vunpack.c.h.b16 %v631
        %v2397 = vunpack.c.l.b16 %v632
        %v2398 = vunpack.c.h.b16 %v632
        %v2399 = vunpack.c.l.b16 %v633
        %v2400 = vunpack.c.h.b16 %v633
        %v2401 = vunpack.c.l.b16 %v634
        %v2402 = vunpack.c.h.b16 %v634
        %v2403 = vunpack.c.l.b16 %v635
        %v2404 = vunpack.c.h.b16 %v635
        %v2405 = vunpack.c.l.b16 %v636
        %v2406 = vunpack.c.h.b16 %v636
        %v2407 = vunpack.c.l.b16 %v637
        %v2408 = vunpack.c.h.b16 %v637
        %v2409 = vunpack.c.l.b16 %v638
        %v2410 = vunpack.c.h.b16 %v638
        %v2411 = vunpack.c.l.b16 %v639
        %v2412 = vunpack.c.h.b16 %v639
        %v2413 = vunpack.c.l.b16 %v640
        %v2414 = vunpack.c.h.b16 %v640
        %v2415 = vunpack.c.l.b16 %v641
        %v2416 = vunpack.c.h.b16 %v641
        %v2417 = vunpack.c.l.b16 %v642
        %v2418 = vunpack.c.h.b16 %v642
        %v2419 = vunpack.c.l.b16 %v643
        %v2420 = vunpack.c.h.b16 %v643
        %v2421 = vunpack.c.l.b16 %v644
        %v2422 = vunpack.c.h.b16 %v644
        %v2423 = vunpack.c.l.b16 %v645
        %v2424 = vunpack.c.h.b16 %v645
        %v2425 = vunpack.c.l.b16 %v646
        %v2426 = vunpack.c.h.b16 %v646
        %v2427 = vunpack.c.l.b16 %v647
        %v2428 = vunpack.c.h.b16 %v647
        %v2429 = vunpack.c.l.b16 %v648
        %v2430 = vunpack.c.h.b16 %v648
        %v2431 = vunpack.c.l.b16 %v649
        %v2432 = vunpack.c.h.b16 %v649
        %v2433 = vunpack.c.l.b16 %v650
        %v2434 = vunpack.c.h.b16 %v650
        %v2435 = vunpack.c.l.b16 %v651
        %v2436 = vunpack.c.h.b16 %v651
        %v2437 = vunpack.c.l.b16 %v652
        %v2438 = vunpack.c.h.b16 %v652
        %v2439 = vunpack.c.l.b16 %v653
        %v2440 = vunpack.c.h.b16 %v653
        %v2441 = vunpack.c.l.b16 %v654
        %v2442 = vunpack.c.h.b16 %v654
        %v2443 = vunpack.c.l.b16 %v655
        %v2444 = vunpack.c.h.b16 %v655
        %v2445 = vunpack.c.l.b16 %v656
        %v2446 = vunpack.c.h.b16 %v656
        %v2447 = vunpack.c.l.b16 %v657
        %v2448 = vunpack.c.h.b16 %v657
        %v2449 = vunpack.c.l.b16 %v658
        %v2450 = vunpack.c.h.b16 %v658
        %v2451 = vunpack.c.l.b16 %v659
        %v2452 = vunpack.c.h.b16 %v659
        %v2453 = vunpack.c.l.b16 %v660
        %v2454 = vunpack.c.h.b16 %v660
        %v2455 = vunpack.c.l.b16 %v661
        %v2456 = vunpack.c.h.b16 %v661
        %v2457 = vunpack.c.l.b16 %v662
        %v2458 = vunpack.c.h.b16 %v662
        %v2459 = vunpack.c.l.b16 %v663
        %v2460 = vunpack.c.h.b16 %v663
        %v2461 = vunpack.c.l.b16 %v664
        %v2462 = vunpack.c.h.b16 %v664
        %v2463 = vunpack.c.l.b16 %v665
        %v2464 = vunpack.c.h.b16 %v665
        %v2465 = vunpack.c.l.b16 %v666
        %v2466 = vunpack.c.h.b16 %v666
        %v2467 = vunpack.c.l.b16 %v667
        %v2468 = vunpack.c.h.b16 %v667
        %v2469 = vunpack.c.l.b16 %v668
        %v2470 = vunpack.c.h.b16 %v668
        %v2471 = vunpack.c.l.b16 %v669
        %v2472 = vunpack.c.h.b16 %v669
        %v2473 = vunpack.c.l.b16 %v670
        %v2474 = vunpack.c.h.b16 %v670
        %v2475 = vunpack.c.l.b16 %v671
        %v2476 = vunpack.c.h.b16 %v671
        %v2477 = vunpack.c.l.b16 %v672
        %v2478 = vunpack.c.h.b16 %v672
        %v2479 = vunpack.c.l.b16 %v673
        %v2480 = vunpack.c.h.b16 %v673
        %v2481 = vunpack.c.l.b16 %v674
        %v2482 = vunpack.c.h.b16 %v674
        %v2483 = vunpack.c.l.b16 %v675
        %v2484 = vunpack.c.h.b16 %v675
        %v2485 = vunpack.c.l.b16 %v676
        %v2486 = vunpack.c.h.b16 %v676
        %v2487 = vunpack.c.l.b16 %v677
        %v2488 = vunpack.c.h.b16 %v677
        %v2489 = vunpack.c.l.b16 %v678
        %v2490 = vunpack.c.h.b16 %v678
        %v2491 = vunpack.c.l.b16 %v679
        %v2492 = vunpack.c.h.b16 %v679
        %v2493 = vunpack.c.l.b16 %v680
        %v2494 = vunpack.c.h.b16 %v680
        %v2495 = vunpack.c.l.b16 %v681
        %v2496 = vunpack.c.h.b16 %v681
        %v2497 = vunpack.c.l.b16 %v682
        %v2498 = vunpack.c.h.b16 %v682
        %v2499 = vunpack.c.l.b16 %v683
        %v2500 = vunpack.c.h.b16 %v683
        %v2501 = vunpack.c.l.b16 %v684
        %v2502 = vunpack.c.h.b16 %v684
        %v2503 = vunpack.c.l.b16 %v685
        %v2504 = vunpack.c.h.b16 %v685
        %v2505 = vunpack.c.l.b16 %v686
        %v2506 = vunpack.c.h.b16 %v686
        %v2507 = vunpack.c.l.b16 %v687
        %v2508 = vunpack.c.h.b16 %v687
        %v2509 = vunpack.c.l.b16 %v688
        %v2510 = vunpack.c.h.b16 %v688
        %v2511 = vunpack.c.l.b16 %v689
        %v2512 = vunpack.c.h.b16 %v689
        %v2513 = vunpack.c.l.b16 %v690
        %v2514 = vunpack.c.h.b16 %v690
        %v2515 = vunpack.c.l.b16 %v691
        %v2516 = vunpack.c.h.b16 %v691
        %v2517 = vunpack.c.l.b16 %v692
        %v2518 = vunpack.c.h.b16 %v692
        %v2519 = vunpack.c.l.b16 %v693
        %v2520 = vunpack.c.h.b16 %v693
        %v2521 = vunpack.c.l.b16 %v694
        %v2522 = vunpack.c.h.b16 %v694
        %v2523 = vunpack.c.l.b16 %v695
        %v2524 = vunpack.c.h.b16 %v695
        %v2525 = vunpack.c.l.b16 %v696
        %v2526 = vunpack.c.h.b16 %v696
        %v2527 = vunpack.c.l.b16 %v697
        %v2528 = vunpack.c.h.b16 %v697
        %v2529 = vunpack.c.l.b16 %v698
        %v2530 = vunpack.c.h.b16 %v698
        %v2531 = vunpack.c.l.b16 %v699
        %v2532 = vunpack.c.h.b16 %v699
        %v2533 = vunpack.c.l.b16 %v700
        %v2534 = vunpack.c.h.b16 %v700
        %v2535 = vunpack.c.l.b16 %v701
        %v2536 = vunpack.c.h.b16 %v701
        %v2537 = vunpack.c.l.b16 %v702
        %v2538 = vunpack.c.h.b16 %v702
        %v2539 = vunpack.c.l.b16 %v703
        %v2540 = vunpack.c.h.b16 %v703
        %v2541 = vunpack.c.l.b16 %v704
        %v2542 = vunpack.c.h.b16 %v704
        %v2543 = vunpack.c.l.b16 %v705
        %v2544 = vunpack.c.h.b16 %v705
        %v2545 = vunpack.c.l.b16 %v706
        %v2546 = vunpack.c.h.b16 %v706
        %v2547 = vunpack.c.l.b16 %v707
        %v2548 = vunpack.c.h.b16 %v707
        %v2549 = vunpack.c.l.b16 %v708
        %v2550 = vunpack.c.h.b16 %v708
        %v2551 = vunpack.c.l.b16 %v709
        %v2552 = vunpack.c.h.b16 %v709
        %v2553 = vunpack.c.l.b16 %v710
        %v2554 = vunpack.c.h.b16 %v710
        %v2555 = vunpack.c.l.b16 %v711
        %v2556 = vunpack.c.h.b16 %v711
        %v2557 = vunpack.c.l.b16 %v712
        %v2558 = vunpack.c.h.b16 %v712
        %v2559 = vunpack.c.l.b16 %v713
        %v2560 = vunpack.c.h.b16 %v713
        %v2561 = vunpack.c.l.b16 %v714
        %v2562 = vunpack.c.h.b16 %v714
        %v2563 = vunpack.c.l.b16 %v715
        %v2564 = vunpack.c.h.b16 %v715
        %v2565 = vunpack.c.l.b16 %v716
        %v2566 = vunpack.c.h.b16 %v716
        %v2567 = vunpack.c.l.b16 %v717
        %v2568 = vunpack.c.h.b16 %v717
        %v2569 = vunpack.c.l.b16 %v718
        %v2570 = vunpack.c.h.b16 %v718
        %v2571 = vunpack.c.l.b16 %v719
        %v2572 = vunpack.c.h.b16 %v719
        %v2573 = vunpack.c.l.b16 %v720
        %v2574 = vunpack.c.h.b16 %v720
        %v2575 = vunpack.c.l.b16 %v721
        %v2576 = vunpack.c.h.b16 %v721
        %v2577 = vunpack.c.l.b16 %v722
        %v2578 = vunpack.c.h.b16 %v722
        %v2579 = vunpack.c.l.b16 %v723
        %v2580 = vunpack.c.h.b16 %v723
        %v2581 = vunpack.c.l.b16 %v724
        %v2582 = vunpack.c.h.b16 %v724
        %v2583 = vunpack.c.l.b16 %v725
        %v2584 = vunpack.c.h.b16 %v725
        %v2585 = vunpack.c.l.b16 %v726
        %v2586 = vunpack.c.h.b16 %v726
        %v2587 = vunpack.c.l.b16 %v727
        %v2588 = vunpack.c.h.b16 %v727
        %v2589 = vunpack.c.l.b16 %v728
        %v2590 = vunpack.c.h.b16 %v728
        %v2591 = vunpack.c.l.b16 %v729
        %v2592 = vunpack.c.h.b16 %v729
        %v2593 = vunpack.c.l.b16 %v730
        %v2594 = vunpack.c.h.b16 %v730
        %v2595 = vunpack.c.l.b16 %v731
        %v2596 = vunpack.c.h.b16 %v731
        %v2597 = vunpack.c.l.b16 %v732
        %v2598 = vunpack.c.h.b16 %v732
        %v2599 = vunpack.c.l.b16 %v733
        %v2600 = vunpack.c.h.b16 %v733
        %v2601 = vunpack.c.l.b16 %v734
        %v2602 = vunpack.c.h.b16 %v734
        %v2603 = vunpack.c.l.b16 %v735
        %v2604 = vunpack.c.h.b16 %v735
        %v2605 = vunpack.c.l.b16 %v736
        %v2606 = vunpack.c.h.b16 %v736
        %v2607 = vunpack.c.l.b16 %v737
        %v2608 = vunpack.c.h.b16 %v737
        %v2609 = vunpack.c.l.b16 %v738
        %v2610 = vunpack.c.h.b16 %v738
        %v2611 = vunpack.c.l.b16 %v739
        %v2612 = vunpack.c.h.b16 %v739
        %v2613 = vunpack.c.l.b16 %v740
        %v2614 = vunpack.c.h.b16 %v740
        %v2615 = vunpack.c.l.b16 %v741
        %v2616 = vunpack.c.h.b16 %v741
        %v2617 = vunpack.c.l.b16 %v742
        %v2618 = vunpack.c.h.b16 %v742
        %v2619 = vunpack.c.l.b16 %v743
        %v2620 = vunpack.c.h.b16 %v743
        %v2621 = vunpack.c.l.b16 %v744
        %v2622 = vunpack.c.h.b16 %v744
        %v2623 = vunpack.c.l.b16 %v745
        %v2624 = vunpack.c.h.b16 %v745
        %v2625 = vunpack.c.l.b16 %v746
        %v2626 = vunpack.c.h.b16 %v746
        %v2627 = vunpack.c.l.b16 %v747
        %v2628 = vunpack.c.h.b16 %v747
        %v2629 = vunpack.c.l.b16 %v748
        %v2630 = vunpack.c.h.b16 %v748
        %v2631 = vunpack.c.l.b16 %v749
        %v2632 = vunpack.c.h.b16 %v749
        %v2633 = vunpack.c.l.b16 %v750
        %v2634 = vunpack.c.h.b16 %v750
        %v2635 = vunpack.c.l.b16 %v751
        %v2636 = vunpack.c.h.b16 %v751
        %v2637 = vunpack.c.l.b16 %v752
        %v2638 = vunpack.c.h.b16 %v752
        %v2639 = vunpack.c.l.b16 %v753
        %v2640 = vunpack.c.h.b16 %v753
        %v2641 = vunpack.c.l.b16 %v754
        %v2642 = vunpack.c.h.b16 %v754
        %v2643 = vunpack.c.l.b16 %v755
        %v2644 = vunpack.c.h.b16 %v755
        %v2645 = vunpack.c.l.b16 %v756
        %v2646 = vunpack.c.h.b16 %v756
        %v2647 = vunpack.c.l.b16 %v757
        %v2648 = vunpack.c.h.b16 %v757
        %v2649 = vunpack.c.l.b16 %v758
        %v2650 = vunpack.c.h.b16 %v758
        %v2651 = vunpack.c.l.b16 %v759
        %v2652 = vunpack.c.h.b16 %v759
        %v2653 = vunpack.c.l.b16 %v760
        %v2654 = vunpack.c.h.b16 %v760
        %v2655 = vunpack.c.l.b16 %v761
        %v2656 = vunpack.c.h.b16 %v761
        %v2657 = vunpack.c.l.b16 %v762
        %v2658 = vunpack.c.h.b16 %v762
        %v2659 = vunpack.c.l.b16 %v763
        %v2660 = vunpack.c.h.b16 %v763
        %v2661 = vunpack.c.l.b16 %v764
        %v2662 = vunpack.c.h.b16 %v764
        %v2663 = vunpack.c.l.b16 %v765
        %v2664 = vunpack.c.h.b16 %v765
        %v2665 = vunpack.c.l.b16 %v766
        %v2666 = vunpack.c.h.b16 %v766
        %v2667 = vunpack.c.l.b16 %v767
        %v2668 = vunpack.c.h.b16 %v767
        %v2669 = vunpack.c.l.b16 %v768
        %v2670 = vunpack.c.h.b16 %v768
        %v2671 = vunpack.c.l.b16 %v769
        %v2672 = vunpack.c.h.b16 %v769
        %v2673 = vunpack.c.l.b16 %v770
        %v2674 = vunpack.c.h.b16 %v770
        %v2675 = vunpack.c.l.b16 %v771
        %v2676 = vunpack.c.h.b16 %v771
        %v2677 = vunpack.c.l.b16 %v772
        %v2678 = vunpack.c.h.b16 %v772
        %v2679 = vunpack.c.l.b16 %v773
        %v2680 = vunpack.c.h.b16 %v773
        %v2681 = vunpack.c.l.b16 %v774
        %v2682 = vunpack.c.h.b16 %v774
        %v2683 = vunpack.c.l.b16 %v775
        %v2684 = vunpack.c.h.b16 %v775
        %v2685 = vunpack.c.l.b16 %v776
        %v2686 = vunpack.c.h.b16 %v776
        %v2687 = vunpack.c.l.b16 %v777
        %v2688 = vunpack.c.h.b16 %v777
        %v2689 = vunpack.c.l.b16 %v778
        %v2690 = vunpack.c.h.b16 %v778
        %v2691 = vunpack.c.l.b16 %v779
        %v2692 = vunpack.c.h.b16 %v779
        %v2693 = vunpack.c.l.b16 %v780
        %v2694 = vunpack.c.h.b16 %v780
        %v2695 = vunpack.c.l.b16 %v781
        %v2696 = vunpack.c.h.b16 %v781
        %v2697 = vunpack.c.l.b16 %v782
        %v2698 = vunpack.c.h.b16 %v782
        %v2699 = vunpack.c.l.b16 %v783
        %v2700 = vunpack.c.h.b16 %v783
        %v2701 = vunpack.c.l.b16 %v784
        %v2702 = vunpack.c.h.b16 %v784
        %v2703 = vunpack.c.l.b16 %v785
        %v2704 = vunpack.c.h.b16 %v785
        %v2705 = vunpack.c.l.b16 %v786
        %v2706 = vunpack.c.h.b16 %v786
        %v2707 = vunpack.c.l.b16 %v787
        %v2708 = vunpack.c.h.b16 %v787
        %v2709 = vunpack.c.l.b16 %v788
        %v2710 = vunpack.c.h.b16 %v788
        %v2711 = vunpack.c.l.b16 %v789
        %v2712 = vunpack.c.h.b16 %v789
        %v2713 = vunpack.c.l.b16 %v790
        %v2714 = vunpack.c.h.b16 %v790
        %v2715 = vunpack.c.l.b16 %v791
        %v2716 = vunpack.c.h.b16 %v791
        %v2717 = vunpack.c.l.b16 %v792
        %v2718 = vunpack.c.h.b16 %v792
        %v2719 = vunpack.c.l.b16 %v793
        %v2720 = vunpack.c.h.b16 %v793
        %v2721 = vunpack.c.l.b16 %v794
        %v2722 = vunpack.c.h.b16 %v794
        %v2723 = vunpack.c.l.b16 %v795
        %v2724 = vunpack.c.h.b16 %v795
        %v2725 = vunpack.c.l.b16 %v796
        %v2726 = vunpack.c.h.b16 %v796
        %v2727 = vunpack.c.l.b16 %v797
        %v2728 = vunpack.c.h.b16 %v797
        %v2729 = vunpack.c.l.b16 %v798
        %v2730 = vunpack.c.h.b16 %v798
        %v2731 = vunpack.c.l.b16 %v799
        %v2732 = vunpack.c.h.b16 %v799
        %v2733 = vunpack.c.l.b16 %v800
        %v2734 = vunpack.c.h.b16 %v800
        %v2735 = vunpack.c.l.b16 %v801
        %v2736 = vunpack.c.h.b16 %v801
        %v2737 = vunpack.c.l.b16 %v802
        %v2738 = vunpack.c.h.b16 %v802
        %v2739 = vunpack.c.l.b16 %v803
        %v2740 = vunpack.c.h.b16 %v803
        %v2741 = vunpack.c.l.b16 %v804
        %v2742 = vunpack.c.h.b16 %v804
        %v2743 = vunpack.c.l.b16 %v805
        %v2744 = vunpack.c.h.b16 %v805
        %v2745 = vunpack.c.l.b16 %v806
        %v2746 = vunpack.c.h.b16 %v806
        %v2747 = vunpack.c.l.b16 %v807
        %v2748 = vunpack.c.h.b16 %v807
        %v2749 = vunpack.c.l.b16 %v808
        %v2750 = vunpack.c.h.b16 %v808
        %v2751 = vunpack.c.l.b16 %v809
        %v2752 = vunpack.c.h.b16 %v809
        %v2753 = vunpack.c.l.b16 %v810
        %v2754 = vunpack.c.h.b16 %v810
        %v2755 = vunpack.c.l.b16 %v811
        %v2756 = vunpack.c.h.b16 %v811
        %v2757 = vunpack.c.l.b16 %v812
        %v2758 = vunpack.c.h.b16 %v812
        %v2759 = vunpack.c.l.b16 %v813
        %v2760 = vunpack.c.h.b16 %v813
        %v2761 = vunpack.c.l.b16 %v814
        %v2762 = vunpack.c.h.b16 %v814
        %v2763 = vunpack.c.l.b16 %v815
        %v2764 = vunpack.c.h.b16 %v815
        %v2765 = vunpack.c.l.b16 %v816
        %v2766 = vunpack.c.h.b16 %v816
        %v2767 = vunpack.c.l.b16 %v817
        %v2768 = vunpack.c.h.b16 %v817
        %v2769 = vunpack.c.l.b16 %v818
        %v2770 = vunpack.c.h.b16 %v818
        %v2771 = vunpack.c.l.b16 %v819
        %v2772 = vunpack.c.h.b16 %v819
        %v2773 = vunpack.c.l.b16 %v820
        %v2774 = vunpack.c.h.b16 %v820
        %v2775 = vunpack.c.l.b16 %v821
        %v2776 = vunpack.c.h.b16 %v821
        %v2777 = vunpack.c.l.b16 %v822
        %v2778 = vunpack.c.h.b16 %v822
        %v2779 = vunpack.c.l.b16 %v823
        %v2780 = vunpack.c.h.b16 %v823
        %v2781 = vunpack.c.l.b16 %v824
        %v2782 = vunpack.c.h.b16 %v824
        %v2783 = vunpack.c.l.b16 %v825
        %v2784 = vunpack.c.h.b16 %v825
        %v2785 = vunpack.c.l.b16 %v826
        %v2786 = vunpack.c.h.b16 %v826
        %v2787 = vunpack.c.l.b16 %v827
        %v2788 = vunpack.c.h.b16 %v827
        %v2789 = vunpack.c.l.b16 %v828
        %v2790 = vunpack.c.h.b16 %v828
        %v2791 = vunpack.c.l.b16 %v829
        %v2792 = vunpack.c.h.b16 %v829
        %v2793 = vunpack.c.l.b16 %v830
        %v2794 = vunpack.c.h.b16 %v830
        %v2795 = vunpack.c.l.b16 %v831
        %v2796 = vunpack.c.h.b16 %v831
        %v2797 = vunpack.c.l.b16 %v832
        %v2798 = vunpack.c.h.b16 %v832
        %v2799 = vunpack.c.l.b16 %v833
        %v2800 = vunpack.c.h.b16 %v833
        %v2801 = vunpack.c.l.b16 %v834
        %v2802 = vunpack.c.h.b16 %v834
        %v2803 = vunpack.c.l.b16 %v835
        %v2804 = vunpack.c.h.b16 %v835
        %v2805 = vunpack.c.l.b16 %v836
        %v2806 = vunpack.c.h.b16 %v836
        %v2807 = vunpack.c.l.b16 %v837
        %v2808 = vunpack.c.h.b16 %v837
        %v2809 = vunpack.c.l.b16 %v838
        %v2810 = vunpack.c.h.b16 %v838
        %v2811 = vunpack.c.l.b16 %v839
        %v2812 = vunpack.c.h.b16 %v839
        %v2813 = vunpack.c.l.b16 %v840
        %v2814 = vunpack.c.h.b16 %v840
        %v2815 = vunpack.c.l.b16 %v841
        %v2816 = vunpack.c.h.b16 %v841
        %v2817 = vunpack.c.l.b16 %v842
        %v2818 = vunpack.c.h.b16 %v842
        %v2819 = vunpack.c.l.b16 %v843
        %v2820 = vunpack.c.h.b16 %v843
        %v2821 = vunpack.c.l.b16 %v844
        %v2822 = vunpack.c.h.b16 %v844
        %v2823 = vunpack.c.l.b16 %v845
        %v2824 = vunpack.c.h.b16 %v845
        %v2825 = vunpack.c.l.b16 %v846
        %v2826 = vunpack.c.h.b16 %v846
        %v2827 = vunpack.c.l.b16 %v847
        %v2828 = vunpack.c.h.b16 %v847
        %v2829 = vunpack.c.l.b16 %v848
        %v2830 = vunpack.c.h.b16 %v848
        %v2831 = vunpack.c.l.b16 %v849
        %v2832 = vunpack.c.h.b16 %v849
        %v2833 = vunpack.c.l.b16 %v850
        %v2834 = vunpack.c.h.b16 %v850
        %v2835 = vunpack.c.l.b16 %v851
        %v2836 = vunpack.c.h.b16 %v851
        %v2837 = vunpack.c.l.b16 %v852
        %v2838 = vunpack.c.h.b16 %v852
        %v2839 = vunpack.c.l.b16 %v853
        %v2840 = vunpack.c.h.b16 %v853
        %v2841 = vunpack.c.l.b16 %v854
        %v2842 = vunpack.c.h.b16 %v854
        %v2843 = vunpack.c.l.b16 %v855
        %v2844 = vunpack.c.h.b16 %v855
        %v2845 = vunpack.c.l.b16 %v856
        %v2846 = vunpack.c.h.b16 %v856
        %v2847 = vunpack.c.l.b16 %v857
        %v2848 = vunpack.c.h.b16 %v857
        %v2849 = vunpack.c.l.b16 %v858
        %v2850 = vunpack.c.h.b16 %v858
        %v2851 = vunpack.c.l.b16 %v859
        %v2852 = vunpack.c.h.b16 %v859
        %v2853 = vunpack.c.l.b16 %v860
        %v2854 = vunpack.c.h.b16 %v860
        %v2855 = vunpack.c.l.b16 %v861
        %v2856 = vunpack.c.h.b16 %v861
        %v2857 = vunpack.c.l.b16 %v862
        %v2858 = vunpack.c.h.b16 %v862
        %v2859 = vunpack.c.l.b16 %v863
        %v2860 = vunpack.c.h.b16 %v863
        %v2861 = vunpack.c.l.b16 %v864
        %v2862 = vunpack.c.h.b16 %v864
        %v2863 = vunpack.c.l.b16 %v865
        %v2864 = vunpack.c.h.b16 %v865
        %v2865 = vunpack.c.l.b16 %v866
        %v2866 = vunpack.c.h.b16 %v866
        %v2867 = vunpack.c.l.b16 %v867
        %v2868 = vunpack.c.h.b16 %v867
        %v2869 = vunpack.c.l.b16 %v868
        %v2870 = vunpack.c.h.b16 %v868
        %v2871 = vunpack.c.l.b16 %v869
        %v2872 = vunpack.c.h.b16 %v869
        %v2873 = vunpack.c.l.b16 %v870
        %v2874 = vunpack.c.h.b16 %v870
        %v2875 = vunpack.c.l.b16 %v871
        %v2876 = vunpack.c.h.b16 %v871
        %v2877 = vunpack.c.l.b16 %v872
        %v2878 = vunpack.c.h.b16 %v872
        %v2879 = vunpack.c.l.b16 %v873
        %v2880 = vunpack.c.h.b16 %v873
        %v2881 = vunpack.c.l.b16 %v874
        %v2882 = vunpack.c.h.b16 %v874
        %v2883 = vunpack.c.l.b16 %v875
        %v2884 = vunpack.c.h.b16 %v875
        %v2885 = vunpack.c.l.b16 %v876
        %v2886 = vunpack.c.h.b16 %v876
        %v2887 = vunpack.c.l.b16 %v877
        %v2888 = vunpack.c.h.b16 %v877
        %v2889 = vunpack.c.l.b16 %v878
        %v2890 = vunpack.c.h.b16 %v878
        %v2891 = vunpack.c.l.b16 %v879
        %v2892 = vunpack.c.h.b16 %v879
        %v2893 = vunpack.c.l.b16 %v880
        %v2894 = vunpack.c.h.b16 %v880
        %v2895 = vunpack.c.l.b16 %v881
        %v2896 = vunpack.c.h.b16 %v881
        %v2897 = vunpack.c.l.b16 %v882
        %v2898 = vunpack.c.h.b16 %v882
        %v2899 = vunpack.c.l.b16 %v883
        %v2900 = vunpack.c.h.b16 %v883
        %v2901 = vunpack.c.l.b16 %v884
        %v2902 = vunpack.c.h.b16 %v884
        %v2903 = vunpack.c.l.b16 %v885
        %v2904 = vunpack.c.h.b16 %v885
        %v2905 = vunpack.c.l.b16 %v886
        %v2906 = vunpack.c.h.b16 %v886
        %v2907 = vunpack.c.l.b16 %v887
        %v2908 = vunpack.c.h.b16 %v887
        %v2909 = vunpack.c.l.b16 %v888
        %v2910 = vunpack.c.h.b16 %v888
        %v2911 = vunpack.c.l.b16 %v889
        %v2912 = vunpack.c.h.b16 %v889
        %v2913 = vunpack.c.l.b16 %v890
        %v2914 = vunpack.c.h.b16 %v890
        %v2915 = vunpack.c.l.b16 %v891
        %v2916 = vunpack.c.h.b16 %v891
        %v2917 = vunpack.c.l.b16 %v892
        %v2918 = vunpack.c.h.b16 %v892
        %v2919 = vunpack.c.l.b16 %v893
        %v2920 = vunpack.c.h.b16 %v893
        %v2921 = vunpack.c.l.b16 %v894
        %v2922 = vunpack.c.h.b16 %v894
        %v2923 = vunpack.c.l.b16 %v895
        %v2924 = vunpack.c.h.b16 %v895
        %v2925 = vunpack.c.l.b16 %v896
        %v2926 = vunpack.c.h.b16 %v896
        %v2927 = vunpack.c.l.b16 %v897
        %v2928 = vunpack.c.h.b16 %v897
        %v2929 = vunpack.c.l.b16 %v898
        %v2930 = vunpack.c.h.b16 %v898
        %v2931 = vunpack.c.l.b16 %v899
        %v2932 = vunpack.c.h.b16 %v899
        %v2933 = vunpack.c.l.b16 %v900
        %v2934 = vunpack.c.h.b16 %v900
        %v2935 = vunpack.c.l.b16 %v901
        %v2936 = vunpack.c.h.b16 %v901
        %v2937 = vunpack.c.l.b16 %v902
        %v2938 = vunpack.c.h.b16 %v902
        %v2939 = vunpack.c.l.b16 %v903
        %v2940 = vunpack.c.h.b16 %v903
        %v2941 = vunpack.c.l.b16 %v904
        %v2942 = vunpack.c.h.b16 %v904
        %v2943 = vunpack.c.l.b16 %v905
        %v2944 = vunpack.c.h.b16 %v905
        %v2945 = vunpack.c.l.b16 %v906
        %v2946 = vunpack.c.h.b16 %v906
        %v2947 = vunpack.c.l.b16 %v907
        %v2948 = vunpack.c.h.b16 %v907
        %v2949 = vunpack.c.l.b16 %v908
        %v2950 = vunpack.c.h.b16 %v908
        %v2951 = vunpack.c.l.b16 %v909
        %v2952 = vunpack.c.h.b16 %v909
        %v2953 = vunpack.c.l.b16 %v910
        %v2954 = vunpack.c.h.b16 %v910
        %v2955 = vunpack.c.l.b16 %v911
        %v2956 = vunpack.c.h.b16 %v911
        %v2957 = vunpack.c.l.b16 %v912
        %v2958 = vunpack.c.h.b16 %v912
        %v2959 = vunpack.c.l.b16 %v913
        %v2960 = vunpack.c.h.b16 %v913
        %v2961 = vunpack.c.l.b16 %v914
        %v2962 = vunpack.c.h.b16 %v914
        %v2963 = vunpack.c.l.b16 %v915
        %v2964 = vunpack.c.h.b16 %v915
        %v2965 = vunpack.c.l.b16 %v916
        %v2966 = vunpack.c.h.b16 %v916
        %v2967 = vunpack.c.l.b16 %v917
        %v2968 = vunpack.c.h.b16 %v917
        %v2969 = vunpack.c.l.b16 %v918
        %v2970 = vunpack.c.h.b16 %v918
        %v2971 = vunpack.c.l.b16 %v919
        %v2972 = vunpack.c.h.b16 %v919
        %v2973 = vunpack.c.l.b16 %v920
        %v2974 = vunpack.c.h.b16 %v920
        %v2975 = vunpack.c.l.b16 %v921
        %v2976 = vunpack.c.h.b16 %v921
        %v2977 = vunpack.c.l.b16 %v922
        %v2978 = vunpack.c.h.b16 %v922
        %v2979 = vunpack.c.l.b16 %v923
        %v2980 = vunpack.c.h.b16 %v923
        %v2981 = vunpack.c.l.b16 %v924
        %v2982 = vunpack.c.h.b16 %v924
        %v2983 = vunpack.c.l.b16 %v925
        %v2984 = vunpack.c.h.b16 %v925
        %v2985 = vunpack.c.l.b16 %v926
        %v2986 = vunpack.c.h.b16 %v926
        %v2987 = vunpack.c.l.b16 %v927
        %v2988 = vunpack.c.h.b16 %v927
        %v2989 = vunpack.c.l.b16 %v928
        %v2990 = vunpack.c.h.b16 %v928
        %v2991 = vunpack.c.l.b16 %v929
        %v2992 = vunpack.c.h.b16 %v929
        %v2993 = vunpack.c.l.b16 %v930
        %v2994 = vunpack.c.h.b16 %v930
        %v2995 = vunpack.c.l.b16 %v931
        %v2996 = vunpack.c.h.b16 %v931
        %v2997 = vunpack.c.l.b16 %v932
        %v2998 = vunpack.c.h.b16 %v932
        %v2999 = vunpack.c.l.b16 %v933
        %v3000 = vunpack.c.h.b16 %v933
        %v3001 = vunpack.c.l.b16 %v934
        %v3002 = vunpack.c.h.b16 %v934
        %v3003 = vunpack.c.l.b16 %v935
        %v3004 = vunpack.c.h.b16 %v935
        %v3005 = vunpack.c.l.b16 %v936
        %v3006 = vunpack.c.h.b16 %v936
        %v3007 = vunpack.c.l.b16 %v937
        %v3008 = vunpack.c.h.b16 %v937
        %v3009 = vunpack.c.l.b16 %v938
        %v3010 = vunpack.c.h.b16 %v938
        %v3011 = vunpack.c.l.b16 %v939
        %v3012 = vunpack.c.h.b16 %v939
        %v3013 = vunpack.c.l.b16 %v940
        %v3014 = vunpack.c.h.b16 %v940
        %v3015 = vunpack.c.l.b16 %v941
        %v3016 = vunpack.c.h.b16 %v941
        %v3017 = vunpack.c.l.b16 %v942
        %v3018 = vunpack.c.h.b16 %v942
        %v3019 = vunpack.c.l.b16 %v943
        %v3020 = vunpack.c.h.b16 %v943
        %v3021 = vunpack.c.l.b16 %v944
        %v3022 = vunpack.c.h.b16 %v944
        %v3023 = vunpack.c.l.b16 %v945
        %v3024 = vunpack.c.h.b16 %v945
        %v3025 = vunpack.c.l.b16 %v946
        %v3026 = vunpack.c.h.b16 %v946
        %v3027 = vunpack.c.l.b16 %v947
        %v3028 = vunpack.c.h.b16 %v947
        %v3029 = vunpack.c.l.b16 %v948
        %v3030 = vunpack.c.h.b16 %v948
        %v3031 = vunpack.c.l.b16 %v949
        %v3032 = vunpack.c.h.b16 %v949
        %v3033 = vunpack.c.l.b16 %v950
        %v3034 = vunpack.c.h.b16 %v950
        %v3035 = vunpack.c.l.b16 %v951
        %v3036 = vunpack.c.h.b16 %v951
        %v3037 = vunpack.c.l.b16 %v952
        %v3038 = vunpack.c.h.b16 %v952
        %v3039 = vunpack.c.l.b16 %v953
        %v3040 = vunpack.c.h.b16 %v953
        %v3041 = vunpack.c.l.b16 %v954
        %v3042 = vunpack.c.h.b16 %v954
        %v3043 = vunpack.c.l.b16 %v955
        %v3044 = vunpack.c.h.b16 %v955
        %v3045 = vunpack.c.l.b16 %v956
        %v3046 = vunpack.c.h.b16 %v956
        %v3047 = vunpack.c.l.b16 %v957
        %v3048 = vunpack.c.h.b16 %v957
        %v3049 = vunpack.c.l.b16 %v958
        %v3050 = vunpack.c.h.b16 %v958
        %v3051 = vunpack.c.l.b16 %v959
        %v3052 = vunpack.c.h.b16 %v959
        %v3053 = vunpack.c.l.b16 %v960
        %v3054 = vunpack.c.h.b16 %v960
        %v3055 = vunpack.c.l.b16 %v961
        %v3056 = vunpack.c.h.b16 %v961
        %v3057 = vunpack.c.l.b16 %v962
        %v3058 = vunpack.c.h.b16 %v962
        %v3059 = vunpack.c.l.b16 %v963
        %v3060 = vunpack.c.h.b16 %v963
        %v3061 = vunpack.c.l.b16 %v964
        %v3062 = vunpack.c.h.b16 %v964
        %v3063 = vunpack.c.l.b16 %v965
        %v3064 = vunpack.c.h.b16 %v965
        %v3065 = vunpack.c.l.b16 %v966
        %v3066 = vunpack.c.h.b16 %v966
        %v3067 = vunpack.c.l.b16 %v967
        %v3068 = vunpack.c.h.b16 %v967
        %v3069 = vunpack.c.l.b16 %v968
        %v3070 = vunpack.c.h.b16 %v968
        %v3071 = vunpack.c.l.b16 %v969
        %v3072 = vunpack.c.h.b16 %v969
        %v3073 = vunpack.c.l.b16 %v970
        %v3074 = vunpack.c.h.b16 %v970
        %v3075 = vunpack.c.l.b16 %v971
        %v3076 = vunpack.c.h.b16 %v971
        %v3077 = vunpack.c.l.b16 %v972
        %v3078 = vunpack.c.h.b16 %v972
        %v3079 = vunpack.c.l.b16 %v973
        %v3080 = vunpack.c.h.b16 %v973
        %v3081 = vunpack.c.l.b16 %v974
        %v3082 = vunpack.c.h.b16 %v974
        %v3083 = vunpack.c.l.b16 %v975
        %v3084 = vunpack.c.h.b16 %v975
        %v3085 = vunpack.c.l.b16 %v976
        %v3086 = vunpack.c.h.b16 %v976
        %v3087 = vunpack.c.l.b16 %v977
        %v3088 = vunpack.c.h.b16 %v977
        %v3089 = vunpack.c.l.b16 %v978
        %v3090 = vunpack.c.h.b16 %v978
        %v3091 = vunpack.c.l.b16 %v979
        %v3092 = vunpack.c.h.b16 %v979
        %v3093 = vunpack.c.l.b16 %v980
        %v3094 = vunpack.c.h.b16 %v980
        %v3095 = vunpack.c.l.b16 %v981
        %v3096 = vunpack.c.h.b16 %v981
        %v3097 = vunpack.c.l.b16 %v982
        %v3098 = vunpack.c.h.b16 %v982
        %v3099 = vunpack.c.l.b16 %v983
        %v3100 = vunpack.c.h.b16 %v983
        %v3101 = vunpack.c.l.b16 %v984
        %v3102 = vunpack.c.h.b16 %v984
        %v3103 = vunpack.c.l.b16 %v985
        %v3104 = vunpack.c.h.b16 %v985
        %v3105 = vunpack.c.l.b16 %v986
        %v3106 = vunpack.c.h.b16 %v986
        %v3107 = vunpack.c.l.b16 %v987
        %v3108 = vunpack.c.h.b16 %v987
        %v3109 = vunpack.c.l.b16 %v988
        %v3110 = vunpack.c.h.b16 %v988
        %v3111 = vunpack.c.l.b16 %v989
        %v3112 = vunpack.c.h.b16 %v989
        %v3113 = vunpack.c.l.b16 %v990
        %v3114 = vunpack.c.h.b16 %v990
        %v3115 = vunpack.c.l.b16 %v991
        %v3116 = vunpack.c.h.b16 %v991
        %v3117 = vunpack.c.l.b16 %v992
        %v3118 = vunpack.c.h.b16 %v992
        %v3119 = vunpack.c.l.b16 %v993
        %v3120 = vunpack.c.h.b16 %v993
        %v3121 = vunpack.c.l.b16 %v994
        %v3122 = vunpack.c.h.b16 %v994
        %v3123 = vunpack.c.l.b16 %v995
        %v3124 = vunpack.c.h.b16 %v995
        %v3125 = vunpack.c.l.b16 %v996
        %v3126 = vunpack.c.h.b16 %v996
        %v3127 = vunpack.c.l.b16 %v997
        %v3128 = vunpack.c.h.b16 %v997
        %v3129 = vunpack.c.l.b16 %v998
        %v3130 = vunpack.c.h.b16 %v998
        %v3131 = vunpack.c.l.b16 %v999
        %v3132 = vunpack.c.h.b16 %v999
        %v3133 = vunpack.c.l.b16 %v1000
        %v3134 = vunpack.c.h.b16 %v1000
        %v3135 = vunpack.c.l.b16 %v1001
        %v3136 = vunpack.c.h.b16 %v1001
        %v3137 = vunpack.c.l.b16 %v1002
        %v3138 = vunpack.c.h.b16 %v1002
        %v3139 = vunpack.c.l.b16 %v1003
        %v3140 = vunpack.c.h.b16 %v1003
        %v3141 = vunpack.c.l.b16 %v1004
        %v3142 = vunpack.c.h.b16 %v1004
        %v3143 = vunpack.c.l.b16 %v1005
        %v3144 = vunpack.c.h.b16 %v1005
        %v3145 = vunpack.c.l.b16 %v1006
        %v3146 = vunpack.c.h.b16 %v1006
        %v3147 = vunpack.c.l.b16 %v1007
        %v3148 = vunpack.c.h.b16 %v1007
        %v3149 = vunpack.c.l.b16 %v1008
        %v3150 = vunpack.c.h.b16 %v1008
        %v3151 = vunpack.c.l.b16 %v1009
        %v3152 = vunpack.c.h.b16 %v1009
        %v3153 = vunpack.c.l.b16 %v1010
        %v3154 = vunpack.c.h.b16 %v1010
        %v3155 = vunpack.c.l.b16 %v1011
        %v3156 = vunpack.c.h.b16 %v1011
        %v3157 = vunpack.c.l.b16 %v1012
        %v3158 = vunpack.c.h.b16 %v1012
        %v3159 = vunpack.c.l.b16 %v1013
        %v3160 = vunpack.c.h.b16 %v1013
        %v3161 = vunpack.c.l.b16 %v1014
        %v3162 = vunpack.c.h.b16 %v1014
        %v3163 = vunpack.c.l.b16 %v1015
        %v3164 = vunpack.c.h.b16 %v1015
        %v3165 = vunpack.c.l.b16 %v1016
        %v3166 = vunpack.c.h.b16 %v1016
        %v3167 = vunpack.c.l.b16 %v1017
        %v3168 = vunpack.c.h.b16 %v1017
        %v3169 = vunpack.c.l.b16 %v1018
        %v3170 = vunpack.c.h.b16 %v1018
        %v3171 = vunpack.c.l.b16 %v1019
        %v3172 = vunpack.c.h.b16 %v1019
        %v3173 = vunpack.c.l.b16 %v1020
        %v3174 = vunpack.c.h.b16 %v1020
        %v3175 = vunpack.c.l.b16 %v1021
        %v3176 = vunpack.c.h.b16 %v1021
        %v3177 = vunpack.c.l.b16 %v1022
        %v3178 = vunpack.c.h.b16 %v1022
        %v3179 = vunpack.c.l.b16 %v1023
        %v3180 = vunpack.c.h.b16 %v1023
        %v3181 = vunpack.c.l.b16 %v1024
        %v3182 = vunpack.c.h.b16 %v1024
        %v3183 = vunpack.c.l.b16 %v1025
        %v3184 = vunpack.c.h.b16 %v1025
        %v3185 = vunpack.c.l.b16 %v1026
        %v3186 = vunpack.c.h.b16 %v1026
        %v3187 = vunpack.c.l.b16 %v1027
        %v3188 = vunpack.c.h.b16 %v1027
        %v3189 = vunpack.c.l.b16 %v1028
        %v3190 = vunpack.c.h.b16 %v1028
        %v3191 = vunpack.c.l.b16 %v1029
        %v3192 = vunpack.c.h.b16 %v1029
        %v3193 = vunpack.c.l.b16 %v1030
        %v3194 = vunpack.c.h.b16 %v1030
        %v3195 = vunpack.c.l.b16 %v1031
        %v3196 = vunpack.c.h.b16 %v1031
        %v3197 = vunpack.c.l.b16 %v1032
        %v3198 = vunpack.c.h.b16 %v1032
        %v3199 = vunpack.c.l.b16 %v1033
        %v3200 = vunpack.c.h.b16 %v1033
        %v3201 = vunpack.c.l.b16 %v1034
        %v3202 = vunpack.c.h.b16 %v1034
        %v3203 = vunpack.c.l.b16 %v1035
        %v3204 = vunpack.c.h.b16 %v1035
        %v3205 = vunpack.c.l.b16 %v1036
        %v3206 = vunpack.c.h.b16 %v1036
        %v3207 = vunpack.c.l.b16 %v1037
        %v3208 = vunpack.c.h.b16 %v1037
        %v3209 = vunpack.c.l.b16 %v1038
        %v3210 = vunpack.c.h.b16 %v1038
        %v3211 = vunpack.c.l.b16 %v1039
        %v3212 = vunpack.c.h.b16 %v1039
        %v3213 = vunpack.c.l.b16 %v1040
        %v3214 = vunpack.c.h.b16 %v1040
        %v3215 = vunpack.c.l.b16 %v1041
        %v3216 = vunpack.c.h.b16 %v1041
        %v3217 = vunpack.c.l.b16 %v1042
        %v3218 = vunpack.c.h.b16 %v1042
        %v3219 = vunpack.c.l.b16 %v1043
        %v3220 = vunpack.c.h.b16 %v1043
        %v3221 = vunpack.c.l.b16 %v1044
        %v3222 = vunpack.c.h.b16 %v1044
        %v3223 = vunpack.c.l.b16 %v1045
        %v3224 = vunpack.c.h.b16 %v1045
        %v3225 = vunpack.c.l.b16 %v1046
        %v3226 = vunpack.c.h.b16 %v1046
        %v3227 = vunpack.c.l.b16 %v1047
        %v3228 = vunpack.c.h.b16 %v1047
        %v3229 = vunpack.c.l.b16 %v1048
        %v3230 = vunpack.c.h.b16 %v1048
        %v3231 = vunpack.c.l.b16 %v1049
        %v3232 = vunpack.c.h.b16 %v1049
        %v3233 = vunpack.c.l.b16 %v1050
        %v3234 = vunpack.c.h.b16 %v1050
        %v3235 = vunpack.c.l.b16 %v1051
        %v3236 = vunpack.c.h.b16 %v1051
        %v3237 = vunpack.c.l.b16 %v1052
        %v3238 = vunpack.c.h.b16 %v1052
        %v3239 = vunpack.c.l.b16 %v1053
        %v3240 = vunpack.c.h.b16 %v1053
        %v3241 = vunpack.c.l.b16 %v1054
        %v3242 = vunpack.c.h.b16 %v1054
        %v3243 = vunpack.c.l.b16 %v1055
        %v3244 = vunpack.c.h.b16 %v1055
        %v3245 = vunpack.c.l.b16 %v1056
        %v3246 = vunpack.c.h.b16 %v1056
        %v3247 = vunpack.c.l.b16 %v1057
        %v3248 = vunpack.c.h.b16 %v1057
        %v3249 = vunpack.c.l.b16 %v1058
        %v3250 = vunpack.c.h.b16 %v1058
        %v3251 = vunpack.c.l.b16 %v1059
        %v3252 = vunpack.c.h.b16 %v1059
        %v3253 = vunpack.c.l.b16 %v1060
        %v3254 = vunpack.c.h.b16 %v1060
        %v3255 = vunpack.c.l.b16 %v1061
        %v3256 = vunpack.c.h.b16 %v1061
        %v3257 = vunpack.c.l.b16 %v1062
        %v3258 = vunpack.c.h.b16 %v1062
        %v3259 = vunpack.c.l.b16 %v1063
        %v3260 = vunpack.c.h.b16 %v1063
        %v3261 = vunpack.c.l.b16 %v1064
        %v3262 = vunpack.c.h.b16 %v1064
        %v3263 = vunpack.c.l.b16 %v1065
        %v3264 = vunpack.c.h.b16 %v1065
        %v3265 = vunpack.c.l.b16 %v1066
        %v3266 = vunpack.c.h.b16 %v1066
        %v3267 = vunpack.c.l.b16 %v1067
        %v3268 = vunpack.c.h.b16 %v1067
        %v3269 = vunpack.c.l.b16 %v1068
        %v3270 = vunpack.c.h.b16 %v1068
        %v3271 = vunpack.c.l.b16 %v1069
        %v3272 = vunpack.c.h.b16 %v1069
        %v3273 = vunpack.c.l.b16 %v1070
        %v3274 = vunpack.c.h.b16 %v1070
        %v3275 = vunpack.c.l.b16 %v1071
        %v3276 = vunpack.c.h.b16 %v1071
        %v3277 = vunpack.c.l.b16 %v1072
        %v3278 = vunpack.c.h.b16 %v1072
        %v3279 = vunpack.c.l.b16 %v1073
        %v3280 = vunpack.c.h.b16 %v1073
        %v3281 = vunpack.c.l.b16 %v1074
        %v3282 = vunpack.c.h.b16 %v1074
        %v3283 = vunpack.c.l.b16 %v1075
        %v3284 = vunpack.c.h.b16 %v1075
        %v3285 = vunpack.c.l.b16 %v1076
        %v3286 = vunpack.c.h.b16 %v1076
        %v3287 = vunpack.c.l.b16 %v1077
        %v3288 = vunpack.c.h.b16 %v1077
        %v3289 = vunpack.c.l.b16 %v1078
        %v3290 = vunpack.c.h.b16 %v1078
        %v3291 = vunpack.c.l.b16 %v1079
        %v3292 = vunpack.c.h.b16 %v1079
        %v3293 = vunpack.c.l.b16 %v1080
        %v3294 = vunpack.c.h.b16 %v1080
        %v3295 = vunpack.c.l.b16 %v1081
        %v3296 = vunpack.c.h.b16 %v1081
        %v3297 = vunpack.c.l.b16 %v1082
        %v3298 = vunpack.c.h.b16 %v1082
        %v3299 = vunpack.c.l.b16 %v1083
        %v3300 = vunpack.c.h.b16 %v1083
        %v3301 = vunpack.c.l.b16 %v1084
        %v3302 = vunpack.c.h.b16 %v1084
        %v3303 = vunpack.c.l.b16 %v1085
        %v3304 = vunpack.c.h.b16 %v1085
        %v3305 = vunpack.c.l.b16 %v1086
        %v3306 = vunpack.c.h.b16 %v1086
        %v3307 = vunpack.c.l.b16 %v1087
        %v3308 = vunpack.c.h.b16 %v1087
        %v3309 = vunpack.c.l.b16 %v1088
        %v3310 = vunpack.c.h.b16 %v1088
        %v3311 = vunpack.c.l.b16 %v1089
        %v3312 = vunpack.c.h.b16 %v1089
        %v3313 = vunpack.c.l.b16 %v1090
        %v3314 = vunpack.c.h.b16 %v1090
        %v3315 = vunpack.c.l.b16 %v1091
        %v3316 = vunpack.c.h.b16 %v1091
        %v3317 = vunpack.c.l.b16 %v1092
        %v3318 = vunpack.c.h.b16 %v1092
        %v3319 = vunpack.c.l.b16 %v1093
        %v3320 = vunpack.c.h.b16 %v1093
        %v3321 = vunpack.c.l.b16 %v1094
        %v3322 = vunpack.c.h.b16 %v1094
        %v3323 = vunpack.c.l.b16 %v1095
        %v3324 = vunpack.c.h.b16 %v1095
        %v3325 = vunpack.c.l.b16 %v1096
        %v3326 = vunpack.c.h.b16 %v1096
        %v3327 = vunpack.c.l.b16 %v1097
        %v3328 = vunpack.c.h.b16 %v1097
        %v3329 = vunpack.c.l.b16 %v1098
        %v3330 = vunpack.c.h.b16 %v1098
        %v3331 = vunpack.c.l.b16 %v1099
        %v3332 = vunpack.c.h.b16 %v1099
        %v3333 = vunpack.c.l.b16 %v1100
        %v3334 = vunpack.c.h.b16 %v1100
        %v3335 = vunpack.c.l.b16 %v1101
        %v3336 = vunpack.c.h.b16 %v1101
        %v3337 = vunpack.c.l.b16 %v1102
        %v3338 = vunpack.c.h.b16 %v1102
        %v3339 = vunpack.c.l.b16 %v1103
        %v3340 = vunpack.c.h.b16 %v1103
        %v3341 = vunpack.c.l.b16 %v1104
        %v3342 = vunpack.c.h.b16 %v1104
        %v3343 = vunpack.c.l.b16 %v1105
        %v3344 = vunpack.c.h.b16 %v1105
        %v3345 = vunpack.c.l.b16 %v1106
        %v3346 = vunpack.c.h.b16 %v1106
        %v3347 = vunpack.c.l.b16 %v1107
        %v3348 = vunpack.c.h.b16 %v1107
        %v3349 = vunpack.c.l.b16 %v1108
        %v3350 = vunpack.c.h.b16 %v1108
        %v3351 = vunpack.c.l.b16 %v1109
        %v3352 = vunpack.c.h.b16 %v1109
        %v3353 = vunpack.c.l.b16 %v1110
        %v3354 = vunpack.c.h.b16 %v1110
        %v3355 = vunpack.c.l.b16 %v1111
        %v3356 = vunpack.c.h.b16 %v1111
        %v3357 = vunpack.c.l.b16 %v1112
        %v3358 = vunpack.c.h.b16 %v1112
        %v3359 = vunpack.c.l.b16 %v1113
        %v3360 = vunpack.c.h.b16 %v1113
        %v3361 = vunpack.c.l.b16 %v1114
        %v3362 = vunpack.c.h.b16 %v1114
        %v3363 = vunpack.c.l.b16 %v1115
        %v3364 = vunpack.c.h.b16 %v1115
        %v3365 = vunpack.c.l.b16 %v1116
        %v3366 = vunpack.c.h.b16 %v1116
        %v3367 = vunpack.c.l.b16 %v1117
        %v3368 = vunpack.c.h.b16 %v1117
        %v3369 = vunpack.c.l.b16 %v1118
        %v3370 = vunpack.c.h.b16 %v1118
        %v3371 = vunpack.c.l.b16 %v1119
        %v3372 = vunpack.c.h.b16 %v1119
        %v3373 = vunpack.c.l.b16 %v1120
        %v3374 = vunpack.c.h.b16 %v1120
        %v3375 = vunpack.c.l.b16 %v1121
        %v3376 = vunpack.c.h.b16 %v1121
        %v3377 = vunpack.c.l.b16 %v1122
        %v3378 = vunpack.c.h.b16 %v1122
        %v3379 = vunpack.c.l.b16 %v1123
        %v3380 = vunpack.c.h.b16 %v1123
        %v3381 = vunpack.c.l.b16 %v1124
        %v3382 = vunpack.c.h.b16 %v1124
        %v3383 = vunpack.c.l.b16 %v1125
        %v3384 = vunpack.c.h.b16 %v1125
        %v3385 = vunpack.c.l.b16 %v1126
        %v3386 = vunpack.c.h.b16 %v1126
        %v3387 = vunpack.c.l.b16 %v1127
        %v3388 = vunpack.c.h.b16 %v1127
        %v3389 = vunpack.c.l.b16 %v1128
        %v3390 = vunpack.c.h.b16 %v1128
        %v3391 = vunpack.c.l.b16 %v1129
        %v3392 = vunpack.c.h.b16 %v1129
        %v3393 = vunpack.c.l.b16 %v1130
        %v3394 = vunpack.c.h.b16 %v1130
        %v3395 = vunpack.c.l.b16 %v1131
        %v3396 = vunpack.c.h.b16 %v1131
        %v3397 = vunpack.c.l.b16 %v1132
        %v3398 = vunpack.c.h.b16 %v1132
        %v3399 = vunpack.c.l.b16 %v1133
        %v3400 = vunpack.c.h.b16 %v1133
        %v3401 = vunpack.c.l.b16 %v1134
        %v3402 = vunpack.c.h.b16 %v1134
        %v3403 = vunpack.c.l.b16 %v1135
        %v3404 = vunpack.c.h.b16 %v1135
        %v3405 = vunpack.c.l.b16 %v1136
        %v3406 = vunpack.c.h.b16 %v1136
        %v3407 = vunpack.c.l.b16 %v1137
        %v3408 = vunpack.c.h.b16 %v1137
        %v3409 = vunpack.c.l.b16 %v1138
        %v3410 = vunpack.c.h.b16 %v1138
        %v3411 = vunpack.c.l.b16 %v1139
        %v3412 = vunpack.c.h.b16 %v1139
        %v3413 = vunpack.c.l.b16 %v1140
        %v3414 = vunpack.c.h.b16 %v1140
        %v3415 = vunpack.c.l.b16 %v1141
        %v3416 = vunpack.c.h.b16 %v1141
        %v3417 = vunpack.c.l.b16 %v1142
        %v3418 = vunpack.c.h.b16 %v1142
        %v3419 = vunpack.c.l.b16 %v1143
        %v3420 = vunpack.c.h.b16 %v1143
        %v3421 = vunpack.c.l.b16 %v1144
        %v3422 = vunpack.c.h.b16 %v1144
        %v3423 = vunpack.c.l.b16 %v1145
        %v3424 = vunpack.c.h.b16 %v1145
        %v3425 = vunpack.c.l.b16 %v1146
        %v3426 = vunpack.c.h.b16 %v1146
        %v3427 = vunpack.c.l.b16 %v1147
        %v3428 = vunpack.c.h.b16 %v1147
        %v3429 = vunpack.c.l.b16 %v1148
        %v3430 = vunpack.c.h.b16 %v1148
        %v3431 = vunpack.c.l.b16 %v1149
        %v3432 = vunpack.c.h.b16 %v1149
        %v3433 = vunpack.c.l.b16 %v1150
        %v3434 = vunpack.c.h.b16 %v1150
        %v3435 = vunpack.c.l.b16 %v1151
        %v3436 = vunpack.c.h.b16 %v1151
        %v3437 = vunpack.c.l.b16 %v1152
        %v3438 = vunpack.c.h.b16 %v1152
        %v3439 = vunpack.c.l.b16 %v1153
        %v3440 = vunpack.c.h.b16 %v1153
        %v3441 = vunpack.c.l.b16 %v1154
        %v3442 = vunpack.c.h.b16 %v1154
        %v3443 = vunpack.c.l.b16 %v1155
        %v3444 = vunpack.c.h.b16 %v1155
        %v3445 = vunpack.c.l.b16 %v1156
        %v3446 = vunpack.c.h.b16 %v1156
        %v3447 = vunpack.c.l.b16 %v1157
        %v3448 = vunpack.c.h.b16 %v1157
        %v3449 = vunpack.c.l.b16 %v1158
        %v3450 = vunpack.c.h.b16 %v1158
        %v3451 = vunpack.c.l.b16 %v1159
        %v3452 = vunpack.c.h.b16 %v1159
        %v3453 = vunpack.c.l.b16 %v1160
        %v3454 = vunpack.c.h.b16 %v1160
        %v3455 = vunpack.c.l.b16 %v1161
        %v3456 = vunpack.c.h.b16 %v1161
        %v3457 = vunpack.c.l.b16 %v1162
        %v3458 = vunpack.c.h.b16 %v1162
        %v3459 = vunpack.c.l.b16 %v1163
        %v3460 = vunpack.c.h.b16 %v1163
        %v3461 = vunpack.c.l.b16 %v1164
        %v3462 = vunpack.c.h.b16 %v1164
        %v3463 = vunpack.c.l.b16 %v1165
        %v3464 = vunpack.c.h.b16 %v1165
        %v3465 = vunpack.c.l.b16 %v1166
        %v3466 = vunpack.c.h.b16 %v1166
        %v3467 = vunpack.c.l.b16 %v1167
        %v3468 = vunpack.c.h.b16 %v1167
        %v3469 = vunpack.c.l.b16 %v1168
        %v3470 = vunpack.c.h.b16 %v1168
        %v3471 = vunpack.c.l.b16 %v1169
        %v3472 = vunpack.c.h.b16 %v1169
        %v3473 = vunpack.c.l.b16 %v1170
        %v3474 = vunpack.c.h.b16 %v1170
        %v3475 = vunpack.c.l.b16 %v1171
        %v3476 = vunpack.c.h.b16 %v1171
        %v3477 = vunpack.c.l.b16 %v1172
        %v3478 = vunpack.c.h.b16 %v1172
        %v3479 = vunpack.c.l.b16 %v1173
        %v3480 = vunpack.c.h.b16 %v1173
        %v3481 = vunpack.c.l.b16 %v1174
        %v3482 = vunpack.c.h.b16 %v1174
        %v3483 = vunpack.c.l.b16 %v1175
        %v3484 = vunpack.c.h.b16 %v1175
        %v3485 = vunpack.c.l.b16 %v1176
        %v3486 = vunpack.c.h.b16 %v1176
        %v3487 = vunpack.c.l.b16 %v1177
        %v3488 = vunpack.c.h.b16 %v1177
        %v3489 = vunpack.c.l.b16 %v1178
        %v3490 = vunpack.c.h.b16 %v1178
        %v3491 = vunpack.c.l.b16 %v1179
        %v3492 = vunpack.c.h.b16 %v1179
        %v3493 = vunpack.c.l.b16 %v1180
        %v3494 = vunpack.c.h.b16 %v1180
        %v3495 = vunpack.c.l.b16 %v1181
        %v3496 = vunpack.c.h.b16 %v1181
        %v3497 = vunpack.c.l.b16 %v1182
        %v3498 = vunpack.c.h.b16 %v1182
        %v3499 = vunpack.c.l.b16 %v1183
        %v3500 = vunpack.c.h.b16 %v1183
        %v3501 = vunpack.c.l.b16 %v1184
        %v3502 = vunpack.c.h.b16 %v1184
        %v3503 = vunpack.c.l.b16 %v1185
        %v3504 = vunpack.c.h.b16 %v1185
        %v3505 = vunpack.c.l.b16 %v1186
        %v3506 = vunpack.c.h.b16 %v1186
        %v3507 = vunpack.c.l.b16 %v1187
        %v3508 = vunpack.c.h.b16 %v1187
        %v3509 = vunpack.c.l.b16 %v1188
        %v3510 = vunpack.c.h.b16 %v1188
        %v3511 = vunpack.c.l.b16 %v1189
        %v3512 = vunpack.c.h.b16 %v1189
        %v3513 = vunpack.c.l.b16 %v1190
        %v3514 = vunpack.c.h.b16 %v1190
        %v3515 = vunpack.c.l.b16 %v1191
        %v3516 = vunpack.c.h.b16 %v1191
        %v3517 = vunpack.c.l.b16 %v1192
        %v3518 = vunpack.c.h.b16 %v1192
        %v3519 = vpack.c.b16 %v1987, %v1983
        %v3520 = vpack.c.b16 %v1988, %v1984
        %v3521 = vpack.c.b16 %v1989, %v1985
        %v3522 = vpack.c.b16 %v1990, %v1986
        %v3523 = vpack.c.b16 %v1995, %v1991
        %v3524 = vpack.c.b16 %v1996, %v1992
        %v3525 = vpack.c.b16 %v1997, %v1993
        %v3526 = vpack.c.b16 %v1998, %v1994
        %v3527 = vpack.c.b16 %v2003, %v1999
        %v3528 = vpack.c.b16 %v2004, %v2000
        %v3529 = vpack.c.b16 %v2005, %v2001
        %v3530 = vpack.c.b16 %v2006, %v2002
        %v3531 = vpack.c.b16 %v2011, %v2007
        %v3532 = vpack.c.b16 %v2012, %v2008
        %v3533 = vpack.c.b16 %v2013, %v2009
        %v3534 = vpack.c.b16 %v2014, %v2010
        %v3535 = vpack.c.b16 %v2019, %v2015
        %v3536 = vpack.c.b16 %v2020, %v2016
        %v3537 = vpack.c.b16 %v2021, %v2017
        %v3538 = vpack.c.b16 %v2022, %v2018
        %v3539 = vpack.c.b16 %v2027, %v2023
        %v3540 = vpack.c.b16 %v2028, %v2024
        %v3541 = vpack.c.b16 %v2029, %v2025
        %v3542 = vpack.c.b16 %v2030, %v2026
        %v3543 = vpack.c.b16 %v2035, %v2031
        %v3544 = vpack.c.b16 %v2036, %v2032
        %v3545 = vpack.c.b16 %v2037, %v2033
        %v3546 = vpack.c.b16 %v2038, %v2034
        %v3547 = vpack.c.b16 %v2043, %v2039
        %v3548 = vpack.c.b16 %v2044, %v2040
        %v3549 = vpack.c.b16 %v2045, %v2041
        %v3550 = vpack.c.b16 %v2046, %v2042
        %v3551 = vpack.c.b16 %v2051, %v2047
        %v3552 = vpack.c.b16 %v2052, %v2048
        %v3553 = vpack.c.b16 %v2053, %v2049
        %v3554 = vpack.c.b16 %v2054, %v2050
        %v3555 = vpack.c.b16 %v2059, %v2055
        %v3556 = vpack.c.b16 %v2060, %v2056
        %v3557 = vpack.c.b16 %v2061, %v2057
        %v3558 = vpack.c.b16 %v2062, %v2058
        %v3559 = vpack.c.b16 %v2067, %v2063
        %v3560 = vpack.c.b16 %v2068, %v2064
        %v3561 = vpack.c.b16 %v2069, %v2065
        %v3562 = vpack.c.b16 %v2070, %v2066
        %v3563 = vpack.c.b16 %v2075, %v2071
        %v3564 = vpack.c.b16 %v2076, %v2072
        %v3565 = vpack.c.b16 %v2077, %v2073
        %v3566 = vpack.c.b16 %v2078, %v2074
        %v3567 = vpack.c.b16 %v2083, %v2079
        %v3568 = vpack.c.b16 %v2084, %v2080
        %v3569 = vpack.c.b16 %v2085, %v2081
        %v3570 = vpack.c.b16 %v2086, %v2082
        %v3571 = vpack.c.b16 %v2091, %v2087
        %v3572 = vpack.c.b16 %v2092, %v2088
        %v3573 = vpack.c.b16 %v2093, %v2089
        %v3574 = vpack.c.b16 %v2094, %v2090
        %v3575 = vpack.c.b16 %v2099, %v2095
        %v3576 = vpack.c.b16 %v2100, %v2096
        %v3577 = vpack.c.b16 %v2101, %v2097
        %v3578 = vpack.c.b16 %v2102, %v2098
        %v3579 = vpack.c.b16 %v2107, %v2103
        %v3580 = vpack.c.b16 %v2108, %v2104
        %v3581 = vpack.c.b16 %v2109, %v2105
        %v3582 = vpack.c.b16 %v2110, %v2106
        %v3583 = vpack.c.b16 %v2115, %v2111
        %v3584 = vpack.c.b16 %v2116, %v2112
        %v3585 = vpack.c.b16 %v2117, %v2113
        %v3586 = vpack.c.b16 %v2118, %v2114
        %v3587 = vpack.c.b16 %v2123, %v2119
        %v3588 = vpack.c.b16 %v2124, %v2120
        %v3589 = vpack.c.b16 %v2125, %v2121
        %v3590 = vpack.c.b16 %v2126, %v2122
        %v3591 = vpack.c.b16 %v2131, %v2127
        %v3592 = vpack.c.b16 %v2132, %v2128
        %v3593 = vpack.c.b16 %v2133, %v2129
        %v3594 = vpack.c.b16 %v2134, %v2130
        %v3595 = vpack.c.b16 %v2139, %v2135
        %v3596 = vpack.c.b16 %v2140, %v2136
        %v3597 = vpack.c.b16 %v2141, %v2137
        %v3598 = vpack.c.b16 %v2142, %v2138
        %v3599 = vpack.c.b16 %v2147, %v2143
        %v3600 = vpack.c.b16 %v2148, %v2144
        %v3601 = vpack.c.b16 %v2149, %v2145
        %v3602 = vpack.c.b16 %v2150, %v2146
        %v3603 = vpack.c.b16 %v2155, %v2151
        %v3604 = vpack.c.b16 %v2156, %v2152
        %v3605 = vpack.c.b16 %v2157, %v2153
        %v3606 = vpack.c.b16 %v2158, %v2154
        %v3607 = vpack.c.b16 %v2163, %v2159
        %v3608 = vpack.c.b16 %v2164, %v2160
        %v3609 = vpack.c.b16 %v2165, %v2161
        %v3610 = vpack.c.b16 %v2166, %v2162
        %v3611 = vpack.c.b16 %v2171, %v2167
        %v3612 = vpack.c.b16 %v2172, %v2168
        %v3613 = vpack.c.b16 %v2173, %v2169
        %v3614 = vpack.c.b16 %v2174, %v2170
        %v3615 = vpack.c.b16 %v2179, %v2175
        %v3616 = vpack.c.b16 %v2180, %v2176
        %v3617 = vpack.c.b16 %v2181, %v2177
        %v3618 = vpack.c.b16 %v2182, %v2178
        %v3619 = vpack.c.b16 %v2187, %v2183
        %v3620 = vpack.c.b16 %v2188, %v2184
        %v3621 = vpack.c.b16 %v2189, %v2185
        %v3622 = vpack.c.b16 %v2190, %v2186
        %v3623 = vpack.c.b16 %v2195, %v2191
        %v3624 = vpack.c.b16 %v2196, %v2192
        %v3625 = vpack.c.b16 %v2197, %v2193
        %v3626 = vpack.c.b16 %v2198, %v2194
        %v3627 = vpack.c.b16 %v2203, %v2199
        %v3628 = vpack.c.b16 %v2204, %v2200
        %v3629 = vpack.c.b16 %v2205, %v2201
        %v3630 = vpack.c.b16 %v2206, %v2202
        %v3631 = vpack.c.b16 %v2211, %v2207
        %v3632 = vpack.c.b16 %v2212, %v2208
        %v3633 = vpack.c.b16 %v2213, %v2209
        %v3634 = vpack.c.b16 %v2214, %v2210
        %v3635 = vpack.c.b16 %v2219, %v2215
        %v3636 = vpack.c.b16 %v2220, %v2216
        %v3637 = vpack.c.b16 %v2221, %v2217
        %v3638 = vpack.c.b16 %v2222, %v2218
        %v3639 = vpack.c.b16 %v2227, %v2223
        %v3640 = vpack.c.b16 %v2228, %v2224
        %v3641 = vpack.c.b16 %v2229, %v2225
        %v3642 = vpack.c.b16 %v2230, %v2226
        %v3643 = vpack.c.b16 %v2235, %v2231
        %v3644 = vpack.c.b16 %v2236, %v2232
        %v3645 = vpack.c.b16 %v2237, %v2233
        %v3646 = vpack.c.b16 %v2238, %v2234
        %v3647 = vpack.c.b16 %v2243, %v2239
        %v3648 = vpack.c.b16 %v2244, %v2240
        %v3649 = vpack.c.b16 %v2245, %v2241
        %v3650 = vpack.c.b16 %v2246, %v2242
        %v3651 = vpack.c.b16 %v2251, %v2247
        %v3652 = vpack.c.b16 %v2252, %v2248
        %v3653 = vpack.c.b16 %v2253, %v2249
        %v3654 = vpack.c.b16 %v2254, %v2250
        %v3655 = vpack.c.b16 %v2259, %v2255
        %v3656 = vpack.c.b16 %v2260, %v2256
        %v3657 = vpack.c.b16 %v2261, %v2257
        %v3658 = vpack.c.b16 %v2262, %v2258
        %v3659 = vpack.c.b16 %v2267, %v2263
        %v3660 = vpack.c.b16 %v2268, %v2264
        %v3661 = vpack.c.b16 %v2269, %v2265
        %v3662 = vpack.c.b16 %v2270, %v2266
        %v3663 = vpack.c.b16 %v2275, %v2271
        %v3664 = vpack.c.b16 %v2276, %v2272
        %v3665 = vpack.c.b16 %v2277, %v2273
        %v3666 = vpack.c.b16 %v2278, %v2274
        %v3667 = vpack.c.b16 %v2283, %v2279
        %v3668 = vpack.c.b16 %v2284, %v2280
        %v3669 = vpack.c.b16 %v2285, %v2281
        %v3670 = vpack.c.b16 %v2286, %v2282
        %v3671 = vpack.c.b16 %v2291, %v2287
        %v3672 = vpack.c.b16 %v2292, %v2288
        %v3673 = vpack.c.b16 %v2293, %v2289
        %v3674 = vpack.c.b16 %v2294, %v2290
        %v3675 = vpack.c.b16 %v2299, %v2295
        %v3676 = vpack.c.b16 %v2300, %v2296
        %v3677 = vpack.c.b16 %v2301, %v2297
        %v3678 = vpack.c.b16 %v2302, %v2298
        %v3679 = vpack.c.b16 %v2307, %v2303
        %v3680 = vpack.c.b16 %v2308, %v2304
        %v3681 = vpack.c.b16 %v2309, %v2305
        %v3682 = vpack.c.b16 %v2310, %v2306
        %v3683 = vpack.c.b16 %v2315, %v2311
        %v3684 = vpack.c.b16 %v2316, %v2312
        %v3685 = vpack.c.b16 %v2317, %v2313
        %v3686 = vpack.c.b16 %v2318, %v2314
        %v3687 = vpack.c.b16 %v2323, %v2319
        %v3688 = vpack.c.b16 %v2324, %v2320
        %v3689 = vpack.c.b16 %v2325, %v2321
        %v3690 = vpack.c.b16 %v2326, %v2322
        %v3691 = vpack.c.b16 %v2331, %v2327
        %v3692 = vpack.c.b16 %v2332, %v2328
        %v3693 = vpack.c.b16 %v2333, %v2329
        %v3694 = vpack.c.b16 %v2334, %v2330
        %v3695 = vpack.c.b16 %v2339, %v2335
        %v3696 = vpack.c.b16 %v2340, %v2336
        %v3697 = vpack.c.b16 %v2341, %v2337
        %v3698 = vpack.c.b16 %v2342, %v2338
        %v3699 = vpack.c.b16 %v2347, %v2343
        %v3700 = vpack.c.b16 %v2348, %v2344
        %v3701 = vpack.c.b16 %v2349, %v2345
        %v3702 = vpack.c.b16 %v2350, %v2346
        %v3703 = vpack.c.b16 %v2355, %v2351
        %v3704 = vpack.c.b16 %v2356, %v2352
        %v3705 = vpack.c.b16 %v2357, %v2353
        %v3706 = vpack.c.b16 %v2358, %v2354
        %v3707 = vpack.c.b16 %v2363, %v2359
        %v3708 = vpack.c.b16 %v2364, %v2360
        %v3709 = vpack.c.b16 %v2365, %v2361
        %v3710 = vpack.c.b16 %v2366, %v2362
        %v3711 = vpack.c.b16 %v2371, %v2367
        %v3712 = vpack.c.b16 %v2372, %v2368
        %v3713 = vpack.c.b16 %v2373, %v2369
        %v3714 = vpack.c.b16 %v2374, %v2370
        %v3715 = vpack.c.b16 %v2379, %v2375
        %v3716 = vpack.c.b16 %v2380, %v2376
        %v3717 = vpack.c.b16 %v2381, %v2377
        %v3718 = vpack.c.b16 %v2382, %v2378
        %v3719 = vpack.c.b16 %v2387, %v2383
        %v3720 = vpack.c.b16 %v2388, %v2384
        %v3721 = vpack.c.b16 %v2389, %v2385
        %v3722 = vpack.c.b16 %v2390, %v2386
        %v3723 = vpack.c.b16 %v2395, %v2391
        %v3724 = vpack.c.b16 %v2396, %v2392
        %v3725 = vpack.c.b16 %v2397, %v2393
        %v3726 = vpack.c.b16 %v2398, %v2394
        %v3727 = vpack.c.b16 %v2403, %v2399
        %v3728 = vpack.c.b16 %v2404, %v2400
        %v3729 = vpack.c.b16 %v2405, %v2401
        %v3730 = vpack.c.b16 %v2406, %v2402
        %v3731 = vpack.c.b16 %v2411, %v2407
        %v3732 = vpack.c.b16 %v2412, %v2408
        %v3733 = vpack.c.b16 %v2413, %v2409
        %v3734 = vpack.c.b16 %v2414, %v2410
        %v3735 = vpack.c.b16 %v2419, %v2415
        %v3736 = vpack.c.b16 %v2420, %v2416
        %v3737 = vpack.c.b16 %v2421, %v2417
        %v3738 = vpack.c.b16 %v2422, %v2418
        %v3739 = vpack.c.b16 %v2427, %v2423
        %v3740 = vpack.c.b16 %v2428, %v2424
        %v3741 = vpack.c.b16 %v2429, %v2425
        %v3742 = vpack.c.b16 %v2430, %v2426
        %v3743 = vpack.c.b16 %v2435, %v2431
        %v3744 = vpack.c.b16 %v2436, %v2432
        %v3745 = vpack.c.b16 %v2437, %v2433
        %v3746 = vpack.c.b16 %v2438, %v2434
        %v3747 = vpack.c.b16 %v2443, %v2439
        %v3748 = vpack.c.b16 %v2444, %v2440
        %v3749 = vpack.c.b16 %v2445, %v2441
        %v3750 = vpack.c.b16 %v2446, %v2442
        %v3751 = vpack.c.b16 %v2451, %v2447
        %v3752 = vpack.c.b16 %v2452, %v2448
        %v3753 = vpack.c.b16 %v2453, %v2449
        %v3754 = vpack.c.b16 %v2454, %v2450
        %v3755 = vpack.c.b16 %v2459, %v2455
        %v3756 = vpack.c.b16 %v2460, %v2456
        %v3757 = vpack.c.b16 %v2461, %v2457
        %v3758 = vpack.c.b16 %v2462, %v2458
        %v3759 = vpack.c.b16 %v2467, %v2463
        %v3760 = vpack.c.b16 %v2468, %v2464
        %v3761 = vpack.c.b16 %v2469, %v2465
        %v3762 = vpack.c.b16 %v2470, %v2466
        %v3763 = vpack.c.b16 %v2475, %v2471
        %v3764 = vpack.c.b16 %v2476, %v2472
        %v3765 = vpack.c.b16 %v2477, %v2473
        %v3766 = vpack.c.b16 %v2478, %v2474
        %v3767 = vpack.c.b16 %v2483, %v2479
        %v3768 = vpack.c.b16 %v2484, %v2480
        %v3769 = vpack.c.b16 %v2485, %v2481
        %v3770 = vpack.c.b16 %v2486, %v2482
        %v3771 = vpack.c.b16 %v2491, %v2487
        %v3772 = vpack.c.b16 %v2492, %v2488
        %v3773 = vpack.c.b16 %v2493, %v2489
        %v3774 = vpack.c.b16 %v2494, %v2490
        %v3775 = vpack.c.b16 %v2499, %v2495
        %v3776 = vpack.c.b16 %v2500, %v2496
        %v3777 = vpack.c.b16 %v2501, %v2497
        %v3778 = vpack.c.b16 %v2502, %v2498
        %v3779 = vpack.c.b16 %v2507, %v2503
        %v3780 = vpack.c.b16 %v2508, %v2504
        %v3781 = vpack.c.b16 %v2509, %v2505
        %v3782 = vpack.c.b16 %v2510, %v2506
        %v3783 = vpack.c.b16 %v2515, %v2511
        %v3784 = vpack.c.b16 %v2516, %v2512
        %v3785 = vpack.c.b16 %v2517, %v2513
        %v3786 = vpack.c.b16 %v2518, %v2514
        %v3787 = vpack.c.b16 %v2523, %v2519
        %v3788 = vpack.c.b16 %v2524, %v2520
        %v3789 = vpack.c.b16 %v2525, %v2521
        %v3790 = vpack.c.b16 %v2526, %v2522
        %v3791 = vpack.c.b16 %v2531, %v2527
        %v3792 = vpack.c.b16 %v2532, %v2528
        %v3793 = vpack.c.b16 %v2533, %v2529
        %v3794 = vpack.c.b16 %v2534, %v2530
        %v3795 = vpack.c.b16 %v2539, %v2535
        %v3796 = vpack.c.b16 %v2540, %v2536
        %v3797 = vpack.c.b16 %v2541, %v2537
        %v3798 = vpack.c.b16 %v2542, %v2538
        %v3799 = vpack.c.b16 %v2547, %v2543
        %v3800 = vpack.c.b16 %v2548, %v2544
        %v3801 = vpack.c.b16 %v2549, %v2545
        %v3802 = vpack.c.b16 %v2550, %v2546
        %v3803 = vpack.c.b16 %v2555, %v2551
        %v3804 = vpack.c.b16 %v2556, %v2552
        %v3805 = vpack.c.b16 %v2557, %v2553
        %v3806 = vpack.c.b16 %v2558, %v2554
        %v3807 = vpack.c.b16 %v2563, %v2559
        %v3808 = vpack.c.b16 %v2564, %v2560
        %v3809 = vpack.c.b16 %v2565, %v2561
        %v3810 = vpack.c.b16 %v2566, %v2562
        %v3811 = vpack.c.b16 %v2571, %v2567
        %v3812 = vpack.c.b16 %v2572, %v2568
        %v3813 = vpack.c.b16 %v2573, %v2569
        %v3814 = vpack.c.b16 %v2574, %v2570
        %v3815 = vpack.c.b16 %v2579, %v2575
        %v3816 = vpack.c.b16 %v2580, %v2576
        %v3817 = vpack.c.b16 %v2581, %v2577
        %v3818 = vpack.c.b16 %v2582, %v2578
        %v3819 = vpack.c.b16 %v2587, %v2583
        %v3820 = vpack.c.b16 %v2588, %v2584
        %v3821 = vpack.c.b16 %v2589, %v2585
        %v3822 = vpack.c.b16 %v2590, %v2586
        %v3823 = vpack.c.b16 %v2595, %v2591
        %v3824 = vpack.c.b16 %v2596, %v2592
        %v3825 = vpack.c.b16 %v2597, %v2593
        %v3826 = vpack.c.b16 %v2598, %v2594
        %v3827 = vpack.c.b16 %v2603, %v2599
        %v3828 = vpack.c.b16 %v2604, %v2600
        %v3829 = vpack.c.b16 %v2605, %v2601
        %v3830 = vpack.c.b16 %v2606, %v2602
        %v3831 = vpack.c.b16 %v2611, %v2607
        %v3832 = vpack.c.b16 %v2612, %v2608
        %v3833 = vpack.c.b16 %v2613, %v2609
        %v3834 = vpack.c.b16 %v2614, %v2610
        %v3835 = vpack.c.b16 %v2619, %v2615
        %v3836 = vpack.c.b16 %v2620, %v2616
        %v3837 = vpack.c.b16 %v2621, %v2617
        %v3838 = vpack.c.b16 %v2622, %v2618
        %v3839 = vpack.c.b16 %v2627, %v2623
        %v3840 = vpack.c.b16 %v2628, %v2624
        %v3841 = vpack.c.b16 %v2629, %v2625
        %v3842 = vpack.c.b16 %v2630, %v2626
        %v3843 = vpack.c.b16 %v2635, %v2631
        %v3844 = vpack.c.b16 %v2636, %v2632
        %v3845 = vpack.c.b16 %v2637, %v2633
        %v3846 = vpack.c.b16 %v2638, %v2634
        %v3847 = vpack.c.b16 %v2643, %v2639
        %v3848 = vpack.c.b16 %v2644, %v2640
        %v3849 = vpack.c.b16 %v2645, %v2641
        %v3850 = vpack.c.b16 %v2646, %v2642
        %v3851 = vpack.c.b16 %v2651, %v2647
        %v3852 = vpack.c.b16 %v2652, %v2648
        %v3853 = vpack.c.b16 %v2653, %v2649
        %v3854 = vpack.c.b16 %v2654, %v2650
        %v3855 = vpack.c.b16 %v2659, %v2655
        %v3856 = vpack.c.b16 %v2660, %v2656
        %v3857 = vpack.c.b16 %v2661, %v2657
        %v3858 = vpack.c.b16 %v2662, %v2658
        %v3859 = vpack.c.b16 %v2667, %v2663
        %v3860 = vpack.c.b16 %v2668, %v2664
        %v3861 = vpack.c.b16 %v2669, %v2665
        %v3862 = vpack.c.b16 %v2670, %v2666
        %v3863 = vpack.c.b16 %v2675, %v2671
        %v3864 = vpack.c.b16 %v2676, %v2672
        %v3865 = vpack.c.b16 %v2677, %v2673
        %v3866 = vpack.c.b16 %v2678, %v2674
        %v3867 = vpack.c.b16 %v2683, %v2679
        %v3868 = vpack.c.b16 %v2684, %v2680
        %v3869 = vpack.c.b16 %v2685, %v2681
        %v3870 = vpack.c.b16 %v2686, %v2682
        %v3871 = vpack.c.b16 %v2691, %v2687
        %v3872 = vpack.c.b16 %v2692, %v2688
        %v3873 = vpack.c.b16 %v2693, %v2689
        %v3874 = vpack.c.b16 %v2694, %v2690
        %v3875 = vpack.c.b16 %v2699, %v2695
        %v3876 = vpack.c.b16 %v2700, %v2696
        %v3877 = vpack.c.b16 %v2701, %v2697
        %v3878 = vpack.c.b16 %v2702, %v2698
        %v3879 = vpack.c.b16 %v2707, %v2703
        %v3880 = vpack.c.b16 %v2708, %v2704
        %v3881 = vpack.c.b16 %v2709, %v2705
        %v3882 = vpack.c.b16 %v2710, %v2706
        %v3883 = vpack.c.b16 %v2715, %v2711
        %v3884 = vpack.c.b16 %v2716, %v2712
        %v3885 = vpack.c.b16 %v2717, %v2713
        %v3886 = vpack.c.b16 %v2718, %v2714
        %v3887 = vpack.c.b16 %v2723, %v2719
        %v3888 = vpack.c.b16 %v2724, %v2720
        %v3889 = vpack.c.b16 %v2725, %v2721
        %v3890 = vpack.c.b16 %v2726, %v2722
        %v3891 = vpack.c.b16 %v2731, %v2727
        %v3892 = vpack.c.b16 %v2732, %v2728
        %v3893 = vpack.c.b16 %v2733, %v2729
        %v3894 = vpack.c.b16 %v2734, %v2730
        %v3895 = vpack.c.b16 %v2739, %v2735
        %v3896 = vpack.c.b16 %v2740, %v2736
        %v3897 = vpack.c.b16 %v2741, %v2737
        %v3898 = vpack.c.b16 %v2742, %v2738
        %v3899 = vpack.c.b16 %v2747, %v2743
        %v3900 = vpack.c.b16 %v2748, %v2744
        %v3901 = vpack.c.b16 %v2749, %v2745
        %v3902 = vpack.c.b16 %v2750, %v2746
        %v3903 = vpack.c.b16 %v2755, %v2751
        %v3904 = vpack.c.b16 %v2756, %v2752
        %v3905 = vpack.c.b16 %v2757, %v2753
        %v3906 = vpack.c.b16 %v2758, %v2754
        %v3907 = vpack.c.b16 %v2763, %v2759
        %v3908 = vpack.c.b16 %v2764, %v2760
        %v3909 = vpack.c.b16 %v2765, %v2761
        %v3910 = vpack.c.b16 %v2766, %v2762
        %v3911 = vpack.c.b16 %v2771, %v2767
        %v3912 = vpack.c.b16 %v2772, %v2768
        %v3913 = vpack.c.b16 %v2773, %v2769
        %v3914 = vpack.c.b16 %v2774, %v2770
        %v3915 = vpack.c.b16 %v2779, %v2775
        %v3916 = vpack.c.b16 %v2780, %v2776
        %v3917 = vpack.c.b16 %v2781, %v2777
        %v3918 = vpack.c.b16 %v2782, %v2778
        %v3919 = vpack.c.b16 %v2787, %v2783
        %v3920 = vpack.c.b16 %v2788, %v2784
        %v3921 = vpack.c.b16 %v2789, %v2785
        %v3922 = vpack.c.b16 %v2790, %v2786
        %v3923 = vpack.c.b16 %v2795, %v2791
        %v3924 = vpack.c.b16 %v2796, %v2792
        %v3925 = vpack.c.b16 %v2797, %v2793
        %v3926 = vpack.c.b16 %v2798, %v2794
        %v3927 = vpack.c.b16 %v2803, %v2799
        %v3928 = vpack.c.b16 %v2804, %v2800
        %v3929 = vpack.c.b16 %v2805, %v2801
        %v3930 = vpack.c.b16 %v2806, %v2802
        %v3931 = vpack.c.b16 %v2811, %v2807
        %v3932 = vpack.c.b16 %v2812, %v2808
        %v3933 = vpack.c.b16 %v2813, %v2809
        %v3934 = vpack.c.b16 %v2814, %v2810
        %v3935 = vpack.c.b16 %v2819, %v2815
        %v3936 = vpack.c.b16 %v2820, %v2816
        %v3937 = vpack.c.b16 %v2821, %v2817
        %v3938 = vpack.c.b16 %v2822, %v2818
        %v3939 = vpack.c.b16 %v2827, %v2823
        %v3940 = vpack.c.b16 %v2828, %v2824
        %v3941 = vpack.c.b16 %v2829, %v2825
        %v3942 = vpack.c.b16 %v2830, %v2826
        %v3943 = vpack.c.b16 %v2835, %v2831
        %v3944 = vpack.c.b16 %v2836, %v2832
        %v3945 = vpack.c.b16 %v2837, %v2833
        %v3946 = vpack.c.b16 %v2838, %v2834
        %v3947 = vpack.c.b16 %v2843, %v2839
        %v3948 = vpack.c.b16 %v2844, %v2840
        %v3949 = vpack.c.b16 %v2845, %v2841
        %v3950 = vpack.c.b16 %v2846, %v2842
        %v3951 = vpack.c.b16 %v2851, %v2847
        %v3952 = vpack.c.b16 %v2852, %v2848
        %v3953 = vpack.c.b16 %v2853, %v2849
        %v3954 = vpack.c.b16 %v2854, %v2850
        %v3955 = vpack.c.b16 %v2859, %v2855
        %v3956 = vpack.c.b16 %v2860, %v2856
        %v3957 = vpack.c.b16 %v2861, %v2857
        %v3958 = vpack.c.b16 %v2862, %v2858
        %v3959 = vpack.c.b16 %v2867, %v2863
        %v3960 = vpack.c.b16 %v2868, %v2864
        %v3961 = vpack.c.b16 %v2869, %v2865
        %v3962 = vpack.c.b16 %v2870, %v2866
        %v3963 = vpack.c.b16 %v2875, %v2871
        %v3964 = vpack.c.b16 %v2876, %v2872
        %v3965 = vpack.c.b16 %v2877, %v2873
        %v3966 = vpack.c.b16 %v2878, %v2874
        %v3967 = vpack.c.b16 %v2883, %v2879
        %v3968 = vpack.c.b16 %v2884, %v2880
        %v3969 = vpack.c.b16 %v2885, %v2881
        %v3970 = vpack.c.b16 %v2886, %v2882
        %v3971 = vpack.c.b16 %v2891, %v2887
        %v3972 = vpack.c.b16 %v2892, %v2888
        %v3973 = vpack.c.b16 %v2893, %v2889
        %v3974 = vpack.c.b16 %v2894, %v2890
        %v3975 = vpack.c.b16 %v2899, %v2895
        %v3976 = vpack.c.b16 %v2900, %v2896
        %v3977 = vpack.c.b16 %v2901, %v2897
        %v3978 = vpack.c.b16 %v2902, %v2898
        %v3979 = vpack.c.b16 %v2907, %v2903
        %v3980 = vpack.c.b16 %v2908, %v2904
        %v3981 = vpack.c.b16 %v2909, %v2905
        %v3982 = vpack.c.b16 %v2910, %v2906
        %v3983 = vpack.c.b16 %v2915, %v2911
        %v3984 = vpack.c.b16 %v2916, %v2912
        %v3985 = vpack.c.b16 %v2917, %v2913
        %v3986 = vpack.c.b16 %v2918, %v2914
        %v3987 = vpack.c.b16 %v2923, %v2919
        %v3988 = vpack.c.b16 %v2924, %v2920
        %v3989 = vpack.c.b16 %v2925, %v2921
        %v3990 = vpack.c.b16 %v2926, %v2922
        %v3991 = vpack.c.b16 %v2931, %v2927
        %v3992 = vpack.c.b16 %v2932, %v2928
        %v3993 = vpack.c.b16 %v2933, %v2929
        %v3994 = vpack.c.b16 %v2934, %v2930
        %v3995 = vpack.c.b16 %v2939, %v2935
        %v3996 = vpack.c.b16 %v2940, %v2936
        %v3997 = vpack.c.b16 %v2941, %v2937
        %v3998 = vpack.c.b16 %v2942, %v2938
        %v3999 = vpack.c.b16 %v2947, %v2943
        %v4000 = vpack.c.b16 %v2948, %v2944
        %v4001 = vpack.c.b16 %v2949, %v2945
        %v4002 = vpack.c.b16 %v2950, %v2946
        %v4003 = vpack.c.b16 %v2955, %v2951
        %v4004 = vpack.c.b16 %v2956, %v2952
        %v4005 = vpack.c.b16 %v2957, %v2953
        %v4006 = vpack.c.b16 %v2958, %v2954
        %v4007 = vpack.c.b16 %v2963, %v2959
        %v4008 = vpack.c.b16 %v2964, %v2960
        %v4009 = vpack.c.b16 %v2965, %v2961
        %v4010 = vpack.c.b16 %v2966, %v2962
        %v4011 = vpack.c.b16 %v2971, %v2967
        %v4012 = vpack.c.b16 %v2972, %v2968
        %v4013 = vpack.c.b16 %v2973, %v2969
        %v4014 = vpack.c.b16 %v2974, %v2970
        %v4015 = vpack.c.b16 %v2979, %v2975
        %v4016 = vpack.c.b16 %v2980, %v2976
        %v4017 = vpack.c.b16 %v2981, %v2977
        %v4018 = vpack.c.b16 %v2982, %v2978
        %v4019 = vpack.c.b16 %v2987, %v2983
        %v4020 = vpack.c.b16 %v2988, %v2984
        %v4021 = vpack.c.b16 %v2989, %v2985
        %v4022 = vpack.c.b16 %v2990, %v2986
        %v4023 = vpack.c.b16 %v2995, %v2991
        %v4024 = vpack.c.b16 %v2996, %v2992
        %v4025 = vpack.c.b16 %v2997, %v2993
        %v4026 = vpack.c.b16 %v2998, %v2994
        %v4027 = vpack.c.b16 %v3003, %v2999
        %v4028 = vpack.c.b16 %v3004, %v3000
        %v4029 = vpack.c.b16 %v3005, %v3001
        %v4030 = vpack.c.b16 %v3006, %v3002
        %v4031 = vpack.c.b16 %v3011, %v3007
        %v4032 = vpack.c.b16 %v3012, %v3008
        %v4033 = vpack.c.b16 %v3013, %v3009
        %v4034 = vpack.c.b16 %v3014, %v3010
        %v4035 = vpack.c.b16 %v3019, %v3015
        %v4036 = vpack.c.b16 %v3020, %v3016
        %v4037 = vpack.c.b16 %v3021, %v3017
        %v4038 = vpack.c.b16 %v3022, %v3018
        %v4039 = vpack.c.b16 %v3027, %v3023
        %v4040 = vpack.c.b16 %v3028, %v3024
        %v4041 = vpack.c.b16 %v3029, %v3025
        %v4042 = vpack.c.b16 %v3030, %v3026
        %v4043 = vpack.c.b16 %v3035, %v3031
        %v4044 = vpack.c.b16 %v3036, %v3032
        %v4045 = vpack.c.b16 %v3037, %v3033
        %v4046 = vpack.c.b16 %v3038, %v3034
        %v4047 = vpack.c.b16 %v3043, %v3039
        %v4048 = vpack.c.b16 %v3044, %v3040
        %v4049 = vpack.c.b16 %v3045, %v3041
        %v4050 = vpack.c.b16 %v3046, %v3042
        %v4051 = vpack.c.b16 %v3051, %v3047
        %v4052 = vpack.c.b16 %v3052, %v3048
        %v4053 = vpack.c.b16 %v3053, %v3049
        %v4054 = vpack.c.b16 %v3054, %v3050
        %v4055 = vpack.c.b16 %v3059, %v3055
        %v4056 = vpack.c.b16 %v3060, %v3056
        %v4057 = vpack.c.b16 %v3061, %v3057
        %v4058 = vpack.c.b16 %v3062, %v3058
        %v4059 = vpack.c.b16 %v3067, %v3063
        %v4060 = vpack.c.b16 %v3068, %v3064
        %v4061 = vpack.c.b16 %v3069, %v3065
        %v4062 = vpack.c.b16 %v3070, %v3066
        %v4063 = vpack.c.b16 %v3075, %v3071
        %v4064 = vpack.c.b16 %v3076, %v3072
        %v4065 = vpack.c.b16 %v3077, %v3073
        %v4066 = vpack.c.b16 %v3078, %v3074
        %v4067 = vpack.c.b16 %v3083, %v3079
        %v4068 = vpack.c.b16 %v3084, %v3080
        %v4069 = vpack.c.b16 %v3085, %v3081
        %v4070 = vpack.c.b16 %v3086, %v3082
        %v4071 = vpack.c.b16 %v3091, %v3087
        %v4072 = vpack.c.b16 %v3092, %v3088
        %v4073 = vpack.c.b16 %v3093, %v3089
        %v4074 = vpack.c.b16 %v3094, %v3090
        %v4075 = vpack.c.b16 %v3099, %v3095
        %v4076 = vpack.c.b16 %v3100, %v3096
        %v4077 = vpack.c.b16 %v3101, %v3097
        %v4078 = vpack.c.b16 %v3102, %v3098
        %v4079 = vpack.c.b16 %v3107, %v3103
        %v4080 = vpack.c.b16 %v3108, %v3104
        %v4081 = vpack.c.b16 %v3109, %v3105
        %v4082 = vpack.c.b16 %v3110, %v3106
        %v4083 = vpack.c.b16 %v3115, %v3111
        %v4084 = vpack.c.b16 %v3116, %v3112
        %v4085 = vpack.c.b16 %v3117, %v3113
        %v4086 = vpack.c.b16 %v3118, %v3114
        %v4087 = vpack.c.b16 %v3123, %v3119
        %v4088 = vpack.c.b16 %v3124, %v3120
        %v4089 = vpack.c.b16 %v3125, %v3121
        %v4090 = vpack.c.b16 %v3126, %v3122
        %v4091 = vpack.c.b16 %v3131, %v3127
        %v4092 = vpack.c.b16 %v3132, %v3128
        %v4093 = vpack.c.b16 %v3133, %v3129
        %v4094 = vpack.c.b16 %v3134, %v3130
        %v4095 = vpack.c.b16 %v3139, %v3135
        %v4096 = vpack.c.b16 %v3140, %v3136
        %v4097 = vpack.c.b16 %v3141, %v3137
        %v4098 = vpack.c.b16 %v3142, %v3138
        %v4099 = vpack.c.b16 %v3147, %v3143
        %v4100 = vpack.c.b16 %v3148, %v3144
        %v4101 = vpack.c.b16 %v3149, %v3145
        %v4102 = vpack.c.b16 %v3150, %v3146
        %v4103 = vpack.c.b16 %v3155, %v3151
        %v4104 = vpack.c.b16 %v3156, %v3152
        %v4105 = vpack.c.b16 %v3157, %v3153
        %v4106 = vpack.c.b16 %v3158, %v3154
        %v4107 = vpack.c.b16 %v3163, %v3159
        %v4108 = vpack.c.b16 %v3164, %v3160
        %v4109 = vpack.c.b16 %v3165, %v3161
        %v4110 = vpack.c.b16 %v3166, %v3162
        %v4111 = vpack.c.b16 %v3171, %v3167
        %v4112 = vpack.c.b16 %v3172, %v3168
        %v4113 = vpack.c.b16 %v3173, %v3169
        %v4114 = vpack.c.b16 %v3174, %v3170
        %v4115 = vpack.c.b16 %v3179, %v3175
        %v4116 = vpack.c.b16 %v3180, %v3176
        %v4117 = vpack.c.b16 %v3181, %v3177
        %v4118 = vpack.c.b16 %v3182, %v3178
        %v4119 = vpack.c.b16 %v3187, %v3183
        %v4120 = vpack.c.b16 %v3188, %v3184
        %v4121 = vpack.c.b16 %v3189, %v3185
        %v4122 = vpack.c.b16 %v3190, %v3186
        %v4123 = vpack.c.b16 %v3195, %v3191
        %v4124 = vpack.c.b16 %v3196, %v3192
        %v4125 = vpack.c.b16 %v3197, %v3193
        %v4126 = vpack.c.b16 %v3198, %v3194
        %v4127 = vpack.c.b16 %v3203, %v3199
        %v4128 = vpack.c.b16 %v3204, %v3200
        %v4129 = vpack.c.b16 %v3205, %v3201
        %v4130 = vpack.c.b16 %v3206, %v3202
        %v4131 = vpack.c.b16 %v3211, %v3207
        %v4132 = vpack.c.b16 %v3212, %v3208
        %v4133 = vpack.c.b16 %v3213, %v3209
        %v4134 = vpack.c.b16 %v3214, %v3210
        %v4135 = vpack.c.b16 %v3219, %v3215
        %v4136 = vpack.c.b16 %v3220, %v3216
        %v4137 = vpack.c.b16 %v3221, %v3217
        %v4138 = vpack.c.b16 %v3222, %v3218
        %v4139 = vpack.c.b16 %v3227, %v3223
        %v4140 = vpack.c.b16 %v3228, %v3224
        %v4141 = vpack.c.b16 %v3229, %v3225
        %v4142 = vpack.c.b16 %v3230, %v3226
        %v4143 = vpack.c.b16 %v3235, %v3231
        %v4144 = vpack.c.b16 %v3236, %v3232
        %v4145 = vpack.c.b16 %v3237, %v3233
        %v4146 = vpack.c.b16 %v3238, %v3234
        %v4147 = vpack.c.b16 %v3243, %v3239
        %v4148 = vpack.c.b16 %v3244, %v3240
        %v4149 = vpack.c.b16 %v3245, %v3241
        %v4150 = vpack.c.b16 %v3246, %v3242
        %v4151 = vpack.c.b16 %v3251, %v3247
        %v4152 = vpack.c.b16 %v3252, %v3248
        %v4153 = vpack.c.b16 %v3253, %v3249
        %v4154 = vpack.c.b16 %v3254, %v3250
        %v4155 = vpack.c.b16 %v3259, %v3255
        %v4156 = vpack.c.b16 %v3260, %v3256
        %v4157 = vpack.c.b16 %v3261, %v3257
        %v4158 = vpack.c.b16 %v3262, %v3258
        %v4159 = vpack.c.b16 %v3267, %v3263
        %v4160 = vpack.c.b16 %v3268, %v3264
        %v4161 = vpack.c.b16 %v3269, %v3265
        %v4162 = vpack.c.b16 %v3270, %v3266
        %v4163 = vpack.c.b16 %v3275, %v3271
        %v4164 = vpack.c.b16 %v3276, %v3272
        %v4165 = vpack.c.b16 %v3277, %v3273
        %v4166 = vpack.c.b16 %v3278, %v3274
        %v4167 = vpack.c.b16 %v3283, %v3279
        %v4168 = vpack.c.b16 %v3284, %v3280
        %v4169 = vpack.c.b16 %v3285, %v3281
        %v4170 = vpack.c.b16 %v3286, %v3282
        %v4171 = vpack.c.b16 %v3291, %v3287
        %v4172 = vpack.c.b16 %v3292, %v3288
        %v4173 = vpack.c.b16 %v3293, %v3289
        %v4174 = vpack.c.b16 %v3294, %v3290
        %v4175 = vpack.c.b16 %v3299, %v3295
        %v4176 = vpack.c.b16 %v3300, %v3296
        %v4177 = vpack.c.b16 %v3301, %v3297
        %v4178 = vpack.c.b16 %v3302, %v3298
        %v4179 = vpack.c.b16 %v3307, %v3303
        %v4180 = vpack.c.b16 %v3308, %v3304
        %v4181 = vpack.c.b16 %v3309, %v3305
        %v4182 = vpack.c.b16 %v3310, %v3306
        %v4183 = vpack.c.b16 %v3315, %v3311
        %v4184 = vpack.c.b16 %v3316, %v3312
        %v4185 = vpack.c.b16 %v3317, %v3313
        %v4186 = vpack.c.b16 %v3318, %v3314
        %v4187 = vpack.c.b16 %v3323, %v3319
        %v4188 = vpack.c.b16 %v3324, %v3320
        %v4189 = vpack.c.b16 %v3325, %v3321
        %v4190 = vpack.c.b16 %v3326, %v3322
        %v4191 = vpack.c.b16 %v3331, %v3327
        %v4192 = vpack.c.b16 %v3332, %v3328
        %v4193 = vpack.c.b16 %v3333, %v3329
        %v4194 = vpack.c.b16 %v3334, %v3330
        %v4195 = vpack.c.b16 %v3339, %v3335
        %v4196 = vpack.c.b16 %v3340, %v3336
        %v4197 = vpack.c.b16 %v3341, %v3337
        %v4198 = vpack.c.b16 %v3342, %v3338
        %v4199 = vpack.c.b16 %v3347, %v3343
        %v4200 = vpack.c.b16 %v3348, %v3344
        %v4201 = vpack.c.b16 %v3349, %v3345
        %v4202 = vpack.c.b16 %v3350, %v3346
        %v4203 = vpack.c.b16 %v3355, %v3351
        %v4204 = vpack.c.b16 %v3356, %v3352
        %v4205 = vpack.c.b16 %v3357, %v3353
        %v4206 = vpack.c.b16 %v3358, %v3354
        %v4207 = vpack.c.b16 %v3363, %v3359
        %v4208 = vpack.c.b16 %v3364, %v3360
        %v4209 = vpack.c.b16 %v3365, %v3361
        %v4210 = vpack.c.b16 %v3366, %v3362
        %v4211 = vpack.c.b16 %v3371, %v3367
        %v4212 = vpack.c.b16 %v3372, %v3368
        %v4213 = vpack.c.b16 %v3373, %v3369
        %v4214 = vpack.c.b16 %v3374, %v3370
        %v4215 = vpack.c.b16 %v3379, %v3375
        %v4216 = vpack.c.b16 %v3380, %v3376
        %v4217 = vpack.c.b16 %v3381, %v3377
        %v4218 = vpack.c.b16 %v3382, %v3378
        %v4219 = vpack.c.b16 %v3387, %v3383
        %v4220 = vpack.c.b16 %v3388, %v3384
        %v4221 = vpack.c.b16 %v3389, %v3385
        %v4222 = vpack.c.b16 %v3390, %v3386
        %v4223 = vpack.c.b16 %v3395, %v3391
        %v4224 = vpack.c.b16 %v3396, %v3392
        %v4225 = vpack.c.b16 %v3397, %v3393
        %v4226 = vpack.c.b16 %v3398, %v3394
        %v4227 = vpack.c.b16 %v3403, %v3399
        %v4228 = vpack.c.b16 %v3404, %v3400
        %v4229 = vpack.c.b16 %v3405, %v3401
        %v4230 = vpack.c.b16 %v3406, %v3402
        %v4231 = vpack.c.b16 %v3411, %v3407
        %v4232 = vpack.c.b16 %v3412, %v3408
        %v4233 = vpack.c.b16 %v3413, %v3409
        %v4234 = vpack.c.b16 %v3414, %v3410
        %v4235 = vpack.c.b16 %v3419, %v3415
        %v4236 = vpack.c.b16 %v3420, %v3416
        %v4237 = vpack.c.b16 %v3421, %v3417
        %v4238 = vpack.c.b16 %v3422, %v3418
        %v4239 = vpack.c.b16 %v3427, %v3423
        %v4240 = vpack.c.b16 %v3428, %v3424
        %v4241 = vpack.c.b16 %v3429, %v3425
        %v4242 = vpack.c.b16 %v3430, %v3426
        %v4243 = vpack.c.b16 %v3435, %v3431
        %v4244 = vpack.c.b16 %v3436, %v3432
        %v4245 = vpack.c.b16 %v3437, %v3433
        %v4246 = vpack.c.b16 %v3438, %v3434
        %v4247 = vpack.c.b16 %v3443, %v3439
        %v4248 = vpack.c.b16 %v3444, %v3440
        %v4249 = vpack.c.b16 %v3445, %v3441
        %v4250 = vpack.c.b16 %v3446, %v3442
        %v4251 = vpack.c.b16 %v3451, %v3447
        %v4252 = vpack.c.b16 %v3452, %v3448
        %v4253 = vpack.c.b16 %v3453, %v3449
        %v4254 = vpack.c.b16 %v3454, %v3450
        %v4255 = vpack.c.b16 %v3459, %v3455
        %v4256 = vpack.c.b16 %v3460, %v3456
        %v4257 = vpack.c.b16 %v3461, %v3457
        %v4258 = vpack.c.b16 %v3462, %v3458
        %v4259 = vpack.c.b16 %v3467, %v3463
        %v4260 = vpack.c.b16 %v3468, %v3464
        %v4261 = vpack.c.b16 %v3469, %v3465
        %v4262 = vpack.c.b16 %v3470, %v3466
        %v4263 = vpack.c.b16 %v3475, %v3471
        %v4264 = vpack.c.b16 %v3476, %v3472
        %v4265 = vpack.c.b16 %v3477, %v3473
        %v4266 = vpack.c.b16 %v3478, %v3474
        %v4267 = vpack.c.b16 %v3483, %v3479
        %v4268 = vpack.c.b16 %v3484, %v3480
        %v4269 = vpack.c.b16 %v3485, %v3481
        %v4270 = vpack.c.b16 %v3486, %v3482
        %v4271 = vpack.c.b16 %v3491, %v3487
        %v4272 = vpack.c.b16 %v3492, %v3488
        %v4273 = vpack.c.b16 %v3493, %v3489
        %v4274 = vpack.c.b16 %v3494, %v3490
        %v4275 = vpack.c.b16 %v3499, %v3495
        %v4276 = vpack.c.b16 %v3500, %v3496
        %v4277 = vpack.c.b16 %v3501, %v3497
        %v4278 = vpack.c.b16 %v3502, %v3498
        %v4279 = vpack.c.b16 %v3507, %v3503
        %v4280 = vpack.c.b16 %v3508, %v3504
        %v4281 = vpack.c.b16 %v3509, %v3505
        %v4282 = vpack.c.b16 %v3510, %v3506
        %v4283 = vpack.c.b16 %v3515, %v3511
        %v4284 = vpack.c.b16 %v3516, %v3512
        %v4285 = vpack.c.b16 %v3517, %v3513
        %v4286 = vpack.c.b16 %v3518, %v3514
        %5055 = vmatprep.subr.bf16.mxu0 %v3520
        %5056 = vmatpush1.bf16.msra.mxu0 %v3519
        %5057 = vmatprep.subr.bf16.mxu0 %v3524
        %5058 = vmatpush1.bf16.msra.mxu0 %v3523
        %5059 = vmatprep.subr.bf16.mxu0 %v3528
        %5060 = vmatpush1.bf16.msra.mxu0 %v3527
        %5061 = vmatprep.subr.bf16.mxu0 %v3532
        %5062 = vmatpush1.bf16.msra.mxu0 %v3531
        %5063 = vmatprep.subr.bf16.mxu0 %v3536
        %5064 = vmatpush1.bf16.msra.mxu0 %v3535
        %5065 = vmatprep.subr.bf16.mxu0 %v3540
        %5066 = vmatpush1.bf16.msra.mxu0 %v3539
        %5067 = vmatprep.subr.bf16.mxu0 %v3544
        %5068 = vmatpush1.bf16.msra.mxu0 %v3543
        %5069 = vmatprep.subr.bf16.mxu0 %v3548
        %5070 = vmatpush1.bf16.msra.mxu0 %v3547
        %5071 = vmatprep.subr.bf16.mxu0 %v3552
        %5072 = vmatpush1.bf16.msra.mxu0 %v3551
        %5073 = vmatprep.subr.bf16.mxu0 %v3556
        %5074 = vmatpush1.bf16.msra.mxu0 %v3555
        %5075 = vmatprep.subr.bf16.mxu0 %v3560
        %5076 = vmatpush1.bf16.msra.mxu0 %v3559
        %5077 = vmatprep.subr.bf16.mxu0 %v3564
        %5078 = vmatpush1.bf16.msra.mxu0 %v3563
        %5079 = vmatprep.subr.bf16.mxu0 %v3568
        %5080 = vmatpush1.bf16.msra.mxu0 %v3567
        %5081 = vmatprep.subr.bf16.mxu0 %v3572
        %5082 = vmatpush1.bf16.msra.mxu0 %v3571
        %5083 = vmatprep.subr.bf16.mxu0 %v3576
        %5084 = vmatpush1.bf16.msra.mxu0 %v3575
        %5085 = vmatprep.subr.bf16.mxu0 %v3580
        %5086 = vmatpush1.bf16.msra.mxu0 %v3579
        %5087 = vmatprep.mubr.bf16.mxu0 %v402
        %5088 = vmatmul.mubr.bf16.gmra.mrb[0].mxu0 %v401
        %v5089 = vpop.f32.mrb[0].mxu0
        %v5090 = vadd.f32 %v1198, %v5089
        %v5091 = vpop.f32.mrb[0].mxu0
        %v5092 = vadd.f32 %v1202, %v5091
        %v5093 = vpop.f32.mrb[0].mxu0
        %v5094 = vpop.f32.mrb[0].mxu0
        %5095 = vdwg.mxu0
        %5096 = vmatprep.subr.bf16.mxu0 %v3584
        %5097 = vmatpush1.bf16.msra.mxu0 %v3583
        %5098 = vmatprep.subr.bf16.mxu0 %v3588
        %5099 = vmatpush1.bf16.msra.mxu0 %v3587
        %5100 = vmatprep.subr.bf16.mxu0 %v3592
        %5101 = vmatpush1.bf16.msra.mxu0 %v3591
        %5102 = vmatprep.subr.bf16.mxu0 %v3596
        %5103 = vmatpush1.bf16.msra.mxu0 %v3595
        %5104 = vmatprep.subr.bf16.mxu0 %v3600
        %5105 = vmatpush1.bf16.msra.mxu0 %v3599
        %5106 = vmatprep.subr.bf16.mxu0 %v3604
        %5107 = vmatpush1.bf16.msra.mxu0 %v3603
        %5108 = vmatprep.subr.bf16.mxu0 %v3608
        %5109 = vmatpush1.bf16.msra.mxu0 %v3607
        %5110 = vmatprep.subr.bf16.mxu0 %v3612
        %5111 = vmatpush1.bf16.msra.mxu0 %v3611
        %5112 = vmatprep.subr.bf16.mxu0 %v3616
        %5113 = vmatpush1.bf16.msra.mxu0 %v3615
        %5114 = vmatprep.subr.bf16.mxu0 %v3620
        %5115 = vmatpush1.bf16.msra.mxu0 %v3619
        %5116 = vmatprep.subr.bf16.mxu0 %v3624
        %5117 = vmatpush1.bf16.msra.mxu0 %v3623
        %5118 = vmatprep.subr.bf16.mxu0 %v3628
        %5119 = vmatpush1.bf16.msra.mxu0 %v3627
        %5120 = vmatprep.subr.bf16.mxu0 %v3632
        %5121 = vmatpush1.bf16.msra.mxu0 %v3631
        %5122 = vmatprep.subr.bf16.mxu0 %v3636
        %5123 = vmatpush1.bf16.msra.mxu0 %v3635
        %5124 = vmatprep.subr.bf16.mxu0 %v3640
        %5125 = vmatpush1.bf16.msra.mxu0 %v3639
        %5126 = vmatprep.subr.bf16.mxu0 %v3644
        %5127 = vmatpush1.bf16.msra.mxu0 %v3643
        %5128 = vmatprep.mubr.bf16.mxu0 %v404
        %5129 = vmatmul.mubr.bf16.gmra.mrb[0].mxu0 %v403
        %v5130 = vpop.f32.mrb[0].mxu0
        %v5131 = vadd.f32 %v5090, %v5130
        %v5132 = vpop.f32.mrb[0].mxu0
        %v5133 = vadd.f32 %v5092, %v5132
        %v5134 = vpop.f32.mrb[0].mxu0
        %v5135 = vpop.f32.mrb[0].mxu0
        %5136 = vdwg.mxu0
        %5137 = vmatprep.subr.bf16.mxu0 %v3648
        %5138 = vmatpush1.bf16.msra.mxu0 %v3647
        %5139 = vmatprep.subr.bf16.mxu0 %v3652
        %5140 = vmatpush1.bf16.msra.mxu0 %v3651
        %5141 = vmatprep.subr.bf16.mxu0 %v3656
        %5142 = vmatpush1.bf16.msra.mxu0 %v3655
        %5143 = vmatprep.subr.bf16.mxu0 %v3660
        %5144 = vmatpush1.bf16.msra.mxu0 %v3659
        %5145 = vmatprep.subr.bf16.mxu0 %v3664
        %5146 = vmatpush1.bf16.msra.mxu0 %v3663
        %5147 = vmatprep.subr.bf16.mxu0 %v3668
        %5148 = vmatpush1.bf16.msra.mxu0 %v3667
        %5149 = vmatprep.subr.bf16.mxu0 %v3672
        %5150 = vmatpush1.bf16.msra.mxu0 %v3671
        %5151 = vmatprep.subr.bf16.mxu0 %v3676
        %5152 = vmatpush1.bf16.msra.mxu0 %v3675
        %5153 = vmatprep.subr.bf16.mxu0 %v3680
        %5154 = vmatpush1.bf16.msra.mxu0 %v3679
        %5155 = vmatprep.subr.bf16.mxu0 %v3684
        %5156 = vmatpush1.bf16.msra.mxu0 %v3683
        %5157 = vmatprep.subr.bf16.mxu0 %v3688
        %5158 = vmatpush1.bf16.msra.mxu0 %v3687
        %5159 = vmatprep.subr.bf16.mxu0 %v3692
        %5160 = vmatpush1.bf16.msra.mxu0 %v3691
        %5161 = vmatprep.subr.bf16.mxu0 %v3696
        %5162 = vmatpush1.bf16.msra.mxu0 %v3695
        %5163 = vmatprep.subr.bf16.mxu0 %v3700
        %5164 = vmatpush1.bf16.msra.mxu0 %v3699
        %5165 = vmatprep.subr.bf16.mxu0 %v3704
        %5166 = vmatpush1.bf16.msra.mxu0 %v3703
        %5167 = vmatprep.subr.bf16.mxu0 %v3708
        %5168 = vmatpush1.bf16.msra.mxu0 %v3707
        %5169 = vmatprep.mubr.bf16.mxu0 %v406
        %5170 = vmatmul.mubr.bf16.gmra.mrb[0].mxu0 %v405
        %v5171 = vpop.f32.mrb[0].mxu0
        %v5172 = vadd.f32 %v5131, %v5171
        %v5173 = vpop.f32.mrb[0].mxu0
        %v5174 = vadd.f32 %v5133, %v5173
        %v5175 = vpop.f32.mrb[0].mxu0
        %v5176 = vpop.f32.mrb[0].mxu0
        %5177 = vdwg.mxu0
        %5178 = vmatprep.subr.bf16.mxu0 %v3712
        %5179 = vmatpush1.bf16.msra.mxu0 %v3711
        %5180 = vmatprep.subr.bf16.mxu0 %v3716
        %5181 = vmatpush1.bf16.msra.mxu0 %v3715
        %5182 = vmatprep.subr.bf16.mxu0 %v3720
        %5183 = vmatpush1.bf16.msra.mxu0 %v3719
        %5184 = vmatprep.subr.bf16.mxu0 %v3724
        %5185 = vmatpush1.bf16.msra.mxu0 %v3723
        %5186 = vmatprep.subr.bf16.mxu0 %v3728
        %5187 = vmatpush1.bf16.msra.mxu0 %v3727
        %5188 = vmatprep.subr.bf16.mxu0 %v3732
        %5189 = vmatpush1.bf16.msra.mxu0 %v3731
        %5190 = vmatprep.subr.bf16.mxu0 %v3736
        %5191 = vmatpush1.bf16.msra.mxu0 %v3735
        %5192 = vmatprep.subr.bf16.mxu0 %v3740
        %5193 = vmatpush1.bf16.msra.mxu0 %v3739
        %5194 = vmatprep.subr.bf16.mxu0 %v3744
        %5195 = vmatpush1.bf16.msra.mxu0 %v3743
        %5196 = vmatprep.subr.bf16.mxu0 %v3748
        %5197 = vmatpush1.bf16.msra.mxu0 %v3747
        %5198 = vmatprep.subr.bf16.mxu0 %v3752
        %5199 = vmatpush1.bf16.msra.mxu0 %v3751
        %5200 = vmatprep.subr.bf16.mxu0 %v3756
        %5201 = vmatpush1.bf16.msra.mxu0 %v3755
        %5202 = vmatprep.subr.bf16.mxu0 %v3760
        %5203 = vmatpush1.bf16.msra.mxu0 %v3759
        %5204 = vmatprep.subr.bf16.mxu0 %v3764
        %5205 = vmatpush1.bf16.msra.mxu0 %v3763
        %5206 = vmatprep.subr.bf16.mxu0 %v3768
        %5207 = vmatpush1.bf16.msra.mxu0 %v3767
        %5208 = vmatprep.subr.bf16.mxu0 %v3772
        %5209 = vmatpush1.bf16.msra.mxu0 %v3771
        %5210 = vmatprep.mubr.bf16.mxu0 %v408
        %5211 = vmatmul.mubr.bf16.gmra.mrb[0].mxu0 %v407
        %v5212 = vpop.f32.mrb[0].mxu0
        %v5213 = vadd.f32 %v5172, %v5212
        %v5214 = vpop.f32.mrb[0].mxu0
        %v5215 = vadd.f32 %v5174, %v5214
        %v5216 = vpop.f32.mrb[0].mxu0
        %v5217 = vpop.f32.mrb[0].mxu0
        %5218 = vdwg.mxu0
        %5219 = vmatprep.subr.bf16.mxu0 %v3776
        %5220 = vmatpush1.bf16.msra.mxu0 %v3775
        %5221 = vmatprep.subr.bf16.mxu0 %v3780
        %5222 = vmatpush1.bf16.msra.mxu0 %v3779
        %5223 = vmatprep.subr.bf16.mxu0 %v3784
        %5224 = vmatpush1.bf16.msra.mxu0 %v3783
        %5225 = vmatprep.subr.bf16.mxu0 %v3788
        %5226 = vmatpush1.bf16.msra.mxu0 %v3787
        %5227 = vmatprep.subr.bf16.mxu0 %v3792
        %5228 = vmatpush1.bf16.msra.mxu0 %v3791
        %5229 = vmatprep.subr.bf16.mxu0 %v3796
        %5230 = vmatpush1.bf16.msra.mxu0 %v3795
        %5231 = vmatprep.subr.bf16.mxu0 %v3800
        %5232 = vmatpush1.bf16.msra.mxu0 %v3799
        %5233 = vmatprep.subr.bf16.mxu0 %v3804
        %5234 = vmatpush1.bf16.msra.mxu0 %v3803
        %5235 = vmatprep.subr.bf16.mxu0 %v3808
        %5236 = vmatpush1.bf16.msra.mxu0 %v3807
        %5237 = vmatprep.subr.bf16.mxu0 %v3812
        %5238 = vmatpush1.bf16.msra.mxu0 %v3811
        %5239 = vmatprep.subr.bf16.mxu0 %v3816
        %5240 = vmatpush1.bf16.msra.mxu0 %v3815
        %5241 = vmatprep.subr.bf16.mxu0 %v3820
        %5242 = vmatpush1.bf16.msra.mxu0 %v3819
        %5243 = vmatprep.subr.bf16.mxu0 %v3824
        %5244 = vmatpush1.bf16.msra.mxu0 %v3823
        %5245 = vmatprep.subr.bf16.mxu0 %v3828
        %5246 = vmatpush1.bf16.msra.mxu0 %v3827
        %5247 = vmatprep.subr.bf16.mxu0 %v3832
        %5248 = vmatpush1.bf16.msra.mxu0 %v3831
        %5249 = vmatprep.subr.bf16.mxu0 %v3836
        %5250 = vmatpush1.bf16.msra.mxu0 %v3835
        %5251 = vmatprep.mubr.bf16.mxu0 %v410
        %5252 = vmatmul.mubr.bf16.gmra.mrb[0].mxu0 %v409
        %v5253 = vpop.f32.mrb[0].mxu0
        %v5254 = vadd.f32 %v5213, %v5253
        %v5255 = vpop.f32.mrb[0].mxu0
        %v5256 = vadd.f32 %v5215, %v5255
        %v5257 = vpop.f32.mrb[0].mxu0
        %v5258 = vpop.f32.mrb[0].mxu0
        %5259 = vdwg.mxu0
        %5260 = vmatprep.subr.bf16.mxu0 %v3840
        %5261 = vmatpush1.bf16.msra.mxu0 %v3839
        %5262 = vmatprep.subr.bf16.mxu0 %v3844
        %5263 = vmatpush1.bf16.msra.mxu0 %v3843
        %5264 = vmatprep.subr.bf16.mxu0 %v3848
        %5265 = vmatpush1.bf16.msra.mxu0 %v3847
        %5266 = vmatprep.subr.bf16.mxu0 %v3852
        %5267 = vmatpush1.bf16.msra.mxu0 %v3851
        %5268 = vmatprep.subr.bf16.mxu0 %v3856
        %5269 = vmatpush1.bf16.msra.mxu0 %v3855
        %5270 = vmatprep.subr.bf16.mxu0 %v3860
        %5271 = vmatpush1.bf16.msra.mxu0 %v3859
        %5272 = vmatprep.subr.bf16.mxu0 %v3864
        %5273 = vmatpush1.bf16.msra.mxu0 %v3863
        %5274 = vmatprep.subr.bf16.mxu0 %v3868
        %5275 = vmatpush1.bf16.msra.mxu0 %v3867
        %5276 = vmatprep.subr.bf16.mxu0 %v3872
        %5277 = vmatpush1.bf16.msra.mxu0 %v3871
        %5278 = vmatprep.subr.bf16.mxu0 %v3876
        %5279 = vmatpush1.bf16.msra.mxu0 %v3875
        %5280 = vmatprep.subr.bf16.mxu0 %v3880
        %5281 = vmatpush1.bf16.msra.mxu0 %v3879
        %5282 = vmatprep.subr.bf16.mxu0 %v3884
        %5283 = vmatpush1.bf16.msra.mxu0 %v3883
        %5284 = vmatprep.subr.bf16.mxu0 %v3888
        %5285 = vmatpush1.bf16.msra.mxu0 %v3887
        %5286 = vmatprep.subr.bf16.mxu0 %v3892
        %5287 = vmatpush1.bf16.msra.mxu0 %v3891
        %5288 = vmatprep.subr.bf16.mxu0 %v3896
        %5289 = vmatpush1.bf16.msra.mxu0 %v3895
        %5290 = vmatprep.subr.bf16.mxu0 %v3900
        %5291 = vmatpush1.bf16.msra.mxu0 %v3899
        %5292 = vmatprep.mubr.bf16.mxu0 %v412
        %5293 = vmatmul.mubr.bf16.gmra.mrb[0].mxu0 %v411
        %v5294 = vpop.f32.mrb[0].mxu0
        %v5295 = vadd.f32 %v5254, %v5294
        %v5296 = vpop.f32.mrb[0].mxu0
        %v5297 = vadd.f32 %v5256, %v5296
        %v5298 = vpop.f32.mrb[0].mxu0
        %v5299 = vpop.f32.mrb[0].mxu0
        %5300 = vdwg.mxu0
        %5301 = vmatprep.subr.bf16.mxu0 %v3904
        %5302 = vmatpush1.bf16.msra.mxu0 %v3903
        %5303 = vmatprep.subr.bf16.mxu0 %v3908
        %5304 = vmatpush1.bf16.msra.mxu0 %v3907
        %5305 = vmatprep.subr.bf16.mxu0 %v3912
        %5306 = vmatpush1.bf16.msra.mxu0 %v3911
        %5307 = vmatprep.subr.bf16.mxu0 %v3916
        %5308 = vmatpush1.bf16.msra.mxu0 %v3915
        %5309 = vmatprep.subr.bf16.mxu0 %v3920
        %5310 = vmatpush1.bf16.msra.mxu0 %v3919
        %5311 = vmatprep.subr.bf16.mxu0 %v3924
        %5312 = vmatpush1.bf16.msra.mxu0 %v3923
        %5313 = vmatprep.subr.bf16.mxu0 %v3928
        %5314 = vmatpush1.bf16.msra.mxu0 %v3927
        %5315 = vmatprep.subr.bf16.mxu0 %v3932
        %5316 = vmatpush1.bf16.msra.mxu0 %v3931
        %5317 = vmatprep.subr.bf16.mxu0 %v3936
        %5318 = vmatpush1.bf16.msra.mxu0 %v3935
        %5319 = vmatprep.subr.bf16.mxu0 %v3940
        %5320 = vmatpush1.bf16.msra.mxu0 %v3939
        %5321 = vmatprep.subr.bf16.mxu0 %v3944
        %5322 = vmatpush1.bf16.msra.mxu0 %v3943
        %5323 = vmatprep.subr.bf16.mxu0 %v3948
        %5324 = vmatpush1.bf16.msra.mxu0 %v3947
        %5325 = vmatprep.subr.bf16.mxu0 %v3952
        %5326 = vmatpush1.bf16.msra.mxu0 %v3951
        %5327 = vmatprep.subr.bf16.mxu0 %v3956
        %5328 = vmatpush1.bf16.msra.mxu0 %v3955
        %5329 = vmatprep.subr.bf16.mxu0 %v3960
        %5330 = vmatpush1.bf16.msra.mxu0 %v3959
        %5331 = vmatprep.subr.bf16.mxu0 %v3964
        %5332 = vmatpush1.bf16.msra.mxu0 %v3963
        %5333 = vmatprep.mubr.bf16.mxu0 %v414
        %5334 = vmatmul.mubr.bf16.gmra.mrb[0].mxu0 %v413
        %v5335 = vpop.f32.mrb[0].mxu0
        %v5336 = vadd.f32 %v5295, %v5335
        %v5337 = vpop.f32.mrb[0].mxu0
        %v5338 = vadd.f32 %v5297, %v5337
        %v5339 = vpop.f32.mrb[0].mxu0
        %v5340 = vpop.f32.mrb[0].mxu0
        %5341 = vdwg.mxu0
        %5342 = vmatprep.subr.bf16.mxu0 %v3968
        %5343 = vmatpush1.bf16.msra.mxu0 %v3967
        %5344 = vmatprep.subr.bf16.mxu0 %v3972
        %5345 = vmatpush1.bf16.msra.mxu0 %v3971
        %5346 = vmatprep.subr.bf16.mxu0 %v3976
        %5347 = vmatpush1.bf16.msra.mxu0 %v3975
        %5348 = vmatprep.subr.bf16.mxu0 %v3980
        %5349 = vmatpush1.bf16.msra.mxu0 %v3979
        %5350 = vmatprep.subr.bf16.mxu0 %v3984
        %5351 = vmatpush1.bf16.msra.mxu0 %v3983
        %5352 = vmatprep.subr.bf16.mxu0 %v3988
        %5353 = vmatpush1.bf16.msra.mxu0 %v3987
        %5354 = vmatprep.subr.bf16.mxu0 %v3992
        %5355 = vmatpush1.bf16.msra.mxu0 %v3991
        %5356 = vmatprep.subr.bf16.mxu0 %v3996
        %5357 = vmatpush1.bf16.msra.mxu0 %v3995
        %5358 = vmatprep.subr.bf16.mxu0 %v4000
        %5359 = vmatpush1.bf16.msra.mxu0 %v3999
        %5360 = vmatprep.subr.bf16.mxu0 %v4004
        %5361 = vmatpush1.bf16.msra.mxu0 %v4003
        %5362 = vmatprep.subr.bf16.mxu0 %v4008
        %5363 = vmatpush1.bf16.msra.mxu0 %v4007
        %5364 = vmatprep.subr.bf16.mxu0 %v4012
        %5365 = vmatpush1.bf16.msra.mxu0 %v4011
        %5366 = vmatprep.subr.bf16.mxu0 %v4016
        %5367 = vmatpush1.bf16.msra.mxu0 %v4015
        %5368 = vmatprep.subr.bf16.mxu0 %v4020
        %5369 = vmatpush1.bf16.msra.mxu0 %v4019
        %5370 = vmatprep.subr.bf16.mxu0 %v4024
        %5371 = vmatpush1.bf16.msra.mxu0 %v4023
        %5372 = vmatprep.subr.bf16.mxu0 %v4028
        %5373 = vmatpush1.bf16.msra.mxu0 %v4027
        %5374 = vmatprep.mubr.bf16.mxu0 %v416
        %5375 = vmatmul.mubr.bf16.gmra.mrb[0].mxu0 %v415
        %v5376 = vpop.f32.mrb[0].mxu0
        %v5377 = vadd.f32 %v5336, %v5376
        %v5378 = vpop.f32.mrb[0].mxu0
        %v5379 = vadd.f32 %v5338, %v5378
        %v5380 = vpop.f32.mrb[0].mxu0
        %v5381 = vpop.f32.mrb[0].mxu0
        %5382 = vdwg.mxu0
        %5383 = vmatprep.subr.bf16.mxu0 %v4032
        %5384 = vmatpush1.bf16.msra.mxu0 %v4031
        %5385 = vmatprep.subr.bf16.mxu0 %v4036
        %5386 = vmatpush1.bf16.msra.mxu0 %v4035
        %5387 = vmatprep.subr.bf16.mxu0 %v4040
        %5388 = vmatpush1.bf16.msra.mxu0 %v4039
        %5389 = vmatprep.subr.bf16.mxu0 %v4044
        %5390 = vmatpush1.bf16.msra.mxu0 %v4043
        %5391 = vmatprep.subr.bf16.mxu0 %v4048
        %5392 = vmatpush1.bf16.msra.mxu0 %v4047
        %5393 = vmatprep.subr.bf16.mxu0 %v4052
        %5394 = vmatpush1.bf16.msra.mxu0 %v4051
        %5395 = vmatprep.subr.bf16.mxu0 %v4056
        %5396 = vmatpush1.bf16.msra.mxu0 %v4055
        %5397 = vmatprep.subr.bf16.mxu0 %v4060
        %5398 = vmatpush1.bf16.msra.mxu0 %v4059
        %5399 = vmatprep.subr.bf16.mxu0 %v4064
        %5400 = vmatpush1.bf16.msra.mxu0 %v4063
        %5401 = vmatprep.subr.bf16.mxu0 %v4068
        %5402 = vmatpush1.bf16.msra.mxu0 %v4067
        %5403 = vmatprep.subr.bf16.mxu0 %v4072
        %5404 = vmatpush1.bf16.msra.mxu0 %v4071
        %5405 = vmatprep.subr.bf16.mxu0 %v4076
        %5406 = vmatpush1.bf16.msra.mxu0 %v4075
        %5407 = vmatprep.subr.bf16.mxu0 %v4080
        %5408 = vmatpush1.bf16.msra.mxu0 %v4079
        %5409 = vmatprep.subr.bf16.mxu0 %v4084
        %5410 = vmatpush1.bf16.msra.mxu0 %v4083
        %5411 = vmatprep.subr.bf16.mxu0 %v4088
        %5412 = vmatpush1.bf16.msra.mxu0 %v4087
        %5413 = vmatprep.subr.bf16.mxu0 %v4092
        %5414 = vmatpush1.bf16.msra.mxu0 %v4091
        %5415 = vmatprep.mubr.bf16.mxu0 %v418
        %5416 = vmatmul.mubr.bf16.gmra.mrb[0].mxu0 %v417
        %v5417 = vpop.f32.mrb[0].mxu0
        %v5418 = vadd.f32 %v5377, %v5417
        %v5419 = vpop.f32.mrb[0].mxu0
        %v5420 = vadd.f32 %v5379, %v5419
        %v5421 = vpop.f32.mrb[0].mxu0
        %v5422 = vpop.f32.mrb[0].mxu0
        %5423 = vdwg.mxu0
        %5424 = vmatprep.subr.bf16.mxu0 %v4096
        %5425 = vmatpush1.bf16.msra.mxu0 %v4095
        %5426 = vmatprep.subr.bf16.mxu0 %v4100
        %5427 = vmatpush1.bf16.msra.mxu0 %v4099
        %5428 = vmatprep.subr.bf16.mxu0 %v4104
        %5429 = vmatpush1.bf16.msra.mxu0 %v4103
        %5430 = vmatprep.subr.bf16.mxu0 %v4108
        %5431 = vmatpush1.bf16.msra.mxu0 %v4107
        %5432 = vmatprep.subr.bf16.mxu0 %v4112
        %5433 = vmatpush1.bf16.msra.mxu0 %v4111
        %5434 = vmatprep.subr.bf16.mxu0 %v4116
        %5435 = vmatpush1.bf16.msra.mxu0 %v4115
        %5436 = vmatprep.subr.bf16.mxu0 %v4120
        %5437 = vmatpush1.bf16.msra.mxu0 %v4119
        %5438 = vmatprep.subr.bf16.mxu0 %v4124
        %5439 = vmatpush1.bf16.msra.mxu0 %v4123
        %5440 = vmatprep.subr.bf16.mxu0 %v4128
        %5441 = vmatpush1.bf16.msra.mxu0 %v4127
        %5442 = vmatprep.subr.bf16.mxu0 %v4132
        %5443 = vmatpush1.bf16.msra.mxu0 %v4131
        %5444 = vmatprep.subr.bf16.mxu0 %v4136
        %5445 = vmatpush1.bf16.msra.mxu0 %v4135
        %5446 = vmatprep.subr.bf16.mxu0 %v4140
        %5447 = vmatpush1.bf16.msra.mxu0 %v4139
        %5448 = vmatprep.subr.bf16.mxu0 %v4144
        %5449 = vmatpush1.bf16.msra.mxu0 %v4143
        %5450 = vmatprep.subr.bf16.mxu0 %v4148
        %5451 = vmatpush1.bf16.msra.mxu0 %v4147
        %5452 = vmatprep.subr.bf16.mxu0 %v4152
        %5453 = vmatpush1.bf16.msra.mxu0 %v4151
        %5454 = vmatprep.subr.bf16.mxu0 %v4156
        %5455 = vmatpush1.bf16.msra.mxu0 %v4155
        %5456 = vmatprep.mubr.bf16.mxu0 %v420
        %5457 = vmatmul.mubr.bf16.gmra.mrb[0].mxu0 %v419
        %v5458 = vpop.f32.mrb[0].mxu0
        %v5459 = vadd.f32 %v5418, %v5458
        %v5460 = vpop.f32.mrb[0].mxu0
        %v5461 = vadd.f32 %v5420, %v5460
        %v5462 = vpop.f32.mrb[0].mxu0
        %v5463 = vpop.f32.mrb[0].mxu0
        %5464 = vdwg.mxu0
        %5465 = vmatprep.subr.bf16.mxu0 %v4160
        %5466 = vmatpush1.bf16.msra.mxu0 %v4159
        %5467 = vmatprep.subr.bf16.mxu0 %v4164
        %5468 = vmatpush1.bf16.msra.mxu0 %v4163
        %5469 = vmatprep.subr.bf16.mxu0 %v4168
        %5470 = vmatpush1.bf16.msra.mxu0 %v4167
        %5471 = vmatprep.subr.bf16.mxu0 %v4172
        %5472 = vmatpush1.bf16.msra.mxu0 %v4171
        %5473 = vmatprep.subr.bf16.mxu0 %v4176
        %5474 = vmatpush1.bf16.msra.mxu0 %v4175
        %5475 = vmatprep.subr.bf16.mxu0 %v4180
        %5476 = vmatpush1.bf16.msra.mxu0 %v4179
        %5477 = vmatprep.subr.bf16.mxu0 %v4184
        %5478 = vmatpush1.bf16.msra.mxu0 %v4183
        %5479 = vmatprep.subr.bf16.mxu0 %v4188
        %5480 = vmatpush1.bf16.msra.mxu0 %v4187
        %5481 = vmatprep.subr.bf16.mxu0 %v4192
        %5482 = vmatpush1.bf16.msra.mxu0 %v4191
        %5483 = vmatprep.subr.bf16.mxu0 %v4196
        %5484 = vmatpush1.bf16.msra.mxu0 %v4195
        %5485 = vmatprep.subr.bf16.mxu0 %v4200
        %5486 = vmatpush1.bf16.msra.mxu0 %v4199
        %5487 = vmatprep.subr.bf16.mxu0 %v4204
        %5488 = vmatpush1.bf16.msra.mxu0 %v4203
        %5489 = vmatprep.subr.bf16.mxu0 %v4208
        %5490 = vmatpush1.bf16.msra.mxu0 %v4207
        %5491 = vmatprep.subr.bf16.mxu0 %v4212
        %5492 = vmatpush1.bf16.msra.mxu0 %v4211
        %5493 = vmatprep.subr.bf16.mxu0 %v4216
        %5494 = vmatpush1.bf16.msra.mxu0 %v4215
        %5495 = vmatprep.subr.bf16.mxu0 %v4220
        %5496 = vmatpush1.bf16.msra.mxu0 %v4219
        %5497 = vmatprep.mubr.bf16.mxu0 %v422
        %5498 = vmatmul.mubr.bf16.gmra.mrb[0].mxu0 %v421
        %v5499 = vpop.f32.mrb[0].mxu0
        %v5500 = vadd.f32 %v5459, %v5499
        %v5501 = vpop.f32.mrb[0].mxu0
        %v5502 = vadd.f32 %v5461, %v5501
        %v5503 = vpop.f32.mrb[0].mxu0
        %v5504 = vpop.f32.mrb[0].mxu0
        %5505 = vdwg.mxu0
        %5506 = vmatprep.subr.bf16.mxu0 %v4224
        %5507 = vmatpush1.bf16.msra.mxu0 %v4223
        %5508 = vmatprep.subr.bf16.mxu0 %v4228
        %5509 = vmatpush1.bf16.msra.mxu0 %v4227
        %5510 = vmatprep.subr.bf16.mxu0 %v4232
        %5511 = vmatpush1.bf16.msra.mxu0 %v4231
        %5512 = vmatprep.subr.bf16.mxu0 %v4236
        %5513 = vmatpush1.bf16.msra.mxu0 %v4235
        %5514 = vmatprep.subr.bf16.mxu0 %v4240
        %5515 = vmatpush1.bf16.msra.mxu0 %v4239
        %5516 = vmatprep.subr.bf16.mxu0 %v4244
        %5517 = vmatpush1.bf16.msra.mxu0 %v4243
        %5518 = vmatprep.subr.bf16.mxu0 %v4248
        %5519 = vmatpush1.bf16.msra.mxu0 %v4247
        %5520 = vmatprep.subr.bf16.mxu0 %v4252
        %5521 = vmatpush1.bf16.msra.mxu0 %v4251
        %5522 = vmatprep.subr.bf16.mxu0 %v4256
        %5523 = vmatpush1.bf16.msra.mxu0 %v4255
        %5524 = vmatprep.subr.bf16.mxu0 %v4260
        %5525 = vmatpush1.bf16.msra.mxu0 %v4259
        %5526 = vmatprep.subr.bf16.mxu0 %v4264
        %5527 = vmatpush1.bf16.msra.mxu0 %v4263
        %5528 = vmatprep.subr.bf16.mxu0 %v4268
        %5529 = vmatpush1.bf16.msra.mxu0 %v4267
        %5530 = vmatprep.subr.bf16.mxu0 %v4272
        %5531 = vmatpush1.bf16.msra.mxu0 %v4271
        %5532 = vmatprep.subr.bf16.mxu0 %v4276
        %5533 = vmatpush1.bf16.msra.mxu0 %v4275
        %5534 = vmatprep.subr.bf16.mxu0 %v4280
        %5535 = vmatpush1.bf16.msra.mxu0 %v4279
        %5536 = vmatprep.subr.bf16.mxu0 %v4284
        %5537 = vmatpush1.bf16.msra.mxu0 %v4283
        %5538 = vmatprep.mubr.bf16.mxu0 %v424
        %5539 = vmatmul.mubr.bf16.gmra.mrb[0].mxu0 %v423
        %v5540 = vpop.f32.mrb[0].mxu0
        %v5541 = vadd.f32 %v5500, %v5540
        %v5542 = vpop.f32.mrb[0].mxu0
        %v5543 = vadd.f32 %v5502, %v5542
        %v5544 = vpop.f32.mrb[0].mxu0
        %v5545 = vpop.f32.mrb[0].mxu0
        %5546 = vdwg.mxu0
        %5547 = vmatprep.subr.bf16.mxu0 %v3522
        %5548 = vmatpush1.bf16.msra.mxu0 %v3521
        %5549 = vmatprep.subr.bf16.mxu0 %v3526
        %5550 = vmatpush1.bf16.msra.mxu0 %v3525
        %5551 = vmatprep.subr.bf16.mxu0 %v3530
        %5552 = vmatpush1.bf16.msra.mxu0 %v3529
        %5553 = vmatprep.subr.bf16.mxu0 %v3534
        %5554 = vmatpush1.bf16.msra.mxu0 %v3533
        %5555 = vmatprep.subr.bf16.mxu0 %v3538
        %5556 = vmatpush1.bf16.msra.mxu0 %v3537
        %5557 = vmatprep.subr.bf16.mxu0 %v3542
        %5558 = vmatpush1.bf16.msra.mxu0 %v3541
        %5559 = vmatprep.subr.bf16.mxu0 %v3546
        %5560 = vmatpush1.bf16.msra.mxu0 %v3545
        %5561 = vmatprep.subr.bf16.mxu0 %v3550
        %5562 = vmatpush1.bf16.msra.mxu0 %v3549
        %5563 = vmatprep.subr.bf16.mxu0 %v3554
        %5564 = vmatpush1.bf16.msra.mxu0 %v3553
        %5565 = vmatprep.subr.bf16.mxu0 %v3558
        %5566 = vmatpush1.bf16.msra.mxu0 %v3557
        %5567 = vmatprep.subr.bf16.mxu0 %v3562
        %5568 = vmatpush1.bf16.msra.mxu0 %v3561
        %5569 = vmatprep.subr.bf16.mxu0 %v3566
        %5570 = vmatpush1.bf16.msra.mxu0 %v3565
        %5571 = vmatprep.subr.bf16.mxu0 %v3570
        %5572 = vmatpush1.bf16.msra.mxu0 %v3569
        %5573 = vmatprep.subr.bf16.mxu0 %v3574
        %5574 = vmatpush1.bf16.msra.mxu0 %v3573
        %5575 = vmatprep.subr.bf16.mxu0 %v3578
        %5576 = vmatpush1.bf16.msra.mxu0 %v3577
        %5577 = vmatprep.subr.bf16.mxu0 %v3582
        %5578 = vmatpush1.bf16.msra.mxu0 %v3581
        %5579 = vmatprep.mubr.bf16.mxu0 %v402
        %5580 = vmatmul.mubr.bf16.gmra.mrb[0].mxu0 %v401
        %v5581 = vpop.f32.mrb[0].mxu0
        %v5582 = vadd.f32 %v1206, %v5581
        %v5583 = vpop.f32.mrb[0].mxu0
        %v5584 = vadd.f32 %v1210, %v5583
        %v5585 = vpop.f32.mrb[0].mxu0
        %v5586 = vpop.f32.mrb[0].mxu0
        %5587 = vdwg.mxu0
        %5588 = vmatprep.subr.bf16.mxu0 %v3586
        %5589 = vmatpush1.bf16.msra.mxu0 %v3585
        %5590 = vmatprep.subr.bf16.mxu0 %v3590
        %5591 = vmatpush1.bf16.msra.mxu0 %v3589
        %5592 = vmatprep.subr.bf16.mxu0 %v3594
        %5593 = vmatpush1.bf16.msra.mxu0 %v3593
        %5594 = vmatprep.subr.bf16.mxu0 %v3598
        %5595 = vmatpush1.bf16.msra.mxu0 %v3597
        %5596 = vmatprep.subr.bf16.mxu0 %v3602
        %5597 = vmatpush1.bf16.msra.mxu0 %v3601
        %5598 = vmatprep.subr.bf16.mxu0 %v3606
        %5599 = vmatpush1.bf16.msra.mxu0 %v3605
        %5600 = vmatprep.subr.bf16.mxu0 %v3610
        %5601 = vmatpush1.bf16.msra.mxu0 %v3609
        %5602 = vmatprep.subr.bf16.mxu0 %v3614
        %5603 = vmatpush1.bf16.msra.mxu0 %v3613
        %5604 = vmatprep.subr.bf16.mxu0 %v3618
        %5605 = vmatpush1.bf16.msra.mxu0 %v3617
        %5606 = vmatprep.subr.bf16.mxu0 %v3622
        %5607 = vmatpush1.bf16.msra.mxu0 %v3621
        %5608 = vmatprep.subr.bf16.mxu0 %v3626
        %5609 = vmatpush1.bf16.msra.mxu0 %v3625
        %5610 = vmatprep.subr.bf16.mxu0 %v3630
        %5611 = vmatpush1.bf16.msra.mxu0 %v3629
        %5612 = vmatprep.subr.bf16.mxu0 %v3634
        %5613 = vmatpush1.bf16.msra.mxu0 %v3633
        %5614 = vmatprep.subr.bf16.mxu0 %v3638
        %5615 = vmatpush1.bf16.msra.mxu0 %v3637
        %5616 = vmatprep.subr.bf16.mxu0 %v3642
        %5617 = vmatpush1.bf16.msra.mxu0 %v3641
        %5618 = vmatprep.subr.bf16.mxu0 %v3646
        %5619 = vmatpush1.bf16.msra.mxu0 %v3645
        %5620 = vmatprep.mubr.bf16.mxu0 %v404
        %5621 = vmatmul.mubr.bf16.gmra.mrb[0].mxu0 %v403
        %v5622 = vpop.f32.mrb[0].mxu0
        %v5623 = vadd.f32 %v5582, %v5622
        %v5624 = vpop.f32.mrb[0].mxu0
        %v5625 = vadd.f32 %v5584, %v5624
        %v5626 = vpop.f32.mrb[0].mxu0
        %v5627 = vpop.f32.mrb[0].mxu0
        %5628 = vdwg.mxu0
        %5629 = vmatprep.subr.bf16.mxu0 %v3650
        %5630 = vmatpush1.bf16.msra.mxu0 %v3649
        %5631 = vmatprep.subr.bf16.mxu0 %v3654
        %5632 = vmatpush1.bf16.msra.mxu0 %v3653
        %5633 = vmatprep.subr.bf16.mxu0 %v3658
        %5634 = vmatpush1.bf16.msra.mxu0 %v3657
        %5635 = vmatprep.subr.bf16.mxu0 %v3662
        %5636 = vmatpush1.bf16.msra.mxu0 %v3661
        %5637 = vmatprep.subr.bf16.mxu0 %v3666
        %5638 = vmatpush1.bf16.msra.mxu0 %v3665
        %5639 = vmatprep.subr.bf16.mxu0 %v3670
        %5640 = vmatpush1.bf16.msra.mxu0 %v3669
        %5641 = vmatprep.subr.bf16.mxu0 %v3674
        %5642 = vmatpush1.bf16.msra.mxu0 %v3673
        %5643 = vmatprep.subr.bf16.mxu0 %v3678
        %5644 = vmatpush1.bf16.msra.mxu0 %v3677
        %5645 = vmatprep.subr.bf16.mxu0 %v3682
        %5646 = vmatpush1.bf16.msra.mxu0 %v3681
        %5647 = vmatprep.subr.bf16.mxu0 %v3686
        %5648 = vmatpush1.bf16.msra.mxu0 %v3685
        %5649 = vmatprep.subr.bf16.mxu0 %v3690
        %5650 = vmatpush1.bf16.msra.mxu0 %v3689
        %5651 = vmatprep.subr.bf16.mxu0 %v3694
        %5652 = vmatpush1.bf16.msra.mxu0 %v3693
        %5653 = vmatprep.subr.bf16.mxu0 %v3698
        %5654 = vmatpush1.bf16.msra.mxu0 %v3697
        %5655 = vmatprep.subr.bf16.mxu0 %v3702
        %5656 = vmatpush1.bf16.msra.mxu0 %v3701
        %5657 = vmatprep.subr.bf16.mxu0 %v3706
        %5658 = vmatpush1.bf16.msra.mxu0 %v3705
        %5659 = vmatprep.subr.bf16.mxu0 %v3710
        %5660 = vmatpush1.bf16.msra.mxu0 %v3709
        %5661 = vmatprep.mubr.bf16.mxu0 %v406
        %5662 = vmatmul.mubr.bf16.gmra.mrb[0].mxu0 %v405
        %v5663 = vpop.f32.mrb[0].mxu0
        %v5664 = vadd.f32 %v5623, %v5663
        %v5665 = vpop.f32.mrb[0].mxu0
        %v5666 = vadd.f32 %v5625, %v5665
        %v5667 = vpop.f32.mrb[0].mxu0
        %v5668 = vpop.f32.mrb[0].mxu0
        %5669 = vdwg.mxu0
        %5670 = vmatprep.subr.bf16.mxu0 %v3714
        %5671 = vmatpush1.bf16.msra.mxu0 %v3713
        %5672 = vmatprep.subr.bf16.mxu0 %v3718
        %5673 = vmatpush1.bf16.msra.mxu0 %v3717
        %5674 = vmatprep.subr.bf16.mxu0 %v3722
        %5675 = vmatpush1.bf16.msra.mxu0 %v3721
        %5676 = vmatprep.subr.bf16.mxu0 %v3726
        %5677 = vmatpush1.bf16.msra.mxu0 %v3725
        %5678 = vmatprep.subr.bf16.mxu0 %v3730
        %5679 = vmatpush1.bf16.msra.mxu0 %v3729
        %5680 = vmatprep.subr.bf16.mxu0 %v3734
        %5681 = vmatpush1.bf16.msra.mxu0 %v3733
        %5682 = vmatprep.subr.bf16.mxu0 %v3738
        %5683 = vmatpush1.bf16.msra.mxu0 %v3737
        %5684 = vmatprep.subr.bf16.mxu0 %v3742
        %5685 = vmatpush1.bf16.msra.mxu0 %v3741
        %5686 = vmatprep.subr.bf16.mxu0 %v3746
        %5687 = vmatpush1.bf16.msra.mxu0 %v3745
        %5688 = vmatprep.subr.bf16.mxu0 %v3750
        %5689 = vmatpush1.bf16.msra.mxu0 %v3749
        %5690 = vmatprep.subr.bf16.mxu0 %v3754
        %5691 = vmatpush1.bf16.msra.mxu0 %v3753
        %5692 = vmatprep.subr.bf16.mxu0 %v3758
        %5693 = vmatpush1.bf16.msra.mxu0 %v3757
        %5694 = vmatprep.subr.bf16.mxu0 %v3762
        %5695 = vmatpush1.bf16.msra.mxu0 %v3761
        %5696 = vmatprep.subr.bf16.mxu0 %v3766
        %5697 = vmatpush1.bf16.msra.mxu0 %v3765
        %5698 = vmatprep.subr.bf16.mxu0 %v3770
        %5699 = vmatpush1.bf16.msra.mxu0 %v3769
        %5700 = vmatprep.subr.bf16.mxu0 %v3774
        %5701 = vmatpush1.bf16.msra.mxu0 %v3773
        %5702 = vmatprep.mubr.bf16.mxu0 %v408
        %5703 = vmatmul.mubr.bf16.gmra.mrb[0].mxu0 %v407
        %v5704 = vpop.f32.mrb[0].mxu0
        %v5705 = vadd.f32 %v5664, %v5704
        %v5706 = vpop.f32.mrb[0].mxu0
        %v5707 = vadd.f32 %v5666, %v5706
        %v5708 = vpop.f32.mrb[0].mxu0
        %v5709 = vpop.f32.mrb[0].mxu0
        %5710 = vdwg.mxu0
        %5711 = vmatprep.subr.bf16.mxu0 %v3778
        %5712 = vmatpush1.bf16.msra.mxu0 %v3777
        %5713 = vmatprep.subr.bf16.mxu0 %v3782
        %5714 = vmatpush1.bf16.msra.mxu0 %v3781
        %5715 = vmatprep.subr.bf16.mxu0 %v3786
        %5716 = vmatpush1.bf16.msra.mxu0 %v3785
        %5717 = vmatprep.subr.bf16.mxu0 %v3790
        %5718 = vmatpush1.bf16.msra.mxu0 %v3789
        %5719 = vmatprep.subr.bf16.mxu0 %v3794
        %5720 = vmatpush1.bf16.msra.mxu0 %v3793
        %5721 = vmatprep.subr.bf16.mxu0 %v3798
        %5722 = vmatpush1.bf16.msra.mxu0 %v3797
        %5723 = vmatprep.subr.bf16.mxu0 %v3802
        %5724 = vmatpush1.bf16.msra.mxu0 %v3801
        %5725 = vmatprep.subr.bf16.mxu0 %v3806
        %5726 = vmatpush1.bf16.msra.mxu0 %v3805
        %5727 = vmatprep.subr.bf16.mxu0 %v3810
        %5728 = vmatpush1.bf16.msra.mxu0 %v3809
        %5729 = vmatprep.subr.bf16.mxu0 %v3814
        %5730 = vmatpush1.bf16.msra.mxu0 %v3813
        %5731 = vmatprep.subr.bf16.mxu0 %v3818
        %5732 = vmatpush1.bf16.msra.mxu0 %v3817
        %5733 = vmatprep.subr.bf16.mxu0 %v3822
        %5734 = vmatpush1.bf16.msra.mxu0 %v3821
        %5735 = vmatprep.subr.bf16.mxu0 %v3826
        %5736 = vmatpush1.bf16.msra.mxu0 %v3825
        %5737 = vmatprep.subr.bf16.mxu0 %v3830
        %5738 = vmatpush1.bf16.msra.mxu0 %v3829
        %5739 = vmatprep.subr.bf16.mxu0 %v3834
        %5740 = vmatpush1.bf16.msra.mxu0 %v3833
        %5741 = vmatprep.subr.bf16.mxu0 %v3838
        %5742 = vmatpush1.bf16.msra.mxu0 %v3837
        %5743 = vmatprep.mubr.bf16.mxu0 %v410
        %5744 = vmatmul.mubr.bf16.gmra.mrb[0].mxu0 %v409
        %v5745 = vpop.f32.mrb[0].mxu0
        %v5746 = vadd.f32 %v5705, %v5745
        %v5747 = vpop.f32.mrb[0].mxu0
        %v5748 = vadd.f32 %v5707, %v5747
        %v5749 = vpop.f32.mrb[0].mxu0
        %v5750 = vpop.f32.mrb[0].mxu0
        %5751 = vdwg.mxu0
        %5752 = vmatprep.subr.bf16.mxu0 %v3842
        %5753 = vmatpush1.bf16.msra.mxu0 %v3841
        %5754 = vmatprep.subr.bf16.mxu0 %v3846
        %5755 = vmatpush1.bf16.msra.mxu0 %v3845
        %5756 = vmatprep.subr.bf16.mxu0 %v3850
        %5757 = vmatpush1.bf16.msra.mxu0 %v3849
        %5758 = vmatprep.subr.bf16.mxu0 %v3854
        %5759 = vmatpush1.bf16.msra.mxu0 %v3853
        %5760 = vmatprep.subr.bf16.mxu0 %v3858
        %5761 = vmatpush1.bf16.msra.mxu0 %v3857
        %5762 = vmatprep.subr.bf16.mxu0 %v3862
        %5763 = vmatpush1.bf16.msra.mxu0 %v3861
        %5764 = vmatprep.subr.bf16.mxu0 %v3866
        %5765 = vmatpush1.bf16.msra.mxu0 %v3865
        %5766 = vmatprep.subr.bf16.mxu0 %v3870
        %5767 = vmatpush1.bf16.msra.mxu0 %v3869
        %5768 = vmatprep.subr.bf16.mxu0 %v3874
        %5769 = vmatpush1.bf16.msra.mxu0 %v3873
        %5770 = vmatprep.subr.bf16.mxu0 %v3878
        %5771 = vmatpush1.bf16.msra.mxu0 %v3877
        %5772 = vmatprep.subr.bf16.mxu0 %v3882
        %5773 = vmatpush1.bf16.msra.mxu0 %v3881
        %5774 = vmatprep.subr.bf16.mxu0 %v3886
        %5775 = vmatpush1.bf16.msra.mxu0 %v3885
        %5776 = vmatprep.subr.bf16.mxu0 %v3890
        %5777 = vmatpush1.bf16.msra.mxu0 %v3889
        %5778 = vmatprep.subr.bf16.mxu0 %v3894
        %5779 = vmatpush1.bf16.msra.mxu0 %v3893
        %5780 = vmatprep.subr.bf16.mxu0 %v3898
        %5781 = vmatpush1.bf16.msra.mxu0 %v3897
        %5782 = vmatprep.subr.bf16.mxu0 %v3902
        %5783 = vmatpush1.bf16.msra.mxu0 %v3901
        %5784 = vmatprep.mubr.bf16.mxu0 %v412
        %5785 = vmatmul.mubr.bf16.gmra.mrb[0].mxu0 %v411
        %v5786 = vpop.f32.mrb[0].mxu0
        %v5787 = vadd.f32 %v5746, %v5786
        %v5788 = vpop.f32.mrb[0].mxu0
        %v5789 = vadd.f32 %v5748, %v5788
        %v5790 = vpop.f32.mrb[0].mxu0
        %v5791 = vpop.f32.mrb[0].mxu0
        %5792 = vdwg.mxu0
        %5793 = vmatprep.subr.bf16.mxu0 %v3906
        %5794 = vmatpush1.bf16.msra.mxu0 %v3905
        %5795 = vmatprep.subr.bf16.mxu0 %v3910
        %5796 = vmatpush1.bf16.msra.mxu0 %v3909
        %5797 = vmatprep.subr.bf16.mxu0 %v3914
        %5798 = vmatpush1.bf16.msra.mxu0 %v3913
        %5799 = vmatprep.subr.bf16.mxu0 %v3918
        %5800 = vmatpush1.bf16.msra.mxu0 %v3917
        %5801 = vmatprep.subr.bf16.mxu0 %v3922
        %5802 = vmatpush1.bf16.msra.mxu0 %v3921
        %5803 = vmatprep.subr.bf16.mxu0 %v3926
        %5804 = vmatpush1.bf16.msra.mxu0 %v3925
        %5805 = vmatprep.subr.bf16.mxu0 %v3930
        %5806 = vmatpush1.bf16.msra.mxu0 %v3929
        %5807 = vmatprep.subr.bf16.mxu0 %v3934
        %5808 = vmatpush1.bf16.msra.mxu0 %v3933
        %5809 = vmatprep.subr.bf16.mxu0 %v3938
        %5810 = vmatpush1.bf16.msra.mxu0 %v3937
        %5811 = vmatprep.subr.bf16.mxu0 %v3942
        %5812 = vmatpush1.bf16.msra.mxu0 %v3941
        %5813 = vmatprep.subr.bf16.mxu0 %v3946
        %5814 = vmatpush1.bf16.msra.mxu0 %v3945
        %5815 = vmatprep.subr.bf16.mxu0 %v3950
        %5816 = vmatpush1.bf16.msra.mxu0 %v3949
        %5817 = vmatprep.subr.bf16.mxu0 %v3954
        %5818 = vmatpush1.bf16.msra.mxu0 %v3953
        %5819 = vmatprep.subr.bf16.mxu0 %v3958
        %5820 = vmatpush1.bf16.msra.mxu0 %v3957
        %5821 = vmatprep.subr.bf16.mxu0 %v3962
        %5822 = vmatpush1.bf16.msra.mxu0 %v3961
        %5823 = vmatprep.subr.bf16.mxu0 %v3966
        %5824 = vmatpush1.bf16.msra.mxu0 %v3965
        %5825 = vmatprep.mubr.bf16.mxu0 %v414
        %5826 = vmatmul.mubr.bf16.gmra.mrb[0].mxu0 %v413
        %v5827 = vpop.f32.mrb[0].mxu0
        %v5828 = vadd.f32 %v5787, %v5827
        %v5829 = vpop.f32.mrb[0].mxu0
        %v5830 = vadd.f32 %v5789, %v5829
        %v5831 = vpop.f32.mrb[0].mxu0
        %v5832 = vpop.f32.mrb[0].mxu0
        %5833 = vdwg.mxu0
        %5834 = vmatprep.subr.bf16.mxu0 %v3970
        %5835 = vmatpush1.bf16.msra.mxu0 %v3969
        %5836 = vmatprep.subr.bf16.mxu0 %v3974
        %5837 = vmatpush1.bf16.msra.mxu0 %v3973
        %5838 = vmatprep.subr.bf16.mxu0 %v3978
        %5839 = vmatpush1.bf16.msra.mxu0 %v3977
        %5840 = vmatprep.subr.bf16.mxu0 %v3982
        %5841 = vmatpush1.bf16.msra.mxu0 %v3981
        %5842 = vmatprep.subr.bf16.mxu0 %v3986
        %5843 = vmatpush1.bf16.msra.mxu0 %v3985
        %5844 = vmatprep.subr.bf16.mxu0 %v3990
        %5845 = vmatpush1.bf16.msra.mxu0 %v3989
        %5846 = vmatprep.subr.bf16.mxu0 %v3994
        %5847 = vmatpush1.bf16.msra.mxu0 %v3993
        %5848 = vmatprep.subr.bf16.mxu0 %v3998
        %5849 = vmatpush1.bf16.msra.mxu0 %v3997
        %5850 = vmatprep.subr.bf16.mxu0 %v4002
        %5851 = vmatpush1.bf16.msra.mxu0 %v4001
        %5852 = vmatprep.subr.bf16.mxu0 %v4006
        %5853 = vmatpush1.bf16.msra.mxu0 %v4005
        %5854 = vmatprep.subr.bf16.mxu0 %v4010
        %5855 = vmatpush1.bf16.msra.mxu0 %v4009
        %5856 = vmatprep.subr.bf16.mxu0 %v4014
        %5857 = vmatpush1.bf16.msra.mxu0 %v4013
        %5858 = vmatprep.subr.bf16.mxu0 %v4018
        %5859 = vmatpush1.bf16.msra.mxu0 %v4017
        %5860 = vmatprep.subr.bf16.mxu0 %v4022
        %5861 = vmatpush1.bf16.msra.mxu0 %v4021
        %5862 = vmatprep.subr.bf16.mxu0 %v4026
        %5863 = vmatpush1.bf16.msra.mxu0 %v4025
        %5864 = vmatprep.subr.bf16.mxu0 %v4030
        %5865 = vmatpush1.bf16.msra.mxu0 %v4029
        %5866 = vmatprep.mubr.bf16.mxu0 %v416
        %5867 = vmatmul.mubr.bf16.gmra.mrb[0].mxu0 %v415
        %v5868 = vpop.f32.mrb[0].mxu0
        %v5869 = vadd.f32 %v5828, %v5868
        %v5870 = vpop.f32.mrb[0].mxu0
        %v5871 = vadd.f32 %v5830, %v5870
        %v5872 = vpop.f32.mrb[0].mxu0
        %v5873 = vpop.f32.mrb[0].mxu0
        %5874 = vdwg.mxu0
        %5875 = vmatprep.subr.bf16.mxu0 %v4034
        %5876 = vmatpush1.bf16.msra.mxu0 %v4033
        %5877 = vmatprep.subr.bf16.mxu0 %v4038
        %5878 = vmatpush1.bf16.msra.mxu0 %v4037
        %5879 = vmatprep.subr.bf16.mxu0 %v4042
        %5880 = vmatpush1.bf16.msra.mxu0 %v4041
        %5881 = vmatprep.subr.bf16.mxu0 %v4046
        %5882 = vmatpush1.bf16.msra.mxu0 %v4045
        %5883 = vmatprep.subr.bf16.mxu0 %v4050
        %5884 = vmatpush1.bf16.msra.mxu0 %v4049
        %5885 = vmatprep.subr.bf16.mxu0 %v4054
        %5886 = vmatpush1.bf16.msra.mxu0 %v4053
        %5887 = vmatprep.subr.bf16.mxu0 %v4058
        %5888 = vmatpush1.bf16.msra.mxu0 %v4057
        %5889 = vmatprep.subr.bf16.mxu0 %v4062
        %5890 = vmatpush1.bf16.msra.mxu0 %v4061
        %5891 = vmatprep.subr.bf16.mxu0 %v4066
        %5892 = vmatpush1.bf16.msra.mxu0 %v4065
        %5893 = vmatprep.subr.bf16.mxu0 %v4070
        %5894 = vmatpush1.bf16.msra.mxu0 %v4069
        %5895 = vmatprep.subr.bf16.mxu0 %v4074
        %5896 = vmatpush1.bf16.msra.mxu0 %v4073
        %5897 = vmatprep.subr.bf16.mxu0 %v4078
        %5898 = vmatpush1.bf16.msra.mxu0 %v4077
        %5899 = vmatprep.subr.bf16.mxu0 %v4082
        %5900 = vmatpush1.bf16.msra.mxu0 %v4081
        %5901 = vmatprep.subr.bf16.mxu0 %v4086
        %5902 = vmatpush1.bf16.msra.mxu0 %v4085
        %5903 = vmatprep.subr.bf16.mxu0 %v4090
        %5904 = vmatpush1.bf16.msra.mxu0 %v4089
        %5905 = vmatprep.subr.bf16.mxu0 %v4094
        %5906 = vmatpush1.bf16.msra.mxu0 %v4093
        %5907 = vmatprep.mubr.bf16.mxu0 %v418
        %5908 = vmatmul.mubr.bf16.gmra.mrb[0].mxu0 %v417
        %v5909 = vpop.f32.mrb[0].mxu0
        %v5910 = vadd.f32 %v5869, %v5909
        %v5911 = vpop.f32.mrb[0].mxu0
        %v5912 = vadd.f32 %v5871, %v5911
        %v5913 = vpop.f32.mrb[0].mxu0
        %v5914 = vpop.f32.mrb[0].mxu0
        %5915 = vdwg.mxu0
        %5916 = vmatprep.subr.bf16.mxu0 %v4098
        %5917 = vmatpush1.bf16.msra.mxu0 %v4097
        %5918 = vmatprep.subr.bf16.mxu0 %v4102
        %5919 = vmatpush1.bf16.msra.mxu0 %v4101
        %5920 = vmatprep.subr.bf16.mxu0 %v4106
        %5921 = vmatpush1.bf16.msra.mxu0 %v4105
        %5922 = vmatprep.subr.bf16.mxu0 %v4110
        %5923 = vmatpush1.bf16.msra.mxu0 %v4109
        %5924 = vmatprep.subr.bf16.mxu0 %v4114
        %5925 = vmatpush1.bf16.msra.mxu0 %v4113
        %5926 = vmatprep.subr.bf16.mxu0 %v4118
        %5927 = vmatpush1.bf16.msra.mxu0 %v4117
        %5928 = vmatprep.subr.bf16.mxu0 %v4122
        %5929 = vmatpush1.bf16.msra.mxu0 %v4121
        %5930 = vmatprep.subr.bf16.mxu0 %v4126
        %5931 = vmatpush1.bf16.msra.mxu0 %v4125
        %5932 = vmatprep.subr.bf16.mxu0 %v4130
        %5933 = vmatpush1.bf16.msra.mxu0 %v4129
        %5934 = vmatprep.subr.bf16.mxu0 %v4134
        %5935 = vmatpush1.bf16.msra.mxu0 %v4133
        %5936 = vmatprep.subr.bf16.mxu0 %v4138
        %5937 = vmatpush1.bf16.msra.mxu0 %v4137
        %5938 = vmatprep.subr.bf16.mxu0 %v4142
        %5939 = vmatpush1.bf16.msra.mxu0 %v4141
        %5940 = vmatprep.subr.bf16.mxu0 %v4146
        %5941 = vmatpush1.bf16.msra.mxu0 %v4145
        %5942 = vmatprep.subr.bf16.mxu0 %v4150
        %5943 = vmatpush1.bf16.msra.mxu0 %v4149
        %5944 = vmatprep.subr.bf16.mxu0 %v4154
        %5945 = vmatpush1.bf16.msra.mxu0 %v4153
        %5946 = vmatprep.subr.bf16.mxu0 %v4158
        %5947 = vmatpush1.bf16.msra.mxu0 %v4157
        %5948 = vmatprep.mubr.bf16.mxu0 %v420
        %5949 = vmatmul.mubr.bf16.gmra.mrb[0].mxu0 %v419
        %v5950 = vpop.f32.mrb[0].mxu0
        %v5951 = vadd.f32 %v5910, %v5950
        %v5952 = vpop.f32.mrb[0].mxu0
        %v5953 = vadd.f32 %v5912, %v5952
        %v5954 = vpop.f32.mrb[0].mxu0
        %v5955 = vpop.f32.mrb[0].mxu0
        %5956 = vdwg.mxu0
        %5957 = vmatprep.subr.bf16.mxu0 %v4162
        %5958 = vmatpush1.bf16.msra.mxu0 %v4161
        %5959 = vmatprep.subr.bf16.mxu0 %v4166
        %5960 = vmatpush1.bf16.msra.mxu0 %v4165
        %5961 = vmatprep.subr.bf16.mxu0 %v4170
        %5962 = vmatpush1.bf16.msra.mxu0 %v4169
        %5963 = vmatprep.subr.bf16.mxu0 %v4174
        %5964 = vmatpush1.bf16.msra.mxu0 %v4173
        %5965 = vmatprep.subr.bf16.mxu0 %v4178
        %5966 = vmatpush1.bf16.msra.mxu0 %v4177
        %5967 = vmatprep.subr.bf16.mxu0 %v4182
        %5968 = vmatpush1.bf16.msra.mxu0 %v4181
        %5969 = vmatprep.subr.bf16.mxu0 %v4186
        %5970 = vmatpush1.bf16.msra.mxu0 %v4185
        %5971 = vmatprep.subr.bf16.mxu0 %v4190
        %5972 = vmatpush1.bf16.msra.mxu0 %v4189
        %5973 = vmatprep.subr.bf16.mxu0 %v4194
        %5974 = vmatpush1.bf16.msra.mxu0 %v4193
        %5975 = vmatprep.subr.bf16.mxu0 %v4198
        %5976 = vmatpush1.bf16.msra.mxu0 %v4197
        %5977 = vmatprep.subr.bf16.mxu0 %v4202
        %5978 = vmatpush1.bf16.msra.mxu0 %v4201
        %5979 = vmatprep.subr.bf16.mxu0 %v4206
        %5980 = vmatpush1.bf16.msra.mxu0 %v4205
        %5981 = vmatprep.subr.bf16.mxu0 %v4210
        %5982 = vmatpush1.bf16.msra.mxu0 %v4209
        %5983 = vmatprep.subr.bf16.mxu0 %v4214
        %5984 = vmatpush1.bf16.msra.mxu0 %v4213
        %5985 = vmatprep.subr.bf16.mxu0 %v4218
        %5986 = vmatpush1.bf16.msra.mxu0 %v4217
        %5987 = vmatprep.subr.bf16.mxu0 %v4222
        %5988 = vmatpush1.bf16.msra.mxu0 %v4221
        %5989 = vmatprep.mubr.bf16.mxu0 %v422
        %5990 = vmatmul.mubr.bf16.gmra.mrb[0].mxu0 %v421
        %v5991 = vpop.f32.mrb[0].mxu0
        %v5992 = vadd.f32 %v5951, %v5991
        %v5993 = vpop.f32.mrb[0].mxu0
        %v5994 = vadd.f32 %v5953, %v5993
        %v5995 = vpop.f32.mrb[0].mxu0
        %v5996 = vpop.f32.mrb[0].mxu0
        %5997 = vdwg.mxu0
        %5998 = vmatprep.subr.bf16.mxu0 %v4226
        %5999 = vmatpush1.bf16.msra.mxu0 %v4225
        %6000 = vmatprep.subr.bf16.mxu0 %v4230
        %6001 = vmatpush1.bf16.msra.mxu0 %v4229
        %6002 = vmatprep.subr.bf16.mxu0 %v4234
        %6003 = vmatpush1.bf16.msra.mxu0 %v4233
        %6004 = vmatprep.subr.bf16.mxu0 %v4238
        %6005 = vmatpush1.bf16.msra.mxu0 %v4237
        %6006 = vmatprep.subr.bf16.mxu0 %v4242
        %6007 = vmatpush1.bf16.msra.mxu0 %v4241
        %6008 = vmatprep.subr.bf16.mxu0 %v4246
        %6009 = vmatpush1.bf16.msra.mxu0 %v4245
        %6010 = vmatprep.subr.bf16.mxu0 %v4250
        %6011 = vmatpush1.bf16.msra.mxu0 %v4249
        %6012 = vmatprep.subr.bf16.mxu0 %v4254
        %6013 = vmatpush1.bf16.msra.mxu0 %v4253
        %6014 = vmatprep.subr.bf16.mxu0 %v4258
        %6015 = vmatpush1.bf16.msra.mxu0 %v4257
        %6016 = vmatprep.subr.bf16.mxu0 %v4262
        %6017 = vmatpush1.bf16.msra.mxu0 %v4261
        %6018 = vmatprep.subr.bf16.mxu0 %v4266
        %6019 = vmatpush1.bf16.msra.mxu0 %v4265
        %6020 = vmatprep.subr.bf16.mxu0 %v4270
        %6021 = vmatpush1.bf16.msra.mxu0 %v4269
        %6022 = vmatprep.subr.bf16.mxu0 %v4274
        %6023 = vmatpush1.bf16.msra.mxu0 %v4273
        %6024 = vmatprep.subr.bf16.mxu0 %v4278
        %6025 = vmatpush1.bf16.msra.mxu0 %v4277
        %6026 = vmatprep.subr.bf16.mxu0 %v4282
        %6027 = vmatpush1.bf16.msra.mxu0 %v4281
        %6028 = vmatprep.subr.bf16.mxu0 %v4286
        %6029 = vmatpush1.bf16.msra.mxu0 %v4285
        %6030 = vmatprep.mubr.bf16.mxu0 %v424
        %6031 = vmatmul.mubr.bf16.gmra.mrb[0].mxu0 %v423
        %v6032 = vpop.f32.mrb[0].mxu0
        %v6033 = vadd.f32 %v5992, %v6032
        %v6034 = vpop.f32.mrb[0].mxu0
        %v6035 = vadd.f32 %v5994, %v6034
        %v6036 = vpop.f32.mrb[0].mxu0
        %v6037 = vpop.f32.mrb[0].mxu0
        %6038 = vdwg.mxu0
        %v6039 = vmax.f32 %v5541, 0.0
        %v6040 = vmax.f32 %v5543, 0.0
        %v6041 = vmax.f32 %v6033, 0.0
        %v6042 = vmax.f32 %v6035, 0.0
        %v6043 = vpack.c.bf16 %v6039, %v6039
        %v6044 = vpack.c.bf16 %v6040, %v6040
        %v6045 = vpack.c.bf16 %v6041, %v6041
        %v6046 = vpack.c.bf16 %v6042, %v6042
        %v6047 = vld [vmem:[#allocation8] sm:$0xff]
        %v6048 = vld [vmem:[#allocation8 + $0x8] sm:$0xff]
        %v6049 = vld [vmem:[#allocation8 + $0x10] sm:$0xff]
        %v6050 = vld [vmem:[#allocation8 + $0x18] sm:$0xff]
        %v6051 = vld [vmem:[#allocation8 + $0x20] sm:$0xff]
        %v6052 = vld [vmem:[#allocation8 + $0x28] sm:$0xff]
        %v6053 = vld [vmem:[#allocation8 + $0x30] sm:$0xff]
        %v6054 = vld [vmem:[#allocation8 + $0x38] sm:$0xff]
        %v6055 = vld [vmem:[#allocation8 + $0x40] sm:$0xff]
        %v6056 = vld [vmem:[#allocation8 + $0x48] sm:$0xff]
        %v6057 = vld [vmem:[#allocation8 + $0x50] sm:$0xff]
        %v6058 = vld [vmem:[#allocation8 + $0x58] sm:$0xff]
        %v6059 = vld [vmem:[#allocation8 + $0x60] sm:$0xff]
        %v6060 = vld [vmem:[#allocation8 + $0x68] sm:$0xff]
        %v6061 = vld [vmem:[#allocation8 + $0x70] sm:$0xff]
        %v6062 = vld [vmem:[#allocation8 + $0x78] sm:$0xff]
        %v6063 = vld [vmem:[#allocation8 + $0x80] sm:$0xff]
        %v6064 = vld [vmem:[#allocation8 + $0x88] sm:$0xff]
        %v6065 = vld [vmem:[#allocation8 + $0x90] sm:$0xff]
        %v6066 = vld [vmem:[#allocation8 + $0x98] sm:$0xff]
        %v6067 = vld [vmem:[#allocation8 + $0xa0] sm:$0xff]
        %v6068 = vld [vmem:[#allocation8 + $0xa8] sm:$0xff]
        %v6069 = vld [vmem:[#allocation8 + $0xb0] sm:$0xff]
        %v6070 = vld [vmem:[#allocation8 + $0xb8] sm:$0xff]
        %v6071 = vld [vmem:[#allocation8 + $0xc0] sm:$0xff]
        %v6072 = vld [vmem:[#allocation8 + $0xc8] sm:$0xff]
        %v6073 = vld [vmem:[#allocation8 + $0xd0] sm:$0xff]
        %v6074 = vld [vmem:[#allocation8 + $0xd8] sm:$0xff]
        %v6075 = vld [vmem:[#allocation8 + $0xe0] sm:$0xff]
        %v6076 = vld [vmem:[#allocation8 + $0xe8] sm:$0xff]
        %v6077 = vld [vmem:[#allocation8 + $0xf0] sm:$0xff]
        %v6078 = vld [vmem:[#allocation8 + $0xf8] sm:$0xff]
        %v6079 = vld [vmem:[#allocation8 + $0x100] sm:$0xff]
        %v6080 = vld [vmem:[#allocation8 + $0x108] sm:$0xff]
        %v6081 = vld [vmem:[#allocation8 + $0x110] sm:$0xff]
        %v6082 = vld [vmem:[#allocation8 + $0x118] sm:$0xff]
        %v6083 = vld [vmem:[#allocation8 + $0x120] sm:$0xff]
        %v6084 = vld [vmem:[#allocation8 + $0x128] sm:$0xff]
        %v6085 = vld [vmem:[#allocation8 + $0x130] sm:$0xff]
        %v6086 = vld [vmem:[#allocation8 + $0x138] sm:$0xff]
        %v6087 = vld [vmem:[#allocation8 + $0x140] sm:$0xff]
        %v6088 = vld [vmem:[#allocation8 + $0x148] sm:$0xff]
        %v6089 = vld [vmem:[#allocation8 + $0x150] sm:$0xff]
        %v6090 = vld [vmem:[#allocation8 + $0x158] sm:$0xff]
        %v6091 = vld [vmem:[#allocation8 + $0x160] sm:$0xff]
        %v6092 = vld [vmem:[#allocation8 + $0x168] sm:$0xff]
        %v6093 = vld [vmem:[#allocation8 + $0x170] sm:$0xff]
        %v6094 = vld [vmem:[#allocation8 + $0x178] sm:$0xff]
        %v6095 = vld [vmem:[#allocation8 + $0x180] sm:$0xff]
        %v6096 = vld [vmem:[#allocation8 + $0x188] sm:$0xff]
        %v6097 = vld [vmem:[#allocation8 + $0x190] sm:$0xff]
        %v6098 = vld [vmem:[#allocation8 + $0x198] sm:$0xff]
        %v6099 = vld [vmem:[#allocation8 + $0x1a0] sm:$0xff]
        %v6100 = vld [vmem:[#allocation8 + $0x1a8] sm:$0xff]
        %v6101 = vld [vmem:[#allocation8 + $0x1b0] sm:$0xff]
        %v6102 = vld [vmem:[#allocation8 + $0x1b8] sm:$0xff]
        %v6103 = vld [vmem:[#allocation8 + $0x1c0] sm:$0xff]
        %v6104 = vld [vmem:[#allocation8 + $0x1c8] sm:$0xff]
        %v6105 = vld [vmem:[#allocation8 + $0x1d0] sm:$0xff]
        %v6106 = vld [vmem:[#allocation8 + $0x1d8] sm:$0xff]
        %v6107 = vld [vmem:[#allocation8 + $0x1e0] sm:$0xff]
        %v6108 = vld [vmem:[#allocation8 + $0x1e8] sm:$0xff]
        %v6109 = vld [vmem:[#allocation8 + $0x1f0] sm:$0xff]
        %v6110 = vld [vmem:[#allocation8 + $0x1f8] sm:$0xff]
        %v6111 = vld [vmem:[#allocation10] sm:$0x3]
        %v6113 = vlaneseq
        %v6114 = vshrl.u32 %v6113, 7
        %v6115 = vsub.s32 0, %v6114
        %v6116 = vrot.slane %v6111, %v6115
        %v6117 = vlaneseq
        %v6118 = vshrl.u32 %v6117, 7
        %v6119 = vsub.s32 1, %v6118
        %v6120 = vrot.slane %v6111, %v6119
        %v6187 = vunpack.c.l.b16 %v6047
        %v6188 = vunpack.c.h.b16 %v6047
        %v6189 = vunpack.c.l.b16 %v6048
        %v6190 = vunpack.c.h.b16 %v6048
        %v6191 = vunpack.c.l.b16 %v6049
        %v6192 = vunpack.c.h.b16 %v6049
        %v6193 = vunpack.c.l.b16 %v6050
        %v6194 = vunpack.c.h.b16 %v6050
        %v6195 = vunpack.c.l.b16 %v6051
        %v6196 = vunpack.c.h.b16 %v6051
        %v6197 = vunpack.c.l.b16 %v6052
        %v6198 = vunpack.c.h.b16 %v6052
        %v6199 = vunpack.c.l.b16 %v6053
        %v6200 = vunpack.c.h.b16 %v6053
        %v6201 = vunpack.c.l.b16 %v6054
        %v6202 = vunpack.c.h.b16 %v6054
        %v6203 = vunpack.c.l.b16 %v6055
        %v6204 = vunpack.c.h.b16 %v6055
        %v6205 = vunpack.c.l.b16 %v6056
        %v6206 = vunpack.c.h.b16 %v6056
        %v6207 = vunpack.c.l.b16 %v6057
        %v6208 = vunpack.c.h.b16 %v6057
        %v6209 = vunpack.c.l.b16 %v6058
        %v6210 = vunpack.c.h.b16 %v6058
        %v6211 = vunpack.c.l.b16 %v6059
        %v6212 = vunpack.c.h.b16 %v6059
        %v6213 = vunpack.c.l.b16 %v6060
        %v6214 = vunpack.c.h.b16 %v6060
        %v6215 = vunpack.c.l.b16 %v6061
        %v6216 = vunpack.c.h.b16 %v6061
        %v6217 = vunpack.c.l.b16 %v6062
        %v6218 = vunpack.c.h.b16 %v6062
        %v6219 = vunpack.c.l.b16 %v6063
        %v6220 = vunpack.c.h.b16 %v6063
        %v6221 = vunpack.c.l.b16 %v6064
        %v6222 = vunpack.c.h.b16 %v6064
        %v6223 = vunpack.c.l.b16 %v6065
        %v6224 = vunpack.c.h.b16 %v6065
        %v6225 = vunpack.c.l.b16 %v6066
        %v6226 = vunpack.c.h.b16 %v6066
        %v6227 = vunpack.c.l.b16 %v6067
        %v6228 = vunpack.c.h.b16 %v6067
        %v6229 = vunpack.c.l.b16 %v6068
        %v6230 = vunpack.c.h.b16 %v6068
        %v6231 = vunpack.c.l.b16 %v6069
        %v6232 = vunpack.c.h.b16 %v6069
        %v6233 = vunpack.c.l.b16 %v6070
        %v6234 = vunpack.c.h.b16 %v6070
        %v6235 = vunpack.c.l.b16 %v6071
        %v6236 = vunpack.c.h.b16 %v6071
        %v6237 = vunpack.c.l.b16 %v6072
        %v6238 = vunpack.c.h.b16 %v6072
        %v6239 = vunpack.c.l.b16 %v6073
        %v6240 = vunpack.c.h.b16 %v6073
        %v6241 = vunpack.c.l.b16 %v6074
        %v6242 = vunpack.c.h.b16 %v6074
        %v6243 = vunpack.c.l.b16 %v6075
        %v6244 = vunpack.c.h.b16 %v6075
        %v6245 = vunpack.c.l.b16 %v6076
        %v6246 = vunpack.c.h.b16 %v6076
        %v6247 = vunpack.c.l.b16 %v6077
        %v6248 = vunpack.c.h.b16 %v6077
        %v6249 = vunpack.c.l.b16 %v6078
        %v6250 = vunpack.c.h.b16 %v6078
        %v6251 = vunpack.c.l.b16 %v6079
        %v6252 = vunpack.c.h.b16 %v6079
        %v6253 = vunpack.c.l.b16 %v6080
        %v6254 = vunpack.c.h.b16 %v6080
        %v6255 = vunpack.c.l.b16 %v6081
        %v6256 = vunpack.c.h.b16 %v6081
        %v6257 = vunpack.c.l.b16 %v6082
        %v6258 = vunpack.c.h.b16 %v6082
        %v6259 = vunpack.c.l.b16 %v6083
        %v6260 = vunpack.c.h.b16 %v6083
        %v6261 = vunpack.c.l.b16 %v6084
        %v6262 = vunpack.c.h.b16 %v6084
        %v6263 = vunpack.c.l.b16 %v6085
        %v6264 = vunpack.c.h.b16 %v6085
        %v6265 = vunpack.c.l.b16 %v6086
        %v6266 = vunpack.c.h.b16 %v6086
        %v6267 = vunpack.c.l.b16 %v6087
        %v6268 = vunpack.c.h.b16 %v6087
        %v6269 = vunpack.c.l.b16 %v6088
        %v6270 = vunpack.c.h.b16 %v6088
        %v6271 = vunpack.c.l.b16 %v6089
        %v6272 = vunpack.c.h.b16 %v6089
        %v6273 = vunpack.c.l.b16 %v6090
        %v6274 = vunpack.c.h.b16 %v6090
        %v6275 = vunpack.c.l.b16 %v6091
        %v6276 = vunpack.c.h.b16 %v6091
        %v6277 = vunpack.c.l.b16 %v6092
        %v6278 = vunpack.c.h.b16 %v6092
        %v6279 = vunpack.c.l.b16 %v6093
        %v6280 = vunpack.c.h.b16 %v6093
        %v6281 = vunpack.c.l.b16 %v6094
        %v6282 = vunpack.c.h.b16 %v6094
        %v6283 = vunpack.c.l.b16 %v6095
        %v6284 = vunpack.c.h.b16 %v6095
        %v6285 = vunpack.c.l.b16 %v6096
        %v6286 = vunpack.c.h.b16 %v6096
        %v6287 = vunpack.c.l.b16 %v6097
        %v6288 = vunpack.c.h.b16 %v6097
        %v6289 = vunpack.c.l.b16 %v6098
        %v6290 = vunpack.c.h.b16 %v6098
        %v6291 = vunpack.c.l.b16 %v6099
        %v6292 = vunpack.c.h.b16 %v6099
        %v6293 = vunpack.c.l.b16 %v6100
        %v6294 = vunpack.c.h.b16 %v6100
        %v6295 = vunpack.c.l.b16 %v6101
        %v6296 = vunpack.c.h.b16 %v6101
        %v6297 = vunpack.c.l.b16 %v6102
        %v6298 = vunpack.c.h.b16 %v6102
        %v6299 = vunpack.c.l.b16 %v6103
        %v6300 = vunpack.c.h.b16 %v6103
        %v6301 = vunpack.c.l.b16 %v6104
        %v6302 = vunpack.c.h.b16 %v6104
        %v6303 = vunpack.c.l.b16 %v6105
        %v6304 = vunpack.c.h.b16 %v6105
        %v6305 = vunpack.c.l.b16 %v6106
        %v6306 = vunpack.c.h.b16 %v6106
        %v6307 = vunpack.c.l.b16 %v6107
        %v6308 = vunpack.c.h.b16 %v6107
        %v6309 = vunpack.c.l.b16 %v6108
        %v6310 = vunpack.c.h.b16 %v6108
        %v6311 = vunpack.c.l.b16 %v6109
        %v6312 = vunpack.c.h.b16 %v6109
        %v6313 = vunpack.c.l.b16 %v6110
        %v6314 = vunpack.c.h.b16 %v6110
        %v6315 = vpack.c.b16 %v6189, %v6187
        %v6316 = vpack.c.b16 %v6190, %v6188
        %v6317 = vpack.c.b16 %v6193, %v6191
        %v6318 = vpack.c.b16 %v6194, %v6192
        %v6319 = vpack.c.b16 %v6197, %v6195
        %v6320 = vpack.c.b16 %v6198, %v6196
        %v6321 = vpack.c.b16 %v6201, %v6199
        %v6322 = vpack.c.b16 %v6202, %v6200
        %v6323 = vpack.c.b16 %v6205, %v6203
        %v6324 = vpack.c.b16 %v6206, %v6204
        %v6325 = vpack.c.b16 %v6209, %v6207
        %v6326 = vpack.c.b16 %v6210, %v6208
        %v6327 = vpack.c.b16 %v6213, %v6211
        %v6328 = vpack.c.b16 %v6214, %v6212
        %v6329 = vpack.c.b16 %v6217, %v6215
        %v6330 = vpack.c.b16 %v6218, %v6216
        %v6331 = vpack.c.b16 %v6221, %v6219
        %v6332 = vpack.c.b16 %v6222, %v6220
        %v6333 = vpack.c.b16 %v6225, %v6223
        %v6334 = vpack.c.b16 %v6226, %v6224
        %v6335 = vpack.c.b16 %v6229, %v6227
        %v6336 = vpack.c.b16 %v6230, %v6228
        %v6337 = vpack.c.b16 %v6233, %v6231
        %v6338 = vpack.c.b16 %v6234, %v6232
        %v6339 = vpack.c.b16 %v6237, %v6235
        %v6340 = vpack.c.b16 %v6238, %v6236
        %v6341 = vpack.c.b16 %v6241, %v6239
        %v6342 = vpack.c.b16 %v6242, %v6240
        %v6343 = vpack.c.b16 %v6245, %v6243
        %v6344 = vpack.c.b16 %v6246, %v6244
        %v6345 = vpack.c.b16 %v6249, %v6247
        %v6346 = vpack.c.b16 %v6250, %v6248
        %v6347 = vpack.c.b16 %v6253, %v6251
        %v6348 = vpack.c.b16 %v6254, %v6252
        %v6349 = vpack.c.b16 %v6257, %v6255
        %v6350 = vpack.c.b16 %v6258, %v6256
        %v6351 = vpack.c.b16 %v6261, %v6259
        %v6352 = vpack.c.b16 %v6262, %v6260
        %v6353 = vpack.c.b16 %v6265, %v6263
        %v6354 = vpack.c.b16 %v6266, %v6264
        %v6355 = vpack.c.b16 %v6269, %v6267
        %v6356 = vpack.c.b16 %v6270, %v6268
        %v6357 = vpack.c.b16 %v6273, %v6271
        %v6358 = vpack.c.b16 %v6274, %v6272
        %v6359 = vpack.c.b16 %v6277, %v6275
        %v6360 = vpack.c.b16 %v6278, %v6276
        %v6361 = vpack.c.b16 %v6281, %v6279
        %v6362 = vpack.c.b16 %v6282, %v6280
        %v6363 = vpack.c.b16 %v6285, %v6283
        %v6364 = vpack.c.b16 %v6286, %v6284
        %v6365 = vpack.c.b16 %v6289, %v6287
        %v6366 = vpack.c.b16 %v6290, %v6288
        %v6367 = vpack.c.b16 %v6293, %v6291
        %v6368 = vpack.c.b16 %v6294, %v6292
        %v6369 = vpack.c.b16 %v6297, %v6295
        %v6370 = vpack.c.b16 %v6298, %v6296
        %v6371 = vpack.c.b16 %v6301, %v6299
        %v6372 = vpack.c.b16 %v6302, %v6300
        %v6373 = vpack.c.b16 %v6305, %v6303
        %v6374 = vpack.c.b16 %v6306, %v6304
        %v6375 = vpack.c.b16 %v6309, %v6307
        %v6376 = vpack.c.b16 %v6310, %v6308
        %v6377 = vpack.c.b16 %v6313, %v6311
        %v6378 = vpack.c.b16 %v6314, %v6312
        %6443 = vmatprep.subr.bf16.mxu0 %v6316
        %6444 = vmatpush1.bf16.msra.mxu0 %v6315
        %6445 = vmatprep.subr.bf16.mxu0 %v6318
        %6446 = vmatpush1.bf16.msra.mxu0 %v6317
        %6447 = vmatprep.subr.bf16.mxu0 %v6320
        %6448 = vmatpush1.bf16.msra.mxu0 %v6319
        %6449 = vmatprep.subr.bf16.mxu0 %v6322
        %6450 = vmatpush1.bf16.msra.mxu0 %v6321
        %6451 = vmatprep.subr.bf16.mxu0 %v6324
        %6452 = vmatpush1.bf16.msra.mxu0 %v6323
        %6453 = vmatprep.subr.bf16.mxu0 %v6326
        %6454 = vmatpush1.bf16.msra.mxu0 %v6325
        %6455 = vmatprep.subr.bf16.mxu0 %v6328
        %6456 = vmatpush1.bf16.msra.mxu0 %v6327
        %6457 = vmatprep.subr.bf16.mxu0 %v6330
        %6458 = vmatpush1.bf16.msra.mxu0 %v6329
        %6459 = vmatprep.subr.bf16.mxu0 %v6332
        %6460 = vmatpush1.bf16.msra.mxu0 %v6331
        %6461 = vmatprep.subr.bf16.mxu0 %v6334
        %6462 = vmatpush1.bf16.msra.mxu0 %v6333
        %6463 = vmatprep.subr.bf16.mxu0 %v6336
        %6464 = vmatpush1.bf16.msra.mxu0 %v6335
        %6465 = vmatprep.subr.bf16.mxu0 %v6338
        %6466 = vmatpush1.bf16.msra.mxu0 %v6337
        %6467 = vmatprep.subr.bf16.mxu0 %v6340
        %6468 = vmatpush1.bf16.msra.mxu0 %v6339
        %6469 = vmatprep.subr.bf16.mxu0 %v6342
        %6470 = vmatpush1.bf16.msra.mxu0 %v6341
        %6471 = vmatprep.subr.bf16.mxu0 %v6344
        %6472 = vmatpush1.bf16.msra.mxu0 %v6343
        %6473 = vmatprep.subr.bf16.mxu0 %v6346
        %6474 = vmatpush1.bf16.msra.mxu0 %v6345
        %6475 = vmatprep.mubr.bf16.mxu0 %v6044
        %6476 = vmatmul.mubr.bf16.gmra.mrb[0].mxu0 %v6043
        %v6477 = vpop.f32.mrb[0].mxu0
        %v6478 = vadd.f32 %v6116, %v6477
        %v6479 = vpop.f32.mrb[0].mxu0
        %v6480 = vadd.f32 %v6120, %v6479
        %v6481 = vpop.f32.mrb[0].mxu0
        %v6482 = vpop.f32.mrb[0].mxu0
        %6483 = vdwg.mxu0
        %6484 = vmatprep.subr.bf16.mxu0 %v6348
        %6485 = vmatpush1.bf16.msra.mxu0 %v6347
        %6486 = vmatprep.subr.bf16.mxu0 %v6350
        %6487 = vmatpush1.bf16.msra.mxu0 %v6349
        %6488 = vmatprep.subr.bf16.mxu0 %v6352
        %6489 = vmatpush1.bf16.msra.mxu0 %v6351
        %6490 = vmatprep.subr.bf16.mxu0 %v6354
        %6491 = vmatpush1.bf16.msra.mxu0 %v6353
        %6492 = vmatprep.subr.bf16.mxu0 %v6356
        %6493 = vmatpush1.bf16.msra.mxu0 %v6355
        %6494 = vmatprep.subr.bf16.mxu0 %v6358
        %6495 = vmatpush1.bf16.msra.mxu0 %v6357
        %6496 = vmatprep.subr.bf16.mxu0 %v6360
        %6497 = vmatpush1.bf16.msra.mxu0 %v6359
        %6498 = vmatprep.subr.bf16.mxu0 %v6362
        %6499 = vmatpush1.bf16.msra.mxu0 %v6361
        %6500 = vmatprep.subr.bf16.mxu0 %v6364
        %6501 = vmatpush1.bf16.msra.mxu0 %v6363
        %6502 = vmatprep.subr.bf16.mxu0 %v6366
        %6503 = vmatpush1.bf16.msra.mxu0 %v6365
        %6504 = vmatprep.subr.bf16.mxu0 %v6368
        %6505 = vmatpush1.bf16.msra.mxu0 %v6367
        %6506 = vmatprep.subr.bf16.mxu0 %v6370
        %6507 = vmatpush1.bf16.msra.mxu0 %v6369
        %6508 = vmatprep.subr.bf16.mxu0 %v6372
        %6509 = vmatpush1.bf16.msra.mxu0 %v6371
        %6510 = vmatprep.subr.bf16.mxu0 %v6374
        %6511 = vmatpush1.bf16.msra.mxu0 %v6373
        %6512 = vmatprep.subr.bf16.mxu0 %v6376
        %6513 = vmatpush1.bf16.msra.mxu0 %v6375
        %6514 = vmatprep.subr.bf16.mxu0 %v6378
        %6515 = vmatpush1.bf16.msra.mxu0 %v6377
        %6516 = vmatprep.mubr.bf16.mxu0 %v6046
        %6517 = vmatmul.mubr.bf16.gmra.mrb[0].mxu0 %v6045
        %v6518 = vpop.f32.mrb[0].mxu0
        %v6519 = vadd.f32 %v6478, %v6518
        %v6520 = vpop.f32.mrb[0].mxu0
        %v6521 = vadd.f32 %v6480, %v6520
        %v6522 = vpop.f32.mrb[0].mxu0
        %v6523 = vpop.f32.mrb[0].mxu0
        %6524 = vdwg.mxu0
        %v6525 = vmax.f32 %v6519, 0.0
        %v6526 = vmax.f32 %v6521, 0.0
        %v6527 = vpack.c.bf16 %v6525, %v6525
        %v6528 = vpack.c.bf16 %v6526, %v6526
        %v6529 = vld [vmem:[#allocation11] sm:$0xf]
        %v6530 = vld [vmem:[#allocation11 + $0x4] sm:$0xf]
        %v6531 = vld [vmem:[#allocation11 + $0x8] sm:$0xf]
        %v6532 = vld [vmem:[#allocation11 + $0xc] sm:$0xf]
        %v6533 = vld [vmem:[#allocation11 + $0x10] sm:$0xf]
        %v6534 = vld [vmem:[#allocation11 + $0x14] sm:$0xf]
        %v6535 = vld [vmem:[#allocation11 + $0x18] sm:$0xf]
        %v6536 = vld [vmem:[#allocation11 + $0x1c] sm:$0xf]
        %v6537 = vld [vmem:[#allocation11 + $0x20] sm:$0xf]
        %v6538 = vld [vmem:[#allocation11 + $0x24] sm:$0xf]
        %v6539 = vld [vmem:[#allocation11 + $0x28] sm:$0xf]
        %v6540 = vld [vmem:[#allocation11 + $0x2c] sm:$0xf]
        %v6541 = vld [vmem:[#allocation11 + $0x30] sm:$0xf]
        %v6542 = vld [vmem:[#allocation11 + $0x34] sm:$0xf]
        %v6543 = vld [vmem:[#allocation11 + $0x38] sm:$0xf]
        %v6544 = vld [vmem:[#allocation11 + $0x3c] sm:$0xf]
        %v6545 = vld [vmem:[#allocation11 + $0x40] sm:$0xf]
        %v6546 = vld [vmem:[#allocation11 + $0x44] sm:$0xf]
        %v6547 = vld [vmem:[#allocation11 + $0x48] sm:$0xf]
        %v6548 = vld [vmem:[#allocation11 + $0x4c] sm:$0xf]
        %v6549 = vld [vmem:[#allocation11 + $0x50] sm:$0xf]
        %v6550 = vld [vmem:[#allocation11 + $0x54] sm:$0xf]
        %v6551 = vld [vmem:[#allocation11 + $0x58] sm:$0xf]
        %v6552 = vld [vmem:[#allocation11 + $0x5c] sm:$0xf]
        %v6553 = vld [vmem:[#allocation11 + $0x60] sm:$0xf]
        %v6554 = vld [vmem:[#allocation11 + $0x64] sm:$0xf]
        %v6555 = vld [vmem:[#allocation11 + $0x68] sm:$0xf]
        %v6556 = vld [vmem:[#allocation11 + $0x6c] sm:$0xf]
        %v6557 = vld [vmem:[#allocation11 + $0x70] sm:$0xf]
        %v6558 = vld [vmem:[#allocation11 + $0x74] sm:$0xf]
        %v6559 = vld [vmem:[#allocation11 + $0x78] sm:$0xf]
        %v6560 = vld [vmem:[#allocation11 + $0x7c] sm:$0xf]
        %v6561 = vld [vmem:[#allocation13] sm:$0x1]
        %v6563 = vlaneseq
        %v6564 = vshrl.u32 %v6563, 7
        %v6565 = vsub.s32 0, %v6564
        %v6566 = vrot.slane %v6561, %v6565
        %v6600 = vunpack.c.l.b16 %v6529
        %v6601 = vunpack.c.l.b16 %v6530
        %v6602 = vunpack.c.l.b16 %v6531
        %v6603 = vunpack.c.l.b16 %v6532
        %v6604 = vunpack.c.l.b16 %v6533
        %v6605 = vunpack.c.l.b16 %v6534
        %v6606 = vunpack.c.l.b16 %v6535
        %v6607 = vunpack.c.l.b16 %v6536
        %v6608 = vunpack.c.l.b16 %v6537
        %v6609 = vunpack.c.l.b16 %v6538
        %v6610 = vunpack.c.l.b16 %v6539
        %v6611 = vunpack.c.l.b16 %v6540
        %v6612 = vunpack.c.l.b16 %v6541
        %v6613 = vunpack.c.l.b16 %v6542
        %v6614 = vunpack.c.l.b16 %v6543
        %v6615 = vunpack.c.l.b16 %v6544
        %v6616 = vunpack.c.l.b16 %v6545
        %v6617 = vunpack.c.l.b16 %v6546
        %v6618 = vunpack.c.l.b16 %v6547
        %v6619 = vunpack.c.l.b16 %v6548
        %v6620 = vunpack.c.l.b16 %v6549
        %v6621 = vunpack.c.l.b16 %v6550
        %v6622 = vunpack.c.l.b16 %v6551
        %v6623 = vunpack.c.l.b16 %v6552
        %v6624 = vunpack.c.l.b16 %v6553
        %v6625 = vunpack.c.l.b16 %v6554
        %v6626 = vunpack.c.l.b16 %v6555
        %v6627 = vunpack.c.l.b16 %v6556
        %v6628 = vunpack.c.l.b16 %v6557
        %v6629 = vunpack.c.l.b16 %v6558
        %v6630 = vunpack.c.l.b16 %v6559
        %v6631 = vunpack.c.l.b16 %v6560
        %v6632 = vpack.c.b16 %v6601, %v6600
        %v6633 = vpack.c.b16 %v6603, %v6602
        %v6634 = vpack.c.b16 %v6605, %v6604
        %v6635 = vpack.c.b16 %v6607, %v6606
        %v6636 = vpack.c.b16 %v6609, %v6608
        %v6637 = vpack.c.b16 %v6611, %v6610
        %v6638 = vpack.c.b16 %v6613, %v6612
        %v6639 = vpack.c.b16 %v6615, %v6614
        %v6640 = vpack.c.b16 %v6617, %v6616
        %v6641 = vpack.c.b16 %v6619, %v6618
        %v6642 = vpack.c.b16 %v6621, %v6620
        %v6643 = vpack.c.b16 %v6623, %v6622
        %v6644 = vpack.c.b16 %v6625, %v6624
        %v6645 = vpack.c.b16 %v6627, %v6626
        %v6646 = vpack.c.b16 %v6629, %v6628
        %v6647 = vpack.c.b16 %v6631, %v6630
        %6664 = vmatprep.subr.bf16.mxu0 0
        %6665 = vmatpush1.bf16.msra.mxu0 %v6632
        %6666 = vmatprep.subr.bf16.mxu0 0
        %6667 = vmatpush1.bf16.msra.mxu0 %v6633
        %6668 = vmatprep.subr.bf16.mxu0 0
        %6669 = vmatpush1.bf16.msra.mxu0 %v6634
        %6670 = vmatprep.subr.bf16.mxu0 0
        %6671 = vmatpush1.bf16.msra.mxu0 %v6635
        %6672 = vmatprep.subr.bf16.mxu0 0
        %6673 = vmatpush1.bf16.msra.mxu0 %v6636
        %6674 = vmatprep.subr.bf16.mxu0 0
        %6675 = vmatpush1.bf16.msra.mxu0 %v6637
        %6676 = vmatprep.subr.bf16.mxu0 0
        %6677 = vmatpush1.bf16.msra.mxu0 %v6638
        %6678 = vmatprep.subr.bf16.mxu0 0
        %6679 = vmatpush1.bf16.msra.mxu0 %v6639
        %6680 = vmatprep.subr.bf16.mxu0 0
        %6681 = vmatpush1.bf16.msra.mxu0 %v6640
        %6682 = vmatprep.subr.bf16.mxu0 0
        %6683 = vmatpush1.bf16.msra.mxu0 %v6641
        %6684 = vmatprep.subr.bf16.mxu0 0
        %6685 = vmatpush1.bf16.msra.mxu0 %v6642
        %6686 = vmatprep.subr.bf16.mxu0 0
        %6687 = vmatpush1.bf16.msra.mxu0 %v6643
        %6688 = vmatprep.subr.bf16.mxu0 0
        %6689 = vmatpush1.bf16.msra.mxu0 %v6644
        %6690 = vmatprep.subr.bf16.mxu0 0
        %6691 = vmatpush1.bf16.msra.mxu0 %v6645
        %6692 = vmatprep.subr.bf16.mxu0 0
        %6693 = vmatpush1.bf16.msra.mxu0 %v6646
        %6694 = vmatprep.subr.bf16.mxu0 0
        %6695 = vmatpush1.bf16.msra.mxu0 %v6647
        %6696 = vmatprep.mubr.bf16.mxu0 %v6528
        %6697 = vmatmul.mubr.bf16.gmra.mrb[0].mxu0 %v6527
        %v6698 = vpop.f32.mrb[0].mxu0
        %v6699 = vadd.f32 %v6566, %v6698
        %v6700 = vpop.f32.mrb[0].mxu0
        %v6701 = vpop.f32.mrb[0].mxu0
        %v6702 = vpop.f32.mrb[0].mxu0
        %6703 = vdwg.mxu0
        %v6704 = vpack.c.bf16 %v6699, %v6699
        %6705 = vst [vmem:[%s375] sm:$0xf] %v6704
        %s6706 = sand.u32 %s187, 1
        %s6707 = scalar_lea.sflag [#allocation4], %s6706
        %s6708 = sand.u32 %s187, 1
        %s6709 = smul.addr %s6708, 4
        %s6710 = scalar_lea.vmem [#allocation14], %s6709
        // Predicated region
        $region77: #{tpu_custom_call.1} parent=47 // pred_check
          %p6711 = pneg %p197
        $region78: #{tpu_custom_call.1} parent=47 // pred_check_branch
          %6713 = sbr.rel (%p6711) target = $region80
        $region79: #{tpu_custom_call.1} parent=47 // pred_region
          %s6715 = ssub.s32 64, 64
          %6716 = vsyncadd %s6707, %s6715
          %s6717 = smul.addr %s27, 64
          %s6718 = scalar_lea.hbm %s7, %s6717
          %s6720 = sshll.u32 %s6710, 4
          %s6721 = int_to_ptr.vmem [resolvable:$true] %s6720
          %6723 = dma.vmem_to_hbm [thread:$0]  %s6721, 64, %s6718, %s6707
        $region80: #{tpu_custom_call.1} parent=47 // pred_fallthru
          _
      $region48: #{tpu_custom_call.1} parent=5 // pred_fallthru
        _
      %p6724 = scmp.le.s32.totalorder 2, %s22
      // Predicated region
      $region81: #{tpu_custom_call.1} parent=5 // pred_check
        %p6725 = pneg %p6724
      $region82: #{tpu_custom_call.1} parent=5 // pred_check_branch
        %6727 = sbr.rel (%p6725) target = $region84
      $region83: #{tpu_custom_call.1} parent=5 // pred_region
        %s6728 = ssub.s32 %s22, 2
        // Predicated region
        $region85: #{tpu_custom_call.1} parent=83 // pred_check
          %p6729 = pneg %p203
        $region86: #{tpu_custom_call.1} parent=83 // pred_check_branch
          %6731 = sbr.rel (%p6729) target = $region88
        $region87: #{tpu_custom_call.1} parent=83 // pred_region
          %s6732 = sand.u32 %s188, 1
          %s6733 = scalar_lea.sflag [#allocation4], %s6732
          %s6734 = sand.u32 %s188, 1
          %s6735 = smul.addr %s6734, 4
          %s6736 = scalar_lea.vmem [#allocation14], %s6735
          %6737 = dma.done %s6733, 64
        $region88: #{tpu_custom_call.1} parent=83 // pred_fallthru
          _
      $region84: #{tpu_custom_call.1} parent=5 // pred_fallthru
        _
    $region6: #{tpu_custom_call.1} parent=1 // loop_footer
      %s26 = sadd.s32 1, %s22
    $region7: #{tpu_custom_call.1} parent=1 // loop_footer_branch
      %21 = sbr.rel target = $region3
    $region8: #{tpu_custom_call.1} parent=1 // loop_exit
      _
    %6738 = vsyncpa [#allocation3], 1
    %s6739 = scalar_lea.sflag [#allocation3], 1
    %6740 = vsyncpa %s6739, 1
    %6741 = vsyncpa [#allocation6], 1
    %6742 = vsyncpa [#allocation9], 1
    %6743 = vsyncpa [#allocation12], 1
    %6744 = vsyncpa [#allocation4], 1
    %s6745 = scalar_lea.sflag [#allocation4], 1
    %6746 = vsyncpa %s6745, 1

// kernel: tpu_custom_call.1
$region0: #{tpu_custom_call.1}
  #allocation0 [shape = 'u32[]', space=smem, size = 0x4, offset = 0x4, fixed_abs, tag = 'smem constant byte address 0x4 - core index']
  #allocation1 [shape = 'u32[144,128]{1,0:T(1,128)}', space=vmem, size = 0x12000, scoped, tag = 'internal scratch']
  %s0 = inlined_call_operand.hbm [shape: f32[16,3072], index: 0, kind: input, shape index: {}]
  %s1 = inlined_call_operand.hbm [shape: bf16[3072,512], index: 1, kind: input, shape index: {}]
  %s2 = inlined_call_operand.hbm [shape: f32[1,512], index: 2, kind: input, shape index: {}]
  %s3 = inlined_call_operand.hbm [shape: bf16[512,256], index: 3, kind: input, shape index: {}]
  %s4 = inlined_call_operand.hbm [shape: f32[1,256], index: 4, kind: input, shape index: {}]
  %s5 = inlined_call_operand.hbm [shape: bf16[256,128], index: 5, kind: input, shape index: {}]
  %s6 = inlined_call_operand.hbm [shape: f32[1,128], index: 6, kind: input, shape index: {}]
  %s7 = inlined_call_operand.hbm [shape: bf16[16,128], index: 7, kind: output, shape index: {}]
  %s8 = sld [smem:[#allocation0]]
  $region89: #{tpu_custom_call.1} parent=0
    _
  %s10 = ssub.s32 1, %s8
  %s11 = scalar_select 0, %s10, %s8
  $region1: #{tpu_custom_call.1} parent=0
    #allocation2 [shape = 'u8[196608]{0}', space=vmem, size = 0x30000, scoped, tag = 'input window, operand 0']
    #allocation3 [shape = 's32[2]{0}', space=sflag, size = 0x8, scoped, tag = 'scoped memory for tpu_custom_call.1']
    #allocation4 [shape = 's32[2]{0}', space=sflag, size = 0x8, scoped, tag = 'scoped memory for tpu_custom_call.1']
    #allocation5 [shape = 'u8[3145728]{0}', space=vmem, size = 0x300000, scoped, tag = 'input window, operand 1, single buffered']
    #allocation6 [shape = 's32[1]{0}', space=sflag, size = 0x4, scoped, tag = 'scoped memory for tpu_custom_call.1']
    #allocation7 [shape = 'u8[2048]{0}', space=vmem, size = 0x800, scoped, tag = 'input window, operand 2, single buffered']
    #allocation8 [shape = 'u8[262144]{0}', space=vmem, size = 0x40000, scoped, tag = 'input window, operand 3, single buffered']
    #allocation9 [shape = 's32[1]{0}', space=sflag, size = 0x4, scoped, tag = 'scoped memory for tpu_custom_call.1']
    #allocation10 [shape = 'u8[1024]{0}', space=vmem, size = 0x400, scoped, tag = 'input window, operand 4, single buffered']
    #allocation11 [shape = 'u8[65536]{0}', space=vmem, size = 0x10000, scoped, tag = 'input window, operand 5, single buffered']
    #allocation12 [shape = 's32[1]{0}', space=sflag, size = 0x4, scoped, tag = 'scoped memory for tpu_custom_call.1']
    #allocation13 [shape = 'u8[512]{0}', space=vmem, size = 0x400, scoped, tag = 'input window, operand 6, single buffered']
    #allocation14 [shape = 'u8[4096]{0}', space=vmem, size = 0x1000, scoped, tag = 'output window, operand 0']
    %12 = vsyncpa [#allocation3], 0
    %s13 = scalar_lea.sflag [#allocation3], 1
    %14 = vsyncpa %s13, 0
    %15 = vsyncpa [#allocation6], 0
    %16 = vsyncpa [#allocation9], 0
    %17 = vsyncpa [#allocation12], 0
    %18 = vsyncpa [#allocation4], 0
    %s19 = scalar_lea.sflag [#allocation4], 1
    %20 = vsyncpa %s19, 0
    loop: start=0, step=1, limit=4
    $region2: #{tpu_custom_call.1} parent=1 // loop_pre_header
      _
    $region3: #{tpu_custom_call.1} parent=1 // loop_header
      %s22 = sphi 0, %s26
      %p23 = scmp.ge.s32.totalorder %s22, 4
      %s32 = sphi 0, %s34
      %s35 = sphi 0, %s32
      %s36 = sphi 0, %s35
      %s52 = sphi 0, %s36
      %s56 = sphi 0, %s56
      %s58 = sphi 0, %s56
      %s59 = sphi 0, %s58
      %s73 = sphi 0, %s59
      %s77 = sphi 0, %s77
      %s79 = sphi 0, %s77
      %s80 = sphi 0, %s79
      %s94 = sphi 0, %s80
      %s98 = sphi 0, %s98
      %s100 = sphi 0, %s98
      %s101 = sphi 0, %s100
      %s115 = sphi 0, %s101
      %s119 = sphi 0, %s119
      %s121 = sphi 0, %s119
      %s122 = sphi 0, %s121
      %s136 = sphi 0, %s122
      %s140 = sphi 0, %s140
      %s142 = sphi 0, %s140
      %s143 = sphi 0, %s142
      %s157 = sphi 0, %s143
      %s161 = sphi 0, %s161
      %s163 = sphi 0, %s161
      %s164 = sphi 0, %s163
      %s178 = sphi 0, %s164
      %s184 = sphi 0, %s186
      %s187 = sphi 0, %s184
      %s188 = sphi 0, %s187
      %s204 = sphi 0, %s188
    $region4: #{tpu_custom_call.1} parent=1 // loop_header_branch
      %25 = sbr.rel (%p23) target = $region8
    $region5: #{tpu_custom_call.1} parent=1 // loop_body
      %s27 = ssub.s32 %s22, 1
      %s28 = ssub.s32 %s22, 2
      %s29 = sadd.s32 %s22, 1
      %s30 = ssub.s32 %s22, %s29
      %p31 = scmp.eq.s32.totalorder %s30, 0
      %s33 = sadd.s32 %s32, 1
      %s34 = scalar_select %p31, %s32, %s33
      %p37 = pneg %p31
      %p38 = scmp.eq.s32.totalorder %s22, 1
      %p39 = por %p37, %p38
      %p40 = scmp.ne.s32.totalorder %s32, %s35
      %p41 = scmp.eq.s32.totalorder %s22, 0
      %p42 = por %p40, %p41
      %p43 = scmp.ne.s32.totalorder %s32, %s35
      %p44 = scmp.eq.s32.totalorder %s27, 1
      %p45 = por %p43, %p44
      %p46 = scmp.ne.s32.totalorder %s35, %s36
      %p47 = scmp.eq.s32.totalorder %s27, 0
      %p48 = por %p46, %p47
      %p49 = scmp.ne.s32.totalorder %s35, %s36
      %p50 = scmp.eq.s32.totalorder %s28, 1
      %p51 = por %p49, %p50
      %p53 = scmp.ne.s32.totalorder %s36, %s52
      %p54 = scmp.eq.s32.totalorder %s28, 0
      %p55 = por %p53, %p54
      %s57 = sadd.s32 %s56, 1
      %p60 = scmp.eq.s32.totalorder %s22, 1
      %p61 = scmp.ne.s32.totalorder %s56, %s58
      %p62 = scmp.eq.s32.totalorder %s22, 0
      %p63 = por %p61, %p62
      %p64 = scmp.ne.s32.totalorder %s56, %s58
      %p65 = scmp.eq.s32.totalorder %s27, 1
      %p66 = por %p64, %p65
      %p67 = scmp.ne.s32.totalorder %s58, %s59
      %p68 = scmp.eq.s32.totalorder %s27, 0
      %p69 = por %p67, %p68
      %p70 = scmp.ne.s32.totalorder %s58, %s59
      %p71 = scmp.eq.s32.totalorder %s28, 1
      %p72 = por %p70, %p71
      %p74 = scmp.ne.s32.totalorder %s59, %s73
      %p75 = scmp.eq.s32.totalorder %s28, 0
      %p76 = por %p74, %p75
      %s78 = sadd.s32 %s77, 1
      %p81 = scmp.eq.s32.totalorder %s22, 1
      %p82 = scmp.ne.s32.totalorder %s77, %s79
      %p83 = scmp.eq.s32.totalorder %s22, 0
      %p84 = por %p82, %p83
      %p85 = scmp.ne.s32.totalorder %s77, %s79
      %p86 = scmp.eq.s32.totalorder %s27, 1
      %p87 = por %p85, %p86
      %p88 = scmp.ne.s32.totalorder %s79, %s80
      %p89 = scmp.eq.s32.totalorder %s27, 0
      %p90 = por %p88, %p89
      %p91 = scmp.ne.s32.totalorder %s79, %s80
      %p92 = scmp.eq.s32.totalorder %s28, 1
      %p93 = por %p91, %p92
      %p95 = scmp.ne.s32.totalorder %s80, %s94
      %p96 = scmp.eq.s32.totalorder %s28, 0
      %p97 = por %p95, %p96
      %s99 = sadd.s32 %s98, 1
      %p102 = scmp.eq.s32.totalorder %s22, 1
      %p103 = scmp.ne.s32.totalorder %s98, %s100
      %p104 = scmp.eq.s32.totalorder %s22, 0
      %p105 = por %p103, %p104
      %p106 = scmp.ne.s32.totalorder %s98, %s100
      %p107 = scmp.eq.s32.totalorder %s27, 1
      %p108 = por %p106, %p107
      %p109 = scmp.ne.s32.totalorder %s100, %s101
      %p110 = scmp.eq.s32.totalorder %s27, 0
      %p111 = por %p109, %p110
      %p112 = scmp.ne.s32.totalorder %s100, %s101
      %p113 = scmp.eq.s32.totalorder %s28, 1
      %p114 = por %p112, %p113
      %p116 = scmp.ne.s32.totalorder %s101, %s115
      %p117 = scmp.eq.s32.totalorder %s28, 0
      %p118 = por %p116, %p117
      %s120 = sadd.s32 %s119, 1
      %p123 = scmp.eq.s32.totalorder %s22, 1
      %p124 = scmp.ne.s32.totalorder %s119, %s121
      %p125 = scmp.eq.s32.totalorder %s22, 0
      %p126 = por %p124, %p125
      %p127 = scmp.ne.s32.totalorder %s119, %s121
      %p128 = scmp.eq.s32.totalorder %s27, 1
      %p129 = por %p127, %p128
      %p130 = scmp.ne.s32.totalorder %s121, %s122
      %p131 = scmp.eq.s32.totalorder %s27, 0
      %p132 = por %p130, %p131
      %p133 = scmp.ne.s32.totalorder %s121, %s122
      %p134 = scmp.eq.s32.totalorder %s28, 1
      %p135 = por %p133, %p134
      %p137 = scmp.ne.s32.totalorder %s122, %s136
      %p138 = scmp.eq.s32.totalorder %s28, 0
      %p139 = por %p137, %p138
      %s141 = sadd.s32 %s140, 1
      %p144 = scmp.eq.s32.totalorder %s22, 1
      %p145 = scmp.ne.s32.totalorder %s140, %s142
      %p146 = scmp.eq.s32.totalorder %s22, 0
      %p147 = por %p145, %p146
      %p148 = scmp.ne.s32.totalorder %s140, %s142
      %p149 = scmp.eq.s32.totalorder %s27, 1
      %p150 = por %p148, %p149
      %p151 = scmp.ne.s32.totalorder %s142, %s143
      %p152 = scmp.eq.s32.totalorder %s27, 0
      %p153 = por %p151, %p152
      %p154 = scmp.ne.s32.totalorder %s142, %s143
      %p155 = scmp.eq.s32.totalorder %s28, 1
      %p156 = por %p154, %p155
      %p158 = scmp.ne.s32.totalorder %s143, %s157
      %p159 = scmp.eq.s32.totalorder %s28, 0
      %p160 = por %p158, %p159
      %s162 = sadd.s32 %s161, 1
      %p165 = scmp.eq.s32.totalorder %s22, 1
      %p166 = scmp.ne.s32.totalorder %s161, %s163
      %p167 = scmp.eq.s32.totalorder %s22, 0
      %p168 = por %p166, %p167
      %p169 = scmp.ne.s32.totalorder %s161, %s163
      %p170 = scmp.eq.s32.totalorder %s27, 1
      %p171 = por %p169, %p170
      %p172 = scmp.ne.s32.totalorder %s163, %s164
      %p173 = scmp.eq.s32.totalorder %s27, 0
      %p174 = por %p172, %p173
      %p175 = scmp.ne.s32.totalorder %s163, %s164
      %p176 = scmp.eq.s32.totalorder %s28, 1
      %p177 = por %p175, %p176
      %p179 = scmp.ne.s32.totalorder %s164, %s178
      %p180 = scmp.eq.s32.totalorder %s28, 0
      %p181 = por %p179, %p180
      %s182 = ssub.s32 %s22, %s29
      %p183 = scmp.eq.s32.totalorder %s182, 0
      %s185 = sadd.s32 %s184, 1
      %s186 = scalar_select %p183, %s184, %s185
      %p189 = pneg %p183
      %p190 = scmp.eq.s32.totalorder %s22, 1
      %p191 = por %p189, %p190
      %p192 = scmp.ne.s32.totalorder %s184, %s187
      %p193 = scmp.eq.s32.totalorder %s22, 0
      %p194 = por %p192, %p193
      %p195 = scmp.ne.s32.totalorder %s184, %s187
      %p196 = scmp.eq.s32.totalorder %s27, 1
      %p197 = por %p195, %p196
      %p198 = scmp.ne.s32.totalorder %s187, %s188
      %p199 = scmp.eq.s32.totalorder %s27, 0
      %p200 = por %p198, %p199
      %p201 = scmp.ne.s32.totalorder %s187, %s188
      %p202 = scmp.eq.s32.totalorder %s28, 1
      %p203 = por %p201, %p202
      %p205 = scmp.ne.s32.totalorder %s188, %s204
      %p206 = scmp.eq.s32.totalorder %s28, 0
      %p207 = por %p205, %p206
      %p208 = scmp.le.s32.totalorder 1, %s22
      %p209 = scmp.lt.s32.totalorder %s22, 3
      %p210 = pnand %p208, %p209
      %p211 = pneg %p210
      // Predicated region
      $region9: #{tpu_custom_call.1} parent=5 // pred_check
        _
      $region10: #{tpu_custom_call.1} parent=5 // pred_check_branch
        %213 = sbr.rel (%p210) target = $region12
      $region11: #{tpu_custom_call.1} parent=5 // pred_region
        %s214 = ssub.s32 %s22, 1
        // Predicated region
        $region13: #{tpu_custom_call.1} parent=11 // pred_check
          %p215 = pneg %p69
        $region14: #{tpu_custom_call.1} parent=11 // pred_check_branch
          %217 = sbr.rel (%p215) target = $region16
        $region15: #{tpu_custom_call.1} parent=11 // pred_region
          %s219 = ssub.s32 98304, 98304
          %220 = vsyncadd [#allocation6], %s219
          %s221 = sshll.u32 [#allocation5], 4
          %s222 = int_to_ptr.vmem [resolvable:$true] %s221
          %227 = dma.hbm_to_vmem [thread:$0]  %s1, 98304, %s222, [#allocation6], 256, 256, 16
        $region16: #{tpu_custom_call.1} parent=11 // pred_fallthru
          _
        // Predicated region
        $region17: #{tpu_custom_call.1} parent=11 // pred_check
          %p228 = pneg %p90
        $region18: #{tpu_custom_call.1} parent=11 // pred_check_branch
          %230 = sbr.rel (%p228) target = $region20
        $region19: #{tpu_custom_call.1} parent=11 // pred_region
          %s232 = ssub.s32 64, 64
          %233 = vsyncadd [#allocation6], %s232
          %s235 = sshll.u32 [#allocation7], 4
          %s236 = int_to_ptr.vmem [resolvable:$true] %s235
          %238 = dma.hbm_to_vmem [thread:$0]  %s2, 64, %s236, [#allocation6]
        $region20: #{tpu_custom_call.1} parent=11 // pred_fallthru
          _
        // Predicated region
        $region21: #{tpu_custom_call.1} parent=11 // pred_check
          %p239 = pneg %p111
        $region22: #{tpu_custom_call.1} parent=11 // pred_check_branch
          %241 = sbr.rel (%p239) target = $region24
        $region23: #{tpu_custom_call.1} parent=11 // pred_region
          %s243 = ssub.s32 8192, 8192
          %244 = vsyncadd [#allocation9], %s243
          %s245 = sshll.u32 [#allocation8], 4
          %s246 = int_to_ptr.vmem [resolvable:$true] %s245
          %251 = dma.hbm_to_vmem [thread:$0]  %s3, 8192, %s246, [#allocation9], 128, 128, 8
        $region24: #{tpu_custom_call.1} parent=11 // pred_fallthru
          _
        // Predicated region
        $region25: #{tpu_custom_call.1} parent=11 // pred_check
          %p252 = pneg %p132
        $region26: #{tpu_custom_call.1} parent=11 // pred_check_branch
          %254 = sbr.rel (%p252) target = $region28
        $region27: #{tpu_custom_call.1} parent=11 // pred_region
          %s256 = ssub.s32 32, 32
          %257 = vsyncadd [#allocation9], %s256
          %s259 = sshll.u32 [#allocation10], 4
          %s260 = int_to_ptr.vmem [resolvable:$true] %s259
          %262 = dma.hbm_to_vmem [thread:$0]  %s4, 32, %s260, [#allocation9]
        $region28: #{tpu_custom_call.1} parent=11 // pred_fallthru
          _
        // Predicated region
        $region29: #{tpu_custom_call.1} parent=11 // pred_check
          %p263 = pneg %p153
        $region30: #{tpu_custom_call.1} parent=11 // pred_check_branch
          %265 = sbr.rel (%p263) target = $region32
        $region31: #{tpu_custom_call.1} parent=11 // pred_region
          %s267 = ssub.s32 2048, 2048
          %268 = vsyncadd [#allocation12], %s267
          %s269 = sshll.u32 [#allocation11], 4
          %s270 = int_to_ptr.vmem [resolvable:$true] %s269
          %275 = dma.hbm_to_vmem [thread:$0]  %s5, 2048, %s270, [#allocation12], 64, 64, 4
        $region32: #{tpu_custom_call.1} parent=11 // pred_fallthru
          _
        // Predicated region
        $region33: #{tpu_custom_call.1} parent=11 // pred_check
          %p276 = pneg %p174
        $region34: #{tpu_custom_call.1} parent=11 // pred_check_branch
          %278 = sbr.rel (%p276) target = $region36
        $region35: #{tpu_custom_call.1} parent=11 // pred_region
          %s280 = ssub.s32 16, 16
          %281 = vsyncadd [#allocation12], %s280
          %s283 = sshll.u32 [#allocation13], 4
          %s284 = int_to_ptr.vmem [resolvable:$true] %s283
          %286 = dma.hbm_to_vmem [thread:$0]  %s6, 16, %s284, [#allocation12]
        $region36: #{tpu_custom_call.1} parent=11 // pred_fallthru
          _
      $region12: #{tpu_custom_call.1} parent=5 // pred_fallthru
        _
      %p287 = scmp.lt.s32.totalorder %s22, 2
      // Predicated region
      $region37: #{tpu_custom_call.1} parent=5 // pred_check
        %p288 = pneg %p287
      $region38: #{tpu_custom_call.1} parent=5 // pred_check_branch
        %290 = sbr.rel (%p288) target = $region40
      $region39: #{tpu_custom_call.1} parent=5 // pred_region
        // Predicated region
        $region41: #{tpu_custom_call.1} parent=39 // pred_check
          %p291 = pneg %p42
        $region42: #{tpu_custom_call.1} parent=39 // pred_check_branch
          %293 = sbr.rel (%p291) target = $region44
        $region43: #{tpu_custom_call.1} parent=39 // pred_region
          %s294 = sand.u32 %s32, 1
          %s295 = scalar_lea.sflag [#allocation3], %s294
          %s296 = sand.u32 %s32, 1
          %s297 = smul.addr %s296, 192
          %s298 = scalar_lea.vmem [#allocation2], %s297
          %s300 = ssub.s32 3072, 3072
          %301 = vsyncadd %s295, %s300
          %s302 = smul.addr %s22, 24
          %s303 = smul.addr %s302, 128
          %s304 = scalar_lea.hbm %s0, %s303
          %s306 = sshll.u32 %s298, 4
          %s307 = int_to_ptr.vmem [resolvable:$true] %s306
          %309 = dma.hbm_to_vmem [thread:$0]  %s304, 3072, %s307, %s295
        $region44: #{tpu_custom_call.1} parent=39 // pred_fallthru
          _
      $region40: #{tpu_custom_call.1} parent=5 // pred_fallthru
        _
      %p310 = scmp.le.s32.totalorder 1, %s22
      %p311 = scmp.lt.s32.totalorder %s22, 3
      %p312 = pnand %p310, %p311
      %p313 = pneg %p312
      // Predicated region
      $region45: #{tpu_custom_call.1} parent=5 // pred_check
        _
      $region46: #{tpu_custom_call.1} parent=5 // pred_check_branch
        %315 = sbr.rel (%p312) target = $region48
      $region47: #{tpu_custom_call.1} parent=5 // pred_region
        %s316 = ssub.s32 %s22, 1
        %s317 = sand.u32 %s35, 1
        %s318 = scalar_lea.sflag [#allocation3], %s317
        %s319 = sand.u32 %s35, 1
        %s320 = smul.addr %s319, 192
        %s321 = scalar_lea.vmem [#allocation2], %s320
        // Predicated region
        $region49: #{tpu_custom_call.1} parent=47 // pred_check
          %p322 = pneg %p48
        $region50: #{tpu_custom_call.1} parent=47 // pred_check_branch
          %324 = sbr.rel (%p322) target = $region52
        $region51: #{tpu_custom_call.1} parent=47 // pred_region
          %325 = dma.done %s318, 3072
        $region52: #{tpu_custom_call.1} parent=47 // pred_fallthru
          _
        // Predicated region
        $region53: #{tpu_custom_call.1} parent=47 // pred_check
          %p326 = pneg %p69
        $region54: #{tpu_custom_call.1} parent=47 // pred_check_branch
          %328 = sbr.rel (%p326) target = $region56
        $region55: #{tpu_custom_call.1} parent=47 // pred_region
          %329 = dma.done [#allocation6], 98304
        $region56: #{tpu_custom_call.1} parent=47 // pred_fallthru
          _
        // Predicated region
        $region57: #{tpu_custom_call.1} parent=47 // pred_check
          %p330 = pneg %p90
        $region58: #{tpu_custom_call.1} parent=47 // pred_check_branch
          %332 = sbr.rel (%p330) target = $region60
        $region59: #{tpu_custom_call.1} parent=47 // pred_region
          %333 = dma.done [#allocation6], 64
        $region60: #{tpu_custom_call.1} parent=47 // pred_fallthru
          _
        // Predicated region
        $region61: #{tpu_custom_call.1} parent=47 // pred_check
          %p334 = pneg %p111
        $region62: #{tpu_custom_call.1} parent=47 // pred_check_branch
          %336 = sbr.rel (%p334) target = $region64
        $region63: #{tpu_custom_call.1} parent=47 // pred_region
          %337 = dma.done [#allocation9], 8192
        $region64: #{tpu_custom_call.1} parent=47 // pred_fallthru
          _
        // Predicated region
        $region65: #{tpu_custom_call.1} parent=47 // pred_check
          %p338 = pneg %p132
        $region66: #{tpu_custom_call.1} parent=47 // pred_check_branch
          %340 = sbr.rel (%p338) target = $region68
        $region67: #{tpu_custom_call.1} parent=47 // pred_region
          %341 = dma.done [#allocation9], 32
        $region68: #{tpu_custom_call.1} parent=47 // pred_fallthru
          _
        // Predicated region
        $region69: #{tpu_custom_call.1} parent=47 // pred_check
          %p342 = pneg %p153
        $region70: #{tpu_custom_call.1} parent=47 // pred_check_branch
          %344 = sbr.rel (%p342) target = $region72
        $region71: #{tpu_custom_call.1} parent=47 // pred_region
          %345 = dma.done [#allocation12], 2048
        $region72: #{tpu_custom_call.1} parent=47 // pred_fallthru
          _
        // Predicated region
        $region73: #{tpu_custom_call.1} parent=47 // pred_check
          %p346 = pneg %p174
        $region74: #{tpu_custom_call.1} parent=47 // pred_check_branch
          %348 = sbr.rel (%p346) target = $region76
        $region75: #{tpu_custom_call.1} parent=47 // pred_region
          %349 = dma.done [#allocation12], 16
        $region76: #{tpu_custom_call.1} parent=47 // pred_fallthru
          _
        %s350 = sand.u32 %s35, 1
        %s351 = scalar_lea.sflag [#allocation3], %s350
        %s352 = sand.u32 %s35, 1
        %s353 = smul.addr %s352, 192
        %s354 = scalar_lea.vmem [#allocation2], %s353
        %p355 = pneg %p48
        %p356 = pneg %p45
        %p357 = pneg %p69
        %p358 = pneg %p66
        %p359 = pneg %p90
        %p360 = pneg %p87
        %p361 = pneg %p111
        %p362 = pneg %p108
        %p363 = pneg %p132
        %p364 = pneg %p129
        %p365 = pneg %p153
        %p366 = pneg %p150
        %p367 = pneg %p174
        %p368 = pneg %p171
        %p369 = pneg %p200
        %p370 = pneg %p197
        %s371 = sand.u32 %s187, 1
        %s372 = scalar_lea.sflag [#allocation4], %s371
        %s373 = sand.u32 %s187, 1
        %s374 = smul.addr %s373, 4
        %s375 = scalar_lea.vmem [#allocation14], %s374
        %v377 = vld [vmem:[%s321] sm:$0xff]
        %v378 = vld [vmem:[%s321 + $0x8] sm:$0xff]
        %v379 = vld [vmem:[%s321 + $0x10] sm:$0xff]
        %v380 = vld [vmem:[%s321 + $0x18] sm:$0xff]
        %v381 = vld [vmem:[%s321 + $0x20] sm:$0xff]
        %v382 = vld [vmem:[%s321 + $0x28] sm:$0xff]
        %v383 = vld [vmem:[%s321 + $0x30] sm:$0xff]
        %v384 = vld [vmem:[%s321 + $0x38] sm:$0xff]
        %v385 = vld [vmem:[%s321 + $0x40] sm:$0xff]
        %v386 = vld [vmem:[%s321 + $0x48] sm:$0xff]
        %v387 = vld [vmem:[%s321 + $0x50] sm:$0xff]
        %v388 = vld [vmem:[%s321 + $0x58] sm:$0xff]
        %v389 = vld [vmem:[%s321 + $0x60] sm:$0xff]
        %v390 = vld [vmem:[%s321 + $0x68] sm:$0xff]
        %v391 = vld [vmem:[%s321 + $0x70] sm:$0xff]
        %v392 = vld [vmem:[%s321 + $0x78] sm:$0xff]
        %v393 = vld [vmem:[%s321 + $0x80] sm:$0xff]
        %v394 = vld [vmem:[%s321 + $0x88] sm:$0xff]
        %v395 = vld [vmem:[%s321 + $0x90] sm:$0xff]
        %v396 = vld [vmem:[%s321 + $0x98] sm:$0xff]
        %v397 = vld [vmem:[%s321 + $0xa0] sm:$0xff]
        %v398 = vld [vmem:[%s321 + $0xa8] sm:$0xff]
        %v399 = vld [vmem:[%s321 + $0xb0] sm:$0xff]
        %v400 = vld [vmem:[%s321 + $0xb8] sm:$0xff]
        %v401 = vpack.c.bf16 %v377, %v377
        %v402 = vpack.c.bf16 %v378, %v378
        %v403 = vpack.c.bf16 %v379, %v379
        %v404 = vpack.c.bf16 %v380, %v380
        %v405 = vpack.c.bf16 %v381, %v381
        %v406 = vpack.c.bf16 %v382, %v382
        %v407 = vpack.c.bf16 %v383, %v383
        %v408 = vpack.c.bf16 %v384, %v384
        %v409 = vpack.c.bf16 %v385, %v385
        %v410 = vpack.c.bf16 %v386, %v386
        %v411 = vpack.c.bf16 %v387, %v387
        %v412 = vpack.c.bf16 %v388, %v388
        %v413 = vpack.c.bf16 %v389, %v389
        %v414 = vpack.c.bf16 %v390, %v390
        %v415 = vpack.c.bf16 %v391, %v391
        %v416 = vpack.c.bf16 %v392, %v392
        %v417 = vpack.c.bf16 %v393, %v393
        %v418 = vpack.c.bf16 %v394, %v394
        %v419 = vpack.c.bf16 %v395, %v395
        %v420 = vpack.c.bf16 %v396, %v396
        %v421 = vpack.c.bf16 %v397, %v397
        %v422 = vpack.c.bf16 %v398, %v398
        %v423 = vpack.c.bf16 %v399, %v399
        %v424 = vpack.c.bf16 %v400, %v400
        %v425 = vld [vmem:[#allocation5] sm:$0xff]
        %v426 = vld [vmem:[#allocation5 + $0x8] sm:$0xff]
        %v427 = vld [vmem:[#allocation5 + $0x10] sm:$0xff]
        %v428 = vld [vmem:[#allocation5 + $0x18] sm:$0xff]
        %v429 = vld [vmem:[#allocation5 + $0x20] sm:$0xff]
        %v430 = vld [vmem:[#allocation5 + $0x28] sm:$0xff]
        %v431 = vld [vmem:[#allocation5 + $0x30] sm:$0xff]
        %v432 = vld [vmem:[#allocation5 + $0x38] sm:$0xff]
        %v433 = vld [vmem:[#allocation5 + $0x40] sm:$0xff]
        %v434 = vld [vmem:[#allocation5 + $0x48] sm:$0xff]
        %v435 = vld [vmem:[#allocation5 + $0x50] sm:$0xff]
        %v436 = vld [vmem:[#allocation5 + $0x58] sm:$0xff]
        %v437 = vld [vmem:[#allocation5 + $0x60] sm:$0xff]
        %v438 = vld [vmem:[#allocation5 + $0x68] sm:$0xff]
        %v439 = vld [vmem:[#allocation5 + $0x70] sm:$0xff]
        %v440 = vld [vmem:[#allocation5 + $0x78] sm:$0xff]
        %v441 = vld [vmem:[#allocation5 + $0x80] sm:$0xff]
        %v442 = vld [vmem:[#allocation5 + $0x88] sm:$0xff]
        %v443 = vld [vmem:[#allocation5 + $0x90] sm:$0xff]
        %v444 = vld [vmem:[#allocation5 + $0x98] sm:$0xff]
        %v445 = vld [vmem:[#allocation5 + $0xa0] sm:$0xff]
        %v446 = vld [vmem:[#allocation5 + $0xa8] sm:$0xff]
        %v447 = vld [vmem:[#allocation5 + $0xb0] sm:$0xff]
        %v448 = vld [vmem:[#allocation5 + $0xb8] sm:$0xff]
        %v449 = vld [vmem:[#allocation5 + $0xc0] sm:$0xff]
        %v450 = vld [vmem:[#allocation5 + $0xc8] sm:$0xff]
        %v451 = vld [vmem:[#allocation5 + $0xd0] sm:$0xff]
        %v452 = vld [vmem:[#allocation5 + $0xd8] sm:$0xff]
        %v453 = vld [vmem:[#allocation5 + $0xe0] sm:$0xff]
        %v454 = vld [vmem:[#allocation5 + $0xe8] sm:$0xff]
        %v455 = vld [vmem:[#allocation5 + $0xf0] sm:$0xff]
        %v456 = vld [vmem:[#allocation5 + $0xf8] sm:$0xff]
        %v457 = vld [vmem:[#allocation5 + $0x100] sm:$0xff]
        %v458 = vld [vmem:[#allocation5 + $0x108] sm:$0xff]
        %v459 = vld [vmem:[#allocation5 + $0x110] sm:$0xff]
        %v460 = vld [vmem:[#allocation5 + $0x118] sm:$0xff]
        %v461 = vld [vmem:[#allocation5 + $0x120] sm:$0xff]
        %v462 = vld [vmem:[#allocation5 + $0x128] sm:$0xff]
        %v463 = vld [vmem:[#allocation5 + $0x130] sm:$0xff]
        %v464 = vld [vmem:[#allocation5 + $0x138] sm:$0xff]
        %v465 = vld [vmem:[#allocation5 + $0x140] sm:$0xff]
        %v466 = vld [vmem:[#allocation5 + $0x148] sm:$0xff]
        %v467 = vld [vmem:[#allocation5 + $0x150] sm:$0xff]
        %v468 = vld [vmem:[#allocation5 + $0x158] sm:$0xff]
        %v469 = vld [vmem:[#allocation5 + $0x160] sm:$0xff]
        %v470 = vld [vmem:[#allocation5 + $0x168] sm:$0xff]
        %v471 = vld [vmem:[#allocation5 + $0x170] sm:$0xff]
        %v472 = vld [vmem:[#allocation5 + $0x178] sm:$0xff]
        %v473 = vld [vmem:[#allocation5 + $0x180] sm:$0xff]
        %v474 = vld [vmem:[#allocation5 + $0x188] sm:$0xff]
        %v475 = vld [vmem:[#allocation5 + $0x190] sm:$0xff]
        %v476 = vld [vmem:[#allocation5 + $0x198] sm:$0xff]
        %v477 = vld [vmem:[#allocation5 + $0x1a0] sm:$0xff]
        %v478 = vld [vmem:[#allocation5 + $0x1a8] sm:$0xff]
        %v479 = vld [vmem:[#allocation5 + $0x1b0] sm:$0xff]
        %v480 = vld [vmem:[#allocation5 + $0x1b8] sm:$0xff]
        %v481 = vld [vmem:[#allocation5 + $0x1c0] sm:$0xff]
        %v482 = vld [vmem:[#allocation5 + $0x1c8] sm:$0xff]
        %v483 = vld [vmem:[#allocation5 + $0x1d0] sm:$0xff]
        %v484 = vld [vmem:[#allocation5 + $0x1d8] sm:$0xff]
        %v485 = vld [vmem:[#allocation5 + $0x1e0] sm:$0xff]
        %v486 = vld [vmem:[#allocation5 + $0x1e8] sm:$0xff]
        %v487 = vld [vmem:[#allocation5 + $0x1f0] sm:$0xff]
        %v488 = vld [vmem:[#allocation5 + $0x1f8] sm:$0xff]
        %v489 = vld [vmem:[#allocation5 + $0x200] sm:$0xff]
        %v490 = vld [vmem:[#allocation5 + $0x208] sm:$0xff]
        %v491 = vld [vmem:[#allocation5 + $0x210] sm:$0xff]
        %v492 = vld [vmem:[#allocation5 + $0x218] sm:$0xff]
        %v493 = vld [vmem:[#allocation5 + $0x220] sm:$0xff]
        %v494 = vld [vmem:[#allocation5 + $0x228] sm:$0xff]
        %v495 = vld [vmem:[#allocation5 + $0x230] sm:$0xff]
        %v496 = vld [vmem:[#allocation5 + $0x238] sm:$0xff]
        %v497 = vld [vmem:[#allocation5 + $0x240] sm:$0xff]
        %v498 = vld [vmem:[#allocation5 + $0x248] sm:$0xff]
        %v499 = vld [vmem:[#allocation5 + $0x250] sm:$0xff]
        %v500 = vld [vmem:[#allocation5 + $0x258] sm:$0xff]
        %v501 = vld [vmem:[#allocation5 + $0x260] sm:$0xff]
        %v502 = vld [vmem:[#allocation5 + $0x268] sm:$0xff]
        %v503 = vld [vmem:[#allocation5 + $0x270] sm:$0xff]
        %v504 = vld [vmem:[#allocation5 + $0x278] sm:$0xff]
        %v505 = vld [vmem:[#allocation5 + $0x280] sm:$0xff]
        %v506 = vld [vmem:[#allocation5 + $0x288] sm:$0xff]
        %v507 = vld [vmem:[#allocation5 + $0x290] sm:$0xff]
        %v508 = vld [vmem:[#allocation5 + $0x298] sm:$0xff]
        %v509 = vld [vmem:[#allocation5 + $0x2a0] sm:$0xff]
        %v510 = vld [vmem:[#allocation5 + $0x2a8] sm:$0xff]
        %v511 = vld [vmem:[#allocation5 + $0x2b0] sm:$0xff]
        %v512 = vld [vmem:[#allocation5 + $0x2b8] sm:$0xff]
        %v513 = vld [vmem:[#allocation5 + $0x2c0] sm:$0xff]
        %v514 = vld [vmem:[#allocation5 + $0x2c8] sm:$0xff]
        %v515 = vld [vmem:[#allocation5 + $0x2d0] sm:$0xff]
        %v516 = vld [vmem:[#allocation5 + $0x2d8] sm:$0xff]
        %v517 = vld [vmem:[#allocation5 + $0x2e0] sm:$0xff]
        %v518 = vld [vmem:[#allocation5 + $0x2e8] sm:$0xff]
        %v519 = vld [vmem:[#allocation5 + $0x2f0] sm:$0xff]
        %v520 = vld [vmem:[#allocation5 + $0x2f8] sm:$0xff]
        %v521 = vld [vmem:[#allocation5 + $0x300] sm:$0xff]
        %v522 = vld [vmem:[#allocation5 + $0x308] sm:$0xff]
        %v523 = vld [vmem:[#allocation5 + $0x310] sm:$0xff]
        %v524 = vld [vmem:[#allocation5 + $0x318] sm:$0xff]
        %v525 = vld [vmem:[#allocation5 + $0x320] sm:$0xff]
        %v526 = vld [vmem:[#allocation5 + $0x328] sm:$0xff]
        %v527 = vld [vmem:[#allocation5 + $0x330] sm:$0xff]
        %v528 = vld [vmem:[#allocation5 + $0x338] sm:$0xff]
        %v529 = vld [vmem:[#allocation5 + $0x340] sm:$0xff]
        %v530 = vld [vmem:[#allocation5 + $0x348] sm:$0xff]
        %v531 = vld [vmem:[#allocation5 + $0x350] sm:$0xff]
        %v532 = vld [vmem:[#allocation5 + $0x358] sm:$0xff]
        %v533 = vld [vmem:[#allocation5 + $0x360] sm:$0xff]
        %v534 = vld [vmem:[#allocation5 + $0x368] sm:$0xff]
        %v535 = vld [vmem:[#allocation5 + $0x370] sm:$0xff]
        %v536 = vld [vmem:[#allocation5 + $0x378] sm:$0xff]
        %v537 = vld [vmem:[#allocation5 + $0x380] sm:$0xff]
        %v538 = vld [vmem:[#allocation5 + $0x388] sm:$0xff]
        %v539 = vld [vmem:[#allocation5 + $0x390] sm:$0xff]
        %v540 = vld [vmem:[#allocation5 + $0x398] sm:$0xff]
        %v541 = vld [vmem:[#allocation5 + $0x3a0] sm:$0xff]
        %v542 = vld [vmem:[#allocation5 + $0x3a8] sm:$0xff]
        %v543 = vld [vmem:[#allocation5 + $0x3b0] sm:$0xff]
        %v544 = vld [vmem:[#allocation5 + $0x3b8] sm:$0xff]
        %v545 = vld [vmem:[#allocation5 + $0x3c0] sm:$0xff]
        %v546 = vld [vmem:[#allocation5 + $0x3c8] sm:$0xff]
        %v547 = vld [vmem:[#allocation5 + $0x3d0] sm:$0xff]
        %v548 = vld [vmem:[#allocation5 + $0x3d8] sm:$0xff]
        %v549 = vld [vmem:[#allocation5 + $0x3e0] sm:$0xff]
        %v550 = vld [vmem:[#allocation5 + $0x3e8] sm:$0xff]
        %v551 = vld [vmem:[#allocation5 + $0x3f0] sm:$0xff]
        %v552 = vld [vmem:[#allocation5 + $0x3f8] sm:$0xff]
        %v553 = vld [vmem:[#allocation5 + $0x400] sm:$0xff]
        %v554 = vld [vmem:[#allocation5 + $0x408] sm:$0xff]
        %v555 = vld [vmem:[#allocation5 + $0x410] sm:$0xff]
        %v556 = vld [vmem:[#allocation5 + $0x418] sm:$0xff]
        %v557 = vld [vmem:[#allocation5 + $0x420] sm:$0xff]
        %v558 = vld [vmem:[#allocation5 + $0x428] sm:$0xff]
        %v559 = vld [vmem:[#allocation5 + $0x430] sm:$0xff]
        %v560 = vld [vmem:[#allocation5 + $0x438] sm:$0xff]
        %v561 = vld [vmem:[#allocation5 + $0x440] sm:$0xff]
        %v562 = vld [vmem:[#allocation5 + $0x448] sm:$0xff]
        %v563 = vld [vmem:[#allocation5 + $0x450] sm:$0xff]
        %v564 = vld [vmem:[#allocation5 + $0x458] sm:$0xff]
        %v565 = vld [vmem:[#allocation5 + $0x460] sm:$0xff]
        %v566 = vld [vmem:[#allocation5 + $0x468] sm:$0xff]
        %v567 = vld [vmem:[#allocation5 + $0x470] sm:$0xff]
        %v568 = vld [vmem:[#allocation5 + $0x478] sm:$0xff]
        %v569 = vld [vmem:[#allocation5 + $0x480] sm:$0xff]
        %v570 = vld [vmem:[#allocation5 + $0x488] sm:$0xff]
        %v571 = vld [vmem:[#allocation5 + $0x490] sm:$0xff]
        %v572 = vld [vmem:[#allocation5 + $0x498] sm:$0xff]
        %v573 = vld [vmem:[#allocation5 + $0x4a0] sm:$0xff]
        %v574 = vld [vmem:[#allocation5 + $0x4a8] sm:$0xff]
        %v575 = vld [vmem:[#allocation5 + $0x4b0] sm:$0xff]
        %v576 = vld [vmem:[#allocation5 + $0x4b8] sm:$0xff]
        %v577 = vld [vmem:[#allocation5 + $0x4c0] sm:$0xff]
        %v578 = vld [vmem:[#allocation5 + $0x4c8] sm:$0xff]
        %v579 = vld [vmem:[#allocation5 + $0x4d0] sm:$0xff]
        %v580 = vld [vmem:[#allocation5 + $0x4d8] sm:$0xff]
        %v581 = vld [vmem:[#allocation5 + $0x4e0] sm:$0xff]
        %v582 = vld [vmem:[#allocation5 + $0x4e8] sm:$0xff]
        %v583 = vld [vmem:[#allocation5 + $0x4f0] sm:$0xff]
        %v584 = vld [vmem:[#allocation5 + $0x4f8] sm:$0xff]
        %v585 = vld [vmem:[#allocation5 + $0x500] sm:$0xff]
        %v586 = vld [vmem:[#allocation5 + $0x508] sm:$0xff]
        %v587 = vld [vmem:[#allocation5 + $0x510] sm:$0xff]
        %v588 = vld [vmem:[#allocation5 + $0x518] sm:$0xff]
        %v589 = vld [vmem:[#allocation5 + $0x520] sm:$0xff]
        %v590 = vld [vmem:[#allocation5 + $0x528] sm:$0xff]
        %v591 = vld [vmem:[#allocation5 + $0x530] sm:$0xff]
        %v592 = vld [vmem:[#allocation5 + $0x538] sm:$0xff]
        %v593 = vld [vmem:[#allocation5 + $0x540] sm:$0xff]
        %v594 = vld [vmem:[#allocation5 + $0x548] sm:$0xff]
        %v595 = vld [vmem:[#allocation5 + $0x550] sm:$0xff]
        %v596 = vld [vmem:[#allocation5 + $0x558] sm:$0xff]
        %v597 = vld [vmem:[#allocation5 + $0x560] sm:$0xff]
        %v598 = vld [vmem:[#allocation5 + $0x568] sm:$0xff]
        %v599 = vld [vmem:[#allocation5 + $0x570] sm:$0xff]
        %v600 = vld [vmem:[#allocation5 + $0x578] sm:$0xff]
        %v601 = vld [vmem:[#allocation5 + $0x580] sm:$0xff]
        %v602 = vld [vmem:[#allocation5 + $0x588] sm:$0xff]
        %v603 = vld [vmem:[#allocation5 + $0x590] sm:$0xff]
        %v604 = vld [vmem:[#allocation5 + $0x598] sm:$0xff]
        %v605 = vld [vmem:[#allocation5 + $0x5a0] sm:$0xff]
        %v606 = vld [vmem:[#allocation5 + $0x5a8] sm:$0xff]
        %v607 = vld [vmem:[#allocation5 + $0x5b0] sm:$0xff]
        %v608 = vld [vmem:[#allocation5 + $0x5b8] sm:$0xff]
        %v609 = vld [vmem:[#allocation5 + $0x5c0] sm:$0xff]
        %v610 = vld [vmem:[#allocation5 + $0x5c8] sm:$0xff]
        %v611 = vld [vmem:[#allocation5 + $0x5d0] sm:$0xff]
        %v612 = vld [vmem:[#allocation5 + $0x5d8] sm:$0xff]
        %v613 = vld [vmem:[#allocation5 + $0x5e0] sm:$0xff]
        %v614 = vld [vmem:[#allocation5 + $0x5e8] sm:$0xff]
        %v615 = vld [vmem:[#allocation5 + $0x5f0] sm:$0xff]
        %v616 = vld [vmem:[#allocation5 + $0x5f8] sm:$0xff]
        %v617 = vld [vmem:[#allocation5 + $0x600] sm:$0xff]
        %v618 = vld [vmem:[#allocation5 + $0x608] sm:$0xff]
        %v619 = vld [vmem:[#allocation5 + $0x610] sm:$0xff]
        %v620 = vld [vmem:[#allocation5 + $0x618] sm:$0xff]
        %v621 = vld [vmem:[#allocation5 + $0x620] sm:$0xff]
        %v622 = vld [vmem:[#allocation5 + $0x628] sm:$0xff]
        %v623 = vld [vmem:[#allocation5 + $0x630] sm:$0xff]
        %v624 = vld [vmem:[#allocation5 + $0x638] sm:$0xff]
        %v625 = vld [vmem:[#allocation5 + $0x640] sm:$0xff]
        %v626 = vld [vmem:[#allocation5 + $0x648] sm:$0xff]
        %v627 = vld [vmem:[#allocation5 + $0x650] sm:$0xff]
        %v628 = vld [vmem:[#allocation5 + $0x658] sm:$0xff]
        %v629 = vld [vmem:[#allocation5 + $0x660] sm:$0xff]
        %v630 = vld [vmem:[#allocation5 + $0x668] sm:$0xff]
        %v631 = vld [vmem:[#allocation5 + $0x670] sm:$0xff]
        %v632 = vld [vmem:[#allocation5 + $0x678] sm:$0xff]
        %v633 = vld [vmem:[#allocation5 + $0x680] sm:$0xff]
        %v634 = vld [vmem:[#allocation5 + $0x688] sm:$0xff]
        %v635 = vld [vmem:[#allocation5 + $0x690] sm:$0xff]
        %v636 = vld [vmem:[#allocation5 + $0x698] sm:$0xff]
        %v637 = vld [vmem:[#allocation5 + $0x6a0] sm:$0xff]
        %v638 = vld [vmem:[#allocation5 + $0x6a8] sm:$0xff]
        %v639 = vld [vmem:[#allocation5 + $0x6b0] sm:$0xff]
        %v640 = vld [vmem:[#allocation5 + $0x6b8] sm:$0xff]
        %v641 = vld [vmem:[#allocation5 + $0x6c0] sm:$0xff]
        %v642 = vld [vmem:[#allocation5 + $0x6c8] sm:$0xff]
        %v643 = vld [vmem:[#allocation5 + $0x6d0] sm:$0xff]
        %v644 = vld [vmem:[#allocation5 + $0x6d8] sm:$0xff]
        %v645 = vld [vmem:[#allocation5 + $0x6e0] sm:$0xff]
        %v646 = vld [vmem:[#allocation5 + $0x6e8] sm:$0xff]
        %v647 = vld [vmem:[#allocation5 + $0x6f0] sm:$0xff]
        %v648 = vld [vmem:[#allocation5 + $0x6f8] sm:$0xff]
        %v649 = vld [vmem:[#allocation5 + $0x700] sm:$0xff]
        %v650 = vld [vmem:[#allocation5 + $0x708] sm:$0xff]
        %v651 = vld [vmem:[#allocation5 + $0x710] sm:$0xff]
        %v652 = vld [vmem:[#allocation5 + $0x718] sm:$0xff]
        %v653 = vld [vmem:[#allocation5 + $0x720] sm:$0xff]
        %v654 = vld [vmem:[#allocation5 + $0x728] sm:$0xff]
        %v655 = vld [vmem:[#allocation5 + $0x730] sm:$0xff]
        %v656 = vld [vmem:[#allocation5 + $0x738] sm:$0xff]
        %v657 = vld [vmem:[#allocation5 + $0x740] sm:$0xff]
        %v658 = vld [vmem:[#allocation5 + $0x748] sm:$0xff]
        %v659 = vld [vmem:[#allocation5 + $0x750] sm:$0xff]
        %v660 = vld [vmem:[#allocation5 + $0x758] sm:$0xff]
        %v661 = vld [vmem:[#allocation5 + $0x760] sm:$0xff]
        %v662 = vld [vmem:[#allocation5 + $0x768] sm:$0xff]
        %v663 = vld [vmem:[#allocation5 + $0x770] sm:$0xff]
        %v664 = vld [vmem:[#allocation5 + $0x778] sm:$0xff]
        %v665 = vld [vmem:[#allocation5 + $0x780] sm:$0xff]
        %v666 = vld [vmem:[#allocation5 + $0x788] sm:$0xff]
        %v667 = vld [vmem:[#allocation5 + $0x790] sm:$0xff]
        %v668 = vld [vmem:[#allocation5 + $0x798] sm:$0xff]
        %v669 = vld [vmem:[#allocation5 + $0x7a0] sm:$0xff]
        %v670 = vld [vmem:[#allocation5 + $0x7a8] sm:$0xff]
        %v671 = vld [vmem:[#allocation5 + $0x7b0] sm:$0xff]
        %v672 = vld [vmem:[#allocation5 + $0x7b8] sm:$0xff]
        %v673 = vld [vmem:[#allocation5 + $0x7c0] sm:$0xff]
        %v674 = vld [vmem:[#allocation5 + $0x7c8] sm:$0xff]
        %v675 = vld [vmem:[#allocation5 + $0x7d0] sm:$0xff]
        %v676 = vld [vmem:[#allocation5 + $0x7d8] sm:$0xff]
        %v677 = vld [vmem:[#allocation5 + $0x7e0] sm:$0xff]
        %v678 = vld [vmem:[#allocation5 + $0x7e8] sm:$0xff]
        %v679 = vld [vmem:[#allocation5 + $0x7f0] sm:$0xff]
        %v680 = vld [vmem:[#allocation5 + $0x7f8] sm:$0xff]
        %v681 = vld [vmem:[#allocation5 + $0x800] sm:$0xff]
        %v682 = vld [vmem:[#allocation5 + $0x808] sm:$0xff]
        %v683 = vld [vmem:[#allocation5 + $0x810] sm:$0xff]
        %v684 = vld [vmem:[#allocation5 + $0x818] sm:$0xff]
        %v685 = vld [vmem:[#allocation5 + $0x820] sm:$0xff]
        %v686 = vld [vmem:[#allocation5 + $0x828] sm:$0xff]
        %v687 = vld [vmem:[#allocation5 + $0x830] sm:$0xff]
        %v688 = vld [vmem:[#allocation5 + $0x838] sm:$0xff]
        %v689 = vld [vmem:[#allocation5 + $0x840] sm:$0xff]
        %v690 = vld [vmem:[#allocation5 + $0x848] sm:$0xff]
        %v691 = vld [vmem:[#allocation5 + $0x850] sm:$0xff]
        %v692 = vld [vmem:[#allocation5 + $0x858] sm:$0xff]
        %v693 = vld [vmem:[#allocation5 + $0x860] sm:$0xff]
        %v694 = vld [vmem:[#allocation5 + $0x868] sm:$0xff]
        %v695 = vld [vmem:[#allocation5 + $0x870] sm:$0xff]
        %v696 = vld [vmem:[#allocation5 + $0x878] sm:$0xff]
        %v697 = vld [vmem:[#allocation5 + $0x880] sm:$0xff]
        %v698 = vld [vmem:[#allocation5 + $0x888] sm:$0xff]
        %v699 = vld [vmem:[#allocation5 + $0x890] sm:$0xff]
        %v700 = vld [vmem:[#allocation5 + $0x898] sm:$0xff]
        %v701 = vld [vmem:[#allocation5 + $0x8a0] sm:$0xff]
        %v702 = vld [vmem:[#allocation5 + $0x8a8] sm:$0xff]
        %v703 = vld [vmem:[#allocation5 + $0x8b0] sm:$0xff]
        %v704 = vld [vmem:[#allocation5 + $0x8b8] sm:$0xff]
        %v705 = vld [vmem:[#allocation5 + $0x8c0] sm:$0xff]
        %v706 = vld [vmem:[#allocation5 + $0x8c8] sm:$0xff]
        %v707 = vld [vmem:[#allocation5 + $0x8d0] sm:$0xff]
        %v708 = vld [vmem:[#allocation5 + $0x8d8] sm:$0xff]
        %v709 = vld [vmem:[#allocation5 + $0x8e0] sm:$0xff]
        %v710 = vld [vmem:[#allocation5 + $0x8e8] sm:$0xff]
        %v711 = vld [vmem:[#allocation5 + $0x8f0] sm:$0xff]
        %v712 = vld [vmem:[#allocation5 + $0x8f8] sm:$0xff]
        %v713 = vld [vmem:[#allocation5 + $0x900] sm:$0xff]
        %v714 = vld [vmem:[#allocation5 + $0x908] sm:$0xff]
        %v715 = vld [vmem:[#allocation5 + $0x910] sm:$0xff]
        %v716 = vld [vmem:[#allocation5 + $0x918] sm:$0xff]
        %v717 = vld [vmem:[#allocation5 + $0x920] sm:$0xff]
        %v718 = vld [vmem:[#allocation5 + $0x928] sm:$0xff]
        %v719 = vld [vmem:[#allocation5 + $0x930] sm:$0xff]
        %v720 = vld [vmem:[#allocation5 + $0x938] sm:$0xff]
        %v721 = vld [vmem:[#allocation5 + $0x940] sm:$0xff]
        %v722 = vld [vmem:[#allocation5 + $0x948] sm:$0xff]
        %v723 = vld [vmem:[#allocation5 + $0x950] sm:$0xff]
        %v724 = vld [vmem:[#allocation5 + $0x958] sm:$0xff]
        %v725 = vld [vmem:[#allocation5 + $0x960] sm:$0xff]
        %v726 = vld [vmem:[#allocation5 + $0x968] sm:$0xff]
        %v727 = vld [vmem:[#allocation5 + $0x970] sm:$0xff]
        %v728 = vld [vmem:[#allocation5 + $0x978] sm:$0xff]
        %v729 = vld [vmem:[#allocation5 + $0x980] sm:$0xff]
        %v730 = vld [vmem:[#allocation5 + $0x988] sm:$0xff]
        %v731 = vld [vmem:[#allocation5 + $0x990] sm:$0xff]
        %v732 = vld [vmem:[#allocation5 + $0x998] sm:$0xff]
        %v733 = vld [vmem:[#allocation5 + $0x9a0] sm:$0xff]
        %v734 = vld [vmem:[#allocation5 + $0x9a8] sm:$0xff]
        %v735 = vld [vmem:[#allocation5 + $0x9b0] sm:$0xff]
        %v736 = vld [vmem:[#allocation5 + $0x9b8] sm:$0xff]
        %v737 = vld [vmem:[#allocation5 + $0x9c0] sm:$0xff]
        %v738 = vld [vmem:[#allocation5 + $0x9c8] sm:$0xff]
        %v739 = vld [vmem:[#allocation5 + $0x9d0] sm:$0xff]
        %v740 = vld [vmem:[#allocation5 + $0x9d8] sm:$0xff]
        %v741 = vld [vmem:[#allocation5 + $0x9e0] sm:$0xff]
        %v742 = vld [vmem:[#allocation5 + $0x9e8] sm:$0xff]
        %v743 = vld [vmem:[#allocation5 + $0x9f0] sm:$0xff]
        %v744 = vld [vmem:[#allocation5 + $0x9f8] sm:$0xff]
        %v745 = vld [vmem:[#allocation5 + $0xa00] sm:$0xff]
        %v746 = vld [vmem:[#allocation5 + $0xa08] sm:$0xff]
        %v747 = vld [vmem:[#allocation5 + $0xa10] sm:$0xff]
        %v748 = vld [vmem:[#allocation5 + $0xa18] sm:$0xff]
        %v749 = vld [vmem:[#allocation5 + $0xa20] sm:$0xff]
        %v750 = vld [vmem:[#allocation5 + $0xa28] sm:$0xff]
        %v751 = vld [vmem:[#allocation5 + $0xa30] sm:$0xff]
        %v752 = vld [vmem:[#allocation5 + $0xa38] sm:$0xff]
        %v753 = vld [vmem:[#allocation5 + $0xa40] sm:$0xff]
        %v754 = vld [vmem:[#allocation5 + $0xa48] sm:$0xff]
        %v755 = vld [vmem:[#allocation5 + $0xa50] sm:$0xff]
        %v756 = vld [vmem:[#allocation5 + $0xa58] sm:$0xff]
        %v757 = vld [vmem:[#allocation5 + $0xa60] sm:$0xff]
        %v758 = vld [vmem:[#allocation5 + $0xa68] sm:$0xff]
        %v759 = vld [vmem:[#allocation5 + $0xa70] sm:$0xff]
        %v760 = vld [vmem:[#allocation5 + $0xa78] sm:$0xff]
        %v761 = vld [vmem:[#allocation5 + $0xa80] sm:$0xff]
        %v762 = vld [vmem:[#allocation5 + $0xa88] sm:$0xff]
        %v763 = vld [vmem:[#allocation5 + $0xa90] sm:$0xff]
        %v764 = vld [vmem:[#allocation5 + $0xa98] sm:$0xff]
        %v765 = vld [vmem:[#allocation5 + $0xaa0] sm:$0xff]
        %v766 = vld [vmem:[#allocation5 + $0xaa8] sm:$0xff]
        %v767 = vld [vmem:[#allocation5 + $0xab0] sm:$0xff]
        %v768 = vld [vmem:[#allocation5 + $0xab8] sm:$0xff]
        %v769 = vld [vmem:[#allocation5 + $0xac0] sm:$0xff]
        %v770 = vld [vmem:[#allocation5 + $0xac8] sm:$0xff]
        %v771 = vld [vmem:[#allocation5 + $0xad0] sm:$0xff]
        %v772 = vld [vmem:[#allocation5 + $0xad8] sm:$0xff]
        %v773 = vld [vmem:[#allocation5 + $0xae0] sm:$0xff]
        %v774 = vld [vmem:[#allocation5 + $0xae8] sm:$0xff]
        %v775 = vld [vmem:[#allocation5 + $0xaf0] sm:$0xff]
        %v776 = vld [vmem:[#allocation5 + $0xaf8] sm:$0xff]
        %v777 = vld [vmem:[#allocation5 + $0xb00] sm:$0xff]
        %v778 = vld [vmem:[#allocation5 + $0xb08] sm:$0xff]
        %v779 = vld [vmem:[#allocation5 + $0xb10] sm:$0xff]
        %v780 = vld [vmem:[#allocation5 + $0xb18] sm:$0xff]
        %v781 = vld [vmem:[#allocation5 + $0xb20] sm:$0xff]
        %v782 = vld [vmem:[#allocation5 + $0xb28] sm:$0xff]
        %v783 = vld [vmem:[#allocation5 + $0xb30] sm:$0xff]
        %v784 = vld [vmem:[#allocation5 + $0xb38] sm:$0xff]
        %v785 = vld [vmem:[#allocation5 + $0xb40] sm:$0xff]
        %v786 = vld [vmem:[#allocation5 + $0xb48] sm:$0xff]
        %v787 = vld [vmem:[#allocation5 + $0xb50] sm:$0xff]
        %v788 = vld [vmem:[#allocation5 + $0xb58] sm:$0xff]
        %v789 = vld [vmem:[#allocation5 + $0xb60] sm:$0xff]
        %v790 = vld [vmem:[#allocation5 + $0xb68] sm:$0xff]
        %v791 = vld [vmem:[#allocation5 + $0xb70] sm:$0xff]
        %v792 = vld [vmem:[#allocation5 + $0xb78] sm:$0xff]
        %v793 = vld [vmem:[#allocation5 + $0xb80] sm:$0xff]
        %v794 = vld [vmem:[#allocation5 + $0xb88] sm:$0xff]
        %v795 = vld [vmem:[#allocation5 + $0xb90] sm:$0xff]
        %v796 = vld [vmem:[#allocation5 + $0xb98] sm:$0xff]
        %v797 = vld [vmem:[#allocation5 + $0xba0] sm:$0xff]
        %v798 = vld [vmem:[#allocation5 + $0xba8] sm:$0xff]
        %v799 = vld [vmem:[#allocation5 + $0xbb0] sm:$0xff]
        %v800 = vld [vmem:[#allocation5 + $0xbb8] sm:$0xff]
        %v801 = vld [vmem:[#allocation5 + $0xbc0] sm:$0xff]
        %v802 = vld [vmem:[#allocation5 + $0xbc8] sm:$0xff]
        %v803 = vld [vmem:[#allocation5 + $0xbd0] sm:$0xff]
        %v804 = vld [vmem:[#allocation5 + $0xbd8] sm:$0xff]
        %v805 = vld [vmem:[#allocation5 + $0xbe0] sm:$0xff]
        %v806 = vld [vmem:[#allocation5 + $0xbe8] sm:$0xff]
        %v807 = vld [vmem:[#allocation5 + $0xbf0] sm:$0xff]
        %v808 = vld [vmem:[#allocation5 + $0xbf8] sm:$0xff]
        %v809 = vld [vmem:[#allocation5 + $0xc00] sm:$0xff]
        %v810 = vld [vmem:[#allocation5 + $0xc08] sm:$0xff]
        %v811 = vld [vmem:[#allocation5 + $0xc10] sm:$0xff]
        %v812 = vld [vmem:[#allocation5 + $0xc18] sm:$0xff]
        %v813 = vld [vmem:[#allocation5 + $0xc20] sm:$0xff]
        %v814 = vld [vmem:[#allocation5 + $0xc28] sm:$0xff]
        %v815 = vld [vmem:[#allocation5 + $0xc30] sm:$0xff]
        %v816 = vld [vmem:[#allocation5 + $0xc38] sm:$0xff]
        %v817 = vld [vmem:[#allocation5 + $0xc40] sm:$0xff]
        %v818 = vld [vmem:[#allocation5 + $0xc48] sm:$0xff]
        %v819 = vld [vmem:[#allocation5 + $0xc50] sm:$0xff]
        %v820 = vld [vmem:[#allocation5 + $0xc58] sm:$0xff]
        %v821 = vld [vmem:[#allocation5 + $0xc60] sm:$0xff]
        %v822 = vld [vmem:[#allocation5 + $0xc68] sm:$0xff]
        %v823 = vld [vmem:[#allocation5 + $0xc70] sm:$0xff]
        %v824 = vld [vmem:[#allocation5 + $0xc78] sm:$0xff]
        %v825 = vld [vmem:[#allocation5 + $0xc80] sm:$0xff]
        %v826 = vld [vmem:[#allocation5 + $0xc88] sm:$0xff]
        %v827 = vld [vmem:[#allocation5 + $0xc90] sm:$0xff]
        %v828 = vld [vmem:[#allocation5 + $0xc98] sm:$0xff]
        %v829 = vld [vmem:[#allocation5 + $0xca0] sm:$0xff]
        %v830 = vld [vmem:[#allocation5 + $0xca8] sm:$0xff]
        %v831 = vld [vmem:[#allocation5 + $0xcb0] sm:$0xff]
        %v832 = vld [vmem:[#allocation5 + $0xcb8] sm:$0xff]
        %v833 = vld [vmem:[#allocation5 + $0xcc0] sm:$0xff]
        %v834 = vld [vmem:[#allocation5 + $0xcc8] sm:$0xff]
        %v835 = vld [vmem:[#allocation5 + $0xcd0] sm:$0xff]
        %v836 = vld [vmem:[#allocation5 + $0xcd8] sm:$0xff]
        %v837 = vld [vmem:[#allocation5 + $0xce0] sm:$0xff]
        %v838 = vld [vmem:[#allocation5 + $0xce8] sm:$0xff]
        %v839 = vld [vmem:[#allocation5 + $0xcf0] sm:$0xff]
        %v840 = vld [vmem:[#allocation5 + $0xcf8] sm:$0xff]
        %v841 = vld [vmem:[#allocation5 + $0xd00] sm:$0xff]
        %v842 = vld [vmem:[#allocation5 + $0xd08] sm:$0xff]
        %v843 = vld [vmem:[#allocation5 + $0xd10] sm:$0xff]
        %v844 = vld [vmem:[#allocation5 + $0xd18] sm:$0xff]
        %v845 = vld [vmem:[#allocation5 + $0xd20] sm:$0xff]
        %v846 = vld [vmem:[#allocation5 + $0xd28] sm:$0xff]
        %v847 = vld [vmem:[#allocation5 + $0xd30] sm:$0xff]
        %v848 = vld [vmem:[#allocation5 + $0xd38] sm:$0xff]
        %v849 = vld [vmem:[#allocation5 + $0xd40] sm:$0xff]
        %v850 = vld [vmem:[#allocation5 + $0xd48] sm:$0xff]
        %v851 = vld [vmem:[#allocation5 + $0xd50] sm:$0xff]
        %v852 = vld [vmem:[#allocation5 + $0xd58] sm:$0xff]
        %v853 = vld [vmem:[#allocation5 + $0xd60] sm:$0xff]
        %v854 = vld [vmem:[#allocation5 + $0xd68] sm:$0xff]
        %v855 = vld [vmem:[#allocation5 + $0xd70] sm:$0xff]
        %v856 = vld [vmem:[#allocation5 + $0xd78] sm:$0xff]
        %v857 = vld [vmem:[#allocation5 + $0xd80] sm:$0xff]
        %v858 = vld [vmem:[#allocation5 + $0xd88] sm:$0xff]
        %v859 = vld [vmem:[#allocation5 + $0xd90] sm:$0xff]
        %v860 = vld [vmem:[#allocation5 + $0xd98] sm:$0xff]
        %v861 = vld [vmem:[#allocation5 + $0xda0] sm:$0xff]
        %v862 = vld [vmem:[#allocation5 + $0xda8] sm:$0xff]
        %v863 = vld [vmem:[#allocation5 + $0xdb0] sm:$0xff]
        %v864 = vld [vmem:[#allocation5 + $0xdb8] sm:$0xff]
        %v865 = vld [vmem:[#allocation5 + $0xdc0] sm:$0xff]
        %v866 = vld [vmem:[#allocation5 + $0xdc8] sm:$0xff]
        %v867 = vld [vmem:[#allocation5 + $0xdd0] sm:$0xff]
        %v868 = vld [vmem:[#allocation5 + $0xdd8] sm:$0xff]
        %v869 = vld [vmem:[#allocation5 + $0xde0] sm:$0xff]
        %v870 = vld [vmem:[#allocation5 + $0xde8] sm:$0xff]
        %v871 = vld [vmem:[#allocation5 + $0xdf0] sm:$0xff]
        %v872 = vld [vmem:[#allocation5 + $0xdf8] sm:$0xff]
        %v873 = vld [vmem:[#allocation5 + $0xe00] sm:$0xff]
        %v874 = vld [vmem:[#allocation5 + $0xe08] sm:$0xff]
        %v875 = vld [vmem:[#allocation5 + $0xe10] sm:$0xff]
        %v876 = vld [vmem:[#allocation5 + $0xe18] sm:$0xff]
        %v877 = vld [vmem:[#allocation5 + $0xe20] sm:$0xff]
        %v878 = vld [vmem:[#allocation5 + $0xe28] sm:$0xff]
        %v879 = vld [vmem:[#allocation5 + $0xe30] sm:$0xff]
        %v880 = vld [vmem:[#allocation5 + $0xe38] sm:$0xff]
        %v881 = vld [vmem:[#allocation5 + $0xe40] sm:$0xff]
        %v882 = vld [vmem:[#allocation5 + $0xe48] sm:$0xff]
        %v883 = vld [vmem:[#allocation5 + $0xe50] sm:$0xff]
        %v884 = vld [vmem:[#allocation5 + $0xe58] sm:$0xff]
        %v885 = vld [vmem:[#allocation5 + $0xe60] sm:$0xff]
        %v886 = vld [vmem:[#allocation5 + $0xe68] sm:$0xff]
        %v887 = vld [vmem:[#allocation5 + $0xe70] sm:$0xff]
        %v888 = vld [vmem:[#allocation5 + $0xe78] sm:$0xff]
        %v889 = vld [vmem:[#allocation5 + $0xe80] sm:$0xff]
        %v890 = vld [vmem:[#allocation5 + $0xe88] sm:$0xff]
        %v891 = vld [vmem:[#allocation5 + $0xe90] sm:$0xff]
        %v892 = vld [vmem:[#allocation5 + $0xe98] sm:$0xff]
        %v893 = vld [vmem:[#allocation5 + $0xea0] sm:$0xff]
        %v894 = vld [vmem:[#allocation5 + $0xea8] sm:$0xff]
        %v895 = vld [vmem:[#allocation5 + $0xeb0] sm:$0xff]
        %v896 = vld [vmem:[#allocation5 + $0xeb8] sm:$0xff]
        %v897 = vld [vmem:[#allocation5 + $0xec0] sm:$0xff]
        %v898 = vld [vmem:[#allocation5 + $0xec8] sm:$0xff]
        %v899 = vld [vmem:[#allocation5 + $0xed0] sm:$0xff]
        %v900 = vld [vmem:[#allocation5 + $0xed8] sm:$0xff]
        %v901 = vld [vmem:[#allocation5 + $0xee0] sm:$0xff]
        %v902 = vld [vmem:[#allocation5 + $0xee8] sm:$0xff]
        %v903 = vld [vmem:[#allocation5 + $0xef0] sm:$0xff]
        %v904 = vld [vmem:[#allocation5 + $0xef8] sm:$0xff]
        %v905 = vld [vmem:[#allocation5 + $0xf00] sm:$0xff]
        %v906 = vld [vmem:[#allocation5 + $0xf08] sm:$0xff]
        %v907 = vld [vmem:[#allocation5 + $0xf10] sm:$0xff]
        %v908 = vld [vmem:[#allocation5 + $0xf18] sm:$0xff]
        %v909 = vld [vmem:[#allocation5 + $0xf20] sm:$0xff]
        %v910 = vld [vmem:[#allocation5 + $0xf28] sm:$0xff]
        %v911 = vld [vmem:[#allocation5 + $0xf30] sm:$0xff]
        %v912 = vld [vmem:[#allocation5 + $0xf38] sm:$0xff]
        %v913 = vld [vmem:[#allocation5 + $0xf40] sm:$0xff]
        %v914 = vld [vmem:[#allocation5 + $0xf48] sm:$0xff]
        %v915 = vld [vmem:[#allocation5 + $0xf50] sm:$0xff]
        %v916 = vld [vmem:[#allocation5 + $0xf58] sm:$0xff]
        %v917 = vld [vmem:[#allocation5 + $0xf60] sm:$0xff]
        %v918 = vld [vmem:[#allocation5 + $0xf68] sm:$0xff]
        %v919 = vld [vmem:[#allocation5 + $0xf70] sm:$0xff]
        %v920 = vld [vmem:[#allocation5 + $0xf78] sm:$0xff]
        %v921 = vld [vmem:[#allocation5 + $0xf80] sm:$0xff]
        %v922 = vld [vmem:[#allocation5 + $0xf88] sm:$0xff]
        %v923 = vld [vmem:[#allocation5 + $0xf90] sm:$0xff]
        %v924 = vld [vmem:[#allocation5 + $0xf98] sm:$0xff]
        %v925 = vld [vmem:[#allocation5 + $0xfa0] sm:$0xff]
        %v926 = vld [vmem:[#allocation5 + $0xfa8] sm:$0xff]
        %v927 = vld [vmem:[#allocation5 + $0xfb0] sm:$0xff]
        %v928 = vld [vmem:[#allocation5 + $0xfb8] sm:$0xff]
        %v929 = vld [vmem:[#allocation5 + $0xfc0] sm:$0xff]
        %v930 = vld [vmem:[#allocation5 + $0xfc8] sm:$0xff]
        %v931 = vld [vmem:[#allocation5 + $0xfd0] sm:$0xff]
        %v932 = vld [vmem:[#allocation5 + $0xfd8] sm:$0xff]
        %v933 = vld [vmem:[#allocation5 + $0xfe0] sm:$0xff]
        %v934 = vld [vmem:[#allocation5 + $0xfe8] sm:$0xff]
        %v935 = vld [vmem:[#allocation5 + $0xff0] sm:$0xff]
        %v936 = vld [vmem:[#allocation5 + $0xff8] sm:$0xff]
        %v937 = vld [vmem:[#allocation5 + $0x1000] sm:$0xff]
        %v938 = vld [vmem:[#allocation5 + $0x1008] sm:$0xff]
        %v939 = vld [vmem:[#allocation5 + $0x1010] sm:$0xff]
        %v940 = vld [vmem:[#allocation5 + $0x1018] sm:$0xff]
        %v941 = vld [vmem:[#allocation5 + $0x1020] sm:$0xff]
        %v942 = vld [vmem:[#allocation5 + $0x1028] sm:$0xff]
        %v943 = vld [vmem:[#allocation5 + $0x1030] sm:$0xff]
        %v944 = vld [vmem:[#allocation5 + $0x1038] sm:$0xff]
        %v945 = vld [vmem:[#allocation5 + $0x1040] sm:$0xff]
        %v946 = vld [vmem:[#allocation5 + $0x1048] sm:$0xff]
        %v947 = vld [vmem:[#allocation5 + $0x1050] sm:$0xff]
        %v948 = vld [vmem:[#allocation5 + $0x1058] sm:$0xff]
        %v949 = vld [vmem:[#allocation5 + $0x1060] sm:$0xff]
        %v950 = vld [vmem:[#allocation5 + $0x1068] sm:$0xff]
        %v951 = vld [vmem:[#allocation5 + $0x1070] sm:$0xff]
        %v952 = vld [vmem:[#allocation5 + $0x1078] sm:$0xff]
        %v953 = vld [vmem:[#allocation5 + $0x1080] sm:$0xff]
        %v954 = vld [vmem:[#allocation5 + $0x1088] sm:$0xff]
        %v955 = vld [vmem:[#allocation5 + $0x1090] sm:$0xff]
        %v956 = vld [vmem:[#allocation5 + $0x1098] sm:$0xff]
        %v957 = vld [vmem:[#allocation5 + $0x10a0] sm:$0xff]
        %v958 = vld [vmem:[#allocation5 + $0x10a8] sm:$0xff]
        %v959 = vld [vmem:[#allocation5 + $0x10b0] sm:$0xff]
        %v960 = vld [vmem:[#allocation5 + $0x10b8] sm:$0xff]
        %v961 = vld [vmem:[#allocation5 + $0x10c0] sm:$0xff]
        %v962 = vld [vmem:[#allocation5 + $0x10c8] sm:$0xff]
        %v963 = vld [vmem:[#allocation5 + $0x10d0] sm:$0xff]
        %v964 = vld [vmem:[#allocation5 + $0x10d8] sm:$0xff]
        %v965 = vld [vmem:[#allocation5 + $0x10e0] sm:$0xff]
        %v966 = vld [vmem:[#allocation5 + $0x10e8] sm:$0xff]
        %v967 = vld [vmem:[#allocation5 + $0x10f0] sm:$0xff]
        %v968 = vld [vmem:[#allocation5 + $0x10f8] sm:$0xff]
        %v969 = vld [vmem:[#allocation5 + $0x1100] sm:$0xff]
        %v970 = vld [vmem:[#allocation5 + $0x1108] sm:$0xff]
        %v971 = vld [vmem:[#allocation5 + $0x1110] sm:$0xff]
        %v972 = vld [vmem:[#allocation5 + $0x1118] sm:$0xff]
        %v973 = vld [vmem:[#allocation5 + $0x1120] sm:$0xff]
        %v974 = vld [vmem:[#allocation5 + $0x1128] sm:$0xff]
        %v975 = vld [vmem:[#allocation5 + $0x1130] sm:$0xff]
        %v976 = vld [vmem:[#allocation5 + $0x1138] sm:$0xff]
        %v977 = vld [vmem:[#allocation5 + $0x1140] sm:$0xff]
        %v978 = vld [vmem:[#allocation5 + $0x1148] sm:$0xff]
        %v979 = vld [vmem:[#allocation5 + $0x1150] sm:$0xff]
        %v980 = vld [vmem:[#allocation5 + $0x1158] sm:$0xff]
        %v981 = vld [vmem:[#allocation5 + $0x1160] sm:$0xff]
        %v982 = vld [vmem:[#allocation5 + $0x1168] sm:$0xff]
        %v983 = vld [vmem:[#allocation5 + $0x1170] sm:$0xff]
        %v984 = vld [vmem:[#allocation5 + $0x1178] sm:$0xff]
        %v985 = vld [vmem:[#allocation5 + $0x1180] sm:$0xff]
        %v986 = vld [vmem:[#allocation5 + $0x1188] sm:$0xff]
        %v987 = vld [vmem:[#allocation5 + $0x1190] sm:$0xff]
        %v988 = vld [vmem:[#allocation5 + $0x1198] sm:$0xff]
        %v989 = vld [vmem:[#allocation5 + $0x11a0] sm:$0xff]
        %v990 = vld [vmem:[#allocation5 + $0x11a8] sm:$0xff]
        %v991 = vld [vmem:[#allocation5 + $0x11b0] sm:$0xff]
        %v992 = vld [vmem:[#allocation5 + $0x11b8] sm:$0xff]
        %v993 = vld [vmem:[#allocation5 + $0x11c0] sm:$0xff]
        %v994 = vld [vmem:[#allocation5 + $0x11c8] sm:$0xff]
        %v995 = vld [vmem:[#allocation5 + $0x11d0] sm:$0xff]
        %v996 = vld [vmem:[#allocation5 + $0x11d8] sm:$0xff]
        %v997 = vld [vmem:[#allocation5 + $0x11e0] sm:$0xff]
        %v998 = vld [vmem:[#allocation5 + $0x11e8] sm:$0xff]
        %v999 = vld [vmem:[#allocation5 + $0x11f0] sm:$0xff]
        %v1000 = vld [vmem:[#allocation5 + $0x11f8] sm:$0xff]
        %v1001 = vld [vmem:[#allocation5 + $0x1200] sm:$0xff]
        %v1002 = vld [vmem:[#allocation5 + $0x1208] sm:$0xff]
        %v1003 = vld [vmem:[#allocation5 + $0x1210] sm:$0xff]
        %v1004 = vld [vmem:[#allocation5 + $0x1218] sm:$0xff]
        %v1005 = vld [vmem:[#allocation5 + $0x1220] sm:$0xff]
        %v1006 = vld [vmem:[#allocation5 + $0x1228] sm:$0xff]
        %v1007 = vld [vmem:[#allocation5 + $0x1230] sm:$0xff]
        %v1008 = vld [vmem:[#allocation5 + $0x1238] sm:$0xff]
        %v1009 = vld [vmem:[#allocation5 + $0x1240] sm:$0xff]
        %v1010 = vld [vmem:[#allocation5 + $0x1248] sm:$0xff]
        %v1011 = vld [vmem:[#allocation5 + $0x1250] sm:$0xff]
        %v1012 = vld [vmem:[#allocation5 + $0x1258] sm:$0xff]
        %v1013 = vld [vmem:[#allocation5 + $0x1260] sm:$0xff]
        %v1014 = vld [vmem:[#allocation5 + $0x1268] sm:$0xff]
        %v1015 = vld [vmem:[#allocation5 + $0x1270] sm:$0xff]
        %v1016 = vld [vmem:[#allocation5 + $0x1278] sm:$0xff]
        %v1017 = vld [vmem:[#allocation5 + $0x1280] sm:$0xff]
        %v1018 = vld [vmem:[#allocation5 + $0x1288] sm:$0xff]
        %v1019 = vld [vmem:[#allocation5 + $0x1290] sm:$0xff]
        %v1020 = vld [vmem:[#allocation5 + $0x1298] sm:$0xff]
        %v1021 = vld [vmem:[#allocation5 + $0x12a0] sm:$0xff]
        %v1022 = vld [vmem:[#allocation5 + $0x12a8] sm:$0xff]
        %v1023 = vld [vmem:[#allocation5 + $0x12b0] sm:$0xff]
        %v1024 = vld [vmem:[#allocation5 + $0x12b8] sm:$0xff]
        %v1025 = vld [vmem:[#allocation5 + $0x12c0] sm:$0xff]
        %v1026 = vld [vmem:[#allocation5 + $0x12c8] sm:$0xff]
        %v1027 = vld [vmem:[#allocation5 + $0x12d0] sm:$0xff]
        %v1028 = vld [vmem:[#allocation5 + $0x12d8] sm:$0xff]
        %v1029 = vld [vmem:[#allocation5 + $0x12e0] sm:$0xff]
        %v1030 = vld [vmem:[#allocation5 + $0x12e8] sm:$0xff]
        %v1031 = vld [vmem:[#allocation5 + $0x12f0] sm:$0xff]
        %v1032 = vld [vmem:[#allocation5 + $0x12f8] sm:$0xff]
        %v1033 = vld [vmem:[#allocation5 + $0x1300] sm:$0xff]
        %v1034 = vld [vmem:[#allocation5 + $0x1308] sm:$0xff]
        %v1035 = vld [vmem:[#allocation5 + $0x1310] sm:$0xff]
        %v1036 = vld [vmem:[#allocation5 + $0x1318] sm:$0xff]
        %v1037 = vld [vmem:[#allocation5 + $0x1320] sm:$0xff]
        %v1038 = vld [vmem:[#allocation5 + $0x1328] sm:$0xff]
        %v1039 = vld [vmem:[#allocation5 + $0x1330] sm:$0xff]
        %v1040 = vld [vmem:[#allocation5 + $0x1338] sm:$0xff]
        %v1041 = vld [vmem:[#allocation5 + $0x1340] sm:$0xff]
        %v1042 = vld [vmem:[#allocation5 + $0x1348] sm:$0xff]
        %v1043 = vld [vmem:[#allocation5 + $0x1350] sm:$0xff]
        %v1044 = vld [vmem:[#allocation5 + $0x1358] sm:$0xff]
        %v1045 = vld [vmem:[#allocation5 + $0x1360] sm:$0xff]
        %v1046 = vld [vmem:[#allocation5 + $0x1368] sm:$0xff]
        %v1047 = vld [vmem:[#allocation5 + $0x1370] sm:$0xff]
        %v1048 = vld [vmem:[#allocation5 + $0x1378] sm:$0xff]
        %v1049 = vld [vmem:[#allocation5 + $0x1380] sm:$0xff]
        %v1050 = vld [vmem:[#allocation5 + $0x1388] sm:$0xff]
        %v1051 = vld [vmem:[#allocation5 + $0x1390] sm:$0xff]
        %v1052 = vld [vmem:[#allocation5 + $0x1398] sm:$0xff]
        %v1053 = vld [vmem:[#allocation5 + $0x13a0] sm:$0xff]
        %v1054 = vld [vmem:[#allocation5 + $0x13a8] sm:$0xff]
        %v1055 = vld [vmem:[#allocation5 + $0x13b0] sm:$0xff]
        %v1056 = vld [vmem:[#allocation5 + $0x13b8] sm:$0xff]
        %v1057 = vld [vmem:[#allocation5 + $0x13c0] sm:$0xff]
        %v1058 = vld [vmem:[#allocation5 + $0x13c8] sm:$0xff]
        %v1059 = vld [vmem:[#allocation5 + $0x13d0] sm:$0xff]
        %v1060 = vld [vmem:[#allocation5 + $0x13d8] sm:$0xff]
        %v1061 = vld [vmem:[#allocation5 + $0x13e0] sm:$0xff]
        %v1062 = vld [vmem:[#allocation5 + $0x13e8] sm:$0xff]
        %v1063 = vld [vmem:[#allocation5 + $0x13f0] sm:$0xff]
        %v1064 = vld [vmem:[#allocation5 + $0x13f8] sm:$0xff]
        %v1065 = vld [vmem:[#allocation5 + $0x1400] sm:$0xff]
        %v1066 = vld [vmem:[#allocation5 + $0x1408] sm:$0xff]
        %v1067 = vld [vmem:[#allocation5 + $0x1410] sm:$0xff]
        %v1068 = vld [vmem:[#allocation5 + $0x1418] sm:$0xff]
        %v1069 = vld [vmem:[#allocation5 + $0x1420] sm:$0xff]
        %v1070 = vld [vmem:[#allocation5 + $0x1428] sm:$0xff]
        %v1071 = vld [vmem:[#allocation5 + $0x1430] sm:$0xff]
        %v1072 = vld [vmem:[#allocation5 + $0x1438] sm:$0xff]
        %v1073 = vld [vmem:[#allocation5 + $0x1440] sm:$0xff]
        %v1074 = vld [vmem:[#allocation5 + $0x1448] sm:$0xff]
        %v1075 = vld [vmem:[#allocation5 + $0x1450] sm:$0xff]
        %v1076 = vld [vmem:[#allocation5 + $0x1458] sm:$0xff]
        %v1077 = vld [vmem:[#allocation5 + $0x1460] sm:$0xff]
        %v1078 = vld [vmem:[#allocation5 + $0x1468] sm:$0xff]
        %v1079 = vld [vmem:[#allocation5 + $0x1470] sm:$0xff]
        %v1080 = vld [vmem:[#allocation5 + $0x1478] sm:$0xff]
        %v1081 = vld [vmem:[#allocation5 + $0x1480] sm:$0xff]
        %v1082 = vld [vmem:[#allocation5 + $0x1488] sm:$0xff]
        %v1083 = vld [vmem:[#allocation5 + $0x1490] sm:$0xff]
        %v1084 = vld [vmem:[#allocation5 + $0x1498] sm:$0xff]
        %v1085 = vld [vmem:[#allocation5 + $0x14a0] sm:$0xff]
        %v1086 = vld [vmem:[#allocation5 + $0x14a8] sm:$0xff]
        %v1087 = vld [vmem:[#allocation5 + $0x14b0] sm:$0xff]
        %v1088 = vld [vmem:[#allocation5 + $0x14b8] sm:$0xff]
        %v1089 = vld [vmem:[#allocation5 + $0x14c0] sm:$0xff]
        %v1090 = vld [vmem:[#allocation5 + $0x14c8] sm:$0xff]
        %v1091 = vld [vmem:[#allocation5 + $0x14d0] sm:$0xff]
        %v1092 = vld [vmem:[#allocation5 + $0x14d8] sm:$0xff]
        %v1093 = vld [vmem:[#allocation5 + $0x14e0] sm:$0xff]
        %v1094 = vld [vmem:[#allocation5 + $0x14e8] sm:$0xff]
        %v1095 = vld [vmem:[#allocation5 + $0x14f0] sm:$0xff]
        %v1096 = vld [vmem:[#allocation5 + $0x14f8] sm:$0xff]
        %v1097 = vld [vmem:[#allocation5 + $0x1500] sm:$0xff]
        %v1098 = vld [vmem:[#allocation5 + $0x1508] sm:$0xff]
        %v1099 = vld [vmem:[#allocation5 + $0x1510] sm:$0xff]
        %v1100 = vld [vmem:[#allocation5 + $0x1518] sm:$0xff]
        %v1101 = vld [vmem:[#allocation5 + $0x1520] sm:$0xff]
        %v1102 = vld [vmem:[#allocation5 + $0x1528] sm:$0xff]
        %v1103 = vld [vmem:[#allocation5 + $0x1530] sm:$0xff]
        %v1104 = vld [vmem:[#allocation5 + $0x1538] sm:$0xff]
        %v1105 = vld [vmem:[#allocation5 + $0x1540] sm:$0xff]
        %v1106 = vld [vmem:[#allocation5 + $0x1548] sm:$0xff]
        %v1107 = vld [vmem:[#allocation5 + $0x1550] sm:$0xff]
        %v1108 = vld [vmem:[#allocation5 + $0x1558] sm:$0xff]
        %v1109 = vld [vmem:[#allocation5 + $0x1560] sm:$0xff]
        %v1110 = vld [vmem:[#allocation5 + $0x1568] sm:$0xff]
        %v1111 = vld [vmem:[#allocation5 + $0x1570] sm:$0xff]
        %v1112 = vld [vmem:[#allocation5 + $0x1578] sm:$0xff]
        %v1113 = vld [vmem:[#allocation5 + $0x1580] sm:$0xff]
        %v1114 = vld [vmem:[#allocation5 + $0x1588] sm:$0xff]
        %v1115 = vld [vmem:[#allocation5 + $0x1590] sm:$0xff]
        %v1116 = vld [vmem:[#allocation5 + $0x1598] sm:$0xff]
        %v1117 = vld [vmem:[#allocation5 + $0x15a0] sm:$0xff]
        %v1118 = vld [vmem:[#allocation5 + $0x15a8] sm:$0xff]
        %v1119 = vld [vmem:[#allocation5 + $0x15b0] sm:$0xff]
        %v1120 = vld [vmem:[#allocation5 + $0x15b8] sm:$0xff]
        %v1121 = vld [vmem:[#allocation5 + $0x15c0] sm:$0xff]
        %v1122 = vld [vmem:[#allocation5 + $0x15c8] sm:$0xff]
        %v1123 = vld [vmem:[#allocation5 + $0x15d0] sm:$0xff]
        %v1124 = vld [vmem:[#allocation5 + $0x15d8] sm:$0xff]
        %v1125 = vld [vmem:[#allocation5 + $0x15e0] sm:$0xff]
        %v1126 = vld [vmem:[#allocation5 + $0x15e8] sm:$0xff]
        %v1127 = vld [vmem:[#allocation5 + $0x15f0] sm:$0xff]
        %v1128 = vld [vmem:[#allocation5 + $0x15f8] sm:$0xff]
        %v1129 = vld [vmem:[#allocation5 + $0x1600] sm:$0xff]
        %v1130 = vld [vmem:[#allocation5 + $0x1608] sm:$0xff]
        %v1131 = vld [vmem:[#allocation5 + $0x1610] sm:$0xff]
        %v1132 = vld [vmem:[#allocation5 + $0x1618] sm:$0xff]
        %v1133 = vld [vmem:[#allocation5 + $0x1620] sm:$0xff]
        %v1134 = vld [vmem:[#allocation5 + $0x1628] sm:$0xff]
        %v1135 = vld [vmem:[#allocation5 + $0x1630] sm:$0xff]
        %v1136 = vld [vmem:[#allocation5 + $0x1638] sm:$0xff]
        %v1137 = vld [vmem:[#allocation5 + $0x1640] sm:$0xff]
        %v1138 = vld [vmem:[#allocation5 + $0x1648] sm:$0xff]
        %v1139 = vld [vmem:[#allocation5 + $0x1650] sm:$0xff]
        %v1140 = vld [vmem:[#allocation5 + $0x1658] sm:$0xff]
        %v1141 = vld [vmem:[#allocation5 + $0x1660] sm:$0xff]
        %v1142 = vld [vmem:[#allocation5 + $0x1668] sm:$0xff]
        %v1143 = vld [vmem:[#allocation5 + $0x1670] sm:$0xff]
        %v1144 = vld [vmem:[#allocation5 + $0x1678] sm:$0xff]
        %v1145 = vld [vmem:[#allocation5 + $0x1680] sm:$0xff]
        %v1146 = vld [vmem:[#allocation5 + $0x1688] sm:$0xff]
        %v1147 = vld [vmem:[#allocation5 + $0x1690] sm:$0xff]
        %v1148 = vld [vmem:[#allocation5 + $0x1698] sm:$0xff]
        %v1149 = vld [vmem:[#allocation5 + $0x16a0] sm:$0xff]
        %v1150 = vld [vmem:[#allocation5 + $0x16a8] sm:$0xff]
        %v1151 = vld [vmem:[#allocation5 + $0x16b0] sm:$0xff]
        %v1152 = vld [vmem:[#allocation5 + $0x16b8] sm:$0xff]
        %v1153 = vld [vmem:[#allocation5 + $0x16c0] sm:$0xff]
        %v1154 = vld [vmem:[#allocation5 + $0x16c8] sm:$0xff]
        %v1155 = vld [vmem:[#allocation5 + $0x16d0] sm:$0xff]
        %v1156 = vld [vmem:[#allocation5 + $0x16d8] sm:$0xff]
        %v1157 = vld [vmem:[#allocation5 + $0x16e0] sm:$0xff]
        %v1158 = vld [vmem:[#allocation5 + $0x16e8] sm:$0xff]
        %v1159 = vld [vmem:[#allocation5 + $0x16f0] sm:$0xff]
        %v1160 = vld [vmem:[#allocation5 + $0x16f8] sm:$0xff]
        %v1161 = vld [vmem:[#allocation5 + $0x1700] sm:$0xff]
        %v1162 = vld [vmem:[#allocation5 + $0x1708] sm:$0xff]
        %v1163 = vld [vmem:[#allocation5 + $0x1710] sm:$0xff]
        %v1164 = vld [vmem:[#allocation5 + $0x1718] sm:$0xff]
        %v1165 = vld [vmem:[#allocation5 + $0x1720] sm:$0xff]
        %v1166 = vld [vmem:[#allocation5 + $0x1728] sm:$0xff]
        %v1167 = vld [vmem:[#allocation5 + $0x1730] sm:$0xff]
        %v1168 = vld [vmem:[#allocation5 + $0x1738] sm:$0xff]
        %v1169 = vld [vmem:[#allocation5 + $0x1740] sm:$0xff]
        %v1170 = vld [vmem:[#allocation5 + $0x1748] sm:$0xff]
        %v1171 = vld [vmem:[#allocation5 + $0x1750] sm:$0xff]
        %v1172 = vld [vmem:[#allocation5 + $0x1758] sm:$0xff]
        %v1173 = vld [vmem:[#allocation5 + $0x1760] sm:$0xff]
        %v1174 = vld [vmem:[#allocation5 + $0x1768] sm:$0xff]
        %v1175 = vld [vmem:[#allocation5 + $0x1770] sm:$0xff]
        %v1176 = vld [vmem:[#allocation5 + $0x1778] sm:$0xff]
        %v1177 = vld [vmem:[#allocation5 + $0x1780] sm:$0xff]
        %v1178 = vld [vmem:[#allocation5 + $0x1788] sm:$0xff]
        %v1179 = vld [vmem:[#allocation5 + $0x1790] sm:$0xff]
        %v1180 = vld [vmem:[#allocation5 + $0x1798] sm:$0xff]
        %v1181 = vld [vmem:[#allocation5 + $0x17a0] sm:$0xff]
        %v1182 = vld [vmem:[#allocation5 + $0x17a8] sm:$0xff]
        %v1183 = vld [vmem:[#allocation5 + $0x17b0] sm:$0xff]
        %v1184 = vld [vmem:[#allocation5 + $0x17b8] sm:$0xff]
        %v1185 = vld [vmem:[#allocation5 + $0x17c0] sm:$0xff]
        %v1186 = vld [vmem:[#allocation5 + $0x17c8] sm:$0xff]
        %v1187 = vld [vmem:[#allocation5 + $0x17d0] sm:$0xff]
        %v1188 = vld [vmem:[#allocation5 + $0x17d8] sm:$0xff]
        %v1189 = vld [vmem:[#allocation5 + $0x17e0] sm:$0xff]
        %v1190 = vld [vmem:[#allocation5 + $0x17e8] sm:$0xff]
        %v1191 = vld [vmem:[#allocation5 + $0x17f0] sm:$0xff]
        %v1192 = vld [vmem:[#allocation5 + $0x17f8] sm:$0xff]
        %v1193 = vld [vmem:[#allocation7] sm:$0xf]
        %v1195 = vlaneseq
        %v1196 = vshrl.u32 %v1195, 7
        %v1197 = vsub.s32 0, %v1196
        %v1198 = vrot.slane %v1193, %v1197
        %v1199 = vlaneseq
        %v1200 = vshrl.u32 %v1199, 7
        %v1201 = vsub.s32 1, %v1200
        %v1202 = vrot.slane %v1193, %v1201
        %v1203 = vlaneseq
        %v1204 = vshrl.u32 %v1203, 7
        %v1205 = vsub.s32 2, %v1204
        %v1206 = vrot.slane %v1193, %v1205
        %v1207 = vlaneseq
        %v1208 = vshrl.u32 %v1207, 7
        %v1209 = vsub.s32 3, %v1208
        %v1210 = vrot.slane %v1193, %v1209
        %v1983 = vunpack.c.l.b16 %v425
        %v1984 = vunpack.c.h.b16 %v425
        %v1985 = vunpack.c.l.b16 %v426
        %v1986 = vunpack.c.h.b16 %v426
        %v1987 = vunpack.c.l.b16 %v427
        %v1988 = vunpack.c.h.b16 %v427
        %v1989 = vunpack.c.l.b16 %v428
        %v1990 = vunpack.c.h.b16 %v428
        %v1991 = vunpack.c.l.b16 %v429
        %v1992 = vunpack.c.h.b16 %v429
        %v1993 = vunpack.c.l.b16 %v430
        %v1994 = vunpack.c.h.b16 %v430
        %v1995 = vunpack.c.l.b16 %v431
        %v1996 = vunpack.c.h.b16 %v431
        %v1997 = vunpack.c.l.b16 %v432
        %v1998 = vunpack.c.h.b16 %v432
        %v1999 = vunpack.c.l.b16 %v433
        %v2000 = vunpack.c.h.b16 %v433
        %v2001 = vunpack.c.l.b16 %v434
        %v2002 = vunpack.c.h.b16 %v434
        %v2003 = vunpack.c.l.b16 %v435
        %v2004 = vunpack.c.h.b16 %v435
        %v2005 = vunpack.c.l.b16 %v436
        %v2006 = vunpack.c.h.b16 %v436
        %v2007 = vunpack.c.l.b16 %v437
        %v2008 = vunpack.c.h.b16 %v437
        %v2009 = vunpack.c.l.b16 %v438
        %v2010 = vunpack.c.h.b16 %v438
        %v2011 = vunpack.c.l.b16 %v439
        %v2012 = vunpack.c.h.b16 %v439
        %v2013 = vunpack.c.l.b16 %v440
        %v2014 = vunpack.c.h.b16 %v440
        %v2015 = vunpack.c.l.b16 %v441
        %v2016 = vunpack.c.h.b16 %v441
        %v2017 = vunpack.c.l.b16 %v442
        %v2018 = vunpack.c.h.b16 %v442
        %v2019 = vunpack.c.l.b16 %v443
        %v2020 = vunpack.c.h.b16 %v443
        %v2021 = vunpack.c.l.b16 %v444
        %v2022 = vunpack.c.h.b16 %v444
        %v2023 = vunpack.c.l.b16 %v445
        %v2024 = vunpack.c.h.b16 %v445
        %v2025 = vunpack.c.l.b16 %v446
        %v2026 = vunpack.c.h.b16 %v446
        %v2027 = vunpack.c.l.b16 %v447
        %v2028 = vunpack.c.h.b16 %v447
        %v2029 = vunpack.c.l.b16 %v448
        %v2030 = vunpack.c.h.b16 %v448
        %v2031 = vunpack.c.l.b16 %v449
        %v2032 = vunpack.c.h.b16 %v449
        %v2033 = vunpack.c.l.b16 %v450
        %v2034 = vunpack.c.h.b16 %v450
        %v2035 = vunpack.c.l.b16 %v451
        %v2036 = vunpack.c.h.b16 %v451
        %v2037 = vunpack.c.l.b16 %v452
        %v2038 = vunpack.c.h.b16 %v452
        %v2039 = vunpack.c.l.b16 %v453
        %v2040 = vunpack.c.h.b16 %v453
        %v2041 = vunpack.c.l.b16 %v454
        %v2042 = vunpack.c.h.b16 %v454
        %v2043 = vunpack.c.l.b16 %v455
        %v2044 = vunpack.c.h.b16 %v455
        %v2045 = vunpack.c.l.b16 %v456
        %v2046 = vunpack.c.h.b16 %v456
        %v2047 = vunpack.c.l.b16 %v457
        %v2048 = vunpack.c.h.b16 %v457
        %v2049 = vunpack.c.l.b16 %v458
        %v2050 = vunpack.c.h.b16 %v458
        %v2051 = vunpack.c.l.b16 %v459
        %v2052 = vunpack.c.h.b16 %v459
        %v2053 = vunpack.c.l.b16 %v460
        %v2054 = vunpack.c.h.b16 %v460
        %v2055 = vunpack.c.l.b16 %v461
        %v2056 = vunpack.c.h.b16 %v461
        %v2057 = vunpack.c.l.b16 %v462
        %v2058 = vunpack.c.h.b16 %v462
        %v2059 = vunpack.c.l.b16 %v463
        %v2060 = vunpack.c.h.b16 %v463
        %v2061 = vunpack.c.l.b16 %v464
        %v2062 = vunpack.c.h.b16 %v464
        %v2063 = vunpack.c.l.b16 %v465
        %v2064 = vunpack.c.h.b16 %v465
        %v2065 = vunpack.c.l.b16 %v466
        %v2066 = vunpack.c.h.b16 %v466
        %v2067 = vunpack.c.l.b16 %v467
        %v2068 = vunpack.c.h.b16 %v467
        %v2069 = vunpack.c.l.b16 %v468
        %v2070 = vunpack.c.h.b16 %v468
        %v2071 = vunpack.c.l.b16 %v469
        %v2072 = vunpack.c.h.b16 %v469
        %v2073 = vunpack.c.l.b16 %v470
        %v2074 = vunpack.c.h.b16 %v470
        %v2075 = vunpack.c.l.b16 %v471
        %v2076 = vunpack.c.h.b16 %v471
        %v2077 = vunpack.c.l.b16 %v472
        %v2078 = vunpack.c.h.b16 %v472
        %v2079 = vunpack.c.l.b16 %v473
        %v2080 = vunpack.c.h.b16 %v473
        %v2081 = vunpack.c.l.b16 %v474
        %v2082 = vunpack.c.h.b16 %v474
        %v2083 = vunpack.c.l.b16 %v475
        %v2084 = vunpack.c.h.b16 %v475
        %v2085 = vunpack.c.l.b16 %v476
        %v2086 = vunpack.c.h.b16 %v476
        %v2087 = vunpack.c.l.b16 %v477
        %v2088 = vunpack.c.h.b16 %v477
        %v2089 = vunpack.c.l.b16 %v478
        %v2090 = vunpack.c.h.b16 %v478
        %v2091 = vunpack.c.l.b16 %v479
        %v2092 = vunpack.c.h.b16 %v479
        %v2093 = vunpack.c.l.b16 %v480
        %v2094 = vunpack.c.h.b16 %v480
        %v2095 = vunpack.c.l.b16 %v481
        %v2096 = vunpack.c.h.b16 %v481
        %v2097 = vunpack.c.l.b16 %v482
        %v2098 = vunpack.c.h.b16 %v482
        %v2099 = vunpack.c.l.b16 %v483
        %v2100 = vunpack.c.h.b16 %v483
        %v2101 = vunpack.c.l.b16 %v484
        %v2102 = vunpack.c.h.b16 %v484
        %v2103 = vunpack.c.l.b16 %v485
        %v2104 = vunpack.c.h.b16 %v485
        %v2105 = vunpack.c.l.b16 %v486
        %v2106 = vunpack.c.h.b16 %v486
        %v2107 = vunpack.c.l.b16 %v487
        %v2108 = vunpack.c.h.b16 %v487
        %v2109 = vunpack.c.l.b16 %v488
        %v2110 = vunpack.c.h.b16 %v488
        %v2111 = vunpack.c.l.b16 %v489
        %v2112 = vunpack.c.h.b16 %v489
        %v2113 = vunpack.c.l.b16 %v490
        %v2114 = vunpack.c.h.b16 %v490
        %v2115 = vunpack.c.l.b16 %v491
        %v2116 = vunpack.c.h.b16 %v491
        %v2117 = vunpack.c.l.b16 %v492
        %v2118 = vunpack.c.h.b16 %v492
        %v2119 = vunpack.c.l.b16 %v493
        %v2120 = vunpack.c.h.b16 %v493
        %v2121 = vunpack.c.l.b16 %v494
        %v2122 = vunpack.c.h.b16 %v494
        %v2123 = vunpack.c.l.b16 %v495
        %v2124 = vunpack.c.h.b16 %v495
        %v2125 = vunpack.c.l.b16 %v496
        %v2126 = vunpack.c.h.b16 %v496
        %v2127 = vunpack.c.l.b16 %v497
        %v2128 = vunpack.c.h.b16 %v497
        %v2129 = vunpack.c.l.b16 %v498
        %v2130 = vunpack.c.h.b16 %v498
        %v2131 = vunpack.c.l.b16 %v499
        %v2132 = vunpack.c.h.b16 %v499
        %v2133 = vunpack.c.l.b16 %v500
        %v2134 = vunpack.c.h.b16 %v500
        %v2135 = vunpack.c.l.b16 %v501
        %v2136 = vunpack.c.h.b16 %v501
        %v2137 = vunpack.c.l.b16 %v502
        %v2138 = vunpack.c.h.b16 %v502
        %v2139 = vunpack.c.l.b16 %v503
        %v2140 = vunpack.c.h.b16 %v503
        %v2141 = vunpack.c.l.b16 %v504
        %v2142 = vunpack.c.h.b16 %v504
        %v2143 = vunpack.c.l.b16 %v505
        %v2144 = vunpack.c.h.b16 %v505
        %v2145 = vunpack.c.l.b16 %v506
        %v2146 = vunpack.c.h.b16 %v506
        %v2147 = vunpack.c.l.b16 %v507
        %v2148 = vunpack.c.h.b16 %v507
        %v2149 = vunpack.c.l.b16 %v508
        %v2150 = vunpack.c.h.b16 %v508
        %v2151 = vunpack.c.l.b16 %v509
        %v2152 = vunpack.c.h.b16 %v509
        %v2153 = vunpack.c.l.b16 %v510
        %v2154 = vunpack.c.h.b16 %v510
        %v2155 = vunpack.c.l.b16 %v511
        %v2156 = vunpack.c.h.b16 %v511
        %v2157 = vunpack.c.l.b16 %v512
        %v2158 = vunpack.c.h.b16 %v512
        %v2159 = vunpack.c.l.b16 %v513
        %v2160 = vunpack.c.h.b16 %v513
        %v2161 = vunpack.c.l.b16 %v514
        %v2162 = vunpack.c.h.b16 %v514
        %v2163 = vunpack.c.l.b16 %v515
        %v2164 = vunpack.c.h.b16 %v515
        %v2165 = vunpack.c.l.b16 %v516
        %v2166 = vunpack.c.h.b16 %v516
        %v2167 = vunpack.c.l.b16 %v517
        %v2168 = vunpack.c.h.b16 %v517
        %v2169 = vunpack.c.l.b16 %v518
        %v2170 = vunpack.c.h.b16 %v518
        %v2171 = vunpack.c.l.b16 %v519
        %v2172 = vunpack.c.h.b16 %v519
        %v2173 = vunpack.c.l.b16 %v520
        %v2174 = vunpack.c.h.b16 %v520
        %v2175 = vunpack.c.l.b16 %v521
        %v2176 = vunpack.c.h.b16 %v521
        %v2177 = vunpack.c.l.b16 %v522
        %v2178 = vunpack.c.h.b16 %v522
        %v2179 = vunpack.c.l.b16 %v523
        %v2180 = vunpack.c.h.b16 %v523
        %v2181 = vunpack.c.l.b16 %v524
        %v2182 = vunpack.c.h.b16 %v524
        %v2183 = vunpack.c.l.b16 %v525
        %v2184 = vunpack.c.h.b16 %v525
        %v2185 = vunpack.c.l.b16 %v526
        %v2186 = vunpack.c.h.b16 %v526
        %v2187 = vunpack.c.l.b16 %v527
        %v2188 = vunpack.c.h.b16 %v527
        %v2189 = vunpack.c.l.b16 %v528
        %v2190 = vunpack.c.h.b16 %v528
        %v2191 = vunpack.c.l.b16 %v529
        %v2192 = vunpack.c.h.b16 %v529
        %v2193 = vunpack.c.l.b16 %v530
        %v2194 = vunpack.c.h.b16 %v530
        %v2195 = vunpack.c.l.b16 %v531
        %v2196 = vunpack.c.h.b16 %v531
        %v2197 = vunpack.c.l.b16 %v532
        %v2198 = vunpack.c.h.b16 %v532
        %v2199 = vunpack.c.l.b16 %v533
        %v2200 = vunpack.c.h.b16 %v533
        %v2201 = vunpack.c.l.b16 %v534
        %v2202 = vunpack.c.h.b16 %v534
        %v2203 = vunpack.c.l.b16 %v535
        %v2204 = vunpack.c.h.b16 %v535
        %v2205 = vunpack.c.l.b16 %v536
        %v2206 = vunpack.c.h.b16 %v536
        %v2207 = vunpack.c.l.b16 %v537
        %v2208 = vunpack.c.h.b16 %v537
        %v2209 = vunpack.c.l.b16 %v538
        %v2210 = vunpack.c.h.b16 %v538
        %v2211 = vunpack.c.l.b16 %v539
        %v2212 = vunpack.c.h.b16 %v539
        %v2213 = vunpack.c.l.b16 %v540
        %v2214 = vunpack.c.h.b16 %v540
        %v2215 = vunpack.c.l.b16 %v541
        %v2216 = vunpack.c.h.b16 %v541
        %v2217 = vunpack.c.l.b16 %v542
        %v2218 = vunpack.c.h.b16 %v542
        %v2219 = vunpack.c.l.b16 %v543
        %v2220 = vunpack.c.h.b16 %v543
        %v2221 = vunpack.c.l.b16 %v544
        %v2222 = vunpack.c.h.b16 %v544
        %v2223 = vunpack.c.l.b16 %v545
        %v2224 = vunpack.c.h.b16 %v545
        %v2225 = vunpack.c.l.b16 %v546
        %v2226 = vunpack.c.h.b16 %v546
        %v2227 = vunpack.c.l.b16 %v547
        %v2228 = vunpack.c.h.b16 %v547
        %v2229 = vunpack.c.l.b16 %v548
        %v2230 = vunpack.c.h.b16 %v548
        %v2231 = vunpack.c.l.b16 %v549
        %v2232 = vunpack.c.h.b16 %v549
        %v2233 = vunpack.c.l.b16 %v550
        %v2234 = vunpack.c.h.b16 %v550
        %v2235 = vunpack.c.l.b16 %v551
        %v2236 = vunpack.c.h.b16 %v551
        %v2237 = vunpack.c.l.b16 %v552
        %v2238 = vunpack.c.h.b16 %v552
        %v2239 = vunpack.c.l.b16 %v553
        %v2240 = vunpack.c.h.b16 %v553
        %v2241 = vunpack.c.l.b16 %v554
        %v2242 = vunpack.c.h.b16 %v554
        %v2243 = vunpack.c.l.b16 %v555
        %v2244 = vunpack.c.h.b16 %v555
        %v2245 = vunpack.c.l.b16 %v556
        %v2246 = vunpack.c.h.b16 %v556
        %v2247 = vunpack.c.l.b16 %v557
        %v2248 = vunpack.c.h.b16 %v557
        %v2249 = vunpack.c.l.b16 %v558
        %v2250 = vunpack.c.h.b16 %v558
        %v2251 = vunpack.c.l.b16 %v559
        %v2252 = vunpack.c.h.b16 %v559
        %v2253 = vunpack.c.l.b16 %v560
        %v2254 = vunpack.c.h.b16 %v560
        %v2255 = vunpack.c.l.b16 %v561
        %v2256 = vunpack.c.h.b16 %v561
        %v2257 = vunpack.c.l.b16 %v562
        %v2258 = vunpack.c.h.b16 %v562
        %v2259 = vunpack.c.l.b16 %v563
        %v2260 = vunpack.c.h.b16 %v563
        %v2261 = vunpack.c.l.b16 %v564
        %v2262 = vunpack.c.h.b16 %v564
        %v2263 = vunpack.c.l.b16 %v565
        %v2264 = vunpack.c.h.b16 %v565
        %v2265 = vunpack.c.l.b16 %v566
        %v2266 = vunpack.c.h.b16 %v566
        %v2267 = vunpack.c.l.b16 %v567
        %v2268 = vunpack.c.h.b16 %v567
        %v2269 = vunpack.c.l.b16 %v568
        %v2270 = vunpack.c.h.b16 %v568
        %v2271 = vunpack.c.l.b16 %v569
        %v2272 = vunpack.c.h.b16 %v569
        %v2273 = vunpack.c.l.b16 %v570
        %v2274 = vunpack.c.h.b16 %v570
        %v2275 = vunpack.c.l.b16 %v571
        %v2276 = vunpack.c.h.b16 %v571
        %v2277 = vunpack.c.l.b16 %v572
        %v2278 = vunpack.c.h.b16 %v572
        %v2279 = vunpack.c.l.b16 %v573
        %v2280 = vunpack.c.h.b16 %v573
        %v2281 = vunpack.c.l.b16 %v574
        %v2282 = vunpack.c.h.b16 %v574
        %v2283 = vunpack.c.l.b16 %v575
        %v2284 = vunpack.c.h.b16 %v575
        %v2285 = vunpack.c.l.b16 %v576
        %v2286 = vunpack.c.h.b16 %v576
        %v2287 = vunpack.c.l.b16 %v577
        %v2288 = vunpack.c.h.b16 %v577
        %v2289 = vunpack.c.l.b16 %v578
        %v2290 = vunpack.c.h.b16 %v578
        %v2291 = vunpack.c.l.b16 %v579
        %v2292 = vunpack.c.h.b16 %v579
        %v2293 = vunpack.c.l.b16 %v580
        %v2294 = vunpack.c.h.b16 %v580
        %v2295 = vunpack.c.l.b16 %v581
        %v2296 = vunpack.c.h.b16 %v581
        %v2297 = vunpack.c.l.b16 %v582
        %v2298 = vunpack.c.h.b16 %v582
        %v2299 = vunpack.c.l.b16 %v583
        %v2300 = vunpack.c.h.b16 %v583
        %v2301 = vunpack.c.l.b16 %v584
        %v2302 = vunpack.c.h.b16 %v584
        %v2303 = vunpack.c.l.b16 %v585
        %v2304 = vunpack.c.h.b16 %v585
        %v2305 = vunpack.c.l.b16 %v586
        %v2306 = vunpack.c.h.b16 %v586
        %v2307 = vunpack.c.l.b16 %v587
        %v2308 = vunpack.c.h.b16 %v587
        %v2309 = vunpack.c.l.b16 %v588
        %v2310 = vunpack.c.h.b16 %v588
        %v2311 = vunpack.c.l.b16 %v589
        %v2312 = vunpack.c.h.b16 %v589
        %v2313 = vunpack.c.l.b16 %v590
        %v2314 = vunpack.c.h.b16 %v590
        %v2315 = vunpack.c.l.b16 %v591
        %v2316 = vunpack.c.h.b16 %v591
        %v2317 = vunpack.c.l.b16 %v592
        %v2318 = vunpack.c.h.b16 %v592
        %v2319 = vunpack.c.l.b16 %v593
        %v2320 = vunpack.c.h.b16 %v593
        %v2321 = vunpack.c.l.b16 %v594
        %v2322 = vunpack.c.h.b16 %v594
        %v2323 = vunpack.c.l.b16 %v595
        %v2324 = vunpack.c.h.b16 %v595
        %v2325 = vunpack.c.l.b16 %v596
        %v2326 = vunpack.c.h.b16 %v596
        %v2327 = vunpack.c.l.b16 %v597
        %v2328 = vunpack.c.h.b16 %v597
        %v2329 = vunpack.c.l.b16 %v598
        %v2330 = vunpack.c.h.b16 %v598
        %v2331 = vunpack.c.l.b16 %v599
        %v2332 = vunpack.c.h.b16 %v599
        %v2333 = vunpack.c.l.b16 %v600
        %v2334 = vunpack.c.h.b16 %v600
        %v2335 = vunpack.c.l.b16 %v601
        %v2336 = vunpack.c.h.b16 %v601
        %v2337 = vunpack.c.l.b16 %v602
        %v2338 = vunpack.c.h.b16 %v602
        %v2339 = vunpack.c.l.b16 %v603
        %v2340 = vunpack.c.h.b16 %v603
        %v2341 = vunpack.c.l.b16 %v604
        %v2342 = vunpack.c.h.b16 %v604
        %v2343 = vunpack.c.l.b16 %v605
        %v2344 = vunpack.c.h.b16 %v605
        %v2345 = vunpack.c.l.b16 %v606
        %v2346 = vunpack.c.h.b16 %v606
        %v2347 = vunpack.c.l.b16 %v607
        %v2348 = vunpack.c.h.b16 %v607
        %v2349 = vunpack.c.l.b16 %v608
        %v2350 = vunpack.c.h.b16 %v608
        %v2351 = vunpack.c.l.b16 %v609
        %v2352 = vunpack.c.h.b16 %v609
        %v2353 = vunpack.c.l.b16 %v610
        %v2354 = vunpack.c.h.b16 %v610
        %v2355 = vunpack.c.l.b16 %v611
        %v2356 = vunpack.c.h.b16 %v611
        %v2357 = vunpack.c.l.b16 %v612
        %v2358 = vunpack.c.h.b16 %v612
        %v2359 = vunpack.c.l.b16 %v613
        %v2360 = vunpack.c.h.b16 %v613
        %v2361 = vunpack.c.l.b16 %v614
        %v2362 = vunpack.c.h.b16 %v614
        %v2363 = vunpack.c.l.b16 %v615
        %v2364 = vunpack.c.h.b16 %v615
        %v2365 = vunpack.c.l.b16 %v616
        %v2366 = vunpack.c.h.b16 %v616
        %v2367 = vunpack.c.l.b16 %v617
        %v2368 = vunpack.c.h.b16 %v617
        %v2369 = vunpack.c.l.b16 %v618
        %v2370 = vunpack.c.h.b16 %v618
        %v2371 = vunpack.c.l.b16 %v619
        %v2372 = vunpack.c.h.b16 %v619
        %v2373 = vunpack.c.l.b16 %v620
        %v2374 = vunpack.c.h.b16 %v620
        %v2375 = vunpack.c.l.b16 %v621
        %v2376 = vunpack.c.h.b16 %v621
        %v2377 = vunpack.c.l.b16 %v622
        %v2378 = vunpack.c.h.b16 %v622
        %v2379 = vunpack.c.l.b16 %v623
        %v2380 = vunpack.c.h.b16 %v623
        %v2381 = vunpack.c.l.b16 %v624
        %v2382 = vunpack.c.h.b16 %v624
        %v2383 = vunpack.c.l.b16 %v625
        %v2384 = vunpack.c.h.b16 %v625
        %v2385 = vunpack.c.l.b16 %v626
        %v2386 = vunpack.c.h.b16 %v626
        %v2387 = vunpack.c.l.b16 %v627
        %v2388 = vunpack.c.h.b16 %v627
        %v2389 = vunpack.c.l.b16 %v628
        %v2390 = vunpack.c.h.b16 %v628
        %v2391 = vunpack.c.l.b16 %v629
        %v2392 = vunpack.c.h.b16 %v629
        %v2393 = vunpack.c.l.b16 %v630
        %v2394 = vunpack.c.h.b16 %v630
        %v2395 = vunpack.c.l.b16 %v631
        %v2396 = vunpack.c.h.b16 %v631
        %v2397 = vunpack.c.l.b16 %v632
        %v2398 = vunpack.c.h.b16 %v632
        %v2399 = vunpack.c.l.b16 %v633
        %v2400 = vunpack.c.h.b16 %v633
        %v2401 = vunpack.c.l.b16 %v634
        %v2402 = vunpack.c.h.b16 %v634
        %v2403 = vunpack.c.l.b16 %v635
        %v2404 = vunpack.c.h.b16 %v635
        %v2405 = vunpack.c.l.b16 %v636
        %v2406 = vunpack.c.h.b16 %v636
        %v2407 = vunpack.c.l.b16 %v637
        %v2408 = vunpack.c.h.b16 %v637
        %v2409 = vunpack.c.l.b16 %v638
        %v2410 = vunpack.c.h.b16 %v638
        %v2411 = vunpack.c.l.b16 %v639
        %v2412 = vunpack.c.h.b16 %v639
        %v2413 = vunpack.c.l.b16 %v640
        %v2414 = vunpack.c.h.b16 %v640
        %v2415 = vunpack.c.l.b16 %v641
        %v2416 = vunpack.c.h.b16 %v641
        %v2417 = vunpack.c.l.b16 %v642
        %v2418 = vunpack.c.h.b16 %v642
        %v2419 = vunpack.c.l.b16 %v643
        %v2420 = vunpack.c.h.b16 %v643
        %v2421 = vunpack.c.l.b16 %v644
        %v2422 = vunpack.c.h.b16 %v644
        %v2423 = vunpack.c.l.b16 %v645
        %v2424 = vunpack.c.h.b16 %v645
        %v2425 = vunpack.c.l.b16 %v646
        %v2426 = vunpack.c.h.b16 %v646
        %v2427 = vunpack.c.l.b16 %v647
        %v2428 = vunpack.c.h.b16 %v647
        %v2429 = vunpack.c.l.b16 %v648
        %v2430 = vunpack.c.h.b16 %v648
        %v2431 = vunpack.c.l.b16 %v649
        %v2432 = vunpack.c.h.b16 %v649
        %v2433 = vunpack.c.l.b16 %v650
        %v2434 = vunpack.c.h.b16 %v650
        %v2435 = vunpack.c.l.b16 %v651
        %v2436 = vunpack.c.h.b16 %v651
        %v2437 = vunpack.c.l.b16 %v652
        %v2438 = vunpack.c.h.b16 %v652
        %v2439 = vunpack.c.l.b16 %v653
        %v2440 = vunpack.c.h.b16 %v653
        %v2441 = vunpack.c.l.b16 %v654
        %v2442 = vunpack.c.h.b16 %v654
        %v2443 = vunpack.c.l.b16 %v655
        %v2444 = vunpack.c.h.b16 %v655
        %v2445 = vunpack.c.l.b16 %v656
        %v2446 = vunpack.c.h.b16 %v656
        %v2447 = vunpack.c.l.b16 %v657
        %v2448 = vunpack.c.h.b16 %v657
        %v2449 = vunpack.c.l.b16 %v658
        %v2450 = vunpack.c.h.b16 %v658
        %v2451 = vunpack.c.l.b16 %v659
        %v2452 = vunpack.c.h.b16 %v659
        %v2453 = vunpack.c.l.b16 %v660
        %v2454 = vunpack.c.h.b16 %v660
        %v2455 = vunpack.c.l.b16 %v661
        %v2456 = vunpack.c.h.b16 %v661
        %v2457 = vunpack.c.l.b16 %v662
        %v2458 = vunpack.c.h.b16 %v662
        %v2459 = vunpack.c.l.b16 %v663
        %v2460 = vunpack.c.h.b16 %v663
        %v2461 = vunpack.c.l.b16 %v664
        %v2462 = vunpack.c.h.b16 %v664
        %v2463 = vunpack.c.l.b16 %v665
        %v2464 = vunpack.c.h.b16 %v665
        %v2465 = vunpack.c.l.b16 %v666
        %v2466 = vunpack.c.h.b16 %v666
        %v2467 = vunpack.c.l.b16 %v667
        %v2468 = vunpack.c.h.b16 %v667
        %v2469 = vunpack.c.l.b16 %v668
        %v2470 = vunpack.c.h.b16 %v668
        %v2471 = vunpack.c.l.b16 %v669
        %v2472 = vunpack.c.h.b16 %v669
        %v2473 = vunpack.c.l.b16 %v670
        %v2474 = vunpack.c.h.b16 %v670
        %v2475 = vunpack.c.l.b16 %v671
        %v2476 = vunpack.c.h.b16 %v671
        %v2477 = vunpack.c.l.b16 %v672
        %v2478 = vunpack.c.h.b16 %v672
        %v2479 = vunpack.c.l.b16 %v673
        %v2480 = vunpack.c.h.b16 %v673
        %v2481 = vunpack.c.l.b16 %v674
        %v2482 = vunpack.c.h.b16 %v674
        %v2483 = vunpack.c.l.b16 %v675
        %v2484 = vunpack.c.h.b16 %v675
        %v2485 = vunpack.c.l.b16 %v676
        %v2486 = vunpack.c.h.b16 %v676
        %v2487 = vunpack.c.l.b16 %v677
        %v2488 = vunpack.c.h.b16 %v677
        %v2489 = vunpack.c.l.b16 %v678
        %v2490 = vunpack.c.h.b16 %v678
        %v2491 = vunpack.c.l.b16 %v679
        %v2492 = vunpack.c.h.b16 %v679
        %v2493 = vunpack.c.l.b16 %v680
        %v2494 = vunpack.c.h.b16 %v680
        %v2495 = vunpack.c.l.b16 %v681
        %v2496 = vunpack.c.h.b16 %v681
        %v2497 = vunpack.c.l.b16 %v682
        %v2498 = vunpack.c.h.b16 %v682
        %v2499 = vunpack.c.l.b16 %v683
        %v2500 = vunpack.c.h.b16 %v683
        %v2501 = vunpack.c.l.b16 %v684
        %v2502 = vunpack.c.h.b16 %v684
        %v2503 = vunpack.c.l.b16 %v685
        %v2504 = vunpack.c.h.b16 %v685
        %v2505 = vunpack.c.l.b16 %v686
        %v2506 = vunpack.c.h.b16 %v686
        %v2507 = vunpack.c.l.b16 %v687
        %v2508 = vunpack.c.h.b16 %v687
        %v2509 = vunpack.c.l.b16 %v688
        %v2510 = vunpack.c.h.b16 %v688
        %v2511 = vunpack.c.l.b16 %v689
        %v2512 = vunpack.c.h.b16 %v689
        %v2513 = vunpack.c.l.b16 %v690
        %v2514 = vunpack.c.h.b16 %v690
        %v2515 = vunpack.c.l.b16 %v691
        %v2516 = vunpack.c.h.b16 %v691
        %v2517 = vunpack.c.l.b16 %v692
        %v2518 = vunpack.c.h.b16 %v692
        %v2519 = vunpack.c.l.b16 %v693
        %v2520 = vunpack.c.h.b16 %v693
        %v2521 = vunpack.c.l.b16 %v694
        %v2522 = vunpack.c.h.b16 %v694
        %v2523 = vunpack.c.l.b16 %v695
        %v2524 = vunpack.c.h.b16 %v695
        %v2525 = vunpack.c.l.b16 %v696
        %v2526 = vunpack.c.h.b16 %v696
        %v2527 = vunpack.c.l.b16 %v697
        %v2528 = vunpack.c.h.b16 %v697
        %v2529 = vunpack.c.l.b16 %v698
        %v2530 = vunpack.c.h.b16 %v698
        %v2531 = vunpack.c.l.b16 %v699
        %v2532 = vunpack.c.h.b16 %v699
        %v2533 = vunpack.c.l.b16 %v700
        %v2534 = vunpack.c.h.b16 %v700
        %v2535 = vunpack.c.l.b16 %v701
        %v2536 = vunpack.c.h.b16 %v701
        %v2537 = vunpack.c.l.b16 %v702
        %v2538 = vunpack.c.h.b16 %v702
        %v2539 = vunpack.c.l.b16 %v703
        %v2540 = vunpack.c.h.b16 %v703
        %v2541 = vunpack.c.l.b16 %v704
        %v2542 = vunpack.c.h.b16 %v704
        %v2543 = vunpack.c.l.b16 %v705
        %v2544 = vunpack.c.h.b16 %v705
        %v2545 = vunpack.c.l.b16 %v706
        %v2546 = vunpack.c.h.b16 %v706
        %v2547 = vunpack.c.l.b16 %v707
        %v2548 = vunpack.c.h.b16 %v707
        %v2549 = vunpack.c.l.b16 %v708
        %v2550 = vunpack.c.h.b16 %v708
        %v2551 = vunpack.c.l.b16 %v709
        %v2552 = vunpack.c.h.b16 %v709
        %v2553 = vunpack.c.l.b16 %v710
        %v2554 = vunpack.c.h.b16 %v710
        %v2555 = vunpack.c.l.b16 %v711
        %v2556 = vunpack.c.h.b16 %v711
        %v2557 = vunpack.c.l.b16 %v712
        %v2558 = vunpack.c.h.b16 %v712
        %v2559 = vunpack.c.l.b16 %v713
        %v2560 = vunpack.c.h.b16 %v713
        %v2561 = vunpack.c.l.b16 %v714
        %v2562 = vunpack.c.h.b16 %v714
        %v2563 = vunpack.c.l.b16 %v715
        %v2564 = vunpack.c.h.b16 %v715
        %v2565 = vunpack.c.l.b16 %v716
        %v2566 = vunpack.c.h.b16 %v716
        %v2567 = vunpack.c.l.b16 %v717
        %v2568 = vunpack.c.h.b16 %v717
        %v2569 = vunpack.c.l.b16 %v718
        %v2570 = vunpack.c.h.b16 %v718
        %v2571 = vunpack.c.l.b16 %v719
        %v2572 = vunpack.c.h.b16 %v719
        %v2573 = vunpack.c.l.b16 %v720
        %v2574 = vunpack.c.h.b16 %v720
        %v2575 = vunpack.c.l.b16 %v721
        %v2576 = vunpack.c.h.b16 %v721
        %v2577 = vunpack.c.l.b16 %v722
        %v2578 = vunpack.c.h.b16 %v722
        %v2579 = vunpack.c.l.b16 %v723
        %v2580 = vunpack.c.h.b16 %v723
        %v2581 = vunpack.c.l.b16 %v724
        %v2582 = vunpack.c.h.b16 %v724
        %v2583 = vunpack.c.l.b16 %v725
        %v2584 = vunpack.c.h.b16 %v725
        %v2585 = vunpack.c.l.b16 %v726
        %v2586 = vunpack.c.h.b16 %v726
        %v2587 = vunpack.c.l.b16 %v727
        %v2588 = vunpack.c.h.b16 %v727
        %v2589 = vunpack.c.l.b16 %v728
        %v2590 = vunpack.c.h.b16 %v728
        %v2591 = vunpack.c.l.b16 %v729
        %v2592 = vunpack.c.h.b16 %v729
        %v2593 = vunpack.c.l.b16 %v730
        %v2594 = vunpack.c.h.b16 %v730
        %v2595 = vunpack.c.l.b16 %v731
        %v2596 = vunpack.c.h.b16 %v731
        %v2597 = vunpack.c.l.b16 %v732
        %v2598 = vunpack.c.h.b16 %v732
        %v2599 = vunpack.c.l.b16 %v733
        %v2600 = vunpack.c.h.b16 %v733
        %v2601 = vunpack.c.l.b16 %v734
        %v2602 = vunpack.c.h.b16 %v734
        %v2603 = vunpack.c.l.b16 %v735
        %v2604 = vunpack.c.h.b16 %v735
        %v2605 = vunpack.c.l.b16 %v736
        %v2606 = vunpack.c.h.b16 %v736
        %v2607 = vunpack.c.l.b16 %v737
        %v2608 = vunpack.c.h.b16 %v737
        %v2609 = vunpack.c.l.b16 %v738
        %v2610 = vunpack.c.h.b16 %v738
        %v2611 = vunpack.c.l.b16 %v739
        %v2612 = vunpack.c.h.b16 %v739
        %v2613 = vunpack.c.l.b16 %v740
        %v2614 = vunpack.c.h.b16 %v740
        %v2615 = vunpack.c.l.b16 %v741
        %v2616 = vunpack.c.h.b16 %v741
        %v2617 = vunpack.c.l.b16 %v742
        %v2618 = vunpack.c.h.b16 %v742
        %v2619 = vunpack.c.l.b16 %v743
        %v2620 = vunpack.c.h.b16 %v743
        %v2621 = vunpack.c.l.b16 %v744
        %v2622 = vunpack.c.h.b16 %v744
        %v2623 = vunpack.c.l.b16 %v745
        %v2624 = vunpack.c.h.b16 %v745
        %v2625 = vunpack.c.l.b16 %v746
        %v2626 = vunpack.c.h.b16 %v746
        %v2627 = vunpack.c.l.b16 %v747
        %v2628 = vunpack.c.h.b16 %v747
        %v2629 = vunpack.c.l.b16 %v748
        %v2630 = vunpack.c.h.b16 %v748
        %v2631 = vunpack.c.l.b16 %v749
        %v2632 = vunpack.c.h.b16 %v749
        %v2633 = vunpack.c.l.b16 %v750
        %v2634 = vunpack.c.h.b16 %v750
        %v2635 = vunpack.c.l.b16 %v751
        %v2636 = vunpack.c.h.b16 %v751
        %v2637 = vunpack.c.l.b16 %v752
        %v2638 = vunpack.c.h.b16 %v752
        %v2639 = vunpack.c.l.b16 %v753
        %v2640 = vunpack.c.h.b16 %v753
        %v2641 = vunpack.c.l.b16 %v754
        %v2642 = vunpack.c.h.b16 %v754
        %v2643 = vunpack.c.l.b16 %v755
        %v2644 = vunpack.c.h.b16 %v755
        %v2645 = vunpack.c.l.b16 %v756
        %v2646 = vunpack.c.h.b16 %v756
        %v2647 = vunpack.c.l.b16 %v757
        %v2648 = vunpack.c.h.b16 %v757
        %v2649 = vunpack.c.l.b16 %v758
        %v2650 = vunpack.c.h.b16 %v758
        %v2651 = vunpack.c.l.b16 %v759
        %v2652 = vunpack.c.h.b16 %v759
        %v2653 = vunpack.c.l.b16 %v760
        %v2654 = vunpack.c.h.b16 %v760
        %v2655 = vunpack.c.l.b16 %v761
        %v2656 = vunpack.c.h.b16 %v761
        %v2657 = vunpack.c.l.b16 %v762
        %v2658 = vunpack.c.h.b16 %v762
        %v2659 = vunpack.c.l.b16 %v763
        %v2660 = vunpack.c.h.b16 %v763
        %v2661 = vunpack.c.l.b16 %v764
        %v2662 = vunpack.c.h.b16 %v764
        %v2663 = vunpack.c.l.b16 %v765
        %v2664 = vunpack.c.h.b16 %v765
        %v2665 = vunpack.c.l.b16 %v766
        %v2666 = vunpack.c.h.b16 %v766
        %v2667 = vunpack.c.l.b16 %v767
        %v2668 = vunpack.c.h.b16 %v767
        %v2669 = vunpack.c.l.b16 %v768
        %v2670 = vunpack.c.h.b16 %v768
        %v2671 = vunpack.c.l.b16 %v769
        %v2672 = vunpack.c.h.b16 %v769
        %v2673 = vunpack.c.l.b16 %v770
        %v2674 = vunpack.c.h.b16 %v770
        %v2675 = vunpack.c.l.b16 %v771
        %v2676 = vunpack.c.h.b16 %v771
        %v2677 = vunpack.c.l.b16 %v772
        %v2678 = vunpack.c.h.b16 %v772
        %v2679 = vunpack.c.l.b16 %v773
        %v2680 = vunpack.c.h.b16 %v773
        %v2681 = vunpack.c.l.b16 %v774
        %v2682 = vunpack.c.h.b16 %v774
        %v2683 = vunpack.c.l.b16 %v775
        %v2684 = vunpack.c.h.b16 %v775
        %v2685 = vunpack.c.l.b16 %v776
        %v2686 = vunpack.c.h.b16 %v776
        %v2687 = vunpack.c.l.b16 %v777
        %v2688 = vunpack.c.h.b16 %v777
        %v2689 = vunpack.c.l.b16 %v778
        %v2690 = vunpack.c.h.b16 %v778
        %v2691 = vunpack.c.l.b16 %v779
        %v2692 = vunpack.c.h.b16 %v779
        %v2693 = vunpack.c.l.b16 %v780
        %v2694 = vunpack.c.h.b16 %v780
        %v2695 = vunpack.c.l.b16 %v781
        %v2696 = vunpack.c.h.b16 %v781
        %v2697 = vunpack.c.l.b16 %v782
        %v2698 = vunpack.c.h.b16 %v782
        %v2699 = vunpack.c.l.b16 %v783
        %v2700 = vunpack.c.h.b16 %v783
        %v2701 = vunpack.c.l.b16 %v784
        %v2702 = vunpack.c.h.b16 %v784
        %v2703 = vunpack.c.l.b16 %v785
        %v2704 = vunpack.c.h.b16 %v785
        %v2705 = vunpack.c.l.b16 %v786
        %v2706 = vunpack.c.h.b16 %v786
        %v2707 = vunpack.c.l.b16 %v787
        %v2708 = vunpack.c.h.b16 %v787
        %v2709 = vunpack.c.l.b16 %v788
        %v2710 = vunpack.c.h.b16 %v788
        %v2711 = vunpack.c.l.b16 %v789
        %v2712 = vunpack.c.h.b16 %v789
        %v2713 = vunpack.c.l.b16 %v790
        %v2714 = vunpack.c.h.b16 %v790
        %v2715 = vunpack.c.l.b16 %v791
        %v2716 = vunpack.c.h.b16 %v791
        %v2717 = vunpack.c.l.b16 %v792
        %v2718 = vunpack.c.h.b16 %v792
        %v2719 = vunpack.c.l.b16 %v793
        %v2720 = vunpack.c.h.b16 %v793
        %v2721 = vunpack.c.l.b16 %v794
        %v2722 = vunpack.c.h.b16 %v794
        %v2723 = vunpack.c.l.b16 %v795
        %v2724 = vunpack.c.h.b16 %v795
        %v2725 = vunpack.c.l.b16 %v796
        %v2726 = vunpack.c.h.b16 %v796
        %v2727 = vunpack.c.l.b16 %v797
        %v2728 = vunpack.c.h.b16 %v797
        %v2729 = vunpack.c.l.b16 %v798
        %v2730 = vunpack.c.h.b16 %v798
        %v2731 = vunpack.c.l.b16 %v799
        %v2732 = vunpack.c.h.b16 %v799
        %v2733 = vunpack.c.l.b16 %v800
        %v2734 = vunpack.c.h.b16 %v800
        %v2735 = vunpack.c.l.b16 %v801
        %v2736 = vunpack.c.h.b16 %v801
        %v2737 = vunpack.c.l.b16 %v802
        %v2738 = vunpack.c.h.b16 %v802
        %v2739 = vunpack.c.l.b16 %v803
        %v2740 = vunpack.c.h.b16 %v803
        %v2741 = vunpack.c.l.b16 %v804
        %v2742 = vunpack.c.h.b16 %v804
        %v2743 = vunpack.c.l.b16 %v805
        %v2744 = vunpack.c.h.b16 %v805
        %v2745 = vunpack.c.l.b16 %v806
        %v2746 = vunpack.c.h.b16 %v806
        %v2747 = vunpack.c.l.b16 %v807
        %v2748 = vunpack.c.h.b16 %v807
        %v2749 = vunpack.c.l.b16 %v808
        %v2750 = vunpack.c.h.b16 %v808
        %v2751 = vunpack.c.l.b16 %v809
        %v2752 = vunpack.c.h.b16 %v809
        %v2753 = vunpack.c.l.b16 %v810
        %v2754 = vunpack.c.h.b16 %v810
        %v2755 = vunpack.c.l.b16 %v811
        %v2756 = vunpack.c.h.b16 %v811
        %v2757 = vunpack.c.l.b16 %v812
        %v2758 = vunpack.c.h.b16 %v812
        %v2759 = vunpack.c.l.b16 %v813
        %v2760 = vunpack.c.h.b16 %v813
        %v2761 = vunpack.c.l.b16 %v814
        %v2762 = vunpack.c.h.b16 %v814
        %v2763 = vunpack.c.l.b16 %v815
        %v2764 = vunpack.c.h.b16 %v815
        %v2765 = vunpack.c.l.b16 %v816
        %v2766 = vunpack.c.h.b16 %v816
        %v2767 = vunpack.c.l.b16 %v817
        %v2768 = vunpack.c.h.b16 %v817
        %v2769 = vunpack.c.l.b16 %v818
        %v2770 = vunpack.c.h.b16 %v818
        %v2771 = vunpack.c.l.b16 %v819
        %v2772 = vunpack.c.h.b16 %v819
        %v2773 = vunpack.c.l.b16 %v820
        %v2774 = vunpack.c.h.b16 %v820
        %v2775 = vunpack.c.l.b16 %v821
        %v2776 = vunpack.c.h.b16 %v821
        %v2777 = vunpack.c.l.b16 %v822
        %v2778 = vunpack.c.h.b16 %v822
        %v2779 = vunpack.c.l.b16 %v823
        %v2780 = vunpack.c.h.b16 %v823
        %v2781 = vunpack.c.l.b16 %v824
        %v2782 = vunpack.c.h.b16 %v824
        %v2783 = vunpack.c.l.b16 %v825
        %v2784 = vunpack.c.h.b16 %v825
        %v2785 = vunpack.c.l.b16 %v826
        %v2786 = vunpack.c.h.b16 %v826
        %v2787 = vunpack.c.l.b16 %v827
        %v2788 = vunpack.c.h.b16 %v827
        %v2789 = vunpack.c.l.b16 %v828
        %v2790 = vunpack.c.h.b16 %v828
        %v2791 = vunpack.c.l.b16 %v829
        %v2792 = vunpack.c.h.b16 %v829
        %v2793 = vunpack.c.l.b16 %v830
        %v2794 = vunpack.c.h.b16 %v830
        %v2795 = vunpack.c.l.b16 %v831
        %v2796 = vunpack.c.h.b16 %v831
        %v2797 = vunpack.c.l.b16 %v832
        %v2798 = vunpack.c.h.b16 %v832
        %v2799 = vunpack.c.l.b16 %v833
        %v2800 = vunpack.c.h.b16 %v833
        %v2801 = vunpack.c.l.b16 %v834
        %v2802 = vunpack.c.h.b16 %v834
        %v2803 = vunpack.c.l.b16 %v835
        %v2804 = vunpack.c.h.b16 %v835
        %v2805 = vunpack.c.l.b16 %v836
        %v2806 = vunpack.c.h.b16 %v836
        %v2807 = vunpack.c.l.b16 %v837
        %v2808 = vunpack.c.h.b16 %v837
        %v2809 = vunpack.c.l.b16 %v838
        %v2810 = vunpack.c.h.b16 %v838
        %v2811 = vunpack.c.l.b16 %v839
        %v2812 = vunpack.c.h.b16 %v839
        %v2813 = vunpack.c.l.b16 %v840
        %v2814 = vunpack.c.h.b16 %v840
        %v2815 = vunpack.c.l.b16 %v841
        %v2816 = vunpack.c.h.b16 %v841
        %v2817 = vunpack.c.l.b16 %v842
        %v2818 = vunpack.c.h.b16 %v842
        %v2819 = vunpack.c.l.b16 %v843
        %v2820 = vunpack.c.h.b16 %v843
        %v2821 = vunpack.c.l.b16 %v844
        %v2822 = vunpack.c.h.b16 %v844
        %v2823 = vunpack.c.l.b16 %v845
        %v2824 = vunpack.c.h.b16 %v845
        %v2825 = vunpack.c.l.b16 %v846
        %v2826 = vunpack.c.h.b16 %v846
        %v2827 = vunpack.c.l.b16 %v847
        %v2828 = vunpack.c.h.b16 %v847
        %v2829 = vunpack.c.l.b16 %v848
        %v2830 = vunpack.c.h.b16 %v848
        %v2831 = vunpack.c.l.b16 %v849
        %v2832 = vunpack.c.h.b16 %v849
        %v2833 = vunpack.c.l.b16 %v850
        %v2834 = vunpack.c.h.b16 %v850
        %v2835 = vunpack.c.l.b16 %v851
        %v2836 = vunpack.c.h.b16 %v851
        %v2837 = vunpack.c.l.b16 %v852
        %v2838 = vunpack.c.h.b16 %v852
        %v2839 = vunpack.c.l.b16 %v853
        %v2840 = vunpack.c.h.b16 %v853
        %v2841 = vunpack.c.l.b16 %v854
        %v2842 = vunpack.c.h.b16 %v854
        %v2843 = vunpack.c.l.b16 %v855
        %v2844 = vunpack.c.h.b16 %v855
        %v2845 = vunpack.c.l.b16 %v856
        %v2846 = vunpack.c.h.b16 %v856
        %v2847 = vunpack.c.l.b16 %v857
        %v2848 = vunpack.c.h.b16 %v857
        %v2849 = vunpack.c.l.b16 %v858
        %v2850 = vunpack.c.h.b16 %v858
        %v2851 = vunpack.c.l.b16 %v859
        %v2852 = vunpack.c.h.b16 %v859
        %v2853 = vunpack.c.l.b16 %v860
        %v2854 = vunpack.c.h.b16 %v860
        %v2855 = vunpack.c.l.b16 %v861
        %v2856 = vunpack.c.h.b16 %v861
        %v2857 = vunpack.c.l.b16 %v862
        %v2858 = vunpack.c.h.b16 %v862
        %v2859 = vunpack.c.l.b16 %v863
        %v2860 = vunpack.c.h.b16 %v863
        %v2861 = vunpack.c.l.b16 %v864
        %v2862 = vunpack.c.h.b16 %v864
        %v2863 = vunpack.c.l.b16 %v865
        %v2864 = vunpack.c.h.b16 %v865
        %v2865 = vunpack.c.l.b16 %v866
        %v2866 = vunpack.c.h.b16 %v866
        %v2867 = vunpack.c.l.b16 %v867
        %v2868 = vunpack.c.h.b16 %v867
        %v2869 = vunpack.c.l.b16 %v868
        %v2870 = vunpack.c.h.b16 %v868
        %v2871 = vunpack.c.l.b16 %v869
        %v2872 = vunpack.c.h.b16 %v869
        %v2873 = vunpack.c.l.b16 %v870
        %v2874 = vunpack.c.h.b16 %v870
        %v2875 = vunpack.c.l.b16 %v871
        %v2876 = vunpack.c.h.b16 %v871
        %v2877 = vunpack.c.l.b16 %v872
        %v2878 = vunpack.c.h.b16 %v872
        %v2879 = vunpack.c.l.b16 %v873
        %v2880 = vunpack.c.h.b16 %v873
        %v2881 = vunpack.c.l.b16 %v874
        %v2882 = vunpack.c.h.b16 %v874
        %v2883 = vunpack.c.l.b16 %v875
        %v2884 = vunpack.c.h.b16 %v875
        %v2885 = vunpack.c.l.b16 %v876
        %v2886 = vunpack.c.h.b16 %v876
        %v2887 = vunpack.c.l.b16 %v877
        %v2888 = vunpack.c.h.b16 %v877
        %v2889 = vunpack.c.l.b16 %v878
        %v2890 = vunpack.c.h.b16 %v878
        %v2891 = vunpack.c.l.b16 %v879
        %v2892 = vunpack.c.h.b16 %v879
        %v2893 = vunpack.c.l.b16 %v880
        %v2894 = vunpack.c.h.b16 %v880
        %v2895 = vunpack.c.l.b16 %v881
        %v2896 = vunpack.c.h.b16 %v881
        %v2897 = vunpack.c.l.b16 %v882
        %v2898 = vunpack.c.h.b16 %v882
        %v2899 = vunpack.c.l.b16 %v883
        %v2900 = vunpack.c.h.b16 %v883
        %v2901 = vunpack.c.l.b16 %v884
        %v2902 = vunpack.c.h.b16 %v884
        %v2903 = vunpack.c.l.b16 %v885
        %v2904 = vunpack.c.h.b16 %v885
        %v2905 = vunpack.c.l.b16 %v886
        %v2906 = vunpack.c.h.b16 %v886
        %v2907 = vunpack.c.l.b16 %v887
        %v2908 = vunpack.c.h.b16 %v887
        %v2909 = vunpack.c.l.b16 %v888
        %v2910 = vunpack.c.h.b16 %v888
        %v2911 = vunpack.c.l.b16 %v889
        %v2912 = vunpack.c.h.b16 %v889
        %v2913 = vunpack.c.l.b16 %v890
        %v2914 = vunpack.c.h.b16 %v890
        %v2915 = vunpack.c.l.b16 %v891
        %v2916 = vunpack.c.h.b16 %v891
        %v2917 = vunpack.c.l.b16 %v892
        %v2918 = vunpack.c.h.b16 %v892
        %v2919 = vunpack.c.l.b16 %v893
        %v2920 = vunpack.c.h.b16 %v893
        %v2921 = vunpack.c.l.b16 %v894
        %v2922 = vunpack.c.h.b16 %v894
        %v2923 = vunpack.c.l.b16 %v895
        %v2924 = vunpack.c.h.b16 %v895
        %v2925 = vunpack.c.l.b16 %v896
        %v2926 = vunpack.c.h.b16 %v896
        %v2927 = vunpack.c.l.b16 %v897
        %v2928 = vunpack.c.h.b16 %v897
        %v2929 = vunpack.c.l.b16 %v898
        %v2930 = vunpack.c.h.b16 %v898
        %v2931 = vunpack.c.l.b16 %v899
        %v2932 = vunpack.c.h.b16 %v899
        %v2933 = vunpack.c.l.b16 %v900
        %v2934 = vunpack.c.h.b16 %v900
        %v2935 = vunpack.c.l.b16 %v901
        %v2936 = vunpack.c.h.b16 %v901
        %v2937 = vunpack.c.l.b16 %v902
        %v2938 = vunpack.c.h.b16 %v902
        %v2939 = vunpack.c.l.b16 %v903
        %v2940 = vunpack.c.h.b16 %v903
        %v2941 = vunpack.c.l.b16 %v904
        %v2942 = vunpack.c.h.b16 %v904
        %v2943 = vunpack.c.l.b16 %v905
        %v2944 = vunpack.c.h.b16 %v905
        %v2945 = vunpack.c.l.b16 %v906
        %v2946 = vunpack.c.h.b16 %v906
        %v2947 = vunpack.c.l.b16 %v907
        %v2948 = vunpack.c.h.b16 %v907
        %v2949 = vunpack.c.l.b16 %v908
        %v2950 = vunpack.c.h.b16 %v908
        %v2951 = vunpack.c.l.b16 %v909
        %v2952 = vunpack.c.h.b16 %v909
        %v2953 = vunpack.c.l.b16 %v910
        %v2954 = vunpack.c.h.b16 %v910
        %v2955 = vunpack.c.l.b16 %v911
        %v2956 = vunpack.c.h.b16 %v911
        %v2957 = vunpack.c.l.b16 %v912
        %v2958 = vunpack.c.h.b16 %v912
        %v2959 = vunpack.c.l.b16 %v913
        %v2960 = vunpack.c.h.b16 %v913
        %v2961 = vunpack.c.l.b16 %v914
        %v2962 = vunpack.c.h.b16 %v914
        %v2963 = vunpack.c.l.b16 %v915
        %v2964 = vunpack.c.h.b16 %v915
        %v2965 = vunpack.c.l.b16 %v916
        %v2966 = vunpack.c.h.b16 %v916
        %v2967 = vunpack.c.l.b16 %v917
        %v2968 = vunpack.c.h.b16 %v917
        %v2969 = vunpack.c.l.b16 %v918
        %v2970 = vunpack.c.h.b16 %v918
        %v2971 = vunpack.c.l.b16 %v919
        %v2972 = vunpack.c.h.b16 %v919
        %v2973 = vunpack.c.l.b16 %v920
        %v2974 = vunpack.c.h.b16 %v920
        %v2975 = vunpack.c.l.b16 %v921
        %v2976 = vunpack.c.h.b16 %v921
        %v2977 = vunpack.c.l.b16 %v922
        %v2978 = vunpack.c.h.b16 %v922
        %v2979 = vunpack.c.l.b16 %v923
        %v2980 = vunpack.c.h.b16 %v923
        %v2981 = vunpack.c.l.b16 %v924
        %v2982 = vunpack.c.h.b16 %v924
        %v2983 = vunpack.c.l.b16 %v925
        %v2984 = vunpack.c.h.b16 %v925
        %v2985 = vunpack.c.l.b16 %v926
        %v2986 = vunpack.c.h.b16 %v926
        %v2987 = vunpack.c.l.b16 %v927
        %v2988 = vunpack.c.h.b16 %v927
        %v2989 = vunpack.c.l.b16 %v928
        %v2990 = vunpack.c.h.b16 %v928
        %v2991 = vunpack.c.l.b16 %v929
        %v2992 = vunpack.c.h.b16 %v929
        %v2993 = vunpack.c.l.b16 %v930
        %v2994 = vunpack.c.h.b16 %v930
        %v2995 = vunpack.c.l.b16 %v931
        %v2996 = vunpack.c.h.b16 %v931
        %v2997 = vunpack.c.l.b16 %v932
        %v2998 = vunpack.c.h.b16 %v932
        %v2999 = vunpack.c.l.b16 %v933
        %v3000 = vunpack.c.h.b16 %v933
        %v3001 = vunpack.c.l.b16 %v934
        %v3002 = vunpack.c.h.b16 %v934
        %v3003 = vunpack.c.l.b16 %v935
        %v3004 = vunpack.c.h.b16 %v935
        %v3005 = vunpack.c.l.b16 %v936
        %v3006 = vunpack.c.h.b16 %v936
        %v3007 = vunpack.c.l.b16 %v937
        %v3008 = vunpack.c.h.b16 %v937
        %v3009 = vunpack.c.l.b16 %v938
        %v3010 = vunpack.c.h.b16 %v938
        %v3011 = vunpack.c.l.b16 %v939
        %v3012 = vunpack.c.h.b16 %v939
        %v3013 = vunpack.c.l.b16 %v940
        %v3014 = vunpack.c.h.b16 %v940
        %v3015 = vunpack.c.l.b16 %v941
        %v3016 = vunpack.c.h.b16 %v941
        %v3017 = vunpack.c.l.b16 %v942
        %v3018 = vunpack.c.h.b16 %v942
        %v3019 = vunpack.c.l.b16 %v943
        %v3020 = vunpack.c.h.b16 %v943
        %v3021 = vunpack.c.l.b16 %v944
        %v3022 = vunpack.c.h.b16 %v944
        %v3023 = vunpack.c.l.b16 %v945
        %v3024 = vunpack.c.h.b16 %v945
        %v3025 = vunpack.c.l.b16 %v946
        %v3026 = vunpack.c.h.b16 %v946
        %v3027 = vunpack.c.l.b16 %v947
        %v3028 = vunpack.c.h.b16 %v947
        %v3029 = vunpack.c.l.b16 %v948
        %v3030 = vunpack.c.h.b16 %v948
        %v3031 = vunpack.c.l.b16 %v949
        %v3032 = vunpack.c.h.b16 %v949
        %v3033 = vunpack.c.l.b16 %v950
        %v3034 = vunpack.c.h.b16 %v950
        %v3035 = vunpack.c.l.b16 %v951
        %v3036 = vunpack.c.h.b16 %v951
        %v3037 = vunpack.c.l.b16 %v952
        %v3038 = vunpack.c.h.b16 %v952
        %v3039 = vunpack.c.l.b16 %v953
        %v3040 = vunpack.c.h.b16 %v953
        %v3041 = vunpack.c.l.b16 %v954
        %v3042 = vunpack.c.h.b16 %v954
        %v3043 = vunpack.c.l.b16 %v955
        %v3044 = vunpack.c.h.b16 %v955
        %v3045 = vunpack.c.l.b16 %v956
        %v3046 = vunpack.c.h.b16 %v956
        %v3047 = vunpack.c.l.b16 %v957
        %v3048 = vunpack.c.h.b16 %v957
        %v3049 = vunpack.c.l.b16 %v958
        %v3050 = vunpack.c.h.b16 %v958
        %v3051 = vunpack.c.l.b16 %v959
        %v3052 = vunpack.c.h.b16 %v959
        %v3053 = vunpack.c.l.b16 %v960
        %v3054 = vunpack.c.h.b16 %v960
        %v3055 = vunpack.c.l.b16 %v961
        %v3056 = vunpack.c.h.b16 %v961
        %v3057 = vunpack.c.l.b16 %v962
        %v3058 = vunpack.c.h.b16 %v962
        %v3059 = vunpack.c.l.b16 %v963
        %v3060 = vunpack.c.h.b16 %v963
        %v3061 = vunpack.c.l.b16 %v964
        %v3062 = vunpack.c.h.b16 %v964
        %v3063 = vunpack.c.l.b16 %v965
        %v3064 = vunpack.c.h.b16 %v965
        %v3065 = vunpack.c.l.b16 %v966
        %v3066 = vunpack.c.h.b16 %v966
        %v3067 = vunpack.c.l.b16 %v967
        %v3068 = vunpack.c.h.b16 %v967
        %v3069 = vunpack.c.l.b16 %v968
        %v3070 = vunpack.c.h.b16 %v968
        %v3071 = vunpack.c.l.b16 %v969
        %v3072 = vunpack.c.h.b16 %v969
        %v3073 = vunpack.c.l.b16 %v970
        %v3074 = vunpack.c.h.b16 %v970
        %v3075 = vunpack.c.l.b16 %v971
        %v3076 = vunpack.c.h.b16 %v971
        %v3077 = vunpack.c.l.b16 %v972
        %v3078 = vunpack.c.h.b16 %v972
        %v3079 = vunpack.c.l.b16 %v973
        %v3080 = vunpack.c.h.b16 %v973
        %v3081 = vunpack.c.l.b16 %v974
        %v3082 = vunpack.c.h.b16 %v974
        %v3083 = vunpack.c.l.b16 %v975
        %v3084 = vunpack.c.h.b16 %v975
        %v3085 = vunpack.c.l.b16 %v976
        %v3086 = vunpack.c.h.b16 %v976
        %v3087 = vunpack.c.l.b16 %v977
        %v3088 = vunpack.c.h.b16 %v977
        %v3089 = vunpack.c.l.b16 %v978
        %v3090 = vunpack.c.h.b16 %v978
        %v3091 = vunpack.c.l.b16 %v979
        %v3092 = vunpack.c.h.b16 %v979
        %v3093 = vunpack.c.l.b16 %v980
        %v3094 = vunpack.c.h.b16 %v980
        %v3095 = vunpack.c.l.b16 %v981
        %v3096 = vunpack.c.h.b16 %v981
        %v3097 = vunpack.c.l.b16 %v982
        %v3098 = vunpack.c.h.b16 %v982
        %v3099 = vunpack.c.l.b16 %v983
        %v3100 = vunpack.c.h.b16 %v983
        %v3101 = vunpack.c.l.b16 %v984
        %v3102 = vunpack.c.h.b16 %v984
        %v3103 = vunpack.c.l.b16 %v985
        %v3104 = vunpack.c.h.b16 %v985
        %v3105 = vunpack.c.l.b16 %v986
        %v3106 = vunpack.c.h.b16 %v986
        %v3107 = vunpack.c.l.b16 %v987
        %v3108 = vunpack.c.h.b16 %v987
        %v3109 = vunpack.c.l.b16 %v988
        %v3110 = vunpack.c.h.b16 %v988
        %v3111 = vunpack.c.l.b16 %v989
        %v3112 = vunpack.c.h.b16 %v989
        %v3113 = vunpack.c.l.b16 %v990
        %v3114 = vunpack.c.h.b16 %v990
        %v3115 = vunpack.c.l.b16 %v991
        %v3116 = vunpack.c.h.b16 %v991
        %v3117 = vunpack.c.l.b16 %v992
        %v3118 = vunpack.c.h.b16 %v992
        %v3119 = vunpack.c.l.b16 %v993
        %v3120 = vunpack.c.h.b16 %v993
        %v3121 = vunpack.c.l.b16 %v994
        %v3122 = vunpack.c.h.b16 %v994
        %v3123 = vunpack.c.l.b16 %v995
        %v3124 = vunpack.c.h.b16 %v995
        %v3125 = vunpack.c.l.b16 %v996
        %v3126 = vunpack.c.h.b16 %v996
        %v3127 = vunpack.c.l.b16 %v997
        %v3128 = vunpack.c.h.b16 %v997
        %v3129 = vunpack.c.l.b16 %v998
        %v3130 = vunpack.c.h.b16 %v998
        %v3131 = vunpack.c.l.b16 %v999
        %v3132 = vunpack.c.h.b16 %v999
        %v3133 = vunpack.c.l.b16 %v1000
        %v3134 = vunpack.c.h.b16 %v1000
        %v3135 = vunpack.c.l.b16 %v1001
        %v3136 = vunpack.c.h.b16 %v1001
        %v3137 = vunpack.c.l.b16 %v1002
        %v3138 = vunpack.c.h.b16 %v1002
        %v3139 = vunpack.c.l.b16 %v1003
        %v3140 = vunpack.c.h.b16 %v1003
        %v3141 = vunpack.c.l.b16 %v1004
        %v3142 = vunpack.c.h.b16 %v1004
        %v3143 = vunpack.c.l.b16 %v1005
        %v3144 = vunpack.c.h.b16 %v1005
        %v3145 = vunpack.c.l.b16 %v1006
        %v3146 = vunpack.c.h.b16 %v1006
        %v3147 = vunpack.c.l.b16 %v1007
        %v3148 = vunpack.c.h.b16 %v1007
        %v3149 = vunpack.c.l.b16 %v1008
        %v3150 = vunpack.c.h.b16 %v1008
        %v3151 = vunpack.c.l.b16 %v1009
        %v3152 = vunpack.c.h.b16 %v1009
        %v3153 = vunpack.c.l.b16 %v1010
        %v3154 = vunpack.c.h.b16 %v1010
        %v3155 = vunpack.c.l.b16 %v1011
        %v3156 = vunpack.c.h.b16 %v1011
        %v3157 = vunpack.c.l.b16 %v1012
        %v3158 = vunpack.c.h.b16 %v1012
        %v3159 = vunpack.c.l.b16 %v1013
        %v3160 = vunpack.c.h.b16 %v1013
        %v3161 = vunpack.c.l.b16 %v1014
        %v3162 = vunpack.c.h.b16 %v1014
        %v3163 = vunpack.c.l.b16 %v1015
        %v3164 = vunpack.c.h.b16 %v1015
        %v3165 = vunpack.c.l.b16 %v1016
        %v3166 = vunpack.c.h.b16 %v1016
        %v3167 = vunpack.c.l.b16 %v1017
        %v3168 = vunpack.c.h.b16 %v1017
        %v3169 = vunpack.c.l.b16 %v1018
        %v3170 = vunpack.c.h.b16 %v1018
        %v3171 = vunpack.c.l.b16 %v1019
        %v3172 = vunpack.c.h.b16 %v1019
        %v3173 = vunpack.c.l.b16 %v1020
        %v3174 = vunpack.c.h.b16 %v1020
        %v3175 = vunpack.c.l.b16 %v1021
        %v3176 = vunpack.c.h.b16 %v1021
        %v3177 = vunpack.c.l.b16 %v1022
        %v3178 = vunpack.c.h.b16 %v1022
        %v3179 = vunpack.c.l.b16 %v1023
        %v3180 = vunpack.c.h.b16 %v1023
        %v3181 = vunpack.c.l.b16 %v1024
        %v3182 = vunpack.c.h.b16 %v1024
        %v3183 = vunpack.c.l.b16 %v1025
        %v3184 = vunpack.c.h.b16 %v1025
        %v3185 = vunpack.c.l.b16 %v1026
        %v3186 = vunpack.c.h.b16 %v1026
        %v3187 = vunpack.c.l.b16 %v1027
        %v3188 = vunpack.c.h.b16 %v1027
        %v3189 = vunpack.c.l.b16 %v1028
        %v3190 = vunpack.c.h.b16 %v1028
        %v3191 = vunpack.c.l.b16 %v1029
        %v3192 = vunpack.c.h.b16 %v1029
        %v3193 = vunpack.c.l.b16 %v1030
        %v3194 = vunpack.c.h.b16 %v1030
        %v3195 = vunpack.c.l.b16 %v1031
        %v3196 = vunpack.c.h.b16 %v1031
        %v3197 = vunpack.c.l.b16 %v1032
        %v3198 = vunpack.c.h.b16 %v1032
        %v3199 = vunpack.c.l.b16 %v1033
        %v3200 = vunpack.c.h.b16 %v1033
        %v3201 = vunpack.c.l.b16 %v1034
        %v3202 = vunpack.c.h.b16 %v1034
        %v3203 = vunpack.c.l.b16 %v1035
        %v3204 = vunpack.c.h.b16 %v1035
        %v3205 = vunpack.c.l.b16 %v1036
        %v3206 = vunpack.c.h.b16 %v1036
        %v3207 = vunpack.c.l.b16 %v1037
        %v3208 = vunpack.c.h.b16 %v1037
        %v3209 = vunpack.c.l.b16 %v1038
        %v3210 = vunpack.c.h.b16 %v1038
        %v3211 = vunpack.c.l.b16 %v1039
        %v3212 = vunpack.c.h.b16 %v1039
        %v3213 = vunpack.c.l.b16 %v1040
        %v3214 = vunpack.c.h.b16 %v1040
        %v3215 = vunpack.c.l.b16 %v1041
        %v3216 = vunpack.c.h.b16 %v1041
        %v3217 = vunpack.c.l.b16 %v1042
        %v3218 = vunpack.c.h.b16 %v1042
        %v3219 = vunpack.c.l.b16 %v1043
        %v3220 = vunpack.c.h.b16 %v1043
        %v3221 = vunpack.c.l.b16 %v1044
        %v3222 = vunpack.c.h.b16 %v1044
        %v3223 = vunpack.c.l.b16 %v1045
        %v3224 = vunpack.c.h.b16 %v1045
        %v3225 = vunpack.c.l.b16 %v1046
        %v3226 = vunpack.c.h.b16 %v1046
        %v3227 = vunpack.c.l.b16 %v1047
        %v3228 = vunpack.c.h.b16 %v1047
        %v3229 = vunpack.c.l.b16 %v1048
        %v3230 = vunpack.c.h.b16 %v1048
        %v3231 = vunpack.c.l.b16 %v1049
        %v3232 = vunpack.c.h.b16 %v1049
        %v3233 = vunpack.c.l.b16 %v1050
        %v3234 = vunpack.c.h.b16 %v1050
        %v3235 = vunpack.c.l.b16 %v1051
        %v3236 = vunpack.c.h.b16 %v1051
        %v3237 = vunpack.c.l.b16 %v1052
        %v3238 = vunpack.c.h.b16 %v1052
        %v3239 = vunpack.c.l.b16 %v1053
        %v3240 = vunpack.c.h.b16 %v1053
        %v3241 = vunpack.c.l.b16 %v1054
        %v3242 = vunpack.c.h.b16 %v1054
        %v3243 = vunpack.c.l.b16 %v1055
        %v3244 = vunpack.c.h.b16 %v1055
        %v3245 = vunpack.c.l.b16 %v1056
        %v3246 = vunpack.c.h.b16 %v1056
        %v3247 = vunpack.c.l.b16 %v1057
        %v3248 = vunpack.c.h.b16 %v1057
        %v3249 = vunpack.c.l.b16 %v1058
        %v3250 = vunpack.c.h.b16 %v1058
        %v3251 = vunpack.c.l.b16 %v1059
        %v3252 = vunpack.c.h.b16 %v1059
        %v3253 = vunpack.c.l.b16 %v1060
        %v3254 = vunpack.c.h.b16 %v1060
        %v3255 = vunpack.c.l.b16 %v1061
        %v3256 = vunpack.c.h.b16 %v1061
        %v3257 = vunpack.c.l.b16 %v1062
        %v3258 = vunpack.c.h.b16 %v1062
        %v3259 = vunpack.c.l.b16 %v1063
        %v3260 = vunpack.c.h.b16 %v1063
        %v3261 = vunpack.c.l.b16 %v1064
        %v3262 = vunpack.c.h.b16 %v1064
        %v3263 = vunpack.c.l.b16 %v1065
        %v3264 = vunpack.c.h.b16 %v1065
        %v3265 = vunpack.c.l.b16 %v1066
        %v3266 = vunpack.c.h.b16 %v1066
        %v3267 = vunpack.c.l.b16 %v1067
        %v3268 = vunpack.c.h.b16 %v1067
        %v3269 = vunpack.c.l.b16 %v1068
        %v3270 = vunpack.c.h.b16 %v1068
        %v3271 = vunpack.c.l.b16 %v1069
        %v3272 = vunpack.c.h.b16 %v1069
        %v3273 = vunpack.c.l.b16 %v1070
        %v3274 = vunpack.c.h.b16 %v1070
        %v3275 = vunpack.c.l.b16 %v1071
        %v3276 = vunpack.c.h.b16 %v1071
        %v3277 = vunpack.c.l.b16 %v1072
        %v3278 = vunpack.c.h.b16 %v1072
        %v3279 = vunpack.c.l.b16 %v1073
        %v3280 = vunpack.c.h.b16 %v1073
        %v3281 = vunpack.c.l.b16 %v1074
        %v3282 = vunpack.c.h.b16 %v1074
        %v3283 = vunpack.c.l.b16 %v1075
        %v3284 = vunpack.c.h.b16 %v1075
        %v3285 = vunpack.c.l.b16 %v1076
        %v3286 = vunpack.c.h.b16 %v1076
        %v3287 = vunpack.c.l.b16 %v1077
        %v3288 = vunpack.c.h.b16 %v1077
        %v3289 = vunpack.c.l.b16 %v1078
        %v3290 = vunpack.c.h.b16 %v1078
        %v3291 = vunpack.c.l.b16 %v1079
        %v3292 = vunpack.c.h.b16 %v1079
        %v3293 = vunpack.c.l.b16 %v1080
        %v3294 = vunpack.c.h.b16 %v1080
        %v3295 = vunpack.c.l.b16 %v1081
        %v3296 = vunpack.c.h.b16 %v1081
        %v3297 = vunpack.c.l.b16 %v1082
        %v3298 = vunpack.c.h.b16 %v1082
        %v3299 = vunpack.c.l.b16 %v1083
        %v3300 = vunpack.c.h.b16 %v1083
        %v3301 = vunpack.c.l.b16 %v1084
        %v3302 = vunpack.c.h.b16 %v1084
        %v3303 = vunpack.c.l.b16 %v1085
        %v3304 = vunpack.c.h.b16 %v1085
        %v3305 = vunpack.c.l.b16 %v1086
        %v3306 = vunpack.c.h.b16 %v1086
        %v3307 = vunpack.c.l.b16 %v1087
        %v3308 = vunpack.c.h.b16 %v1087
        %v3309 = vunpack.c.l.b16 %v1088
        %v3310 = vunpack.c.h.b16 %v1088
        %v3311 = vunpack.c.l.b16 %v1089
        %v3312 = vunpack.c.h.b16 %v1089
        %v3313 = vunpack.c.l.b16 %v1090
        %v3314 = vunpack.c.h.b16 %v1090
        %v3315 = vunpack.c.l.b16 %v1091
        %v3316 = vunpack.c.h.b16 %v1091
        %v3317 = vunpack.c.l.b16 %v1092
        %v3318 = vunpack.c.h.b16 %v1092
        %v3319 = vunpack.c.l.b16 %v1093
        %v3320 = vunpack.c.h.b16 %v1093
        %v3321 = vunpack.c.l.b16 %v1094
        %v3322 = vunpack.c.h.b16 %v1094
        %v3323 = vunpack.c.l.b16 %v1095
        %v3324 = vunpack.c.h.b16 %v1095
        %v3325 = vunpack.c.l.b16 %v1096
        %v3326 = vunpack.c.h.b16 %v1096
        %v3327 = vunpack.c.l.b16 %v1097
        %v3328 = vunpack.c.h.b16 %v1097
        %v3329 = vunpack.c.l.b16 %v1098
        %v3330 = vunpack.c.h.b16 %v1098
        %v3331 = vunpack.c.l.b16 %v1099
        %v3332 = vunpack.c.h.b16 %v1099
        %v3333 = vunpack.c.l.b16 %v1100
        %v3334 = vunpack.c.h.b16 %v1100
        %v3335 = vunpack.c.l.b16 %v1101
        %v3336 = vunpack.c.h.b16 %v1101
        %v3337 = vunpack.c.l.b16 %v1102
        %v3338 = vunpack.c.h.b16 %v1102
        %v3339 = vunpack.c.l.b16 %v1103
        %v3340 = vunpack.c.h.b16 %v1103
        %v3341 = vunpack.c.l.b16 %v1104
        %v3342 = vunpack.c.h.b16 %v1104
        %v3343 = vunpack.c.l.b16 %v1105
        %v3344 = vunpack.c.h.b16 %v1105
        %v3345 = vunpack.c.l.b16 %v1106
        %v3346 = vunpack.c.h.b16 %v1106
        %v3347 = vunpack.c.l.b16 %v1107
        %v3348 = vunpack.c.h.b16 %v1107
        %v3349 = vunpack.c.l.b16 %v1108
        %v3350 = vunpack.c.h.b16 %v1108
        %v3351 = vunpack.c.l.b16 %v1109
        %v3352 = vunpack.c.h.b16 %v1109
        %v3353 = vunpack.c.l.b16 %v1110
        %v3354 = vunpack.c.h.b16 %v1110
        %v3355 = vunpack.c.l.b16 %v1111
        %v3356 = vunpack.c.h.b16 %v1111
        %v3357 = vunpack.c.l.b16 %v1112
        %v3358 = vunpack.c.h.b16 %v1112
        %v3359 = vunpack.c.l.b16 %v1113
        %v3360 = vunpack.c.h.b16 %v1113
        %v3361 = vunpack.c.l.b16 %v1114
        %v3362 = vunpack.c.h.b16 %v1114
        %v3363 = vunpack.c.l.b16 %v1115
        %v3364 = vunpack.c.h.b16 %v1115
        %v3365 = vunpack.c.l.b16 %v1116
        %v3366 = vunpack.c.h.b16 %v1116
        %v3367 = vunpack.c.l.b16 %v1117
        %v3368 = vunpack.c.h.b16 %v1117
        %v3369 = vunpack.c.l.b16 %v1118
        %v3370 = vunpack.c.h.b16 %v1118
        %v3371 = vunpack.c.l.b16 %v1119
        %v3372 = vunpack.c.h.b16 %v1119
        %v3373 = vunpack.c.l.b16 %v1120
        %v3374 = vunpack.c.h.b16 %v1120
        %v3375 = vunpack.c.l.b16 %v1121
        %v3376 = vunpack.c.h.b16 %v1121
        %v3377 = vunpack.c.l.b16 %v1122
        %v3378 = vunpack.c.h.b16 %v1122
        %v3379 = vunpack.c.l.b16 %v1123
        %v3380 = vunpack.c.h.b16 %v1123
        %v3381 = vunpack.c.l.b16 %v1124
        %v3382 = vunpack.c.h.b16 %v1124
        %v3383 = vunpack.c.l.b16 %v1125
        %v3384 = vunpack.c.h.b16 %v1125
        %v3385 = vunpack.c.l.b16 %v1126
        %v3386 = vunpack.c.h.b16 %v1126
        %v3387 = vunpack.c.l.b16 %v1127
        %v3388 = vunpack.c.h.b16 %v1127
        %v3389 = vunpack.c.l.b16 %v1128
        %v3390 = vunpack.c.h.b16 %v1128
        %v3391 = vunpack.c.l.b16 %v1129
        %v3392 = vunpack.c.h.b16 %v1129
        %v3393 = vunpack.c.l.b16 %v1130
        %v3394 = vunpack.c.h.b16 %v1130
        %v3395 = vunpack.c.l.b16 %v1131
        %v3396 = vunpack.c.h.b16 %v1131
        %v3397 = vunpack.c.l.b16 %v1132
        %v3398 = vunpack.c.h.b16 %v1132
        %v3399 = vunpack.c.l.b16 %v1133
        %v3400 = vunpack.c.h.b16 %v1133
        %v3401 = vunpack.c.l.b16 %v1134
        %v3402 = vunpack.c.h.b16 %v1134
        %v3403 = vunpack.c.l.b16 %v1135
        %v3404 = vunpack.c.h.b16 %v1135
        %v3405 = vunpack.c.l.b16 %v1136
        %v3406 = vunpack.c.h.b16 %v1136
        %v3407 = vunpack.c.l.b16 %v1137
        %v3408 = vunpack.c.h.b16 %v1137
        %v3409 = vunpack.c.l.b16 %v1138
        %v3410 = vunpack.c.h.b16 %v1138
        %v3411 = vunpack.c.l.b16 %v1139
        %v3412 = vunpack.c.h.b16 %v1139
        %v3413 = vunpack.c.l.b16 %v1140
        %v3414 = vunpack.c.h.b16 %v1140
        %v3415 = vunpack.c.l.b16 %v1141
        %v3416 = vunpack.c.h.b16 %v1141
        %v3417 = vunpack.c.l.b16 %v1142
        %v3418 = vunpack.c.h.b16 %v1142
        %v3419 = vunpack.c.l.b16 %v1143
        %v3420 = vunpack.c.h.b16 %v1143
        %v3421 = vunpack.c.l.b16 %v1144
        %v3422 = vunpack.c.h.b16 %v1144
        %v3423 = vunpack.c.l.b16 %v1145
        %v3424 = vunpack.c.h.b16 %v1145
        %v3425 = vunpack.c.l.b16 %v1146
        %v3426 = vunpack.c.h.b16 %v1146
        %v3427 = vunpack.c.l.b16 %v1147
        %v3428 = vunpack.c.h.b16 %v1147
        %v3429 = vunpack.c.l.b16 %v1148
        %v3430 = vunpack.c.h.b16 %v1148
        %v3431 = vunpack.c.l.b16 %v1149
        %v3432 = vunpack.c.h.b16 %v1149
        %v3433 = vunpack.c.l.b16 %v1150
        %v3434 = vunpack.c.h.b16 %v1150
        %v3435 = vunpack.c.l.b16 %v1151
        %v3436 = vunpack.c.h.b16 %v1151
        %v3437 = vunpack.c.l.b16 %v1152
        %v3438 = vunpack.c.h.b16 %v1152
        %v3439 = vunpack.c.l.b16 %v1153
        %v3440 = vunpack.c.h.b16 %v1153
        %v3441 = vunpack.c.l.b16 %v1154
        %v3442 = vunpack.c.h.b16 %v1154
        %v3443 = vunpack.c.l.b16 %v1155
        %v3444 = vunpack.c.h.b16 %v1155
        %v3445 = vunpack.c.l.b16 %v1156
        %v3446 = vunpack.c.h.b16 %v1156
        %v3447 = vunpack.c.l.b16 %v1157
        %v3448 = vunpack.c.h.b16 %v1157
        %v3449 = vunpack.c.l.b16 %v1158
        %v3450 = vunpack.c.h.b16 %v1158
        %v3451 = vunpack.c.l.b16 %v1159
        %v3452 = vunpack.c.h.b16 %v1159
        %v3453 = vunpack.c.l.b16 %v1160
        %v3454 = vunpack.c.h.b16 %v1160
        %v3455 = vunpack.c.l.b16 %v1161
        %v3456 = vunpack.c.h.b16 %v1161
        %v3457 = vunpack.c.l.b16 %v1162
        %v3458 = vunpack.c.h.b16 %v1162
        %v3459 = vunpack.c.l.b16 %v1163
        %v3460 = vunpack.c.h.b16 %v1163
        %v3461 = vunpack.c.l.b16 %v1164
        %v3462 = vunpack.c.h.b16 %v1164
        %v3463 = vunpack.c.l.b16 %v1165
        %v3464 = vunpack.c.h.b16 %v1165
        %v3465 = vunpack.c.l.b16 %v1166
        %v3466 = vunpack.c.h.b16 %v1166
        %v3467 = vunpack.c.l.b16 %v1167
        %v3468 = vunpack.c.h.b16 %v1167
        %v3469 = vunpack.c.l.b16 %v1168
        %v3470 = vunpack.c.h.b16 %v1168
        %v3471 = vunpack.c.l.b16 %v1169
        %v3472 = vunpack.c.h.b16 %v1169
        %v3473 = vunpack.c.l.b16 %v1170
        %v3474 = vunpack.c.h.b16 %v1170
        %v3475 = vunpack.c.l.b16 %v1171
        %v3476 = vunpack.c.h.b16 %v1171
        %v3477 = vunpack.c.l.b16 %v1172
        %v3478 = vunpack.c.h.b16 %v1172
        %v3479 = vunpack.c.l.b16 %v1173
        %v3480 = vunpack.c.h.b16 %v1173
        %v3481 = vunpack.c.l.b16 %v1174
        %v3482 = vunpack.c.h.b16 %v1174
        %v3483 = vunpack.c.l.b16 %v1175
        %v3484 = vunpack.c.h.b16 %v1175
        %v3485 = vunpack.c.l.b16 %v1176
        %v3486 = vunpack.c.h.b16 %v1176
        %v3487 = vunpack.c.l.b16 %v1177
        %v3488 = vunpack.c.h.b16 %v1177
        %v3489 = vunpack.c.l.b16 %v1178
        %v3490 = vunpack.c.h.b16 %v1178
        %v3491 = vunpack.c.l.b16 %v1179
        %v3492 = vunpack.c.h.b16 %v1179
        %v3493 = vunpack.c.l.b16 %v1180
        %v3494 = vunpack.c.h.b16 %v1180
        %v3495 = vunpack.c.l.b16 %v1181
        %v3496 = vunpack.c.h.b16 %v1181
        %v3497 = vunpack.c.l.b16 %v1182
        %v3498 = vunpack.c.h.b16 %v1182
        %v3499 = vunpack.c.l.b16 %v1183
        %v3500 = vunpack.c.h.b16 %v1183
        %v3501 = vunpack.c.l.b16 %v1184
        %v3502 = vunpack.c.h.b16 %v1184
        %v3503 = vunpack.c.l.b16 %v1185
        %v3504 = vunpack.c.h.b16 %v1185
        %v3505 = vunpack.c.l.b16 %v1186
        %v3506 = vunpack.c.h.b16 %v1186
        %v3507 = vunpack.c.l.b16 %v1187
        %v3508 = vunpack.c.h.b16 %v1187
        %v3509 = vunpack.c.l.b16 %v1188
        %v3510 = vunpack.c.h.b16 %v1188
        %v3511 = vunpack.c.l.b16 %v1189
        %v3512 = vunpack.c.h.b16 %v1189
        %v3513 = vunpack.c.l.b16 %v1190
        %v3514 = vunpack.c.h.b16 %v1190
        %v3515 = vunpack.c.l.b16 %v1191
        %v3516 = vunpack.c.h.b16 %v1191
        %v3517 = vunpack.c.l.b16 %v1192
        %v3518 = vunpack.c.h.b16 %v1192
        %v3519 = vpack.c.b16 %v1987, %v1983
        %v3520 = vpack.c.b16 %v1988, %v1984
        %v3521 = vpack.c.b16 %v1989, %v1985
        %v3522 = vpack.c.b16 %v1990, %v1986
        %v3523 = vpack.c.b16 %v1995, %v1991
        %v3524 = vpack.c.b16 %v1996, %v1992
        %v3525 = vpack.c.b16 %v1997, %v1993
        %v3526 = vpack.c.b16 %v1998, %v1994
        %v3527 = vpack.c.b16 %v2003, %v1999
        %v3528 = vpack.c.b16 %v2004, %v2000
        %v3529 = vpack.c.b16 %v2005, %v2001
        %v3530 = vpack.c.b16 %v2006, %v2002
        %v3531 = vpack.c.b16 %v2011, %v2007
        %v3532 = vpack.c.b16 %v2012, %v2008
        %v3533 = vpack.c.b16 %v2013, %v2009
        %v3534 = vpack.c.b16 %v2014, %v2010
        %v3535 = vpack.c.b16 %v2019, %v2015
        %v3536 = vpack.c.b16 %v2020, %v2016
        %v3537 = vpack.c.b16 %v2021, %v2017
        %v3538 = vpack.c.b16 %v2022, %v2018
        %v3539 = vpack.c.b16 %v2027, %v2023
        %v3540 = vpack.c.b16 %v2028, %v2024
        %v3541 = vpack.c.b16 %v2029, %v2025
        %v3542 = vpack.c.b16 %v2030, %v2026
        %v3543 = vpack.c.b16 %v2035, %v2031
        %v3544 = vpack.c.b16 %v2036, %v2032
        %v3545 = vpack.c.b16 %v2037, %v2033
        %v3546 = vpack.c.b16 %v2038, %v2034
        %v3547 = vpack.c.b16 %v2043, %v2039
        %v3548 = vpack.c.b16 %v2044, %v2040
        %v3549 = vpack.c.b16 %v2045, %v2041
        %v3550 = vpack.c.b16 %v2046, %v2042
        %v3551 = vpack.c.b16 %v2051, %v2047
        %v3552 = vpack.c.b16 %v2052, %v2048
        %v3553 = vpack.c.b16 %v2053, %v2049
        %v3554 = vpack.c.b16 %v2054, %v2050
        %v3555 = vpack.c.b16 %v2059, %v2055
        %v3556 = vpack.c.b16 %v2060, %v2056
        %v3557 = vpack.c.b16 %v2061, %v2057
        %v3558 = vpack.c.b16 %v2062, %v2058
        %v3559 = vpack.c.b16 %v2067, %v2063
        %v3560 = vpack.c.b16 %v2068, %v2064
        %v3561 = vpack.c.b16 %v2069, %v2065
        %v3562 = vpack.c.b16 %v2070, %v2066
        %v3563 = vpack.c.b16 %v2075, %v2071
        %v3564 = vpack.c.b16 %v2076, %v2072
        %v3565 = vpack.c.b16 %v2077, %v2073
        %v3566 = vpack.c.b16 %v2078, %v2074
        %v3567 = vpack.c.b16 %v2083, %v2079
        %v3568 = vpack.c.b16 %v2084, %v2080
        %v3569 = vpack.c.b16 %v2085, %v2081
        %v3570 = vpack.c.b16 %v2086, %v2082
        %v3571 = vpack.c.b16 %v2091, %v2087
        %v3572 = vpack.c.b16 %v2092, %v2088
        %v3573 = vpack.c.b16 %v2093, %v2089
        %v3574 = vpack.c.b16 %v2094, %v2090
        %v3575 = vpack.c.b16 %v2099, %v2095
        %v3576 = vpack.c.b16 %v2100, %v2096
        %v3577 = vpack.c.b16 %v2101, %v2097
        %v3578 = vpack.c.b16 %v2102, %v2098
        %v3579 = vpack.c.b16 %v2107, %v2103
        %v3580 = vpack.c.b16 %v2108, %v2104
        %v3581 = vpack.c.b16 %v2109, %v2105
        %v3582 = vpack.c.b16 %v2110, %v2106
        %v3583 = vpack.c.b16 %v2115, %v2111
        %v3584 = vpack.c.b16 %v2116, %v2112
        %v3585 = vpack.c.b16 %v2117, %v2113
        %v3586 = vpack.c.b16 %v2118, %v2114
        %v3587 = vpack.c.b16 %v2123, %v2119
        %v3588 = vpack.c.b16 %v2124, %v2120
        %v3589 = vpack.c.b16 %v2125, %v2121
        %v3590 = vpack.c.b16 %v2126, %v2122
        %v3591 = vpack.c.b16 %v2131, %v2127
        %v3592 = vpack.c.b16 %v2132, %v2128
        %v3593 = vpack.c.b16 %v2133, %v2129
        %v3594 = vpack.c.b16 %v2134, %v2130
        %v3595 = vpack.c.b16 %v2139, %v2135
        %v3596 = vpack.c.b16 %v2140, %v2136
        %v3597 = vpack.c.b16 %v2141, %v2137
        %v3598 = vpack.c.b16 %v2142, %v2138
        %v3599 = vpack.c.b16 %v2147, %v2143
        %v3600 = vpack.c.b16 %v2148, %v2144
        %v3601 = vpack.c.b16 %v2149, %v2145
        %v3602 = vpack.c.b16 %v2150, %v2146
        %v3603 = vpack.c.b16 %v2155, %v2151
        %v3604 = vpack.c.b16 %v2156, %v2152
        %v3605 = vpack.c.b16 %v2157, %v2153
        %v3606 = vpack.c.b16 %v2158, %v2154
        %v3607 = vpack.c.b16 %v2163, %v2159
        %v3608 = vpack.c.b16 %v2164, %v2160
        %v3609 = vpack.c.b16 %v2165, %v2161
        %v3610 = vpack.c.b16 %v2166, %v2162
        %v3611 = vpack.c.b16 %v2171, %v2167
        %v3612 = vpack.c.b16 %v2172, %v2168
        %v3613 = vpack.c.b16 %v2173, %v2169
        %v3614 = vpack.c.b16 %v2174, %v2170
        %v3615 = vpack.c.b16 %v2179, %v2175
        %v3616 = vpack.c.b16 %v2180, %v2176
        %v3617 = vpack.c.b16 %v2181, %v2177
        %v3618 = vpack.c.b16 %v2182, %v2178
        %v3619 = vpack.c.b16 %v2187, %v2183
        %v3620 = vpack.c.b16 %v2188, %v2184
        %v3621 = vpack.c.b16 %v2189, %v2185
        %v3622 = vpack.c.b16 %v2190, %v2186
        %v3623 = vpack.c.b16 %v2195, %v2191
        %v3624 = vpack.c.b16 %v2196, %v2192
        %v3625 = vpack.c.b16 %v2197, %v2193
        %v3626 = vpack.c.b16 %v2198, %v2194
        %v3627 = vpack.c.b16 %v2203, %v2199
        %v3628 = vpack.c.b16 %v2204, %v2200
        %v3629 = vpack.c.b16 %v2205, %v2201
        %v3630 = vpack.c.b16 %v2206, %v2202
        %v3631 = vpack.c.b16 %v2211, %v2207
        %v3632 = vpack.c.b16 %v2212, %v2208
        %v3633 = vpack.c.b16 %v2213, %v2209
        %v3634 = vpack.c.b16 %v2214, %v2210
        %v3635 = vpack.c.b16 %v2219, %v2215
        %v3636 = vpack.c.b16 %v2220, %v2216
        %v3637 = vpack.c.b16 %v2221, %v2217
        %v3638 = vpack.c.b16 %v2222, %v2218
        %v3639 = vpack.c.b16 %v2227, %v2223
        %v3640 = vpack.c.b16 %v2228, %v2224
        %v3641 = vpack.c.b16 %v2229, %v2225
        %v3642 = vpack.c.b16 %v2230, %v2226
        %v3643 = vpack.c.b16 %v2235, %v2231
        %v3644 = vpack.c.b16 %v2236, %v2232
        %v3645 = vpack.c.b16 %v2237, %v2233
        %v3646 = vpack.c.b16 %v2238, %v2234
        %v3647 = vpack.c.b16 %v2243, %v2239
        %v3648 = vpack.c.b16 %v2244, %v2240
        %v3649 = vpack.c.b16 %v2245, %v2241
        %v3650 = vpack.c.b16 %v2246, %v2242
        %v3651 = vpack.c.b16 %v2251, %v2247
        %v3652 = vpack.c.b16 %v2252, %v2248
        %v3653 = vpack.c.b16 %v2253, %v2249
        %v3654 = vpack.c.b16 %v2254, %v2250
        %v3655 = vpack.c.b16 %v2259, %v2255
        %v3656 = vpack.c.b16 %v2260, %v2256
        %v3657 = vpack.c.b16 %v2261, %v2257
        %v3658 = vpack.c.b16 %v2262, %v2258
        %v3659 = vpack.c.b16 %v2267, %v2263
        %v3660 = vpack.c.b16 %v2268, %v2264
        %v3661 = vpack.c.b16 %v2269, %v2265
        %v3662 = vpack.c.b16 %v2270, %v2266
        %v3663 = vpack.c.b16 %v2275, %v2271
        %v3664 = vpack.c.b16 %v2276, %v2272
        %v3665 = vpack.c.b16 %v2277, %v2273
        %v3666 = vpack.c.b16 %v2278, %v2274
        %v3667 = vpack.c.b16 %v2283, %v2279
        %v3668 = vpack.c.b16 %v2284, %v2280
        %v3669 = vpack.c.b16 %v2285, %v2281
        %v3670 = vpack.c.b16 %v2286, %v2282
        %v3671 = vpack.c.b16 %v2291, %v2287
        %v3672 = vpack.c.b16 %v2292, %v2288
        %v3673 = vpack.c.b16 %v2293, %v2289
        %v3674 = vpack.c.b16 %v2294, %v2290
        %v3675 = vpack.c.b16 %v2299, %v2295
        %v3676 = vpack.c.b16 %v2300, %v2296
        %v3677 = vpack.c.b16 %v2301, %v2297
        %v3678 = vpack.c.b16 %v2302, %v2298
        %v3679 = vpack.c.b16 %v2307, %v2303
        %v3680 = vpack.c.b16 %v2308, %v2304
        %v3681 = vpack.c.b16 %v2309, %v2305
        %v3682 = vpack.c.b16 %v2310, %v2306
        %v3683 = vpack.c.b16 %v2315, %v2311
        %v3684 = vpack.c.b16 %v2316, %v2312
        %v3685 = vpack.c.b16 %v2317, %v2313
        %v3686 = vpack.c.b16 %v2318, %v2314
        %v3687 = vpack.c.b16 %v2323, %v2319
        %v3688 = vpack.c.b16 %v2324, %v2320
        %v3689 = vpack.c.b16 %v2325, %v2321
        %v3690 = vpack.c.b16 %v2326, %v2322
        %v3691 = vpack.c.b16 %v2331, %v2327
        %v3692 = vpack.c.b16 %v2332, %v2328
        %v3693 = vpack.c.b16 %v2333, %v2329
        %v3694 = vpack.c.b16 %v2334, %v2330
        %v3695 = vpack.c.b16 %v2339, %v2335
        %v3696 = vpack.c.b16 %v2340, %v2336
        %v3697 = vpack.c.b16 %v2341, %v2337
        %v3698 = vpack.c.b16 %v2342, %v2338
        %v3699 = vpack.c.b16 %v2347, %v2343
        %v3700 = vpack.c.b16 %v2348, %v2344
        %v3701 = vpack.c.b16 %v2349, %v2345
        %v3702 = vpack.c.b16 %v2350, %v2346
        %v3703 = vpack.c.b16 %v2355, %v2351
        %v3704 = vpack.c.b16 %v2356, %v2352
        %v3705 = vpack.c.b16 %v2357, %v2353
        %v3706 = vpack.c.b16 %v2358, %v2354
        %v3707 = vpack.c.b16 %v2363, %v2359
        %v3708 = vpack.c.b16 %v2364, %v2360
        %v3709 = vpack.c.b16 %v2365, %v2361
        %v3710 = vpack.c.b16 %v2366, %v2362
        %v3711 = vpack.c.b16 %v2371, %v2367
        %v3712 = vpack.c.b16 %v2372, %v2368
        %v3713 = vpack.c.b16 %v2373, %v2369
        %v3714 = vpack.c.b16 %v2374, %v2370
        %v3715 = vpack.c.b16 %v2379, %v2375
        %v3716 = vpack.c.b16 %v2380, %v2376
        %v3717 = vpack.c.b16 %v2381, %v2377
        %v3718 = vpack.c.b16 %v2382, %v2378
        %v3719 = vpack.c.b16 %v2387, %v2383
        %v3720 = vpack.c.b16 %v2388, %v2384
        %v3721 = vpack.c.b16 %v2389, %v2385
        %v3722 = vpack.c.b16 %v2390, %v2386
        %v3723 = vpack.c.b16 %v2395, %v2391
        %v3724 = vpack.c.b16 %v2396, %v2392
        %v3725 = vpack.c.b16 %v2397, %v2393
        %v3726 = vpack.c.b16 %v2398, %v2394
        %v3727 = vpack.c.b16 %v2403, %v2399
        %v3728 = vpack.c.b16 %v2404, %v2400
        %v3729 = vpack.c.b16 %v2405, %v2401
        %v3730 = vpack.c.b16 %v2406, %v2402
        %v3731 = vpack.c.b16 %v2411, %v2407
        %v3732 = vpack.c.b16 %v2412, %v2408
        %v3733 = vpack.c.b16 %v2413, %v2409
        %v3734 = vpack.c.b16 %v2414, %v2410
        %v3735 = vpack.c.b16 %v2419, %v2415
        %v3736 = vpack.c.b16 %v2420, %v2416
        %v3737 = vpack.c.b16 %v2421, %v2417
        %v3738 = vpack.c.b16 %v2422, %v2418
        %v3739 = vpack.c.b16 %v2427, %v2423
        %v3740 = vpack.c.b16 %v2428, %v2424
        %v3741 = vpack.c.b16 %v2429, %v2425
        %v3742 = vpack.c.b16 %v2430, %v2426
        %v3743 = vpack.c.b16 %v2435, %v2431
        %v3744 = vpack.c.b16 %v2436, %v2432
        %v3745 = vpack.c.b16 %v2437, %v2433
        %v3746 = vpack.c.b16 %v2438, %v2434
        %v3747 = vpack.c.b16 %v2443, %v2439
        %v3748 = vpack.c.b16 %v2444, %v2440
        %v3749 = vpack.c.b16 %v2445, %v2441
        %v3750 = vpack.c.b16 %v2446, %v2442
        %v3751 = vpack.c.b16 %v2451, %v2447
        %v3752 = vpack.c.b16 %v2452, %v2448
        %v3753 = vpack.c.b16 %v2453, %v2449
        %v3754 = vpack.c.b16 %v2454, %v2450
        %v3755 = vpack.c.b16 %v2459, %v2455
        %v3756 = vpack.c.b16 %v2460, %v2456
        %v3757 = vpack.c.b16 %v2461, %v2457
        %v3758 = vpack.c.b16 %v2462, %v2458
        %v3759 = vpack.c.b16 %v2467, %v2463
        %v3760 = vpack.c.b16 %v2468, %v2464
        %v3761 = vpack.c.b16 %v2469, %v2465
        %v3762 = vpack.c.b16 %v2470, %v2466
        %v3763 = vpack.c.b16 %v2475, %v2471
        %v3764 = vpack.c.b16 %v2476, %v2472
        %v3765 = vpack.c.b16 %v2477, %v2473
        %v3766 = vpack.c.b16 %v2478, %v2474
        %v3767 = vpack.c.b16 %v2483, %v2479
        %v3768 = vpack.c.b16 %v2484, %v2480
        %v3769 = vpack.c.b16 %v2485, %v2481
        %v3770 = vpack.c.b16 %v2486, %v2482
        %v3771 = vpack.c.b16 %v2491, %v2487
        %v3772 = vpack.c.b16 %v2492, %v2488
        %v3773 = vpack.c.b16 %v2493, %v2489
        %v3774 = vpack.c.b16 %v2494, %v2490
        %v3775 = vpack.c.b16 %v2499, %v2495
        %v3776 = vpack.c.b16 %v2500, %v2496
        %v3777 = vpack.c.b16 %v2501, %v2497
        %v3778 = vpack.c.b16 %v2502, %v2498
        %v3779 = vpack.c.b16 %v2507, %v2503
        %v3780 = vpack.c.b16 %v2508, %v2504
        %v3781 = vpack.c.b16 %v2509, %v2505
        %v3782 = vpack.c.b16 %v2510, %v2506
        %v3783 = vpack.c.b16 %v2515, %v2511
        %v3784 = vpack.c.b16 %v2516, %v2512
        %v3785 = vpack.c.b16 %v2517, %v2513
        %v3786 = vpack.c.b16 %v2518, %v2514
        %v3787 = vpack.c.b16 %v2523, %v2519
        %v3788 = vpack.c.b16 %v2524, %v2520
        %v3789 = vpack.c.b16 %v2525, %v2521
        %v3790 = vpack.c.b16 %v2526, %v2522
        %v3791 = vpack.c.b16 %v2531, %v2527
        %v3792 = vpack.c.b16 %v2532, %v2528
        %v3793 = vpack.c.b16 %v2533, %v2529
        %v3794 = vpack.c.b16 %v2534, %v2530
        %v3795 = vpack.c.b16 %v2539, %v2535
        %v3796 = vpack.c.b16 %v2540, %v2536
        %v3797 = vpack.c.b16 %v2541, %v2537
        %v3798 = vpack.c.b16 %v2542, %v2538
        %v3799 = vpack.c.b16 %v2547, %v2543
        %v3800 = vpack.c.b16 %v2548, %v2544
        %v3801 = vpack.c.b16 %v2549, %v2545
        %v3802 = vpack.c.b16 %v2550, %v2546
        %v3803 = vpack.c.b16 %v2555, %v2551
        %v3804 = vpack.c.b16 %v2556, %v2552
        %v3805 = vpack.c.b16 %v2557, %v2553
        %v3806 = vpack.c.b16 %v2558, %v2554
        %v3807 = vpack.c.b16 %v2563, %v2559
        %v3808 = vpack.c.b16 %v2564, %v2560
        %v3809 = vpack.c.b16 %v2565, %v2561
        %v3810 = vpack.c.b16 %v2566, %v2562
        %v3811 = vpack.c.b16 %v2571, %v2567
        %v3812 = vpack.c.b16 %v2572, %v2568
        %v3813 = vpack.c.b16 %v2573, %v2569
        %v3814 = vpack.c.b16 %v2574, %v2570
        %v3815 = vpack.c.b16 %v2579, %v2575
        %v3816 = vpack.c.b16 %v2580, %v2576
        %v3817 = vpack.c.b16 %v2581, %v2577
        %v3818 = vpack.c.b16 %v2582, %v2578
        %v3819 = vpack.c.b16 %v2587, %v2583
        %v3820 = vpack.c.b16 %v2588, %v2584
        %v3821 = vpack.c.b16 %v2589, %v2585
        %v3822 = vpack.c.b16 %v2590, %v2586
        %v3823 = vpack.c.b16 %v2595, %v2591
        %v3824 = vpack.c.b16 %v2596, %v2592
        %v3825 = vpack.c.b16 %v2597, %v2593
        %v3826 = vpack.c.b16 %v2598, %v2594
        %v3827 = vpack.c.b16 %v2603, %v2599
        %v3828 = vpack.c.b16 %v2604, %v2600
        %v3829 = vpack.c.b16 %v2605, %v2601
        %v3830 = vpack.c.b16 %v2606, %v2602
        %v3831 = vpack.c.b16 %v2611, %v2607
        %v3832 = vpack.c.b16 %v2612, %v2608
        %v3833 = vpack.c.b16 %v2613, %v2609
        %v3834 = vpack.c.b16 %v2614, %v2610
        %v3835 = vpack.c.b16 %v2619, %v2615
        %v3836 = vpack.c.b16 %v2620, %v2616
        %v3837 = vpack.c.b16 %v2621, %v2617
        %v3838 = vpack.c.b16 %v2622, %v2618
        %v3839 = vpack.c.b16 %v2627, %v2623
        %v3840 = vpack.c.b16 %v2628, %v2624
        %v3841 = vpack.c.b16 %v2629, %v2625
        %v3842 = vpack.c.b16 %v2630, %v2626
        %v3843 = vpack.c.b16 %v2635, %v2631
        %v3844 = vpack.c.b16 %v2636, %v2632
        %v3845 = vpack.c.b16 %v2637, %v2633
        %v3846 = vpack.c.b16 %v2638, %v2634
        %v3847 = vpack.c.b16 %v2643, %v2639
        %v3848 = vpack.c.b16 %v2644, %v2640
        %v3849 = vpack.c.b16 %v2645, %v2641
        %v3850 = vpack.c.b16 %v2646, %v2642
        %v3851 = vpack.c.b16 %v2651, %v2647
        %v3852 = vpack.c.b16 %v2652, %v2648
        %v3853 = vpack.c.b16 %v2653, %v2649
        %v3854 = vpack.c.b16 %v2654, %v2650
        %v3855 = vpack.c.b16 %v2659, %v2655
        %v3856 = vpack.c.b16 %v2660, %v2656
        %v3857 = vpack.c.b16 %v2661, %v2657
        %v3858 = vpack.c.b16 %v2662, %v2658
        %v3859 = vpack.c.b16 %v2667, %v2663
        %v3860 = vpack.c.b16 %v2668, %v2664
        %v3861 = vpack.c.b16 %v2669, %v2665
        %v3862 = vpack.c.b16 %v2670, %v2666
        %v3863 = vpack.c.b16 %v2675, %v2671
        %v3864 = vpack.c.b16 %v2676, %v2672
        %v3865 = vpack.c.b16 %v2677, %v2673
        %v3866 = vpack.c.b16 %v2678, %v2674
        %v3867 = vpack.c.b16 %v2683, %v2679
        %v3868 = vpack.c.b16 %v2684, %v2680
        %v3869 = vpack.c.b16 %v2685, %v2681
        %v3870 = vpack.c.b16 %v2686, %v2682
        %v3871 = vpack.c.b16 %v2691, %v2687
        %v3872 = vpack.c.b16 %v2692, %v2688
        %v3873 = vpack.c.b16 %v2693, %v2689
        %v3874 = vpack.c.b16 %v2694, %v2690
        %v3875 = vpack.c.b16 %v2699, %v2695
        %v3876 = vpack.c.b16 %v2700, %v2696
        %v3877 = vpack.c.b16 %v2701, %v2697
        %v3878 = vpack.c.b16 %v2702, %v2698
        %v3879 = vpack.c.b16 %v2707, %v2703
        %v3880 = vpack.c.b16 %v2708, %v2704
        %v3881 = vpack.c.b16 %v2709, %v2705
        %v3882 = vpack.c.b16 %v2710, %v2706
        %v3883 = vpack.c.b16 %v2715, %v2711
        %v3884 = vpack.c.b16 %v2716, %v2712
        %v3885 = vpack.c.b16 %v2717, %v2713
        %v3886 = vpack.c.b16 %v2718, %v2714
        %v3887 = vpack.c.b16 %v2723, %v2719
        %v3888 = vpack.c.b16 %v2724, %v2720
        %v3889 = vpack.c.b16 %v2725, %v2721
        %v3890 = vpack.c.b16 %v2726, %v2722
        %v3891 = vpack.c.b16 %v2731, %v2727
        %v3892 = vpack.c.b16 %v2732, %v2728
        %v3893 = vpack.c.b16 %v2733, %v2729
        %v3894 = vpack.c.b16 %v2734, %v2730
        %v3895 = vpack.c.b16 %v2739, %v2735
        %v3896 = vpack.c.b16 %v2740, %v2736
        %v3897 = vpack.c.b16 %v2741, %v2737
        %v3898 = vpack.c.b16 %v2742, %v2738
        %v3899 = vpack.c.b16 %v2747, %v2743
        %v3900 = vpack.c.b16 %v2748, %v2744
        %v3901 = vpack.c.b16 %v2749, %v2745
        %v3902 = vpack.c.b16 %v2750, %v2746
        %v3903 = vpack.c.b16 %v2755, %v2751
        %v3904 = vpack.c.b16 %v2756, %v2752
        %v3905 = vpack.c.b16 %v2757, %v2753
        %v3906 = vpack.c.b16 %v2758, %v2754
        %v3907 = vpack.c.b16 %v2763, %v2759
        %v3908 = vpack.c.b16 %v2764, %v2760
        %v3909 = vpack.c.b16 %v2765, %v2761
        %v3910 = vpack.c.b16 %v2766, %v2762
        %v3911 = vpack.c.b16 %v2771, %v2767
        %v3912 = vpack.c.b16 %v2772, %v2768
        %v3913 = vpack.c.b16 %v2773, %v2769
        %v3914 = vpack.c.b16 %v2774, %v2770
        %v3915 = vpack.c.b16 %v2779, %v2775
        %v3916 = vpack.c.b16 %v2780, %v2776
        %v3917 = vpack.c.b16 %v2781, %v2777
        %v3918 = vpack.c.b16 %v2782, %v2778
        %v3919 = vpack.c.b16 %v2787, %v2783
        %v3920 = vpack.c.b16 %v2788, %v2784
        %v3921 = vpack.c.b16 %v2789, %v2785
        %v3922 = vpack.c.b16 %v2790, %v2786
        %v3923 = vpack.c.b16 %v2795, %v2791
        %v3924 = vpack.c.b16 %v2796, %v2792
        %v3925 = vpack.c.b16 %v2797, %v2793
        %v3926 = vpack.c.b16 %v2798, %v2794
        %v3927 = vpack.c.b16 %v2803, %v2799
        %v3928 = vpack.c.b16 %v2804, %v2800
        %v3929 = vpack.c.b16 %v2805, %v2801
        %v3930 = vpack.c.b16 %v2806, %v2802
        %v3931 = vpack.c.b16 %v2811, %v2807
        %v3932 = vpack.c.b16 %v2812, %v2808
        %v3933 = vpack.c.b16 %v2813, %v2809
        %v3934 = vpack.c.b16 %v2814, %v2810
        %v3935 = vpack.c.b16 %v2819, %v2815
        %v3936 = vpack.c.b16 %v2820, %v2816
        %v3937 = vpack.c.b16 %v2821, %v2817
        %v3938 = vpack.c.b16 %v2822, %v2818
        %v3939 = vpack.c.b16 %v2827, %v2823
        %v3940 = vpack.c.b16 %v2828, %v2824
        %v3941 = vpack.c.b16 %v2829, %v2825
        %v3942 = vpack.c.b16 %v2830, %v2826
        %v3943 = vpack.c.b16 %v2835, %v2831
        %v3944 = vpack.c.b16 %v2836, %v2832
        %v3945 = vpack.c.b16 %v2837, %v2833
        %v3946 = vpack.c.b16 %v2838, %v2834
        %v3947 = vpack.c.b16 %v2843, %v2839
        %v3948 = vpack.c.b16 %v2844, %v2840
        %v3949 = vpack.c.b16 %v2845, %v2841
        %v3950 = vpack.c.b16 %v2846, %v2842
        %v3951 = vpack.c.b16 %v2851, %v2847
        %v3952 = vpack.c.b16 %v2852, %v2848
        %v3953 = vpack.c.b16 %v2853, %v2849
        %v3954 = vpack.c.b16 %v2854, %v2850
        %v3955 = vpack.c.b16 %v2859, %v2855
        %v3956 = vpack.c.b16 %v2860, %v2856
        %v3957 = vpack.c.b16 %v2861, %v2857
        %v3958 = vpack.c.b16 %v2862, %v2858
        %v3959 = vpack.c.b16 %v2867, %v2863
        %v3960 = vpack.c.b16 %v2868, %v2864
        %v3961 = vpack.c.b16 %v2869, %v2865
        %v3962 = vpack.c.b16 %v2870, %v2866
        %v3963 = vpack.c.b16 %v2875, %v2871
        %v3964 = vpack.c.b16 %v2876, %v2872
        %v3965 = vpack.c.b16 %v2877, %v2873
        %v3966 = vpack.c.b16 %v2878, %v2874
        %v3967 = vpack.c.b16 %v2883, %v2879
        %v3968 = vpack.c.b16 %v2884, %v2880
        %v3969 = vpack.c.b16 %v2885, %v2881
        %v3970 = vpack.c.b16 %v2886, %v2882
        %v3971 = vpack.c.b16 %v2891, %v2887
        %v3972 = vpack.c.b16 %v2892, %v2888
        %v3973 = vpack.c.b16 %v2893, %v2889
        %v3974 = vpack.c.b16 %v2894, %v2890
        %v3975 = vpack.c.b16 %v2899, %v2895
        %v3976 = vpack.c.b16 %v2900, %v2896
        %v3977 = vpack.c.b16 %v2901, %v2897
        %v3978 = vpack.c.b16 %v2902, %v2898
        %v3979 = vpack.c.b16 %v2907, %v2903
        %v3980 = vpack.c.b16 %v2908, %v2904
        %v3981 = vpack.c.b16 %v2909, %v2905
        %v3982 = vpack.c.b16 %v2910, %v2906
        %v3983 = vpack.c.b16 %v2915, %v2911
        %v3984 = vpack.c.b16 %v2916, %v2912
        %v3985 = vpack.c.b16 %v2917, %v2913
        %v3986 = vpack.c.b16 %v2918, %v2914
        %v3987 = vpack.c.b16 %v2923, %v2919
        %v3988 = vpack.c.b16 %v2924, %v2920
        %v3989 = vpack.c.b16 %v2925, %v2921
        %v3990 = vpack.c.b16 %v2926, %v2922
        %v3991 = vpack.c.b16 %v2931, %v2927
        %v3992 = vpack.c.b16 %v2932, %v2928
        %v3993 = vpack.c.b16 %v2933, %v2929
        %v3994 = vpack.c.b16 %v2934, %v2930
        %v3995 = vpack.c.b16 %v2939, %v2935
        %v3996 = vpack.c.b16 %v2940, %v2936
        %v3997 = vpack.c.b16 %v2941, %v2937
        %v3998 = vpack.c.b16 %v2942, %v2938
        %v3999 = vpack.c.b16 %v2947, %v2943
        %v4000 = vpack.c.b16 %v2948, %v2944
        %v4001 = vpack.c.b16 %v2949, %v2945
        %v4002 = vpack.c.b16 %v2950, %v2946
        %v4003 = vpack.c.b16 %v2955, %v2951
        %v4004 = vpack.c.b16 %v2956, %v2952
        %v4005 = vpack.c.b16 %v2957, %v2953
        %v4006 = vpack.c.b16 %v2958, %v2954
        %v4007 = vpack.c.b16 %v2963, %v2959
        %v4008 = vpack.c.b16 %v2964, %v2960
        %v4009 = vpack.c.b16 %v2965, %v2961
        %v4010 = vpack.c.b16 %v2966, %v2962
        %v4011 = vpack.c.b16 %v2971, %v2967
        %v4012 = vpack.c.b16 %v2972, %v2968
        %v4013 = vpack.c.b16 %v2973, %v2969
        %v4014 = vpack.c.b16 %v2974, %v2970
        %v4015 = vpack.c.b16 %v2979, %v2975
        %v4016 = vpack.c.b16 %v2980, %v2976
        %v4017 = vpack.c.b16 %v2981, %v2977
        %v4018 = vpack.c.b16 %v2982, %v2978
        %v4019 = vpack.c.b16 %v2987, %v2983
        %v4020 = vpack.c.b16 %v2988, %v2984
        %v4021 = vpack.c.b16 %v2989, %v2985
        %v4022 = vpack.c.b16 %v2990, %v2986
        %v4023 = vpack.c.b16 %v2995, %v2991
        %v4024 = vpack.c.b16 %v2996, %v2992
        %v4025 = vpack.c.b16 %v2997, %v2993
        %v4026 = vpack.c.b16 %v2998, %v2994
        %v4027 = vpack.c.b16 %v3003, %v2999
        %v4028 = vpack.c.b16 %v3004, %v3000
        %v4029 = vpack.c.b16 %v3005, %v3001
        %v4030 = vpack.c.b16 %v3006, %v3002
        %v4031 = vpack.c.b16 %v3011, %v3007
        %v4032 = vpack.c.b16 %v3012, %v3008
        %v4033 = vpack.c.b16 %v3013, %v3009
        %v4034 = vpack.c.b16 %v3014, %v3010
        %v4035 = vpack.c.b16 %v3019, %v3015
        %v4036 = vpack.c.b16 %v3020, %v3016
        %v4037 = vpack.c.b16 %v3021, %v3017
        %v4038 = vpack.c.b16 %v3022, %v3018
        %v4039 = vpack.c.b16 %v3027, %v3023
        %v4040 = vpack.c.b16 %v3028, %v3024
        %v4041 = vpack.c.b16 %v3029, %v3025
        %v4042 = vpack.c.b16 %v3030, %v3026
        %v4043 = vpack.c.b16 %v3035, %v3031
        %v4044 = vpack.c.b16 %v3036, %v3032
        %v4045 = vpack.c.b16 %v3037, %v3033
        %v4046 = vpack.c.b16 %v3038, %v3034
        %v4047 = vpack.c.b16 %v3043, %v3039
        %v4048 = vpack.c.b16 %v3044, %v3040
        %v4049 = vpack.c.b16 %v3045, %v3041
        %v4050 = vpack.c.b16 %v3046, %v3042
        %v4051 = vpack.c.b16 %v3051, %v3047
        %v4052 = vpack.c.b16 %v3052, %v3048
        %v4053 = vpack.c.b16 %v3053, %v3049
        %v4054 = vpack.c.b16 %v3054, %v3050
        %v4055 = vpack.c.b16 %v3059, %v3055
        %v4056 = vpack.c.b16 %v3060, %v3056
        %v4057 = vpack.c.b16 %v3061, %v3057
        %v4058 = vpack.c.b16 %v3062, %v3058
        %v4059 = vpack.c.b16 %v3067, %v3063
        %v4060 = vpack.c.b16 %v3068, %v3064
        %v4061 = vpack.c.b16 %v3069, %v3065
        %v4062 = vpack.c.b16 %v3070, %v3066
        %v4063 = vpack.c.b16 %v3075, %v3071
        %v4064 = vpack.c.b16 %v3076, %v3072
        %v4065 = vpack.c.b16 %v3077, %v3073
        %v4066 = vpack.c.b16 %v3078, %v3074
        %v4067 = vpack.c.b16 %v3083, %v3079
        %v4068 = vpack.c.b16 %v3084, %v3080
        %v4069 = vpack.c.b16 %v3085, %v3081
        %v4070 = vpack.c.b16 %v3086, %v3082
        %v4071 = vpack.c.b16 %v3091, %v3087
        %v4072 = vpack.c.b16 %v3092, %v3088
        %v4073 = vpack.c.b16 %v3093, %v3089
        %v4074 = vpack.c.b16 %v3094, %v3090
        %v4075 = vpack.c.b16 %v3099, %v3095
        %v4076 = vpack.c.b16 %v3100, %v3096
        %v4077 = vpack.c.b16 %v3101, %v3097
        %v4078 = vpack.c.b16 %v3102, %v3098
        %v4079 = vpack.c.b16 %v3107, %v3103
        %v4080 = vpack.c.b16 %v3108, %v3104
        %v4081 = vpack.c.b16 %v3109, %v3105
        %v4082 = vpack.c.b16 %v3110, %v3106
        %v4083 = vpack.c.b16 %v3115, %v3111
        %v4084 = vpack.c.b16 %v3116, %v3112
        %v4085 = vpack.c.b16 %v3117, %v3113
        %v4086 = vpack.c.b16 %v3118, %v3114
        %v4087 = vpack.c.b16 %v3123, %v3119
        %v4088 = vpack.c.b16 %v3124, %v3120
        %v4089 = vpack.c.b16 %v3125, %v3121
        %v4090 = vpack.c.b16 %v3126, %v3122
        %v4091 = vpack.c.b16 %v3131, %v3127
        %v4092 = vpack.c.b16 %v3132, %v3128
        %v4093 = vpack.c.b16 %v3133, %v3129
        %v4094 = vpack.c.b16 %v3134, %v3130
        %v4095 = vpack.c.b16 %v3139, %v3135
        %v4096 = vpack.c.b16 %v3140, %v3136
        %v4097 = vpack.c.b16 %v3141, %v3137
        %v4098 = vpack.c.b16 %v3142, %v3138
        %v4099 = vpack.c.b16 %v3147, %v3143
        %v4100 = vpack.c.b16 %v3148, %v3144
        %v4101 = vpack.c.b16 %v3149, %v3145
        %v4102 = vpack.c.b16 %v3150, %v3146
        %v4103 = vpack.c.b16 %v3155, %v3151
        %v4104 = vpack.c.b16 %v3156, %v3152
        %v4105 = vpack.c.b16 %v3157, %v3153
        %v4106 = vpack.c.b16 %v3158, %v3154
        %v4107 = vpack.c.b16 %v3163, %v3159
        %v4108 = vpack.c.b16 %v3164, %v3160
        %v4109 = vpack.c.b16 %v3165, %v3161
        %v4110 = vpack.c.b16 %v3166, %v3162
        %v4111 = vpack.c.b16 %v3171, %v3167
        %v4112 = vpack.c.b16 %v3172, %v3168
        %v4113 = vpack.c.b16 %v3173, %v3169
        %v4114 = vpack.c.b16 %v3174, %v3170
        %v4115 = vpack.c.b16 %v3179, %v3175
        %v4116 = vpack.c.b16 %v3180, %v3176
        %v4117 = vpack.c.b16 %v3181, %v3177
        %v4118 = vpack.c.b16 %v3182, %v3178
        %v4119 = vpack.c.b16 %v3187, %v3183
        %v4120 = vpack.c.b16 %v3188, %v3184
        %v4121 = vpack.c.b16 %v3189, %v3185
        %v4122 = vpack.c.b16 %v3190, %v3186
        %v4123 = vpack.c.b16 %v3195, %v3191
        %v4124 = vpack.c.b16 %v3196, %v3192
        %v4125 = vpack.c.b16 %v3197, %v3193
        %v4126 = vpack.c.b16 %v3198, %v3194
        %v4127 = vpack.c.b16 %v3203, %v3199
        %v4128 = vpack.c.b16 %v3204, %v3200
        %v4129 = vpack.c.b16 %v3205, %v3201
        %v4130 = vpack.c.b16 %v3206, %v3202
        %v4131 = vpack.c.b16 %v3211, %v3207
        %v4132 = vpack.c.b16 %v3212, %v3208
        %v4133 = vpack.c.b16 %v3213, %v3209
        %v4134 = vpack.c.b16 %v3214, %v3210
        %v4135 = vpack.c.b16 %v3219, %v3215
        %v4136 = vpack.c.b16 %v3220, %v3216
        %v4137 = vpack.c.b16 %v3221, %v3217
        %v4138 = vpack.c.b16 %v3222, %v3218
        %v4139 = vpack.c.b16 %v3227, %v3223
        %v4140 = vpack.c.b16 %v3228, %v3224
        %v4141 = vpack.c.b16 %v3229, %v3225
        %v4142 = vpack.c.b16 %v3230, %v3226
        %v4143 = vpack.c.b16 %v3235, %v3231
        %v4144 = vpack.c.b16 %v3236, %v3232
        %v4145 = vpack.c.b16 %v3237, %v3233
        %v4146 = vpack.c.b16 %v3238, %v3234
        %v4147 = vpack.c.b16 %v3243, %v3239
        %v4148 = vpack.c.b16 %v3244, %v3240
        %v4149 = vpack.c.b16 %v3245, %v3241
        %v4150 = vpack.c.b16 %v3246, %v3242
        %v4151 = vpack.c.b16 %v3251, %v3247
        %v4152 = vpack.c.b16 %v3252, %v3248
        %v4153 = vpack.c.b16 %v3253, %v3249
        %v4154 = vpack.c.b16 %v3254, %v3250
        %v4155 = vpack.c.b16 %v3259, %v3255
        %v4156 = vpack.c.b16 %v3260, %v3256
        %v4157 = vpack.c.b16 %v3261, %v3257
        %v4158 = vpack.c.b16 %v3262, %v3258
        %v4159 = vpack.c.b16 %v3267, %v3263
        %v4160 = vpack.c.b16 %v3268, %v3264
        %v4161 = vpack.c.b16 %v3269, %v3265
        %v4162 = vpack.c.b16 %v3270, %v3266
        %v4163 = vpack.c.b16 %v3275, %v3271
        %v4164 = vpack.c.b16 %v3276, %v3272
        %v4165 = vpack.c.b16 %v3277, %v3273
        %v4166 = vpack.c.b16 %v3278, %v3274
        %v4167 = vpack.c.b16 %v3283, %v3279
        %v4168 = vpack.c.b16 %v3284, %v3280
        %v4169 = vpack.c.b16 %v3285, %v3281
        %v4170 = vpack.c.b16 %v3286, %v3282
        %v4171 = vpack.c.b16 %v3291, %v3287
        %v4172 = vpack.c.b16 %v3292, %v3288
        %v4173 = vpack.c.b16 %v3293, %v3289
        %v4174 = vpack.c.b16 %v3294, %v3290
        %v4175 = vpack.c.b16 %v3299, %v3295
        %v4176 = vpack.c.b16 %v3300, %v3296
        %v4177 = vpack.c.b16 %v3301, %v3297
        %v4178 = vpack.c.b16 %v3302, %v3298
        %v4179 = vpack.c.b16 %v3307, %v3303
        %v4180 = vpack.c.b16 %v3308, %v3304
        %v4181 = vpack.c.b16 %v3309, %v3305
        %v4182 = vpack.c.b16 %v3310, %v3306
        %v4183 = vpack.c.b16 %v3315, %v3311
        %v4184 = vpack.c.b16 %v3316, %v3312
        %v4185 = vpack.c.b16 %v3317, %v3313
        %v4186 = vpack.c.b16 %v3318, %v3314
        %v4187 = vpack.c.b16 %v3323, %v3319
        %v4188 = vpack.c.b16 %v3324, %v3320
        %v4189 = vpack.c.b16 %v3325, %v3321
        %v4190 = vpack.c.b16 %v3326, %v3322
        %v4191 = vpack.c.b16 %v3331, %v3327
        %v4192 = vpack.c.b16 %v3332, %v3328
        %v4193 = vpack.c.b16 %v3333, %v3329
        %v4194 = vpack.c.b16 %v3334, %v3330
        %v4195 = vpack.c.b16 %v3339, %v3335
        %v4196 = vpack.c.b16 %v3340, %v3336
        %v4197 = vpack.c.b16 %v3341, %v3337
        %v4198 = vpack.c.b16 %v3342, %v3338
        %v4199 = vpack.c.b16 %v3347, %v3343
        %v4200 = vpack.c.b16 %v3348, %v3344
        %v4201 = vpack.c.b16 %v3349, %v3345
        %v4202 = vpack.c.b16 %v3350, %v3346
        %v4203 = vpack.c.b16 %v3355, %v3351
        %v4204 = vpack.c.b16 %v3356, %v3352
        %v4205 = vpack.c.b16 %v3357, %v3353
        %v4206 = vpack.c.b16 %v3358, %v3354
        %v4207 = vpack.c.b16 %v3363, %v3359
        %v4208 = vpack.c.b16 %v3364, %v3360
        %v4209 = vpack.c.b16 %v3365, %v3361
        %v4210 = vpack.c.b16 %v3366, %v3362
        %v4211 = vpack.c.b16 %v3371, %v3367
        %v4212 = vpack.c.b16 %v3372, %v3368
        %v4213 = vpack.c.b16 %v3373, %v3369
        %v4214 = vpack.c.b16 %v3374, %v3370
        %v4215 = vpack.c.b16 %v3379, %v3375
        %v4216 = vpack.c.b16 %v3380, %v3376
        %v4217 = vpack.c.b16 %v3381, %v3377
        %v4218 = vpack.c.b16 %v3382, %v3378
        %v4219 = vpack.c.b16 %v3387, %v3383
        %v4220 = vpack.c.b16 %v3388, %v3384
        %v4221 = vpack.c.b16 %v3389, %v3385
        %v4222 = vpack.c.b16 %v3390, %v3386
        %v4223 = vpack.c.b16 %v3395, %v3391
        %v4224 = vpack.c.b16 %v3396, %v3392
        %v4225 = vpack.c.b16 %v3397, %v3393
        %v4226 = vpack.c.b16 %v3398, %v3394
        %v4227 = vpack.c.b16 %v3403, %v3399
        %v4228 = vpack.c.b16 %v3404, %v3400
        %v4229 = vpack.c.b16 %v3405, %v3401
        %v4230 = vpack.c.b16 %v3406, %v3402
        %v4231 = vpack.c.b16 %v3411, %v3407
        %v4232 = vpack.c.b16 %v3412, %v3408
        %v4233 = vpack.c.b16 %v3413, %v3409
        %v4234 = vpack.c.b16 %v3414, %v3410
        %v4235 = vpack.c.b16 %v3419, %v3415
        %v4236 = vpack.c.b16 %v3420, %v3416
        %v4237 = vpack.c.b16 %v3421, %v3417
        %v4238 = vpack.c.b16 %v3422, %v3418
        %v4239 = vpack.c.b16 %v3427, %v3423
        %v4240 = vpack.c.b16 %v3428, %v3424
        %v4241 = vpack.c.b16 %v3429, %v3425
        %v4242 = vpack.c.b16 %v3430, %v3426
        %v4243 = vpack.c.b16 %v3435, %v3431
        %v4244 = vpack.c.b16 %v3436, %v3432
        %v4245 = vpack.c.b16 %v3437, %v3433
        %v4246 = vpack.c.b16 %v3438, %v3434
        %v4247 = vpack.c.b16 %v3443, %v3439
        %v4248 = vpack.c.b16 %v3444, %v3440
        %v4249 = vpack.c.b16 %v3445, %v3441
        %v4250 = vpack.c.b16 %v3446, %v3442
        %v4251 = vpack.c.b16 %v3451, %v3447
        %v4252 = vpack.c.b16 %v3452, %v3448
        %v4253 = vpack.c.b16 %v3453, %v3449
        %v4254 = vpack.c.b16 %v3454, %v3450
        %v4255 = vpack.c.b16 %v3459, %v3455
        %v4256 = vpack.c.b16 %v3460, %v3456
        %v4257 = vpack.c.b16 %v3461, %v3457
        %v4258 = vpack.c.b16 %v3462, %v3458
        %v4259 = vpack.c.b16 %v3467, %v3463
        %v4260 = vpack.c.b16 %v3468, %v3464
        %v4261 = vpack.c.b16 %v3469, %v3465
        %v4262 = vpack.c.b16 %v3470, %v3466
        %v4263 = vpack.c.b16 %v3475, %v3471
        %v4264 = vpack.c.b16 %v3476, %v3472
        %v4265 = vpack.c.b16 %v3477, %v3473
        %v4266 = vpack.c.b16 %v3478, %v3474
        %v4267 = vpack.c.b16 %v3483, %v3479
        %v4268 = vpack.c.b16 %v3484, %v3480
        %v4269 = vpack.c.b16 %v3485, %v3481
        %v4270 = vpack.c.b16 %v3486, %v3482
        %v4271 = vpack.c.b16 %v3491, %v3487
        %v4272 = vpack.c.b16 %v3492, %v3488
        %v4273 = vpack.c.b16 %v3493, %v3489
        %v4274 = vpack.c.b16 %v3494, %v3490
        %v4275 = vpack.c.b16 %v3499, %v3495
        %v4276 = vpack.c.b16 %v3500, %v3496
        %v4277 = vpack.c.b16 %v3501, %v3497
        %v4278 = vpack.c.b16 %v3502, %v3498
        %v4279 = vpack.c.b16 %v3507, %v3503
        %v4280 = vpack.c.b16 %v3508, %v3504
        %v4281 = vpack.c.b16 %v3509, %v3505
        %v4282 = vpack.c.b16 %v3510, %v3506
        %v4283 = vpack.c.b16 %v3515, %v3511
        %v4284 = vpack.c.b16 %v3516, %v3512
        %v4285 = vpack.c.b16 %v3517, %v3513
        %v4286 = vpack.c.b16 %v3518, %v3514
        %5055 = vmatprep.subr.bf16.mxu0 %v3520
        %5056 = vmatpush1.bf16.msra.mxu0 %v3519
        %5057 = vmatprep.subr.bf16.mxu0 %v3524
        %5058 = vmatpush1.bf16.msra.mxu0 %v3523
        %5059 = vmatprep.subr.bf16.mxu0 %v3528
        %5060 = vmatpush1.bf16.msra.mxu0 %v3527
        %5061 = vmatprep.subr.bf16.mxu0 %v3532
        %5062 = vmatpush1.bf16.msra.mxu0 %v3531
        %5063 = vmatprep.subr.bf16.mxu0 %v3536
        %5064 = vmatpush1.bf16.msra.mxu0 %v3535
        %5065 = vmatprep.subr.bf16.mxu0 %v3540
        %5066 = vmatpush1.bf16.msra.mxu0 %v3539
        %5067 = vmatprep.subr.bf16.mxu0 %v3544
        %5068 = vmatpush1.bf16.msra.mxu0 %v3543
        %5069 = vmatprep.subr.bf16.mxu0 %v3548
        %5070 = vmatpush1.bf16.msra.mxu0 %v3547
        %5071 = vmatprep.subr.bf16.mxu0 %v3552
        %5072 = vmatpush1.bf16.msra.mxu0 %v3551
        %5073 = vmatprep.subr.bf16.mxu0 %v3556
        %5074 = vmatpush1.bf16.msra.mxu0 %v3555
        %5075 = vmatprep.subr.bf16.mxu0 %v3560
        %5076 = vmatpush1.bf16.msra.mxu0 %v3559
        %5077 = vmatprep.subr.bf16.mxu0 %v3564
        %5078 = vmatpush1.bf16.msra.mxu0 %v3563
        %5079 = vmatprep.subr.bf16.mxu0 %v3568
        %5080 = vmatpush1.bf16.msra.mxu0 %v3567
        %5081 = vmatprep.subr.bf16.mxu0 %v3572
        %5082 = vmatpush1.bf16.msra.mxu0 %v3571
        %5083 = vmatprep.subr.bf16.mxu0 %v3576
        %5084 = vmatpush1.bf16.msra.mxu0 %v3575
        %5085 = vmatprep.subr.bf16.mxu0 %v3580
        %5086 = vmatpush1.bf16.msra.mxu0 %v3579
        %5087 = vmatprep.mubr.bf16.mxu0 %v402
        %5088 = vmatmul.mubr.bf16.gmra.mrb[0].mxu0 %v401
        %v5089 = vpop.f32.mrb[0].mxu0
        %v5090 = vadd.f32 %v1198, %v5089
        %v5091 = vpop.f32.mrb[0].mxu0
        %v5092 = vadd.f32 %v1202, %v5091
        %v5093 = vpop.f32.mrb[0].mxu0
        %v5094 = vpop.f32.mrb[0].mxu0
        %5095 = vdwg.mxu0
        %5096 = vmatprep.subr.bf16.mxu0 %v3584
        %5097 = vmatpush1.bf16.msra.mxu0 %v3583
        %5098 = vmatprep.subr.bf16.mxu0 %v3588
        %5099 = vmatpush1.bf16.msra.mxu0 %v3587
        %5100 = vmatprep.subr.bf16.mxu0 %v3592
        %5101 = vmatpush1.bf16.msra.mxu0 %v3591
        %5102 = vmatprep.subr.bf16.mxu0 %v3596
        %5103 = vmatpush1.bf16.msra.mxu0 %v3595
        %5104 = vmatprep.subr.bf16.mxu0 %v3600
        %5105 = vmatpush1.bf16.msra.mxu0 %v3599
        %5106 = vmatprep.subr.bf16.mxu0 %v3604
        %5107 = vmatpush1.bf16.msra.mxu0 %v3603
        %5108 = vmatprep.subr.bf16.mxu0 %v3608
        %5109 = vmatpush1.bf16.msra.mxu0 %v3607
        %5110 = vmatprep.subr.bf16.mxu0 %v3612
        %5111 = vmatpush1.bf16.msra.mxu0 %v3611
        %5112 = vmatprep.subr.bf16.mxu0 %v3616
        %5113 = vmatpush1.bf16.msra.mxu0 %v3615
        %5114 = vmatprep.subr.bf16.mxu0 %v3620
        %5115 = vmatpush1.bf16.msra.mxu0 %v3619
        %5116 = vmatprep.subr.bf16.mxu0 %v3624
        %5117 = vmatpush1.bf16.msra.mxu0 %v3623
        %5118 = vmatprep.subr.bf16.mxu0 %v3628
        %5119 = vmatpush1.bf16.msra.mxu0 %v3627
        %5120 = vmatprep.subr.bf16.mxu0 %v3632
        %5121 = vmatpush1.bf16.msra.mxu0 %v3631
        %5122 = vmatprep.subr.bf16.mxu0 %v3636
        %5123 = vmatpush1.bf16.msra.mxu0 %v3635
        %5124 = vmatprep.subr.bf16.mxu0 %v3640
        %5125 = vmatpush1.bf16.msra.mxu0 %v3639
        %5126 = vmatprep.subr.bf16.mxu0 %v3644
        %5127 = vmatpush1.bf16.msra.mxu0 %v3643
        %5128 = vmatprep.mubr.bf16.mxu0 %v404
        %5129 = vmatmul.mubr.bf16.gmra.mrb[0].mxu0 %v403
        %v5130 = vpop.f32.mrb[0].mxu0
        %v5131 = vadd.f32 %v5090, %v5130
        %v5132 = vpop.f32.mrb[0].mxu0
        %v5133 = vadd.f32 %v5092, %v5132
        %v5134 = vpop.f32.mrb[0].mxu0
        %v5135 = vpop.f32.mrb[0].mxu0
        %5136 = vdwg.mxu0
        %5137 = vmatprep.subr.bf16.mxu0 %v3648
        %5138 = vmatpush1.bf16.msra.mxu0 %v3647
        %5139 = vmatprep.subr.bf16.mxu0 %v3652
        %5140 = vmatpush1.bf16.msra.mxu0 %v3651
        %5141 = vmatprep.subr.bf16.mxu0 %v3656
        %5142 = vmatpush1.bf16.msra.mxu0 %v3655
        %5143 = vmatprep.subr.bf16.mxu0 %v3660
        %5144 = vmatpush1.bf16.msra.mxu0 %v3659
        %5145 = vmatprep.subr.bf16.mxu0 %v3664
        %5146 = vmatpush1.bf16.msra.mxu0 %v3663
        %5147 = vmatprep.subr.bf16.mxu0 %v3668
        %5148 = vmatpush1.bf16.msra.mxu0 %v3667
        %5149 = vmatprep.subr.bf16.mxu0 %v3672
        %5150 = vmatpush1.bf16.msra.mxu0 %v3671
        %5151 = vmatprep.subr.bf16.mxu0 %v3676
        %5152 = vmatpush1.bf16.msra.mxu0 %v3675
        %5153 = vmatprep.subr.bf16.mxu0 %v3680
        %5154 = vmatpush1.bf16.msra.mxu0 %v3679
        %5155 = vmatprep.subr.bf16.mxu0 %v3684
        %5156 = vmatpush1.bf16.msra.mxu0 %v3683
        %5157 = vmatprep.subr.bf16.mxu0 %v3688
        %5158 = vmatpush1.bf16.msra.mxu0 %v3687
        %5159 = vmatprep.subr.bf16.mxu0 %v3692
        %5160 = vmatpush1.bf16.msra.mxu0 %v3691
        %5161 = vmatprep.subr.bf16.mxu0 %v3696
        %5162 = vmatpush1.bf16.msra.mxu0 %v3695
        %5163 = vmatprep.subr.bf16.mxu0 %v3700
        %5164 = vmatpush1.bf16.msra.mxu0 %v3699
        %5165 = vmatprep.subr.bf16.mxu0 %v3704
        %5166 = vmatpush1.bf16.msra.mxu0 %v3703
        %5167 = vmatprep.subr.bf16.mxu0 %v3708
        %5168 = vmatpush1.bf16.msra.mxu0 %v3707
        %5169 = vmatprep.mubr.bf16.mxu0 %v406
        %5170 = vmatmul.mubr.bf16.gmra.mrb[0].mxu0 %v405
        %v5171 = vpop.f32.mrb[0].mxu0
        %v5172 = vadd.f32 %v5131, %v5171
        %v5173 = vpop.f32.mrb[0].mxu0
        %v5174 = vadd.f32 %v5133, %v5173
        %v5175 = vpop.f32.mrb[0].mxu0
        %v5176 = vpop.f32.mrb[0].mxu0
        %5177 = vdwg.mxu0
        %5178 = vmatprep.subr.bf16.mxu0 %v3712
        %5179 = vmatpush1.bf16.msra.mxu0 %v3711
        %5180 = vmatprep.subr.bf16.mxu0 %v3716
        %5181 = vmatpush1.bf16.msra.mxu0 %v3715
        %5182 = vmatprep.subr.bf16.mxu0 %v3720
        %5183 = vmatpush1.bf16.msra.mxu0 %v3719
        %5184 = vmatprep.subr.bf16.mxu0 %v3724
        %5185 = vmatpush1.bf16.msra.mxu0 %v3723
        %5186 = vmatprep.subr.bf16.mxu0 %v3728
        %5187 = vmatpush1.bf16.msra.mxu0 %v3727
        %5188 = vmatprep.subr.bf16.mxu0 %v3732
        %5189 = vmatpush1.bf16.msra.mxu0 %v3731
        %5190 = vmatprep.subr.bf16.mxu0 %v3736
        %5191 = vmatpush1.bf16.msra.mxu0 %v3735
        %5192 = vmatprep.subr.bf16.mxu0 %v3740
        %5193 = vmatpush1.bf16.msra.mxu0 %v3739
        %5194 = vmatprep.subr.bf16.mxu0 %v3744
        %5195 = vmatpush1.bf16.msra.mxu0 %v3743
        %5196 = vmatprep.subr.bf16.mxu0 %v3748
        %5197 = vmatpush1.bf16.msra.mxu0 %v3747
        %5198 = vmatprep.subr.bf16.mxu0 %v3752
        %5199 = vmatpush1.bf16.msra.mxu0 %v3751
        %5200 = vmatprep.subr.bf16.mxu0 %v3756
        %5201 = vmatpush1.bf16.msra.mxu0 %v3755
        %5202 = vmatprep.subr.bf16.mxu0 %v3760
        %5203 = vmatpush1.bf16.msra.mxu0 %v3759
        %5204 = vmatprep.subr.bf16.mxu0 %v3764
        %5205 = vmatpush1.bf16.msra.mxu0 %v3763
        %5206 = vmatprep.subr.bf16.mxu0 %v3768
        %5207 = vmatpush1.bf16.msra.mxu0 %v3767
        %5208 = vmatprep.subr.bf16.mxu0 %v3772
        %5209 = vmatpush1.bf16.msra.mxu0 %v3771
        %5210 = vmatprep.mubr.bf16.mxu0 %v408
        %5211 = vmatmul.mubr.bf16.gmra.mrb[0].mxu0 %v407
        %v5212 = vpop.f32.mrb[0].mxu0
        %v5213 = vadd.f32 %v5172, %v5212
        %v5214 = vpop.f32.mrb[0].mxu0
        %v5215 = vadd.f32 %v5174, %v5214
        %v5216 = vpop.f32.mrb[0].mxu0
        %v5217 = vpop.f32.mrb[0].mxu0
        %5218 = vdwg.mxu0
        %5219 = vmatprep.subr.bf16.mxu0 %v3776
        %5220 = vmatpush1.bf16.msra.mxu0 %v3775
        %5221 = vmatprep.subr.bf16.mxu0 %v3780
        %5222 = vmatpush1.bf16.msra.mxu0 %v3779
        %5223 = vmatprep.subr.bf16.mxu0 %v3784
        %5224 = vmatpush1.bf16.msra.mxu0 %v3783
        %5225 = vmatprep.subr.bf16.mxu0 %v3788
        %5226 = vmatpush1.bf16.msra.mxu0 %v3787
        %5227 = vmatprep.subr.bf16.mxu0 %v3792
        %5228 = vmatpush1.bf16.msra.mxu0 %v3791
        %5229 = vmatprep.subr.bf16.mxu0 %v3796
        %5230 = vmatpush1.bf16.msra.mxu0 %v3795
        %5231 = vmatprep.subr.bf16.mxu0 %v3800
        %5232 = vmatpush1.bf16.msra.mxu0 %v3799
        %5233 = vmatprep.subr.bf16.mxu0 %v3804
        %5234 = vmatpush1.bf16.msra.mxu0 %v3803
        %5235 = vmatprep.subr.bf16.mxu0 %v3808
        %5236 = vmatpush1.bf16.msra.mxu0 %v3807
        %5237 = vmatprep.subr.bf16.mxu0 %v3812
        %5238 = vmatpush1.bf16.msra.mxu0 %v3811
        %5239 = vmatprep.subr.bf16.mxu0 %v3816
        %5240 = vmatpush1.bf16.msra.mxu0 %v3815
        %5241 = vmatprep.subr.bf16.mxu0 %v3820
        %5242 = vmatpush1.bf16.msra.mxu0 %v3819
        %5243 = vmatprep.subr.bf16.mxu0 %v3824
        %5244 = vmatpush1.bf16.msra.mxu0 %v3823
        %5245 = vmatprep.subr.bf16.mxu0 %v3828
        %5246 = vmatpush1.bf16.msra.mxu0 %v3827
        %5247 = vmatprep.subr.bf16.mxu0 %v3832
        %5248 = vmatpush1.bf16.msra.mxu0 %v3831
        %5249 = vmatprep.subr.bf16.mxu0 %v3836
        %5250 = vmatpush1.bf16.msra.mxu0 %v3835
        %5251 = vmatprep.mubr.bf16.mxu0 %v410
        %5252 = vmatmul.mubr.bf16.gmra.mrb[0].mxu0 %v409
        %v5253 = vpop.f32.mrb[0].mxu0
        %v5254 = vadd.f32 %v5213, %v5253
        %v5255 = vpop.f32.mrb[0].mxu0
        %v5256 = vadd.f32 %v5215, %v5255
        %v5257 = vpop.f32.mrb[0].mxu0
        %v5258 = vpop.f32.mrb[0].mxu0
        %5259 = vdwg.mxu0
        %5260 = vmatprep.subr.bf16.mxu0 %v3840
        %5261 = vmatpush1.bf16.msra.mxu0 %v3839
        %5262 = vmatprep.subr.bf16.mxu0 %v3844
        %5263 = vmatpush1.bf16.msra.mxu0 %v3843
        %5264 = vmatprep.subr.bf16.mxu0 %v3848
        %5265 = vmatpush1.bf16.msra.mxu0 %v3847
        %5266 = vmatprep.subr.bf16.mxu0 %v3852
        %5267 = vmatpush1.bf16.msra.mxu0 %v3851
        %5268 = vmatprep.subr.bf16.mxu0 %v3856
        %5269 = vmatpush1.bf16.msra.mxu0 %v3855
        %5270 = vmatprep.subr.bf16.mxu0 %v3860
        %5271 = vmatpush1.bf16.msra.mxu0 %v3859
        %5272 = vmatprep.subr.bf16.mxu0 %v3864
        %5273 = vmatpush1.bf16.msra.mxu0 %v3863
        %5274 = vmatprep.subr.bf16.mxu0 %v3868
        %5275 = vmatpush1.bf16.msra.mxu0 %v3867
        %5276 = vmatprep.subr.bf16.mxu0 %v3872
        %5277 = vmatpush1.bf16.msra.mxu0 %v3871
        %5278 = vmatprep.subr.bf16.mxu0 %v3876
        %5279 = vmatpush1.bf16.msra.mxu0 %v3875
        %5280 = vmatprep.subr.bf16.mxu0 %v3880
        %5281 = vmatpush1.bf16.msra.mxu0 %v3879
        %5282 = vmatprep.subr.bf16.mxu0 %v3884
        %5283 = vmatpush1.bf16.msra.mxu0 %v3883
        %5284 = vmatprep.subr.bf16.mxu0 %v3888
        %5285 = vmatpush1.bf16.msra.mxu0 %v3887
        %5286 = vmatprep.subr.bf16.mxu0 %v3892
        %5287 = vmatpush1.bf16.msra.mxu0 %v3891
        %5288 = vmatprep.subr.bf16.mxu0 %v3896
        %5289 = vmatpush1.bf16.msra.mxu0 %v3895
        %5290 = vmatprep.subr.bf16.mxu0 %v3900
        %5291 = vmatpush1.bf16.msra.mxu0 %v3899
        %5292 = vmatprep.mubr.bf16.mxu0 %v412
        %5293 = vmatmul.mubr.bf16.gmra.mrb[0].mxu0 %v411
        %v5294 = vpop.f32.mrb[0].mxu0
        %v5295 = vadd.f32 %v5254, %v5294
        %v5296 = vpop.f32.mrb[0].mxu0
        %v5297 = vadd.f32 %v5256, %v5296
        %v5298 = vpop.f32.mrb[0].mxu0
        %v5299 = vpop.f32.mrb[0].mxu0
        %5300 = vdwg.mxu0
        %5301 = vmatprep.subr.bf16.mxu0 %v3904
        %5302 = vmatpush1.bf16.msra.mxu0 %v3903
        %5303 = vmatprep.subr.bf16.mxu0 %v3908
        %5304 = vmatpush1.bf16.msra.mxu0 %v3907
        %5305 = vmatprep.subr.bf16.mxu0 %v3912
        %5306 = vmatpush1.bf16.msra.mxu0 %v3911
        %5307 = vmatprep.subr.bf16.mxu0 %v3916
        %5308 = vmatpush1.bf16.msra.mxu0 %v3915
        %5309 = vmatprep.subr.bf16.mxu0 %v3920
        %5310 = vmatpush1.bf16.msra.mxu0 %v3919
        %5311 = vmatprep.subr.bf16.mxu0 %v3924
        %5312 = vmatpush1.bf16.msra.mxu0 %v3923
        %5313 = vmatprep.subr.bf16.mxu0 %v3928
        %5314 = vmatpush1.bf16.msra.mxu0 %v3927
        %5315 = vmatprep.subr.bf16.mxu0 %v3932
        %5316 = vmatpush1.bf16.msra.mxu0 %v3931
        %5317 = vmatprep.subr.bf16.mxu0 %v3936
        %5318 = vmatpush1.bf16.msra.mxu0 %v3935
        %5319 = vmatprep.subr.bf16.mxu0 %v3940
        %5320 = vmatpush1.bf16.msra.mxu0 %v3939
        %5321 = vmatprep.subr.bf16.mxu0 %v3944
        %5322 = vmatpush1.bf16.msra.mxu0 %v3943
        %5323 = vmatprep.subr.bf16.mxu0 %v3948
        %5324 = vmatpush1.bf16.msra.mxu0 %v3947
        %5325 = vmatprep.subr.bf16.mxu0 %v3952
        %5326 = vmatpush1.bf16.msra.mxu0 %v3951
        %5327 = vmatprep.subr.bf16.mxu0 %v3956
        %5328 = vmatpush1.bf16.msra.mxu0 %v3955
        %5329 = vmatprep.subr.bf16.mxu0 %v3960
        %5330 = vmatpush1.bf16.msra.mxu0 %v3959
        %5331 = vmatprep.subr.bf16.mxu0 %v3964
        %5332 = vmatpush1.bf16.msra.mxu0 %v3963
        %5333 = vmatprep.mubr.bf16.mxu0 %v414
        %5334 = vmatmul.mubr.bf16.gmra.mrb[0].mxu0 %v413
        %v5335 = vpop.f32.mrb[0].mxu0
        %v5336 = vadd.f32 %v5295, %v5335
        %v5337 = vpop.f32.mrb[0].mxu0
        %v5338 = vadd.f32 %v5297, %v5337
        %v5339 = vpop.f32.mrb[0].mxu0
        %v5340 = vpop.f32.mrb[0].mxu0
        %5341 = vdwg.mxu0
        %5342 = vmatprep.subr.bf16.mxu0 %v3968
        %5343 = vmatpush1.bf16.msra.mxu0 %v3967
        %5344 = vmatprep.subr.bf16.mxu0 %v3972
        %5345 = vmatpush1.bf16.msra.mxu0 %v3971
        %5346 = vmatprep.subr.bf16.mxu0 %v3976
        %5347 = vmatpush1.bf16.msra.mxu0 %v3975
        %5348 = vmatprep.subr.bf16.mxu0 %v3980
        %5349 = vmatpush1.bf16.msra.mxu0 %v3979
        %5350 = vmatprep.subr.bf16.mxu0 %v3984
        %5351 = vmatpush1.bf16.msra.mxu0 %v3983
        %5352 = vmatprep.subr.bf16.mxu0 %v3988
        %5353 = vmatpush1.bf16.msra.mxu0 %v3987
        %5354 = vmatprep.subr.bf16.mxu0 %v3992
        %5355 = vmatpush1.bf16.msra.mxu0 %v3991
        %5356 = vmatprep.subr.bf16.mxu0 %v3996
        %5357 = vmatpush1.bf16.msra.mxu0 %v3995
        %5358 = vmatprep.subr.bf16.mxu0 %v4000
        %5359 = vmatpush1.bf16.msra.mxu0 %v3999
        %5360 = vmatprep.subr.bf16.mxu0 %v4004
        %5361 = vmatpush1.bf16.msra.mxu0 %v4003
        %5362 = vmatprep.subr.bf16.mxu0 %v4008
        %5363 = vmatpush1.bf16.msra.mxu0 %v4007
        %5364 = vmatprep.subr.bf16.mxu0 %v4012
        %5365 = vmatpush1.bf16.msra.mxu0 %v4011
        %5366 = vmatprep.subr.bf16.mxu0 %v4016
        %5367 = vmatpush1.bf16.msra.mxu0 %v4015
        %5368 = vmatprep.subr.bf16.mxu0 %v4020
        %5369 = vmatpush1.bf16.msra.mxu0 %v4019
        %5370 = vmatprep.subr.bf16.mxu0 %v4024
        %5371 = vmatpush1.bf16.msra.mxu0 %v4023
        %5372 = vmatprep.subr.bf16.mxu0 %v4028
        %5373 = vmatpush1.bf16.msra.mxu0 %v4027
        %5374 = vmatprep.mubr.bf16.mxu0 %v416
        %5375 = vmatmul.mubr.bf16.gmra.mrb[0].mxu0 %v415
        %v5376 = vpop.f32.mrb[0].mxu0
        %v5377 = vadd.f32 %v5336, %v5376
        %v5378 = vpop.f32.mrb[0].mxu0
        %v5379 = vadd.f32 %v5338, %v5378
        %v5380 = vpop.f32.mrb[0].mxu0
        %v5381 = vpop.f32.mrb[0].mxu0
        %5382 = vdwg.mxu0
        %5383 = vmatprep.subr.bf16.mxu0 %v4032
        %5384 = vmatpush1.bf16.msra.mxu0 %v4031
        %5385 = vmatprep.subr.bf16.mxu0 %v4036
        %5386 = vmatpush1.bf16.msra.mxu0 %v4035
        %5387 = vmatprep.subr.bf16.mxu0 %v4040
        %5388 = vmatpush1.bf16.msra.mxu0 %v4039
        %5389 = vmatprep.subr.bf16.mxu0 %v4044
        %5390 = vmatpush1.bf16.msra.mxu0 %v4043
        %5391 = vmatprep.subr.bf16.mxu0 %v4048
        %5392 = vmatpush1.bf16.msra.mxu0 %v4047
        %5393 = vmatprep.subr.bf16.mxu0 %v4052
        %5394 = vmatpush1.bf16.msra.mxu0 %v4051
        %5395 = vmatprep.subr.bf16.mxu0 %v4056
        %5396 = vmatpush1.bf16.msra.mxu0 %v4055
        %5397 = vmatprep.subr.bf16.mxu0 %v4060
        %5398 = vmatpush1.bf16.msra.mxu0 %v4059
        %5399 = vmatprep.subr.bf16.mxu0 %v4064
        %5400 = vmatpush1.bf16.msra.mxu0 %v4063
        %5401 = vmatprep.subr.bf16.mxu0 %v4068
        %5402 = vmatpush1.bf16.msra.mxu0 %v4067
        %5403 = vmatprep.subr.bf16.mxu0 %v4072
        %5404 = vmatpush1.bf16.msra.mxu0 %v4071
        %5405 = vmatprep.subr.bf16.mxu0 %v4076
        %5406 = vmatpush1.bf16.msra.mxu0 %v4075
        %5407 = vmatprep.subr.bf16.mxu0 %v4080
        %5408 = vmatpush1.bf16.msra.mxu0 %v4079
        %5409 = vmatprep.subr.bf16.mxu0 %v4084
        %5410 = vmatpush1.bf16.msra.mxu0 %v4083
        %5411 = vmatprep.subr.bf16.mxu0 %v4088
        %5412 = vmatpush1.bf16.msra.mxu0 %v4087
        %5413 = vmatprep.subr.bf16.mxu0 %v4092
        %5414 = vmatpush1.bf16.msra.mxu0 %v4091
        %5415 = vmatprep.mubr.bf16.mxu0 %v418
        %5416 = vmatmul.mubr.bf16.gmra.mrb[0].mxu0 %v417
        %v5417 = vpop.f32.mrb[0].mxu0
        %v5418 = vadd.f32 %v5377, %v5417
        %v5419 = vpop.f32.mrb[0].mxu0
        %v5420 = vadd.f32 %v5379, %v5419
        %v5421 = vpop.f32.mrb[0].mxu0
        %v5422 = vpop.f32.mrb[0].mxu0
        %5423 = vdwg.mxu0
        %5424 = vmatprep.subr.bf16.mxu0 %v4096
        %5425 = vmatpush1.bf16.msra.mxu0 %v4095
        %5426 = vmatprep.subr.bf16.mxu0 %v4100
        %5427 = vmatpush1.bf16.msra.mxu0 %v4099
        %5428 = vmatprep.subr.bf16.mxu0 %v4104
        %5429 = vmatpush1.bf16.msra.mxu0 %v4103
        %5430 = vmatprep.subr.bf16.mxu0 %v4108
        %5431 = vmatpush1.bf16.msra.mxu0 %v4107
        %5432 = vmatprep.subr.bf16.mxu0 %v4112
        %5433 = vmatpush1.bf16.msra.mxu0 %v4111
        %5434 = vmatprep.subr.bf16.mxu0 %v4116
        %5435 = vmatpush1.bf16.msra.mxu0 %v4115
        %5436 = vmatprep.subr.bf16.mxu0 %v4120
        %5437 = vmatpush1.bf16.msra.mxu0 %v4119
        %5438 = vmatprep.subr.bf16.mxu0 %v4124
        %5439 = vmatpush1.bf16.msra.mxu0 %v4123
        %5440 = vmatprep.subr.bf16.mxu0 %v4128
        %5441 = vmatpush1.bf16.msra.mxu0 %v4127
        %5442 = vmatprep.subr.bf16.mxu0 %v4132
        %5443 = vmatpush1.bf16.msra.mxu0 %v4131
        %5444 = vmatprep.subr.bf16.mxu0 %v4136
        %5445 = vmatpush1.bf16.msra.mxu0 %v4135
        %5446 = vmatprep.subr.bf16.mxu0 %v4140
        %5447 = vmatpush1.bf16.msra.mxu0 %v4139
        %5448 = vmatprep.subr.bf16.mxu0 %v4144
        %5449 = vmatpush1.bf16.msra.mxu0 %v4143
        %5450 = vmatprep.subr.bf16.mxu0 %v4148
        %5451 = vmatpush1.bf16.msra.mxu0 %v4147
        %5452 = vmatprep.subr.bf16.mxu0 %v4152
        %5453 = vmatpush1.bf16.msra.mxu0 %v4151
        %5454 = vmatprep.subr.bf16.mxu0 %v4156
        %5455 = vmatpush1.bf16.msra.mxu0 %v4155
        %5456 = vmatprep.mubr.bf16.mxu0 %v420
        %5457 = vmatmul.mubr.bf16.gmra.mrb[0].mxu0 %v419
        %v5458 = vpop.f32.mrb[0].mxu0
        %v5459 = vadd.f32 %v5418, %v5458
        %v5460 = vpop.f32.mrb[0].mxu0
        %v5461 = vadd.f32 %v5420, %v5460
        %v5462 = vpop.f32.mrb[0].mxu0
        %v5463 = vpop.f32.mrb[0].mxu0
        %5464 = vdwg.mxu0
        %5465 = vmatprep.subr.bf16.mxu0 %v4160
        %5466 = vmatpush1.bf16.msra.mxu0 %v4159
        %5467 = vmatprep.subr.bf16.mxu0 %v4164
        %5468 = vmatpush1.bf16.msra.mxu0 %v4163
        %5469 = vmatprep.subr.bf16.mxu0 %v4168
        %5470 = vmatpush1.bf16.msra.mxu0 %v4167
        %5471 = vmatprep.subr.bf16.mxu0 %v4172
        %5472 = vmatpush1.bf16.msra.mxu0 %v4171
        %5473 = vmatprep.subr.bf16.mxu0 %v4176
        %5474 = vmatpush1.bf16.msra.mxu0 %v4175
        %5475 = vmatprep.subr.bf16.mxu0 %v4180
        %5476 = vmatpush1.bf16.msra.mxu0 %v4179
        %5477 = vmatprep.subr.bf16.mxu0 %v4184
        %5478 = vmatpush1.bf16.msra.mxu0 %v4183
        %5479 = vmatprep.subr.bf16.mxu0 %v4188
        %5480 = vmatpush1.bf16.msra.mxu0 %v4187
        %5481 = vmatprep.subr.bf16.mxu0 %v4192
        %5482 = vmatpush1.bf16.msra.mxu0 %v4191
        %5483 = vmatprep.subr.bf16.mxu0 %v4196
        %5484 = vmatpush1.bf16.msra.mxu0 %v4195
        %5485 = vmatprep.subr.bf16.mxu0 %v4200
        %5486 = vmatpush1.bf16.msra.mxu0 %v4199
        %5487 = vmatprep.subr.bf16.mxu0 %v4204
        %5488 = vmatpush1.bf16.msra.mxu0 %v4203
        %5489 = vmatprep.subr.bf16.mxu0 %v4208
        %5490 = vmatpush1.bf16.msra.mxu0 %v4207
        %5491 = vmatprep.subr.bf16.mxu0 %v4212
        %5492 = vmatpush1.bf16.msra.mxu0 %v4211
        %5493 = vmatprep.subr.bf16.mxu0 %v4216
        %5494 = vmatpush1.bf16.msra.mxu0 %v4215
        %5495 = vmatprep.subr.bf16.mxu0 %v4220
        %5496 = vmatpush1.bf16.msra.mxu0 %v4219
        %5497 = vmatprep.mubr.bf16.mxu0 %v422
        %5498 = vmatmul.mubr.bf16.gmra.mrb[0].mxu0 %v421
        %v5499 = vpop.f32.mrb[0].mxu0
        %v5500 = vadd.f32 %v5459, %v5499
        %v5501 = vpop.f32.mrb[0].mxu0
        %v5502 = vadd.f32 %v5461, %v5501
        %v5503 = vpop.f32.mrb[0].mxu0
        %v5504 = vpop.f32.mrb[0].mxu0
        %5505 = vdwg.mxu0
        %5506 = vmatprep.subr.bf16.mxu0 %v4224
        %5507 = vmatpush1.bf16.msra.mxu0 %v4223
        %5508 = vmatprep.subr.bf16.mxu0 %v4228
        %5509 = vmatpush1.bf16.msra.mxu0 %v4227
        %5510 = vmatprep.subr.bf16.mxu0 %v4232
        %5511 = vmatpush1.bf16.msra.mxu0 %v4231
        %5512 = vmatprep.subr.bf16.mxu0 %v4236
        %5513 = vmatpush1.bf16.msra.mxu0 %v4235
        %5514 = vmatprep.subr.bf16.mxu0 %v4240
        %5515 = vmatpush1.bf16.msra.mxu0 %v4239
        %5516 = vmatprep.subr.bf16.mxu0 %v4244
        %5517 = vmatpush1.bf16.msra.mxu0 %v4243
        %5518 = vmatprep.subr.bf16.mxu0 %v4248
        %5519 = vmatpush1.bf16.msra.mxu0 %v4247
        %5520 = vmatprep.subr.bf16.mxu0 %v4252
        %5521 = vmatpush1.bf16.msra.mxu0 %v4251
        %5522 = vmatprep.subr.bf16.mxu0 %v4256
        %5523 = vmatpush1.bf16.msra.mxu0 %v4255
        %5524 = vmatprep.subr.bf16.mxu0 %v4260
        %5525 = vmatpush1.bf16.msra.mxu0 %v4259
        %5526 = vmatprep.subr.bf16.mxu0 %v4264
        %5527 = vmatpush1.bf16.msra.mxu0 %v4263
        %5528 = vmatprep.subr.bf16.mxu0 %v4268
        %5529 = vmatpush1.bf16.msra.mxu0 %v4267
        %5530 = vmatprep.subr.bf16.mxu0 %v4272
        %5531 = vmatpush1.bf16.msra.mxu0 %v4271
        %5532 = vmatprep.subr.bf16.mxu0 %v4276
        %5533 = vmatpush1.bf16.msra.mxu0 %v4275
        %5534 = vmatprep.subr.bf16.mxu0 %v4280
        %5535 = vmatpush1.bf16.msra.mxu0 %v4279
        %5536 = vmatprep.subr.bf16.mxu0 %v4284
        %5537 = vmatpush1.bf16.msra.mxu0 %v4283
        %5538 = vmatprep.mubr.bf16.mxu0 %v424
        %5539 = vmatmul.mubr.bf16.gmra.mrb[0].mxu0 %v423
        %v5540 = vpop.f32.mrb[0].mxu0
        %v5541 = vadd.f32 %v5500, %v5540
        %v5542 = vpop.f32.mrb[0].mxu0
        %v5543 = vadd.f32 %v5502, %v5542
        %v5544 = vpop.f32.mrb[0].mxu0
        %v5545 = vpop.f32.mrb[0].mxu0
        %5546 = vdwg.mxu0
        %5547 = vmatprep.subr.bf16.mxu0 %v3522
        %5548 = vmatpush1.bf16.msra.mxu0 %v3521
        %5549 = vmatprep.subr.bf16.mxu0 %v3526
        %5550 = vmatpush1.bf16.msra.mxu0 %v3525
        %5551 = vmatprep.subr.bf16.mxu0 %v3530
        %5552 = vmatpush1.bf16.msra.mxu0 %v3529
        %5553 = vmatprep.subr.bf16.mxu0 %v3534
        %5554 = vmatpush1.bf16.msra.mxu0 %v3533
        %5555 = vmatprep.subr.bf16.mxu0 %v3538
        %5556 = vmatpush1.bf16.msra.mxu0 %v3537
        %5557 = vmatprep.subr.bf16.mxu0 %v3542
        %5558 = vmatpush1.bf16.msra.mxu0 %v3541
        %5559 = vmatprep.subr.bf16.mxu0 %v3546
        %5560 = vmatpush1.bf16.msra.mxu0 %v3545
        %5561 = vmatprep.subr.bf16.mxu0 %v3550
        %5562 = vmatpush1.bf16.msra.mxu0 %v3549
        %5563 = vmatprep.subr.bf16.mxu0 %v3554
        %5564 = vmatpush1.bf16.msra.mxu0 %v3553
        %5565 = vmatprep.subr.bf16.mxu0 %v3558
        %5566 = vmatpush1.bf16.msra.mxu0 %v3557
        %5567 = vmatprep.subr.bf16.mxu0 %v3562
        %5568 = vmatpush1.bf16.msra.mxu0 %v3561
        %5569 = vmatprep.subr.bf16.mxu0 %v3566
        %5570 = vmatpush1.bf16.msra.mxu0 %v3565
        %5571 = vmatprep.subr.bf16.mxu0 %v3570
        %5572 = vmatpush1.bf16.msra.mxu0 %v3569
        %5573 = vmatprep.subr.bf16.mxu0 %v3574
        %5574 = vmatpush1.bf16.msra.mxu0 %v3573
        %5575 = vmatprep.subr.bf16.mxu0 %v3578
        %5576 = vmatpush1.bf16.msra.mxu0 %v3577
        %5577 = vmatprep.subr.bf16.mxu0 %v3582
        %5578 = vmatpush1.bf16.msra.mxu0 %v3581
        %5579 = vmatprep.mubr.bf16.mxu0 %v402
        %5580 = vmatmul.mubr.bf16.gmra.mrb[0].mxu0 %v401
        %v5581 = vpop.f32.mrb[0].mxu0
        %v5582 = vadd.f32 %v1206, %v5581
        %v5583 = vpop.f32.mrb[0].mxu0
        %v5584 = vadd.f32 %v1210, %v5583
        %v5585 = vpop.f32.mrb[0].mxu0
        %v5586 = vpop.f32.mrb[0].mxu0
        %5587 = vdwg.mxu0
        %5588 = vmatprep.subr.bf16.mxu0 %v3586
        %5589 = vmatpush1.bf16.msra.mxu0 %v3585
        %5590 = vmatprep.subr.bf16.mxu0 %v3590
        %5591 = vmatpush1.bf16.msra.mxu0 %v3589
        %5592 = vmatprep.subr.bf16.mxu0 %v3594
        %5593 = vmatpush1.bf16.msra.mxu0 %v3593
        %5594 = vmatprep.subr.bf16.mxu0 %v3598
        %5595 = vmatpush1.bf16.msra.mxu0 %v3597
        %5596 = vmatprep.subr.bf16.mxu0 %v3602
        %5597 = vmatpush1.bf16.msra.mxu0 %v3601
        %5598 = vmatprep.subr.bf16.mxu0 %v3606
        %5599 = vmatpush1.bf16.msra.mxu0 %v3605
        %5600 = vmatprep.subr.bf16.mxu0 %v3610
        %5601 = vmatpush1.bf16.msra.mxu0 %v3609
        %5602 = vmatprep.subr.bf16.mxu0 %v3614
        %5603 = vmatpush1.bf16.msra.mxu0 %v3613
        %5604 = vmatprep.subr.bf16.mxu0 %v3618
        %5605 = vmatpush1.bf16.msra.mxu0 %v3617
        %5606 = vmatprep.subr.bf16.mxu0 %v3622
        %5607 = vmatpush1.bf16.msra.mxu0 %v3621
        %5608 = vmatprep.subr.bf16.mxu0 %v3626
        %5609 = vmatpush1.bf16.msra.mxu0 %v3625
        %5610 = vmatprep.subr.bf16.mxu0 %v3630
        %5611 = vmatpush1.bf16.msra.mxu0 %v3629
        %5612 = vmatprep.subr.bf16.mxu0 %v3634
        %5613 = vmatpush1.bf16.msra.mxu0 %v3633
        %5614 = vmatprep.subr.bf16.mxu0 %v3638
        %5615 = vmatpush1.bf16.msra.mxu0 %v3637
        %5616 = vmatprep.subr.bf16.mxu0 %v3642
        %5617 = vmatpush1.bf16.msra.mxu0 %v3641
        %5618 = vmatprep.subr.bf16.mxu0 %v3646
        %5619 = vmatpush1.bf16.msra.mxu0 %v3645
        %5620 = vmatprep.mubr.bf16.mxu0 %v404
        %5621 = vmatmul.mubr.bf16.gmra.mrb[0].mxu0 %v403
        %v5622 = vpop.f32.mrb[0].mxu0
        %v5623 = vadd.f32 %v5582, %v5622
        %v5624 = vpop.f32.mrb[0].mxu0
        %v5625 = vadd.f32 %v5584, %v5624
        %v5626 = vpop.f32.mrb[0].mxu0
        %v5627 = vpop.f32.mrb[0].mxu0
        %5628 = vdwg.mxu0
        %5629 = vmatprep.subr.bf16.mxu0 %v3650
        %5630 = vmatpush1.bf16.msra.mxu0 %v3649
        %5631 = vmatprep.subr.bf16.mxu0 %v3654
        %5632 = vmatpush1.bf16.msra.mxu0 %v3653
        %5633 = vmatprep.subr.bf16.mxu0 %v3658
        %5634 = vmatpush1.bf16.msra.mxu0 %v3657
        %5635 = vmatprep.subr.bf16.mxu0 %v3662
        %5636 = vmatpush1.bf16.msra.mxu0 %v3661
        %5637 = vmatprep.subr.bf16.mxu0 %v3666
        %5638 = vmatpush1.bf16.msra.mxu0 %v3665
        %5639 = vmatprep.subr.bf16.mxu0 %v3670
        %5640 = vmatpush1.bf16.msra.mxu0 %v3669
        %5641 = vmatprep.subr.bf16.mxu0 %v3674
        %5642 = vmatpush1.bf16.msra.mxu0 %v3673
        %5643 = vmatprep.subr.bf16.mxu0 %v3678
        %5644 = vmatpush1.bf16.msra.mxu0 %v3677
        %5645 = vmatprep.subr.bf16.mxu0 %v3682
        %5646 = vmatpush1.bf16.msra.mxu0 %v3681
        %5647 = vmatprep.subr.bf16.mxu0 %v3686
        %5648 = vmatpush1.bf16.msra.mxu0 %v3685
        %5649 = vmatprep.subr.bf16.mxu0 %v3690
        %5650 = vmatpush1.bf16.msra.mxu0 %v3689
        %5651 = vmatprep.subr.bf16.mxu0 %v3694
        %5652 = vmatpush1.bf16.msra.mxu0 %v3693
        %5653 = vmatprep.subr.bf16.mxu0 %v3698
        %5654 = vmatpush1.bf16.msra.mxu0 %v3697
        %5655 = vmatprep.subr.bf16.mxu0 %v3702
        %5656 = vmatpush1.bf16.msra.mxu0 %v3701
        %5657 = vmatprep.subr.bf16.mxu0 %v3706
        %5658 = vmatpush1.bf16.msra.mxu0 %v3705
        %5659 = vmatprep.subr.bf16.mxu0 %v3710
        %5660 = vmatpush1.bf16.msra.mxu0 %v3709
        %5661 = vmatprep.mubr.bf16.mxu0 %v406
        %5662 = vmatmul.mubr.bf16.gmra.mrb[0].mxu0 %v405
        %v5663 = vpop.f32.mrb[0].mxu0
        %v5664 = vadd.f32 %v5623, %v5663
        %v5665 = vpop.f32.mrb[0].mxu0
        %v5666 = vadd.f32 %v5625, %v5665
        %v5667 = vpop.f32.mrb[0].mxu0
        %v5668 = vpop.f32.mrb[0].mxu0
        %5669 = vdwg.mxu0
        %5670 = vmatprep.subr.bf16.mxu0 %v3714
        %5671 = vmatpush1.bf16.msra.mxu0 %v3713
        %5672 = vmatprep.subr.bf16.mxu0 %v3718
        %5673 = vmatpush1.bf16.msra.mxu0 %v3717
        %5674 = vmatprep.subr.bf16.mxu0 %v3722
        %5675 = vmatpush1.bf16.msra.mxu0 %v3721
        %5676 = vmatprep.subr.bf16.mxu0 %v3726
        %5677 = vmatpush1.bf16.msra.mxu0 %v3725
        %5678 = vmatprep.subr.bf16.mxu0 %v3730
        %5679 = vmatpush1.bf16.msra.mxu0 %v3729
        %5680 = vmatprep.subr.bf16.mxu0 %v3734
        %5681 = vmatpush1.bf16.msra.mxu0 %v3733
        %5682 = vmatprep.subr.bf16.mxu0 %v3738
        %5683 = vmatpush1.bf16.msra.mxu0 %v3737
        %5684 = vmatprep.subr.bf16.mxu0 %v3742
        %5685 = vmatpush1.bf16.msra.mxu0 %v3741
        %5686 = vmatprep.subr.bf16.mxu0 %v3746
        %5687 = vmatpush1.bf16.msra.mxu0 %v3745
        %5688 = vmatprep.subr.bf16.mxu0 %v3750
        %5689 = vmatpush1.bf16.msra.mxu0 %v3749
        %5690 = vmatprep.subr.bf16.mxu0 %v3754
        %5691 = vmatpush1.bf16.msra.mxu0 %v3753
        %5692 = vmatprep.subr.bf16.mxu0 %v3758
        %5693 = vmatpush1.bf16.msra.mxu0 %v3757
        %5694 = vmatprep.subr.bf16.mxu0 %v3762
        %5695 = vmatpush1.bf16.msra.mxu0 %v3761
        %5696 = vmatprep.subr.bf16.mxu0 %v3766
        %5697 = vmatpush1.bf16.msra.mxu0 %v3765
        %5698 = vmatprep.subr.bf16.mxu0 %v3770
        %5699 = vmatpush1.bf16.msra.mxu0 %v3769
        %5700 = vmatprep.subr.bf16.mxu0 %v3774
        %5701 = vmatpush1.bf16.msra.mxu0 %v3773
        %5702 = vmatprep.mubr.bf16.mxu0 %v408
        %5703 = vmatmul.mubr.bf16.gmra.mrb[0].mxu0 %v407
        %v5704 = vpop.f32.mrb[0].mxu0
        %v5705 = vadd.f32 %v5664, %v5704
        %v5706 = vpop.f32.mrb[0].mxu0
        %v5707 = vadd.f32 %v5666, %v5706
        %v5708 = vpop.f32.mrb[0].mxu0
        %v5709 = vpop.f32.mrb[0].mxu0
        %5710 = vdwg.mxu0
        %5711 = vmatprep.subr.bf16.mxu0 %v3778
        %5712 = vmatpush1.bf16.msra.mxu0 %v3777
        %5713 = vmatprep.subr.bf16.mxu0 %v3782
        %5714 = vmatpush1.bf16.msra.mxu0 %v3781
        %5715 = vmatprep.subr.bf16.mxu0 %v3786
        %5716 = vmatpush1.bf16.msra.mxu0 %v3785
        %5717 = vmatprep.subr.bf16.mxu0 %v3790
        %5718 = vmatpush1.bf16.msra.mxu0 %v3789
        %5719 = vmatprep.subr.bf16.mxu0 %v3794
        %5720 = vmatpush1.bf16.msra.mxu0 %v3793
        %5721 = vmatprep.subr.bf16.mxu0 %v3798
        %5722 = vmatpush1.bf16.msra.mxu0 %v3797
        %5723 = vmatprep.subr.bf16.mxu0 %v3802
        %5724 = vmatpush1.bf16.msra.mxu0 %v3801
        %5725 = vmatprep.subr.bf16.mxu0 %v3806
        %5726 = vmatpush1.bf16.msra.mxu0 %v3805
        %5727 = vmatprep.subr.bf16.mxu0 %v3810
        %5728 = vmatpush1.bf16.msra.mxu0 %v3809
        %5729 = vmatprep.subr.bf16.mxu0 %v3814
        %5730 = vmatpush1.bf16.msra.mxu0 %v3813
        %5731 = vmatprep.subr.bf16.mxu0 %v3818
        %5732 = vmatpush1.bf16.msra.mxu0 %v3817
        %5733 = vmatprep.subr.bf16.mxu0 %v3822
        %5734 = vmatpush1.bf16.msra.mxu0 %v3821
        %5735 = vmatprep.subr.bf16.mxu0 %v3826
        %5736 = vmatpush1.bf16.msra.mxu0 %v3825
        %5737 = vmatprep.subr.bf16.mxu0 %v3830
        %5738 = vmatpush1.bf16.msra.mxu0 %v3829
        %5739 = vmatprep.subr.bf16.mxu0 %v3834
        %5740 = vmatpush1.bf16.msra.mxu0 %v3833
        %5741 = vmatprep.subr.bf16.mxu0 %v3838
        %5742 = vmatpush1.bf16.msra.mxu0 %v3837
        %5743 = vmatprep.mubr.bf16.mxu0 %v410
        %5744 = vmatmul.mubr.bf16.gmra.mrb[0].mxu0 %v409
        %v5745 = vpop.f32.mrb[0].mxu0
        %v5746 = vadd.f32 %v5705, %v5745
        %v5747 = vpop.f32.mrb[0].mxu0
        %v5748 = vadd.f32 %v5707, %v5747
        %v5749 = vpop.f32.mrb[0].mxu0
        %v5750 = vpop.f32.mrb[0].mxu0
        %5751 = vdwg.mxu0
        %5752 = vmatprep.subr.bf16.mxu0 %v3842
        %5753 = vmatpush1.bf16.msra.mxu0 %v3841
        %5754 = vmatprep.subr.bf16.mxu0 %v3846
        %5755 = vmatpush1.bf16.msra.mxu0 %v3845
        %5756 = vmatprep.subr.bf16.mxu0 %v3850
        %5757 = vmatpush1.bf16.msra.mxu0 %v3849
        %5758 = vmatprep.subr.bf16.mxu0 %v3854
        %5759 = vmatpush1.bf16.msra.mxu0 %v3853
        %5760 = vmatprep.subr.bf16.mxu0 %v3858
        %5761 = vmatpush1.bf16.msra.mxu0 %v3857
        %5762 = vmatprep.subr.bf16.mxu0 %v3862
        %5763 = vmatpush1.bf16.msra.mxu0 %v3861
        %5764 = vmatprep.subr.bf16.mxu0 %v3866
        %5765 = vmatpush1.bf16.msra.mxu0 %v3865
        %5766 = vmatprep.subr.bf16.mxu0 %v3870
        %5767 = vmatpush1.bf16.msra.mxu0 %v3869
        %5768 = vmatprep.subr.bf16.mxu0 %v3874
        %5769 = vmatpush1.bf16.msra.mxu0 %v3873
        %5770 = vmatprep.subr.bf16.mxu0 %v3878
        %5771 = vmatpush1.bf16.msra.mxu0 %v3877
        %5772 = vmatprep.subr.bf16.mxu0 %v3882
        %5773 = vmatpush1.bf16.msra.mxu0 %v3881
        %5774 = vmatprep.subr.bf16.mxu0 %v3886
        %5775 = vmatpush1.bf16.msra.mxu0 %v3885
        %5776 = vmatprep.subr.bf16.mxu0 %v3890
        %5777 = vmatpush1.bf16.msra.mxu0 %v3889
        %5778 = vmatprep.subr.bf16.mxu0 %v3894
        %5779 = vmatpush1.bf16.msra.mxu0 %v3893
        %5780 = vmatprep.subr.bf16.mxu0 %v3898
        %5781 = vmatpush1.bf16.msra.mxu0 %v3897
        %5782 = vmatprep.subr.bf16.mxu0 %v3902
        %5783 = vmatpush1.bf16.msra.mxu0 %v3901
        %5784 = vmatprep.mubr.bf16.mxu0 %v412
        %5785 = vmatmul.mubr.bf16.gmra.mrb[0].mxu0 %v411
        %v5786 = vpop.f32.mrb[0].mxu0
        %v5787 = vadd.f32 %v5746, %v5786
        %v5788 = vpop.f32.mrb[0].mxu0
        %v5789 = vadd.f32 %v5748, %v5788
        %v5790 = vpop.f32.mrb[0].mxu0
        %v5791 = vpop.f32.mrb[0].mxu0
        %5792 = vdwg.mxu0
        %5793 = vmatprep.subr.bf16.mxu0 %v3906
        %5794 = vmatpush1.bf16.msra.mxu0 %v3905
        %5795 = vmatprep.subr.bf16.mxu0 %v3910
        %5796 = vmatpush1.bf16.msra.mxu0 %v3909
        %5797 = vmatprep.subr.bf16.mxu0 %v3914
        %5798 = vmatpush1.bf16.msra.mxu0 %v3913
        %5799 = vmatprep.subr.bf16.mxu0 %v3918
        %5800 = vmatpush1.bf16.msra.mxu0 %v3917
        %5801 = vmatprep.subr.bf16.mxu0 %v3922
        %5802 = vmatpush1.bf16.msra.mxu0 %v3921
        %5803 = vmatprep.subr.bf16.mxu0 %v3926
        %5804 = vmatpush1.bf16.msra.mxu0 %v3925
        %5805 = vmatprep.subr.bf16.mxu0 %v3930
        %5806 = vmatpush1.bf16.msra.mxu0 %v3929
        %5807 = vmatprep.subr.bf16.mxu0 %v3934
        %5808 = vmatpush1.bf16.msra.mxu0 %v3933
        %5809 = vmatprep.subr.bf16.mxu0 %v3938
        %5810 = vmatpush1.bf16.msra.mxu0 %v3937
        %5811 = vmatprep.subr.bf16.mxu0 %v3942
        %5812 = vmatpush1.bf16.msra.mxu0 %v3941
        %5813 = vmatprep.subr.bf16.mxu0 %v3946
        %5814 = vmatpush1.bf16.msra.mxu0 %v3945
        %5815 = vmatprep.subr.bf16.mxu0 %v3950
        %5816 = vmatpush1.bf16.msra.mxu0 %v3949
        %5817 = vmatprep.subr.bf16.mxu0 %v3954
        %5818 = vmatpush1.bf16.msra.mxu0 %v3953
        %5819 = vmatprep.subr.bf16.mxu0 %v3958
        %5820 = vmatpush1.bf16.msra.mxu0 %v3957
        %5821 = vmatprep.subr.bf16.mxu0 %v3962
        %5822 = vmatpush1.bf16.msra.mxu0 %v3961
        %5823 = vmatprep.subr.bf16.mxu0 %v3966
        %5824 = vmatpush1.bf16.msra.mxu0 %v3965
        %5825 = vmatprep.mubr.bf16.mxu0 %v414
        %5826 = vmatmul.mubr.bf16.gmra.mrb[0].mxu0 %v413
        %v5827 = vpop.f32.mrb[0].mxu0
        %v5828 = vadd.f32 %v5787, %v5827
        %v5829 = vpop.f32.mrb[0].mxu0
        %v5830 = vadd.f32 %v5789, %v5829
        %v5831 = vpop.f32.mrb[0].mxu0
        %v5832 = vpop.f32.mrb[0].mxu0
        %5833 = vdwg.mxu0
        %5834 = vmatprep.subr.bf16.mxu0 %v3970
        %5835 = vmatpush1.bf16.msra.mxu0 %v3969
        %5836 = vmatprep.subr.bf16.mxu0 %v3974
        %5837 = vmatpush1.bf16.msra.mxu0 %v3973
        %5838 = vmatprep.subr.bf16.mxu0 %v3978
        %5839 = vmatpush1.bf16.msra.mxu0 %v3977
        %5840 = vmatprep.subr.bf16.mxu0 %v3982
        %5841 = vmatpush1.bf16.msra.mxu0 %v3981
        %5842 = vmatprep.subr.bf16.mxu0 %v3986
        %5843 = vmatpush1.bf16.msra.mxu0 %v3985
        %5844 = vmatprep.subr.bf16.mxu0 %v3990
        %5845 = vmatpush1.bf16.msra.mxu0 %v3989
        %5846 = vmatprep.subr.bf16.mxu0 %v3994
        %5847 = vmatpush1.bf16.msra.mxu0 %v3993
        %5848 = vmatprep.subr.bf16.mxu0 %v3998
        %5849 = vmatpush1.bf16.msra.mxu0 %v3997
        %5850 = vmatprep.subr.bf16.mxu0 %v4002
        %5851 = vmatpush1.bf16.msra.mxu0 %v4001
        %5852 = vmatprep.subr.bf16.mxu0 %v4006
        %5853 = vmatpush1.bf16.msra.mxu0 %v4005
        %5854 = vmatprep.subr.bf16.mxu0 %v4010
        %5855 = vmatpush1.bf16.msra.mxu0 %v4009
        %5856 = vmatprep.subr.bf16.mxu0 %v4014
        %5857 = vmatpush1.bf16.msra.mxu0 %v4013
        %5858 = vmatprep.subr.bf16.mxu0 %v4018
        %5859 = vmatpush1.bf16.msra.mxu0 %v4017
        %5860 = vmatprep.subr.bf16.mxu0 %v4022
        %5861 = vmatpush1.bf16.msra.mxu0 %v4021
        %5862 = vmatprep.subr.bf16.mxu0 %v4026
        %5863 = vmatpush1.bf16.msra.mxu0 %v4025
        %5864 = vmatprep.subr.bf16.mxu0 %v4030
        %5865 = vmatpush1.bf16.msra.mxu0 %v4029
        %5866 = vmatprep.mubr.bf16.mxu0 %v416
        %5867 = vmatmul.mubr.bf16.gmra.mrb[0].mxu0 %v415
        %v5868 = vpop.f32.mrb[0].mxu0
        %v5869 = vadd.f32 %v5828, %v5868
        %v5870 = vpop.f32.mrb[0].mxu0
        %v5871 = vadd.f32 %v5830, %v5870
        %v5872 = vpop.f32.mrb[0].mxu0
        %v5873 = vpop.f32.mrb[0].mxu0
        %5874 = vdwg.mxu0
        %5875 = vmatprep.subr.bf16.mxu0 %v4034
        %5876 = vmatpush1.bf16.msra.mxu0 %v4033
        %5877 = vmatprep.subr.bf16.mxu0 %v4038
        %5878 = vmatpush1.bf16.msra.mxu0 %v4037
        %5879 = vmatprep.subr.bf16.mxu0 %v4042
        %5880 = vmatpush1.bf16.msra.mxu0 %v4041
        %5881 = vmatprep.subr.bf16.mxu0 %v4046
        %5882 = vmatpush1.bf16.msra.mxu0 %v4045
        %5883 = vmatprep.subr.bf16.mxu0 %v4050
        %5884 = vmatpush1.bf16.msra.mxu0 %v4049
        %5885 = vmatprep.subr.bf16.mxu0 %v4054
        %5886 = vmatpush1.bf16.msra.mxu0 %v4053
        %5887 = vmatprep.subr.bf16.mxu0 %v4058
        %5888 = vmatpush1.bf16.msra.mxu0 %v4057
        %5889 = vmatprep.subr.bf16.mxu0 %v4062
        %5890 = vmatpush1.bf16.msra.mxu0 %v4061
        %5891 = vmatprep.subr.bf16.mxu0 %v4066
        %5892 = vmatpush1.bf16.msra.mxu0 %v4065
        %5893 = vmatprep.subr.bf16.mxu0 %v4070
        %5894 = vmatpush1.bf16.msra.mxu0 %v4069
        %5895 = vmatprep.subr.bf16.mxu0 %v4074
        %5896 = vmatpush1.bf16.msra.mxu0 %v4073
        %5897 = vmatprep.subr.bf16.mxu0 %v4078
        %5898 = vmatpush1.bf16.msra.mxu0 %v4077
        %5899 = vmatprep.subr.bf16.mxu0 %v4082
        %5900 = vmatpush1.bf16.msra.mxu0 %v4081
        %5901 = vmatprep.subr.bf16.mxu0 %v4086
        %5902 = vmatpush1.bf16.msra.mxu0 %v4085
        %5903 = vmatprep.subr.bf16.mxu0 %v4090
        %5904 = vmatpush1.bf16.msra.mxu0 %v4089
        %5905 = vmatprep.subr.bf16.mxu0 %v4094
        %5906 = vmatpush1.bf16.msra.mxu0 %v4093
        %5907 = vmatprep.mubr.bf16.mxu0 %v418
        %5908 = vmatmul.mubr.bf16.gmra.mrb[0].mxu0 %v417
        %v5909 = vpop.f32.mrb[0].mxu0
        %v5910 = vadd.f32 %v5869, %v5909
        %v5911 = vpop.f32.mrb[0].mxu0
        %v5912 = vadd.f32 %v5871, %v5911
        %v5913 = vpop.f32.mrb[0].mxu0
        %v5914 = vpop.f32.mrb[0].mxu0
        %5915 = vdwg.mxu0
        %5916 = vmatprep.subr.bf16.mxu0 %v4098
        %5917 = vmatpush1.bf16.msra.mxu0 %v4097
        %5918 = vmatprep.subr.bf16.mxu0 %v4102
        %5919 = vmatpush1.bf16.msra.mxu0 %v4101
        %5920 = vmatprep.subr.bf16.mxu0 %v4106
        %5921 = vmatpush1.bf16.msra.mxu0 %v4105
        %5922 = vmatprep.subr.bf16.mxu0 %v4110
        %5923 = vmatpush1.bf16.msra.mxu0 %v4109
        %5924 = vmatprep.subr.bf16.mxu0 %v4114
        %5925 = vmatpush1.bf16.msra.mxu0 %v4113
        %5926 = vmatprep.subr.bf16.mxu0 %v4118
        %5927 = vmatpush1.bf16.msra.mxu0 %v4117
        %5928 = vmatprep.subr.bf16.mxu0 %v4122
        %5929 = vmatpush1.bf16.msra.mxu0 %v4121
        %5930 = vmatprep.subr.bf16.mxu0 %v4126
        %5931 = vmatpush1.bf16.msra.mxu0 %v4125
        %5932 = vmatprep.subr.bf16.mxu0 %v4130
        %5933 = vmatpush1.bf16.msra.mxu0 %v4129
        %5934 = vmatprep.subr.bf16.mxu0 %v4134
        %5935 = vmatpush1.bf16.msra.mxu0 %v4133
        %5936 = vmatprep.subr.bf16.mxu0 %v4138
        %5937 = vmatpush1.bf16.msra.mxu0 %v4137
        %5938 = vmatprep.subr.bf16.mxu0 %v4142
        %5939 = vmatpush1.bf16.msra.mxu0 %v4141
        %5940 = vmatprep.subr.bf16.mxu0 %v4146
        %5941 = vmatpush1.bf16.msra.mxu0 %v4145
        %5942 = vmatprep.subr.bf16.mxu0 %v4150
        %5943 = vmatpush1.bf16.msra.mxu0 %v4149
        %5944 = vmatprep.subr.bf16.mxu0 %v4154
        %5945 = vmatpush1.bf16.msra.mxu0 %v4153
        %5946 = vmatprep.subr.bf16.mxu0 %v4158
        %5947 = vmatpush1.bf16.msra.mxu0 %v4157
        %5948 = vmatprep.mubr.bf16.mxu0 %v420
        %5949 = vmatmul.mubr.bf16.gmra.mrb[0].mxu0 %v419
        %v5950 = vpop.f32.mrb[0].mxu0
        %v5951 = vadd.f32 %v5910, %v5950
        %v5952 = vpop.f32.mrb[0].mxu0
        %v5953 = vadd.f32 %v5912, %v5952
        %v5954 = vpop.f32.mrb[0].mxu0
        %v5955 = vpop.f32.mrb[0].mxu0
        %5956 = vdwg.mxu0
        %5957 = vmatprep.subr.bf16.mxu0 %v4162
        %5958 = vmatpush1.bf16.msra.mxu0 %v4161
        %5959 = vmatprep.subr.bf16.mxu0 %v4166
        %5960 = vmatpush1.bf16.msra.mxu0 %v4165
        %5961 = vmatprep.subr.bf16.mxu0 %v4170
        %5962 = vmatpush1.bf16.msra.mxu0 %v4169
        %5963 = vmatprep.subr.bf16.mxu0 %v4174
        %5964 = vmatpush1.bf16.msra.mxu0 %v4173
        %5965 = vmatprep.subr.bf16.mxu0 %v4178
        %5966 = vmatpush1.bf16.msra.mxu0 %v4177
        %5967 = vmatprep.subr.bf16.mxu0 %v4182
        %5968 = vmatpush1.bf16.msra.mxu0 %v4181
        %5969 = vmatprep.subr.bf16.mxu0 %v4186
        %5970 = vmatpush1.bf16.msra.mxu0 %v4185
        %5971 = vmatprep.subr.bf16.mxu0 %v4190
        %5972 = vmatpush1.bf16.msra.mxu0 %v4189
        %5973 = vmatprep.subr.bf16.mxu0 %v4194
        %5974 = vmatpush1.bf16.msra.mxu0 %v4193
        %5975 = vmatprep.subr.bf16.mxu0 %v4198
        %5976 = vmatpush1.bf16.msra.mxu0 %v4197
        %5977 = vmatprep.subr.bf16.mxu0 %v4202
        %5978 = vmatpush1.bf16.msra.mxu0 %v4201
        %5979 = vmatprep.subr.bf16.mxu0 %v4206
        %5980 = vmatpush1.bf16.msra.mxu0 %v4205
        %5981 = vmatprep.subr.bf16.mxu0 %v4210
        %5982 = vmatpush1.bf16.msra.mxu0 %v4209
        %5983 = vmatprep.subr.bf16.mxu0 %v4214
        %5984 = vmatpush1.bf16.msra.mxu0 %v4213
        %5985 = vmatprep.subr.bf16.mxu0 %v4218
        %5986 = vmatpush1.bf16.msra.mxu0 %v4217
        %5987 = vmatprep.subr.bf16.mxu0 %v4222
        %5988 = vmatpush1.bf16.msra.mxu0 %v4221
        %5989 = vmatprep.mubr.bf16.mxu0 %v422
        %5990 = vmatmul.mubr.bf16.gmra.mrb[0].mxu0 %v421
        %v5991 = vpop.f32.mrb[0].mxu0
        %v5992 = vadd.f32 %v5951, %v5991
        %v5993 = vpop.f32.mrb[0].mxu0
        %v5994 = vadd.f32 %v5953, %v5993
        %v5995 = vpop.f32.mrb[0].mxu0
        %v5996 = vpop.f32.mrb[0].mxu0
        %5997 = vdwg.mxu0
        %5998 = vmatprep.subr.bf16.mxu0 %v4226
        %5999 = vmatpush1.bf16.msra.mxu0 %v4225
        %6000 = vmatprep.subr.bf16.mxu0 %v4230
        %6001 = vmatpush1.bf16.msra.mxu0 %v4229
        %6002 = vmatprep.subr.bf16.mxu0 %v4234
        %6003 = vmatpush1.bf16.msra.mxu0 %v4233
        %6004 = vmatprep.subr.bf16.mxu0 %v4238
        %6005 = vmatpush1.bf16.msra.mxu0 %v4237
        %6006 = vmatprep.subr.bf16.mxu0 %v4242
        %6007 = vmatpush1.bf16.msra.mxu0 %v4241
        %6008 = vmatprep.subr.bf16.mxu0 %v4246
        %6009 = vmatpush1.bf16.msra.mxu0 %v4245
        %6010 = vmatprep.subr.bf16.mxu0 %v4250
        %6011 = vmatpush1.bf16.msra.mxu0 %v4249
        %6012 = vmatprep.subr.bf16.mxu0 %v4254
        %6013 = vmatpush1.bf16.msra.mxu0 %v4253
        %6014 = vmatprep.subr.bf16.mxu0 %v4258
        %6015 = vmatpush1.bf16.msra.mxu0 %v4257
        %6016 = vmatprep.subr.bf16.mxu0 %v4262
        %6017 = vmatpush1.bf16.msra.mxu0 %v4261
        %6018 = vmatprep.subr.bf16.mxu0 %v4266
        %6019 = vmatpush1.bf16.msra.mxu0 %v4265
        %6020 = vmatprep.subr.bf16.mxu0 %v4270
        %6021 = vmatpush1.bf16.msra.mxu0 %v4269
        %6022 = vmatprep.subr.bf16.mxu0 %v4274
        %6023 = vmatpush1.bf16.msra.mxu0 %v4273
        %6024 = vmatprep.subr.bf16.mxu0 %v4278
        %6025 = vmatpush1.bf16.msra.mxu0 %v4277
        %6026 = vmatprep.subr.bf16.mxu0 %v4282
        %6027 = vmatpush1.bf16.msra.mxu0 %v4281
        %6028 = vmatprep.subr.bf16.mxu0 %v4286
        %6029 = vmatpush1.bf16.msra.mxu0 %v4285
        %6030 = vmatprep.mubr.bf16.mxu0 %v424
        %6031 = vmatmul.mubr.bf16.gmra.mrb[0].mxu0 %v423
        %v6032 = vpop.f32.mrb[0].mxu0
        %v6033 = vadd.f32 %v5992, %v6032
        %v6034 = vpop.f32.mrb[0].mxu0
        %v6035 = vadd.f32 %v5994, %v6034
        %v6036 = vpop.f32.mrb[0].mxu0
        %v6037 = vpop.f32.mrb[0].mxu0
        %6038 = vdwg.mxu0
        %v6039 = vmax.f32 %v5541, 0.0
        %v6040 = vmax.f32 %v5543, 0.0
        %v6041 = vmax.f32 %v6033, 0.0
        %v6042 = vmax.f32 %v6035, 0.0
        %v6043 = vpack.c.bf16 %v6039, %v6039
        %v6044 = vpack.c.bf16 %v6040, %v6040
        %v6045 = vpack.c.bf16 %v6041, %v6041
        %v6046 = vpack.c.bf16 %v6042, %v6042
        %v6047 = vld [vmem:[#allocation8] sm:$0xff]
        %v6048 = vld [vmem:[#allocation8 + $0x8] sm:$0xff]
        %v6049 = vld [vmem:[#allocation8 + $0x10] sm:$0xff]
        %v6050 = vld [vmem:[#allocation8 + $0x18] sm:$0xff]
        %v6051 = vld [vmem:[#allocation8 + $0x20] sm:$0xff]
        %v6052 = vld [vmem:[#allocation8 + $0x28] sm:$0xff]
        %v6053 = vld [vmem:[#allocation8 + $0x30] sm:$0xff]
        %v6054 = vld [vmem:[#allocation8 + $0x38] sm:$0xff]
        %v6055 = vld [vmem:[#allocation8 + $0x40] sm:$0xff]
        %v6056 = vld [vmem:[#allocation8 + $0x48] sm:$0xff]
        %v6057 = vld [vmem:[#allocation8 + $0x50] sm:$0xff]
        %v6058 = vld [vmem:[#allocation8 + $0x58] sm:$0xff]
        %v6059 = vld [vmem:[#allocation8 + $0x60] sm:$0xff]
        %v6060 = vld [vmem:[#allocation8 + $0x68] sm:$0xff]
        %v6061 = vld [vmem:[#allocation8 + $0x70] sm:$0xff]
        %v6062 = vld [vmem:[#allocation8 + $0x78] sm:$0xff]
        %v6063 = vld [vmem:[#allocation8 + $0x80] sm:$0xff]
        %v6064 = vld [vmem:[#allocation8 + $0x88] sm:$0xff]
        %v6065 = vld [vmem:[#allocation8 + $0x90] sm:$0xff]
        %v6066 = vld [vmem:[#allocation8 + $0x98] sm:$0xff]
        %v6067 = vld [vmem:[#allocation8 + $0xa0] sm:$0xff]
        %v6068 = vld [vmem:[#allocation8 + $0xa8] sm:$0xff]
        %v6069 = vld [vmem:[#allocation8 + $0xb0] sm:$0xff]
        %v6070 = vld [vmem:[#allocation8 + $0xb8] sm:$0xff]
        %v6071 = vld [vmem:[#allocation8 + $0xc0] sm:$0xff]
        %v6072 = vld [vmem:[#allocation8 + $0xc8] sm:$0xff]
        %v6073 = vld [vmem:[#allocation8 + $0xd0] sm:$0xff]
        %v6074 = vld [vmem:[#allocation8 + $0xd8] sm:$0xff]
        %v6075 = vld [vmem:[#allocation8 + $0xe0] sm:$0xff]
        %v6076 = vld [vmem:[#allocation8 + $0xe8] sm:$0xff]
        %v6077 = vld [vmem:[#allocation8 + $0xf0] sm:$0xff]
        %v6078 = vld [vmem:[#allocation8 + $0xf8] sm:$0xff]
        %v6079 = vld [vmem:[#allocation8 + $0x100] sm:$0xff]
        %v6080 = vld [vmem:[#allocation8 + $0x108] sm:$0xff]
        %v6081 = vld [vmem:[#allocation8 + $0x110] sm:$0xff]
        %v6082 = vld [vmem:[#allocation8 + $0x118] sm:$0xff]
        %v6083 = vld [vmem:[#allocation8 + $0x120] sm:$0xff]
        %v6084 = vld [vmem:[#allocation8 + $0x128] sm:$0xff]
        %v6085 = vld [vmem:[#allocation8 + $0x130] sm:$0xff]
        %v6086 = vld [vmem:[#allocation8 + $0x138] sm:$0xff]
        %v6087 = vld [vmem:[#allocation8 + $0x140] sm:$0xff]
        %v6088 = vld [vmem:[#allocation8 + $0x148] sm:$0xff]
        %v6089 = vld [vmem:[#allocation8 + $0x150] sm:$0xff]
        %v6090 = vld [vmem:[#allocation8 + $0x158] sm:$0xff]
        %v6091 = vld [vmem:[#allocation8 + $0x160] sm:$0xff]
        %v6092 = vld [vmem:[#allocation8 + $0x168] sm:$0xff]
        %v6093 = vld [vmem:[#allocation8 + $0x170] sm:$0xff]
        %v6094 = vld [vmem:[#allocation8 + $0x178] sm:$0xff]
        %v6095 = vld [vmem:[#allocation8 + $0x180] sm:$0xff]
        %v6096 = vld [vmem:[#allocation8 + $0x188] sm:$0xff]
        %v6097 = vld [vmem:[#allocation8 + $0x190] sm:$0xff]
        %v6098 = vld [vmem:[#allocation8 + $0x198] sm:$0xff]
        %v6099 = vld [vmem:[#allocation8 + $0x1a0] sm:$0xff]
        %v6100 = vld [vmem:[#allocation8 + $0x1a8] sm:$0xff]
        %v6101 = vld [vmem:[#allocation8 + $0x1b0] sm:$0xff]
        %v6102 = vld [vmem:[#allocation8 + $0x1b8] sm:$0xff]
        %v6103 = vld [vmem:[#allocation8 + $0x1c0] sm:$0xff]
        %v6104 = vld [vmem:[#allocation8 + $0x1c8] sm:$0xff]
        %v6105 = vld [vmem:[#allocation8 + $0x1d0] sm:$0xff]
        %v6106 = vld [vmem:[#allocation8 + $0x1d8] sm:$0xff]
        %v6107 = vld [vmem:[#allocation8 + $0x1e0] sm:$0xff]
        %v6108 = vld [vmem:[#allocation8 + $0x1e8] sm:$0xff]
        %v6109 = vld [vmem:[#allocation8 + $0x1f0] sm:$0xff]
        %v6110 = vld [vmem:[#allocation8 + $0x1f8] sm:$0xff]
        %v6111 = vld [vmem:[#allocation10] sm:$0x3]
        %v6113 = vlaneseq
        %v6114 = vshrl.u32 %v6113, 7
        %v6115 = vsub.s32 0, %v6114
        %v6116 = vrot.slane %v6111, %v6115
        %v6117 = vlaneseq
        %v6118 = vshrl.u32 %v6117, 7
        %v6119 = vsub.s32 1, %v6118
        %v6120 = vrot.slane %v6111, %v6119
        %v6187 = vunpack.c.l.b16 %v6047
        %v6188 = vunpack.c.h.b16 %v6047
        %v6189 = vunpack.c.l.b16 %v6048
        %v6190 = vunpack.c.h.b16 %v6048
        %v6191 = vunpack.c.l.b16 %v6049
        %v6192 = vunpack.c.h.b16 %v6049
        %v6193 = vunpack.c.l.b16 %v6050
        %v6194 = vunpack.c.h.b16 %v6050
        %v6195 = vunpack.c.l.b16 %v6051
        %v6196 = vunpack.c.h.b16 %v6051
        %v6197 = vunpack.c.l.b16 %v6052
        %v6198 = vunpack.c.h.b16 %v6052
        %v6199 = vunpack.c.l.b16 %v6053
        %v6200 = vunpack.c.h.b16 %v6053
        %v6201 = vunpack.c.l.b16 %v6054
        %v6202 = vunpack.c.h.b16 %v6054
        %v6203 = vunpack.c.l.b16 %v6055
        %v6204 = vunpack.c.h.b16 %v6055
        %v6205 = vunpack.c.l.b16 %v6056
        %v6206 = vunpack.c.h.b16 %v6056
        %v6207 = vunpack.c.l.b16 %v6057
        %v6208 = vunpack.c.h.b16 %v6057
        %v6209 = vunpack.c.l.b16 %v6058
        %v6210 = vunpack.c.h.b16 %v6058
        %v6211 = vunpack.c.l.b16 %v6059
        %v6212 = vunpack.c.h.b16 %v6059
        %v6213 = vunpack.c.l.b16 %v6060
        %v6214 = vunpack.c.h.b16 %v6060
        %v6215 = vunpack.c.l.b16 %v6061
        %v6216 = vunpack.c.h.b16 %v6061
        %v6217 = vunpack.c.l.b16 %v6062
        %v6218 = vunpack.c.h.b16 %v6062
        %v6219 = vunpack.c.l.b16 %v6063
        %v6220 = vunpack.c.h.b16 %v6063
        %v6221 = vunpack.c.l.b16 %v6064
        %v6222 = vunpack.c.h.b16 %v6064
        %v6223 = vunpack.c.l.b16 %v6065
        %v6224 = vunpack.c.h.b16 %v6065
        %v6225 = vunpack.c.l.b16 %v6066
        %v6226 = vunpack.c.h.b16 %v6066
        %v6227 = vunpack.c.l.b16 %v6067
        %v6228 = vunpack.c.h.b16 %v6067
        %v6229 = vunpack.c.l.b16 %v6068
        %v6230 = vunpack.c.h.b16 %v6068
        %v6231 = vunpack.c.l.b16 %v6069
        %v6232 = vunpack.c.h.b16 %v6069
        %v6233 = vunpack.c.l.b16 %v6070
        %v6234 = vunpack.c.h.b16 %v6070
        %v6235 = vunpack.c.l.b16 %v6071
        %v6236 = vunpack.c.h.b16 %v6071
        %v6237 = vunpack.c.l.b16 %v6072
        %v6238 = vunpack.c.h.b16 %v6072
        %v6239 = vunpack.c.l.b16 %v6073
        %v6240 = vunpack.c.h.b16 %v6073
        %v6241 = vunpack.c.l.b16 %v6074
        %v6242 = vunpack.c.h.b16 %v6074
        %v6243 = vunpack.c.l.b16 %v6075
        %v6244 = vunpack.c.h.b16 %v6075
        %v6245 = vunpack.c.l.b16 %v6076
        %v6246 = vunpack.c.h.b16 %v6076
        %v6247 = vunpack.c.l.b16 %v6077
        %v6248 = vunpack.c.h.b16 %v6077
        %v6249 = vunpack.c.l.b16 %v6078
        %v6250 = vunpack.c.h.b16 %v6078
        %v6251 = vunpack.c.l.b16 %v6079
        %v6252 = vunpack.c.h.b16 %v6079
        %v6253 = vunpack.c.l.b16 %v6080
        %v6254 = vunpack.c.h.b16 %v6080
        %v6255 = vunpack.c.l.b16 %v6081
        %v6256 = vunpack.c.h.b16 %v6081
        %v6257 = vunpack.c.l.b16 %v6082
        %v6258 = vunpack.c.h.b16 %v6082
        %v6259 = vunpack.c.l.b16 %v6083
        %v6260 = vunpack.c.h.b16 %v6083
        %v6261 = vunpack.c.l.b16 %v6084
        %v6262 = vunpack.c.h.b16 %v6084
        %v6263 = vunpack.c.l.b16 %v6085
        %v6264 = vunpack.c.h.b16 %v6085
        %v6265 = vunpack.c.l.b16 %v6086
        %v6266 = vunpack.c.h.b16 %v6086
        %v6267 = vunpack.c.l.b16 %v6087
        %v6268 = vunpack.c.h.b16 %v6087
        %v6269 = vunpack.c.l.b16 %v6088
        %v6270 = vunpack.c.h.b16 %v6088
        %v6271 = vunpack.c.l.b16 %v6089
        %v6272 = vunpack.c.h.b16 %v6089
        %v6273 = vunpack.c.l.b16 %v6090
        %v6274 = vunpack.c.h.b16 %v6090
        %v6275 = vunpack.c.l.b16 %v6091
        %v6276 = vunpack.c.h.b16 %v6091
        %v6277 = vunpack.c.l.b16 %v6092
        %v6278 = vunpack.c.h.b16 %v6092
        %v6279 = vunpack.c.l.b16 %v6093
        %v6280 = vunpack.c.h.b16 %v6093
        %v6281 = vunpack.c.l.b16 %v6094
        %v6282 = vunpack.c.h.b16 %v6094
        %v6283 = vunpack.c.l.b16 %v6095
        %v6284 = vunpack.c.h.b16 %v6095
        %v6285 = vunpack.c.l.b16 %v6096
        %v6286 = vunpack.c.h.b16 %v6096
        %v6287 = vunpack.c.l.b16 %v6097
        %v6288 = vunpack.c.h.b16 %v6097
        %v6289 = vunpack.c.l.b16 %v6098
        %v6290 = vunpack.c.h.b16 %v6098
        %v6291 = vunpack.c.l.b16 %v6099
        %v6292 = vunpack.c.h.b16 %v6099
        %v6293 = vunpack.c.l.b16 %v6100
        %v6294 = vunpack.c.h.b16 %v6100
        %v6295 = vunpack.c.l.b16 %v6101
        %v6296 = vunpack.c.h.b16 %v6101
        %v6297 = vunpack.c.l.b16 %v6102
        %v6298 = vunpack.c.h.b16 %v6102
        %v6299 = vunpack.c.l.b16 %v6103
        %v6300 = vunpack.c.h.b16 %v6103
        %v6301 = vunpack.c.l.b16 %v6104
        %v6302 = vunpack.c.h.b16 %v6104
        %v6303 = vunpack.c.l.b16 %v6105
        %v6304 = vunpack.c.h.b16 %v6105
        %v6305 = vunpack.c.l.b16 %v6106
        %v6306 = vunpack.c.h.b16 %v6106
        %v6307 = vunpack.c.l.b16 %v6107
        %v6308 = vunpack.c.h.b16 %v6107
        %v6309 = vunpack.c.l.b16 %v6108
        %v6310 = vunpack.c.h.b16 %v6108
        %v6311 = vunpack.c.l.b16 %v6109
        %v6312 = vunpack.c.h.b16 %v6109
        %v6313 = vunpack.c.l.b16 %v6110
        %v6314 = vunpack.c.h.b16 %v6110
        %v6315 = vpack.c.b16 %v6189, %v6187
        %v6316 = vpack.c.b16 %v6190, %v6188
        %v6317 = vpack.c.b16 %v6193, %v6191
        %v6318 = vpack.c.b16 %v6194, %v6192
        %v6319 = vpack.c.b16 %v6197, %v6195
        %v6320 = vpack.c.b16 %v6198, %v6196
        %v6321 = vpack.c.b16 %v6201, %v6199
        %v6322 = vpack.c.b16 %v6202, %v6200
        %v6323 = vpack.c.b16 %v6205, %v6203
        %v6324 = vpack.c.b16 %v6206, %v6204
        %v6325 = vpack.c.b16 %v6209, %v6207
        %v6326 = vpack.c.b16 %v6210, %v6208
        %v6327 = vpack.c.b16 %v6213, %v6211
        %v6328 = vpack.c.b16 %v6214, %v6212
        %v6329 = vpack.c.b16 %v6217, %v6215
        %v6330 = vpack.c.b16 %v6218, %v6216
        %v6331 = vpack.c.b16 %v6221, %v6219
        %v6332 = vpack.c.b16 %v6222, %v6220
        %v6333 = vpack.c.b16 %v6225, %v6223
        %v6334 = vpack.c.b16 %v6226, %v6224
        %v6335 = vpack.c.b16 %v6229, %v6227
        %v6336 = vpack.c.b16 %v6230, %v6228
        %v6337 = vpack.c.b16 %v6233, %v6231
        %v6338 = vpack.c.b16 %v6234, %v6232
        %v6339 = vpack.c.b16 %v6237, %v6235
        %v6340 = vpack.c.b16 %v6238, %v6236
        %v6341 = vpack.c.b16 %v6241, %v6239
        %v6342 = vpack.c.b16 %v6242, %v6240
        %v6343 = vpack.c.b16 %v6245, %v6243
        %v6344 = vpack.c.b16 %v6246, %v6244
        %v6345 = vpack.c.b16 %v6249, %v6247
        %v6346 = vpack.c.b16 %v6250, %v6248
        %v6347 = vpack.c.b16 %v6253, %v6251
        %v6348 = vpack.c.b16 %v6254, %v6252
        %v6349 = vpack.c.b16 %v6257, %v6255
        %v6350 = vpack.c.b16 %v6258, %v6256
        %v6351 = vpack.c.b16 %v6261, %v6259
        %v6352 = vpack.c.b16 %v6262, %v6260
        %v6353 = vpack.c.b16 %v6265, %v6263
        %v6354 = vpack.c.b16 %v6266, %v6264
        %v6355 = vpack.c.b16 %v6269, %v6267
        %v6356 = vpack.c.b16 %v6270, %v6268
        %v6357 = vpack.c.b16 %v6273, %v6271
        %v6358 = vpack.c.b16 %v6274, %v6272
        %v6359 = vpack.c.b16 %v6277, %v6275
        %v6360 = vpack.c.b16 %v6278, %v6276
        %v6361 = vpack.c.b16 %v6281, %v6279
        %v6362 = vpack.c.b16 %v6282, %v6280
        %v6363 = vpack.c.b16 %v6285, %v6283
        %v6364 = vpack.c.b16 %v6286, %v6284
        %v6365 = vpack.c.b16 %v6289, %v6287
        %v6366 = vpack.c.b16 %v6290, %v6288
        %v6367 = vpack.c.b16 %v6293, %v6291
        %v6368 = vpack.c.b16 %v6294, %v6292
        %v6369 = vpack.c.b16 %v6297, %v6295
        %v6370 = vpack.c.b16 %v6298, %v6296
        %v6371 = vpack.c.b16 %v6301, %v6299
        %v6372 = vpack.c.b16 %v6302, %v6300
        %v6373 = vpack.c.b16 %v6305, %v6303
        %v6374 = vpack.c.b16 %v6306, %v6304
        %v6375 = vpack.c.b16 %v6309, %v6307
        %v6376 = vpack.c.b16 %v6310, %v6308
        %v6377 = vpack.c.b16 %v6313, %v6311
        %v6378 = vpack.c.b16 %v6314, %v6312
        %6443 = vmatprep.subr.bf16.mxu0 %v6316
        %6444 = vmatpush1.bf16.msra.mxu0 %v6315
        %6445 = vmatprep.subr.bf16.mxu0 %v6318
        %6446 = vmatpush1.bf16.msra.mxu0 %v6317
        %6447 = vmatprep.subr.bf16.mxu0 %v6320
        %6448 = vmatpush1.bf16.msra.mxu0 %v6319
        %6449 = vmatprep.subr.bf16.mxu0 %v6322
        %6450 = vmatpush1.bf16.msra.mxu0 %v6321
        %6451 = vmatprep.subr.bf16.mxu0 %v6324
        %6452 = vmatpush1.bf16.msra.mxu0 %v6323
        %6453 = vmatprep.subr.bf16.mxu0 %v6326
        %6454 = vmatpush1.bf16.msra.mxu0 %v6325
        %6455 = vmatprep.subr.bf16.mxu0 %v6328
        %6456 = vmatpush1.bf16.msra.mxu0 %v6327
        %6457 = vmatprep.subr.bf16.mxu0 %v6330
        %6458 = vmatpush1.bf16.msra.mxu0 %v6329
        %6459 = vmatprep.subr.bf16.mxu0 %v6332
        %6460 = vmatpush1.bf16.msra.mxu0 %v6331
        %6461 = vmatprep.subr.bf16.mxu0 %v6334
        %6462 = vmatpush1.bf16.msra.mxu0 %v6333
        %6463 = vmatprep.subr.bf16.mxu0 %v6336
        %6464 = vmatpush1.bf16.msra.mxu0 %v6335
        %6465 = vmatprep.subr.bf16.mxu0 %v6338
        %6466 = vmatpush1.bf16.msra.mxu0 %v6337
        %6467 = vmatprep.subr.bf16.mxu0 %v6340
        %6468 = vmatpush1.bf16.msra.mxu0 %v6339
        %6469 = vmatprep.subr.bf16.mxu0 %v6342
        %6470 = vmatpush1.bf16.msra.mxu0 %v6341
        %6471 = vmatprep.subr.bf16.mxu0 %v6344
        %6472 = vmatpush1.bf16.msra.mxu0 %v6343
        %6473 = vmatprep.subr.bf16.mxu0 %v6346
        %6474 = vmatpush1.bf16.msra.mxu0 %v6345
        %6475 = vmatprep.mubr.bf16.mxu0 %v6044
        %6476 = vmatmul.mubr.bf16.gmra.mrb[0].mxu0 %v6043
        %v6477 = vpop.f32.mrb[0].mxu0
        %v6478 = vadd.f32 %v6116, %v6477
        %v6479 = vpop.f32.mrb[0].mxu0
        %v6480 = vadd.f32 %v6120, %v6479
        %v6481 = vpop.f32.mrb[0].mxu0
        %v6482 = vpop.f32.mrb[0].mxu0
        %6483 = vdwg.mxu0
        %6484 = vmatprep.subr.bf16.mxu0 %v6348
        %6485 = vmatpush1.bf16.msra.mxu0 %v6347
        %6486 = vmatprep.subr.bf16.mxu0 %v6350
        %6487 = vmatpush1.bf16.msra.mxu0 %v6349
        %6488 = vmatprep.subr.bf16.mxu0 %v6352
        %6489 = vmatpush1.bf16.msra.mxu0 %v6351
        %6490 = vmatprep.subr.bf16.mxu0 %v6354
        %6491 = vmatpush1.bf16.msra.mxu0 %v6353
        %6492 = vmatprep.subr.bf16.mxu0 %v6356
        %6493 = vmatpush1.bf16.msra.mxu0 %v6355
        %6494 = vmatprep.subr.bf16.mxu0 %v6358
        %6495 = vmatpush1.bf16.msra.mxu0 %v6357
        %6496 = vmatprep.subr.bf16.mxu0 %v6360
        %6497 = vmatpush1.bf16.msra.mxu0 %v6359
        %6498 = vmatprep.subr.bf16.mxu0 %v6362
        %6499 = vmatpush1.bf16.msra.mxu0 %v6361
        %6500 = vmatprep.subr.bf16.mxu0 %v6364
        %6501 = vmatpush1.bf16.msra.mxu0 %v6363
        %6502 = vmatprep.subr.bf16.mxu0 %v6366
        %6503 = vmatpush1.bf16.msra.mxu0 %v6365
        %6504 = vmatprep.subr.bf16.mxu0 %v6368
        %6505 = vmatpush1.bf16.msra.mxu0 %v6367
        %6506 = vmatprep.subr.bf16.mxu0 %v6370
        %6507 = vmatpush1.bf16.msra.mxu0 %v6369
        %6508 = vmatprep.subr.bf16.mxu0 %v6372
        %6509 = vmatpush1.bf16.msra.mxu0 %v6371
        %6510 = vmatprep.subr.bf16.mxu0 %v6374
        %6511 = vmatpush1.bf16.msra.mxu0 %v6373
        %6512 = vmatprep.subr.bf16.mxu0 %v6376
        %6513 = vmatpush1.bf16.msra.mxu0 %v6375
        %6514 = vmatprep.subr.bf16.mxu0 %v6378
        %6515 = vmatpush1.bf16.msra.mxu0 %v6377
        %6516 = vmatprep.mubr.bf16.mxu0 %v6046
        %6517 = vmatmul.mubr.bf16.gmra.mrb[0].mxu0 %v6045
        %v6518 = vpop.f32.mrb[0].mxu0
        %v6519 = vadd.f32 %v6478, %v6518
        %v6520 = vpop.f32.mrb[0].mxu0
        %v6521 = vadd.f32 %v6480, %v6520
        %v6522 = vpop.f32.mrb[0].mxu0
        %v6523 = vpop.f32.mrb[0].mxu0
        %6524 = vdwg.mxu0
        %v6525 = vmax.f32 %v6519, 0.0
        %v6526 = vmax.f32 %v6521, 0.0
        %v6527 = vpack.c.bf16 %v6525, %v6525
        %v6528 = vpack.c.bf16 %v6526, %v6526
        %v6529 = vld [vmem:[#allocation11] sm:$0xf]
        %v6530 = vld [vmem:[#allocation11 + $0x4] sm:$0xf]
        %v6531 = vld [vmem:[#allocation11 + $0x8] sm:$0xf]
        %v6532 = vld [vmem:[#allocation11 + $0xc] sm:$0xf]
        %v6533 = vld [vmem:[#allocation11 + $0x10] sm:$0xf]
        %v6534 = vld [vmem:[#allocation11 + $0x14] sm:$0xf]
        %v6535 = vld [vmem:[#allocation11 + $0x18] sm:$0xf]
        %v6536 = vld [vmem:[#allocation11 + $0x1c] sm:$0xf]
        %v6537 = vld [vmem:[#allocation11 + $0x20] sm:$0xf]
        %v6538 = vld [vmem:[#allocation11 + $0x24] sm:$0xf]
        %v6539 = vld [vmem:[#allocation11 + $0x28] sm:$0xf]
        %v6540 = vld [vmem:[#allocation11 + $0x2c] sm:$0xf]
        %v6541 = vld [vmem:[#allocation11 + $0x30] sm:$0xf]
        %v6542 = vld [vmem:[#allocation11 + $0x34] sm:$0xf]
        %v6543 = vld [vmem:[#allocation11 + $0x38] sm:$0xf]
        %v6544 = vld [vmem:[#allocation11 + $0x3c] sm:$0xf]
        %v6545 = vld [vmem:[#allocation11 + $0x40] sm:$0xf]
        %v6546 = vld [vmem:[#allocation11 + $0x44] sm:$0xf]
        %v6547 = vld [vmem:[#allocation11 + $0x48] sm:$0xf]
        %v6548 = vld [vmem:[#allocation11 + $0x4c] sm:$0xf]
        %v6549 = vld [vmem:[#allocation11 + $0x50] sm:$0xf]
        %v6550 = vld [vmem:[#allocation11 + $0x54] sm:$0xf]
        %v6551 = vld [vmem:[#allocation11 + $0x58] sm:$0xf]
        %v6552 = vld [vmem:[#allocation11 + $0x5c] sm:$0xf]
        %v6553 = vld [vmem:[#allocation11 + $0x60] sm:$0xf]
        %v6554 = vld [vmem:[#allocation11 + $0x64] sm:$0xf]
        %v6555 = vld [vmem:[#allocation11 + $0x68] sm:$0xf]
        %v6556 = vld [vmem:[#allocation11 + $0x6c] sm:$0xf]
        %v6557 = vld [vmem:[#allocation11 + $0x70] sm:$0xf]
        %v6558 = vld [vmem:[#allocation11 + $0x74] sm:$0xf]
        %v6559 = vld [vmem:[#allocation11 + $0x78] sm:$0xf]
        %v6560 = vld [vmem:[#allocation11 + $0x7c] sm:$0xf]
        %v6561 = vld [vmem:[#allocation13] sm:$0x1]
        %v6563 = vlaneseq
        %v6564 = vshrl.u32 %v6563, 7
        %v6565 = vsub.s32 0, %v6564
        %v6566 = vrot.slane %v6561, %v6565
        %v6600 = vunpack.c.l.b16 %v6529
        %v6601 = vunpack.c.l.b16 %v6530
        %v6602 = vunpack.c.l.b16 %v6531
        %v6603 = vunpack.c.l.b16 %v6532
        %v6604 = vunpack.c.l.b16 %v6533
        %v6605 = vunpack.c.l.b16 %v6534
        %v6606 = vunpack.c.l.b16 %v6535
        %v6607 = vunpack.c.l.b16 %v6536
        %v6608 = vunpack.c.l.b16 %v6537
        %v6609 = vunpack.c.l.b16 %v6538
        %v6610 = vunpack.c.l.b16 %v6539
        %v6611 = vunpack.c.l.b16 %v6540
        %v6612 = vunpack.c.l.b16 %v6541
        %v6613 = vunpack.c.l.b16 %v6542
        %v6614 = vunpack.c.l.b16 %v6543
        %v6615 = vunpack.c.l.b16 %v6544
        %v6616 = vunpack.c.l.b16 %v6545
        %v6617 = vunpack.c.l.b16 %v6546
        %v6618 = vunpack.c.l.b16 %v6547
        %v6619 = vunpack.c.l.b16 %v6548
        %v6620 = vunpack.c.l.b16 %v6549
        %v6621 = vunpack.c.l.b16 %v6550
        %v6622 = vunpack.c.l.b16 %v6551
        %v6623 = vunpack.c.l.b16 %v6552
        %v6624 = vunpack.c.l.b16 %v6553
        %v6625 = vunpack.c.l.b16 %v6554
        %v6626 = vunpack.c.l.b16 %v6555
        %v6627 = vunpack.c.l.b16 %v6556
        %v6628 = vunpack.c.l.b16 %v6557
        %v6629 = vunpack.c.l.b16 %v6558
        %v6630 = vunpack.c.l.b16 %v6559
        %v6631 = vunpack.c.l.b16 %v6560
        %v6632 = vpack.c.b16 %v6601, %v6600
        %v6633 = vpack.c.b16 %v6603, %v6602
        %v6634 = vpack.c.b16 %v6605, %v6604
        %v6635 = vpack.c.b16 %v6607, %v6606
        %v6636 = vpack.c.b16 %v6609, %v6608
        %v6637 = vpack.c.b16 %v6611, %v6610
        %v6638 = vpack.c.b16 %v6613, %v6612
        %v6639 = vpack.c.b16 %v6615, %v6614
        %v6640 = vpack.c.b16 %v6617, %v6616
        %v6641 = vpack.c.b16 %v6619, %v6618
        %v6642 = vpack.c.b16 %v6621, %v6620
        %v6643 = vpack.c.b16 %v6623, %v6622
        %v6644 = vpack.c.b16 %v6625, %v6624
        %v6645 = vpack.c.b16 %v6627, %v6626
        %v6646 = vpack.c.b16 %v6629, %v6628
        %v6647 = vpack.c.b16 %v6631, %v6630
        %6664 = vmatprep.subr.bf16.mxu0 0
        %6665 = vmatpush1.bf16.msra.mxu0 %v6632
        %6666 = vmatprep.subr.bf16.mxu0 0
        %6667 = vmatpush1.bf16.msra.mxu0 %v6633
        %6668 = vmatprep.subr.bf16.mxu0 0
        %6669 = vmatpush1.bf16.msra.mxu0 %v6634
        %6670 = vmatprep.subr.bf16.mxu0 0
        %6671 = vmatpush1.bf16.msra.mxu0 %v6635
        %6672 = vmatprep.subr.bf16.mxu0 0
        %6673 = vmatpush1.bf16.msra.mxu0 %v6636
        %6674 = vmatprep.subr.bf16.mxu0 0
        %6675 = vmatpush1.bf16.msra.mxu0 %v6637
        %6676 = vmatprep.subr.bf16.mxu0 0
        %6677 = vmatpush1.bf16.msra.mxu0 %v6638
        %6678 = vmatprep.subr.bf16.mxu0 0
        %6679 = vmatpush1.bf16.msra.mxu0 %v6639
        %6680 = vmatprep.subr.bf16.mxu0 0
        %6681 = vmatpush1.bf16.msra.mxu0 %v6640
        %6682 = vmatprep.subr.bf16.mxu0 0
        %6683 = vmatpush1.bf16.msra.mxu0 %v6641
        %6684 = vmatprep.subr.bf16.mxu0 0
        %6685 = vmatpush1.bf16.msra.mxu0 %v6642
        %6686 = vmatprep.subr.bf16.mxu0 0
        %6687 = vmatpush1.bf16.msra.mxu0 %v6643
        %6688 = vmatprep.subr.bf16.mxu0 0
        %6689 = vmatpush1.bf16.msra.mxu0 %v6644
        %6690 = vmatprep.subr.bf16.mxu0 0
        %6691 = vmatpush1.bf16.msra.mxu0 %v6645
        %6692 = vmatprep.subr.bf16.mxu0 0
        %6693 = vmatpush1.bf16.msra.mxu0 %v6646
        %6694 = vmatprep.subr.bf16.mxu0 0
        %6695 = vmatpush1.bf16.msra.mxu0 %v6647
        %6696 = vmatprep.mubr.bf16.mxu0 %v6528
        %6697 = vmatmul.mubr.bf16.gmra.mrb[0].mxu0 %v6527
        %v6698 = vpop.f32.mrb[0].mxu0
        %v6699 = vadd.f32 %v6566, %v6698
        %v6700 = vpop.f32.mrb[0].mxu0
        %v6701 = vpop.f32.mrb[0].mxu0
        %v6702 = vpop.f32.mrb[0].mxu0
        %6703 = vdwg.mxu0
        %v6704 = vpack.c.bf16 %v6699, %v6699
        %6705 = vst [vmem:[%s375] sm:$0xf] %v6704
        %s6706 = sand.u32 %s187, 1
        %s6707 = scalar_lea.sflag [#allocation4], %s6706
        %s6708 = sand.u32 %s187, 1
        %s6709 = smul.addr %s6708, 4
        %s6710 = scalar_lea.vmem [#allocation14], %s6709
        // Predicated region
        $region77: #{tpu_custom_call.1} parent=47 // pred_check
          %p6711 = pneg %p197
        $region78: #{tpu_custom_call.1} parent=47 // pred_check_branch
          %6713 = sbr.rel (%p6711) target = $region80
        $region79: #{tpu_custom_call.1} parent=47 // pred_region
          %s6715 = ssub.s32 64, 64
          %6716 = vsyncadd %s6707, %s6715
          %s6717 = smul.addr %s27, 64
          %s6718 = scalar_lea.hbm %s7, %s6717
          %s6720 = sshll.u32 %s6710, 4
          %s6721 = int_to_ptr.vmem [resolvable:$true] %s6720
          %6723 = dma.vmem_to_hbm [thread:$0]  %s6721, 64, %s6718, %s6707
        $region80: #{tpu_custom_call.1} parent=47 // pred_fallthru
          _
      $region48: #{tpu_custom_call.1} parent=5 // pred_fallthru
        _
      %p6724 = scmp.le.s32.totalorder 2, %s22
      // Predicated region
      $region81: #{tpu_custom_call.1} parent=5 // pred_check
        %p6725 = pneg %p6724
      $region82: #{tpu_custom_call.1} parent=5 // pred_check_branch
        %6727 = sbr.rel (%p6725) target = $region84
      $region83: #{tpu_custom_call.1} parent=5 // pred_region
        %s6728 = ssub.s32 %s22, 2
        // Predicated region
        $region85: #{tpu_custom_call.1} parent=83 // pred_check
          %p6729 = pneg %p203
        $region86: #{tpu_custom_call.1} parent=83 // pred_check_branch
          %6731 = sbr.rel (%p6729) target = $region88
        $region87: #{tpu_custom_call.1} parent=83 // pred_region
          %s6732 = sand.u32 %s188, 1
          %s6733 = scalar_lea.sflag [#allocation4], %s6732
          %s6734 = sand.u32 %s188, 1
          %s6735 = smul.addr %s6734, 4
          %s6736 = scalar_lea.vmem [#allocation14], %s6735
          %6737 = dma.done %s6733, 64
        $region88: #{tpu_custom_call.1} parent=83 // pred_fallthru
          _
      $region84: #{tpu_custom_call.1} parent=5 // pred_fallthru
        _
    $region6: #{tpu_custom_call.1} parent=1 // loop_footer
      %s26 = sadd.s32 1, %s22
    $region7: #{tpu_custom_call.1} parent=1 // loop_footer_branch
      %21 = sbr.rel target = $region3
    $region8: #{tpu_custom_call.1} parent=1 // loop_exit
      _
    %6738 = vsyncpa [#allocation3], 1
    %s6739 = scalar_lea.sflag [#allocation3], 1
    %6740 = vsyncpa %s6739, 1
    %6741 = vsyncpa [#allocation6], 1
    %6742 = vsyncpa [#allocation9], 1
    %6743 = vsyncpa [#allocation12], 1
    %6744 = vsyncpa [#allocation4], 1
    %s6745 = scalar_lea.sflag [#allocation4], 1
    %6746 = vsyncpa %s6745, 1

</llo_original>
